<compile_context>
chip_gen: v5e
topology: v5e:2x2
jax: 0.10.0
libtpu: 0.0.40
codegen_flags: <defaults>
</compile_context>

<pallas_src>
import numpy as np
import jax
import jax.numpy as jnp
from jax.experimental import pallas as pl
from jax.experimental.pallas import tpu as pltpu

# ---------------------------------------------------------------------------
# Model dims (input_dim = C*H*W, hidden=500 in the module, padded to 512 here)
# ---------------------------------------------------------------------------
BATCH = 256                    # enough rows to feed the MXU / both v7x TCs
C, H, W = 1, 16, 16
INPUT_DIM = C * H * W          # 256
HIDDEN = 500                   # module's true hidden size
HIDDEN_PAD = 512               # lane-aligned padded hidden size
LATENT = 32
HEAD_PAD = 128                 # fused [mu | logsigma | 0-pad] head width (lane-dense)
EPS_PAD = 128                  # eps lane width (only the first LATENT columns are used)
TRAINING = True                # nn.Module default; sampler uses uniform noise (rand_like)
RECON_DTYPE = jnp.float32      # set to jnp.bfloat16 to halve recon HBM writeback


def _round_up(n, m):
    return ((n + m - 1) // m) * m


def _pick_bm(batch):
    """Batch-tile rows per grid step.

    Single-TC chips (v5e / v6e): one big tile -> grid of 1 (kills per-step overhead,
    fills the v6e 256x256 MXU rows). Multi-TC chips (v7x, v4/v5p megacore): 128-row
    tiles so every TensorCore gets a "parallel" batch tile.
    """
    kind = ""
    try:
        kind = jax.devices()[0].device_kind.lower()
    except Exception:
        pass
    single_tc = any(t in kind for t in ("v5e", "v5 lite", "v5lite",
                                        "v6e", "v6 lite", "v6lite"))
    bm = 256 if single_tc else 128
    return min(bm, max(8, _round_up(batch, 8)))


def _vae_kernel(x_ref, eps_ref,
                w1_ref, b1_ref,
                w2_ref, b2_ref,          # fused [fc21 | fc22 | pad] head, 128 lanes
                w3_ref, b3_ref,
                w4_ref, b4_ref,
                recon_ref, mulog_ref):
    # ---- load + in-kernel bf16 cast (cheap VPU pass, hidden under the first matmul)
    x = x_ref[...].astype(jnp.bfloat16)                              # (BM, D_in)

    # ---- encode ----
    h1 = jnp.dot(x, w1_ref[...], preferred_element_type=jnp.float32) + b1_ref[...]
    h1 = jnp.maximum(h1, 0.0).astype(jnp.bfloat16)                   # ReLU, (BM, 512)

    mulog = jnp.dot(h1, w2_ref[...], preferred_element_type=jnp.float32) + b2_ref[...]
    mu = mulog[:, :LATENT]                                           # (BM, 32)
    logsigma = mulog[:, LATENT:2 * LATENT]                           # (BM, 32)

    # ---- gaussian_sampler ----
    if TRAINING:
        std = jnp.exp(0.5 * logsigma)                                # as in the module
        eps = eps_ref[...][:, :LATENT]                               # eps ~ U[0,1) (rand_like)
        z = mu + eps * std
    else:
        z = mu
    z = z.astype(jnp.bfloat16)

    # ---- decode ----
    h3 = jnp.dot(z, w3_ref[...], preferred_element_type=jnp.float32) + b3_ref[...]
    h3 = jnp.maximum(h3, 0.0).astype(jnp.bfloat16)                   # ReLU, (BM, 512)
    logits = jnp.dot(h3, w4_ref[...], preferred_element_type=jnp.float32) + b4_ref[...]

    recon_ref[...] = jax.nn.sigmoid(logits).astype(recon_ref.dtype)  # (BM, D_in)
    mulog_ref[...] = mulog                                           # packed [mu|logsig|0]


def _call_kernel(x2d, eps, packed_params, bm, buffered):
    b_pad = x2d.shape[0]
    grid = (b_pad // bm,)

    def tile_spec(n_lanes):
        return pl.BlockSpec((bm, n_lanes), lambda i: (i, 0))

    def const_spec(shape):
        # Constant block index: weights stay VMEM-resident and are DMA'd once.
        if buffered:
            return pl.BlockSpec(shape, lambda i: (0, 0), pipeline_mode=pl.Buffered(1))
        return pl.BlockSpec(shape, lambda i: (0, 0))

    w_specs = [const_spec(p.shape) for p in packed_params]

    # Advisory cost hint so XLA can overlap this tiny, latency-bound custom call.
    flops = 2 * b_pad * (INPUT_DIM * HIDDEN_PAD + HIDDEN_PAD * HEAD_PAD
                         + LATENT * HIDDEN_PAD + HIDDEN_PAD * INPUT_DIM)
    transcendentals = b_pad * (LATENT + INPUT_DIM)                   # exp(std) + sigmoid
    weight_bytes = sum(int(np.prod(p.shape)) * np.dtype(p.dtype).itemsize
                       for p in packed_params)
    bytes_accessed = (int(x2d.size) * 4 + int(eps.size) * 4 + weight_bytes
                      + b_pad * INPUT_DIM * np.dtype(RECON_DTYPE).itemsize
                      + b_pad * HEAD_PAD * 4)

    return pl.pallas_call(
        _vae_kernel,
        out_shape=(
            jax.ShapeDtypeStruct((b_pad, INPUT_DIM), RECON_DTYPE),
            jax.ShapeDtypeStruct((b_pad, HEAD_PAD), jnp.float32),
        ),
        grid=grid,
        in_specs=[tile_spec(INPUT_DIM), tile_spec(EPS_PAD), *w_specs],
        out_specs=(tile_spec(INPUT_DIM), tile_spec(HEAD_PAD)),
        compiler_params=pltpu.CompilerParams(
            dimension_semantics=("parallel",)),                      # shard batch tiles across TCs
        cost_estimate=pl.CostEstimate(flops=flops,
                                      transcendentals=transcendentals,
                                      bytes_accessed=bytes_accessed),
    )(x2d, eps, *packed_params)


def vae_forward(x, packed_params, eps, *, bm=None):
    """x: (B, C, H, W) f32, eps: (B, >=LATENT) f32 in [0,1)
       -> (recon (B, input_dim), mu (B, latent), logsigma (B, latent))."""
    x2d = x.reshape(-1, INPUT_DIM)                                   # x.view(-1, input_dim)
    b = x2d.shape[0]
    if bm is None:
        bm = _pick_bm(b)
    b_pad = _round_up(b, bm)

    if eps.shape[1] < EPS_PAD:                                       # lane-dense eps tile
        eps = jnp.pad(eps, ((0, 0), (0, EPS_PAD - eps.shape[1])))
    if b_pad != b:
        x2d = jnp.pad(x2d, ((0, b_pad - b), (0, 0)))
        eps = jnp.pad(eps, ((0, b_pad - b), (0, 0)))

    try:
        recon, mulog = _call_kernel(x2d, eps, packed_params, bm, buffered=True)
    except Exception:
        # pl.Buffered(1) / pipeline_mode not supported on this jax version -> plain specs.
        recon, mulog = _call_kernel(x2d, eps, packed_params, bm, buffered=False)

    recon = recon[:b]
    mu = mulog[:b, :LATENT]
    logsigma = mulog[:b, LATENT:2 * LATENT]
    return recon, mu, logsigma


def init_params(key):
    """PyTorch-like uniform(+-1/sqrt(fan_in)) init; Linear weights stored as (in, out)."""
    def linear(key, fan_in, fan_out):
        k1, k2 = jax.random.split(key)
        bound = 1.0 / np.sqrt(fan_in)
        w = jax.random.uniform(k1, (fan_in, fan_out), jnp.float32, -bound, bound)
        bias = jax.random.uniform(k2, (1, fan_out), jnp.float32, -bound, bound)
        return w, bias

    keys = jax.random.split(key, 5)
    w1, b1 = linear(keys[0], INPUT_DIM, HIDDEN)
    w21, b21 = linear(keys[1], HIDDEN, LATENT)
    w22, b22 = linear(keys[2], HIDDEN, LATENT)
    w3, b3 = linear(keys[3], LATENT, HIDDEN)
    w4, b4 = linear(keys[4], HIDDEN, INPUT_DIM)
    return (w1, b1, w21, b21, w22, b22, w3, b3, w4, b4)


def pack_params(params):
    """Pad HIDDEN 500->512, fuse fc21/fc22 into one 128-lane head, cast weights to bf16."""
    (w1, b1, w21, b21, w22, b22, w3, b3, w4, b4) = params
    ph = HIDDEN_PAD - HIDDEN                       # 12 (exact: zero pad)
    pad_head = HEAD_PAD - 2 * LATENT               # 64 (exact: zero pad)
    w1p = jnp.pad(w1, ((0, 0), (0, ph)))                                       # (256, 512)
    b1p = jnp.pad(b1, ((0, 0), (0, ph)))                                       # (1, 512)
    w2p = jnp.pad(jnp.concatenate([w21, w22], axis=1), ((0, ph), (0, pad_head)))  # (512, 128)
    b2p = jnp.pad(jnp.concatenate([b21, b22], axis=1), ((0, 0), (0, pad_head)))   # (1, 128)
    w3p = jnp.pad(w3, ((0, 0), (0, ph)))                                       # (32, 512)
    b3p = jnp.pad(b3, ((0, 0), (0, ph)))                                       # (1, 512)
    w4p = jnp.pad(w4, ((0, ph), (0, 0)))                                       # (512, 256)
    return (w1p.astype(jnp.bfloat16), b1p,
            w2p.astype(jnp.bfloat16), b2p,
            w3p.astype(jnp.bfloat16), b3p,
            w4p.astype(jnp.bfloat16), b4)


def _vae_ref(x, packed_params, eps):
    """Pure-JAX reference with the same bf16-in / f32-accumulate numerics."""
    (w1, b1, w2, b2, w3, b3, w4, b4) = packed_params
    x2d = x.reshape(-1, INPUT_DIM).astype(jnp.bfloat16)
    h1 = jnp.maximum(jnp.dot(x2d, w1, preferred_element_type=jnp.float32) + b1, 0.0)
    mulog = jnp.dot(h1.astype(jnp.bfloat16), w2, preferred_element_type=jnp.float32) + b2
    mu, logsigma = mulog[:, :LATENT], mulog[:, LATENT:2 * LATENT]
    z = (mu + eps[:, :LATENT] * jnp.exp(0.5 * logsigma)).astype(jnp.bfloat16)
    h3 = jnp.maximum(jnp.dot(z, w3, preferred_element_type=jnp.float32) + b3, 0.0)
    logits = jnp.dot(h3.astype(jnp.bfloat16), w4, preferred_element_type=jnp.float32) + b4
    return jax.nn.sigmoid(logits).astype(RECON_DTYPE), mu, logsigma


if __name__ == "__main__":
    key = jax.random.PRNGKey(0)
    pkey, xkey, nkey = jax.random.split(key, 3)

    params = init_params(pkey)
    packed = pack_params(params)
    x = jax.random.uniform(xkey, (BATCH, C, H, W), jnp.float32)       # image-like input in [0,1)
    eps = jax.random.uniform(nkey, (BATCH, EPS_PAD), jnp.float32)     # torch.rand_like semantics
                                                                      # (only [:, :LATENT] used)

    recon, mu, logsigma = vae_forward(x, packed, eps)
    jax.block_until_ready((recon, mu, logsigma))

    # full reference check (noise is an input, so recon is checkable too)
    recon_r, mu_r, logsig_r = _vae_ref(x, packed, eps)
    np.testing.assert_allclose(np.asarray(mu), np.asarray(mu_r), rtol=2e-2, atol=2e-2)
    np.testing.assert_allclose(np.asarray(logsigma), np.asarray(logsig_r), rtol=2e-2, atol=2e-2)
    np.testing.assert_allclose(np.asarray(recon, dtype=np.float32),
                               np.asarray(recon_r, dtype=np.float32), rtol=2e-2, atol=2e-2)
    assert recon.shape == (BATCH, INPUT_DIM)
    assert mu.shape == (BATCH, LATENT) and logsigma.shape == (BATCH, LATENT)
    assert float(np.asarray(recon, dtype=np.float32).min()) >= 0.0
    assert float(np.asarray(recon, dtype=np.float32).max()) <= 1.0

    print("KERNEL_OK")
</pallas_src>

<mosaic_0001>
module attributes {stable_mosaic.version = 11 : i64} {
  func.func @_vae_kernel(%arg0: i32, %arg1: memref<128x256xf32, #tpu.memory_space<vmem>>, %arg2: memref<128x128xf32, #tpu.memory_space<vmem>>, %arg3: memref<256x512xbf16, #tpu.memory_space<vmem>>, %arg4: memref<1x512xf32, #tpu.memory_space<vmem>>, %arg5: memref<512x128xbf16, #tpu.memory_space<vmem>>, %arg6: memref<1x128xf32, #tpu.memory_space<vmem>>, %arg7: memref<32x512xbf16, #tpu.memory_space<vmem>>, %arg8: memref<1x512xf32, #tpu.memory_space<vmem>>, %arg9: memref<512x256xbf16, #tpu.memory_space<vmem>>, %arg10: memref<1x256xf32, #tpu.memory_space<vmem>>, %arg11: memref<128x256xf32, #tpu.memory_space<vmem>>, %arg12: memref<128x128xf32, #tpu.memory_space<vmem>>) attributes {dimension_semantics = [#tpu.dimension_semantics<parallel>], iteration_bounds = array<i64: 2>, scalar_prefetch = 0 : i64, scratch_operands = 0 : i64, tpu.core_type = #tpu.core_type<tc>, window_params = [{transform_indices = @transform_0, window_bounds = array<i64: 128, 256>}, {transform_indices = @transform_1, window_bounds = array<i64: 128, 128>}, {pipeline_mode = #tpu.pipeline_mode<synchronous>, transform_indices = @transform_2, window_bounds = array<i64: 256, 512>}, {pipeline_mode = #tpu.pipeline_mode<synchronous>, transform_indices = @transform_3, window_bounds = array<i64: 1, 512>}, {pipeline_mode = #tpu.pipeline_mode<synchronous>, transform_indices = @transform_4, window_bounds = array<i64: 512, 128>}, {pipeline_mode = #tpu.pipeline_mode<synchronous>, transform_indices = @transform_5, window_bounds = array<i64: 1, 128>}, {pipeline_mode = #tpu.pipeline_mode<synchronous>, transform_indices = @transform_6, window_bounds = array<i64: 32, 512>}, {pipeline_mode = #tpu.pipeline_mode<synchronous>, transform_indices = @transform_7, window_bounds = array<i64: 1, 512>}, {pipeline_mode = #tpu.pipeline_mode<synchronous>, transform_indices = @transform_8, window_bounds = array<i64: 512, 256>}, {pipeline_mode = #tpu.pipeline_mode<synchronous>, transform_indices = @transform_9, window_bounds = array<i64: 1, 256>}, {transform_indices = @transform_10, window_bounds = array<i64: 128, 256>}, {transform_indices = @transform_11, window_bounds = array<i64: 128, 128>}]} {
    %c0 = arith.constant 0 : index
    %c0_0 = arith.constant 0 : index
    %0 = vector.load %arg1[%c0, %c0_0] : memref<128x256xf32, #tpu.memory_space<vmem>>, vector<128x256xf32>
    %1 = arith.truncf %0 : vector<128x256xf32> to vector<128x256xbf16>
    %c0_1 = arith.constant 0 : index
    %c0_2 = arith.constant 0 : index
    %2 = vector.load %arg3[%c0_1, %c0_2] : memref<256x512xbf16, #tpu.memory_space<vmem>>, vector<256x512xbf16>
    %cst = arith.constant dense<0.000000e+00> : vector<128x512xf32>
    %3 = tpu.matmul %1, %2, %cst {dimension_numbers = #tpu.dot_dimension_numbers<[1], [0], [0], [1], [0, 0, 1, 1], [], []>} : vector<128x256xbf16>, vector<256x512xbf16>, vector<128x512xf32> -> vector<128x512xf32>
    %c0_3 = arith.constant 0 : index
    %c0_4 = arith.constant 0 : index
    %4 = vector.load %arg4[%c0_3, %c0_4] : memref<1x512xf32, #tpu.memory_space<vmem>>, vector<1x512xf32>
    %5 = vector.broadcast %4 : vector<1x512xf32> to vector<128x512xf32>
    %6 = arith.addf %3, %5 : vector<128x512xf32>
    %cst_5 = arith.constant 0.000000e+00 : f32
    %7 = vector.broadcast %cst_5 : f32 to vector<128x512xf32>
    %8 = arith.maximumf %6, %7 : vector<128x512xf32>
    %9 = arith.truncf %8 : vector<128x512xf32> to vector<128x512xbf16>
    %c0_6 = arith.constant 0 : index
    %c0_7 = arith.constant 0 : index
    %10 = vector.load %arg5[%c0_6, %c0_7] : memref<512x128xbf16, #tpu.memory_space<vmem>>, vector<512x128xbf16>
    %cst_8 = arith.constant dense<0.000000e+00> : vector<128x128xf32>
    %11 = tpu.matmul %9, %10, %cst_8 {dimension_numbers = #tpu.dot_dimension_numbers<[1], [0], [0], [1], [0, 0, 1, 1], [], []>} : vector<128x512xbf16>, vector<512x128xbf16>, vector<128x128xf32> -> vector<128x128xf32>
    %c0_9 = arith.constant 0 : index
    %c0_10 = arith.constant 0 : index
    %12 = vector.load %arg6[%c0_9, %c0_10] : memref<1x128xf32, #tpu.memory_space<vmem>>, vector<1x128xf32>
    %13 = vector.broadcast %12 : vector<1x128xf32> to vector<128x128xf32>
    %14 = arith.addf %11, %13 : vector<128x128xf32>
    %15 = vector.extract_strided_slice %14 {offsets = [0, 0], sizes = [128, 32], strides = [1, 1]} : vector<128x128xf32> to vector<128x32xf32>
    %16 = vector.extract_strided_slice %14 {offsets = [0, 32], sizes = [128, 32], strides = [1, 1]} : vector<128x128xf32> to vector<128x32xf32>
    %cst_11 = arith.constant 5.000000e-01 : f32
    %17 = vector.broadcast %cst_11 : f32 to vector<128x32xf32>
    %18 = arith.mulf %17, %16 : vector<128x32xf32>
    %19 = math.exp %18 : vector<128x32xf32>
    %c0_12 = arith.constant 0 : index
    %c0_13 = arith.constant 0 : index
    %20 = vector.load %arg2[%c0_12, %c0_13] : memref<128x128xf32, #tpu.memory_space<vmem>>, vector<128x128xf32>
    %21 = vector.extract_strided_slice %20 {offsets = [0, 0], sizes = [128, 32], strides = [1, 1]} : vector<128x128xf32> to vector<128x32xf32>
    %22 = arith.mulf %21, %19 : vector<128x32xf32>
    %23 = arith.addf %15, %22 : vector<128x32xf32>
    %24 = arith.truncf %23 : vector<128x32xf32> to vector<128x32xbf16>
    %c0_14 = arith.constant 0 : index
    %c0_15 = arith.constant 0 : index
    %25 = vector.load %arg7[%c0_14, %c0_15] : memref<32x512xbf16, #tpu.memory_space<vmem>>, vector<32x512xbf16>
    %cst_16 = arith.constant dense<0.000000e+00> : vector<128x512xf32>
    %26 = tpu.matmul %24, %25, %cst_16 {dimension_numbers = #tpu.dot_dimension_numbers<[1], [0], [0], [1], [0, 0, 1, 1], [], []>} : vector<128x32xbf16>, vector<32x512xbf16>, vector<128x512xf32> -> vector<128x512xf32>
    %c0_17 = arith.constant 0 : index
    %c0_18 = arith.constant 0 : index
    %27 = vector.load %arg8[%c0_17, %c0_18] : memref<1x512xf32, #tpu.memory_space<vmem>>, vector<1x512xf32>
    %28 = vector.broadcast %27 : vector<1x512xf32> to vector<128x512xf32>
    %29 = arith.addf %26, %28 : vector<128x512xf32>
    %cst_19 = arith.constant 0.000000e+00 : f32
    %30 = vector.broadcast %cst_19 : f32 to vector<128x512xf32>
    %31 = arith.maximumf %29, %30 : vector<128x512xf32>
    %32 = arith.truncf %31 : vector<128x512xf32> to vector<128x512xbf16>
    %c0_20 = arith.constant 0 : index
    %c0_21 = arith.constant 0 : index
    %33 = vector.load %arg9[%c0_20, %c0_21] : memref<512x256xbf16, #tpu.memory_space<vmem>>, vector<512x256xbf16>
    %cst_22 = arith.constant dense<0.000000e+00> : vector<128x256xf32>
    %34 = tpu.matmul %32, %33, %cst_22 {dimension_numbers = #tpu.dot_dimension_numbers<[1], [0], [0], [1], [0, 0, 1, 1], [], []>} : vector<128x512xbf16>, vector<512x256xbf16>, vector<128x256xf32> -> vector<128x256xf32>
    %c0_23 = arith.constant 0 : index
    %c0_24 = arith.constant 0 : index
    %35 = vector.load %arg10[%c0_23, %c0_24] : memref<1x256xf32, #tpu.memory_space<vmem>>, vector<1x256xf32>
    %36 = vector.broadcast %35 : vector<1x256xf32> to vector<128x256xf32>
    %37 = arith.addf %34, %36 : vector<128x256xf32>
    %38 = arith.negf %37 : vector<128x256xf32>
    %39 = math.exp %38 : vector<128x256xf32>
    %cst_25 = arith.constant 1.000000e+00 : f32
    %40 = vector.broadcast %cst_25 : f32 to vector<128x256xf32>
    %41 = arith.addf %40, %39 : vector<128x256xf32>
    %42 = arith.divf %40, %41 : vector<128x256xf32>
    %c0_26 = arith.constant 0 : index
    %c0_27 = arith.constant 0 : index
    %43 = vector.load %arg11[%c0_26, %c0_27] : memref<128x256xf32, #tpu.memory_space<vmem>>, vector<128x256xf32>
    tpu.vector_store %arg11[%c0_26, %c0_27], %42 {strides = array<i32>} : memref<128x256xf32, #tpu.memory_space<vmem>>, vector<128x256xf32>,
    %c0_28 = arith.constant 0 : index
    %c0_29 = arith.constant 0 : index
    %44 = vector.load %arg12[%c0_28, %c0_29] : memref<128x128xf32, #tpu.memory_space<vmem>>, vector<128x128xf32>
    tpu.vector_store %arg12[%c0_28, %c0_29], %14 {strides = array<i32>} : memref<128x128xf32, #tpu.memory_space<vmem>>, vector<128x128xf32>,
    return
  }
  func.func @transform_0(%arg0: i32) -> (i32, i32) {
    %c0_i32 = arith.constant 0 : i32
    %c0_i32_0 = arith.constant 0 : i32
    return %arg0, %c0_i32 : i32, i32
  }
  func.func @transform_1(%arg0: i32) -> (i32, i32) {
    %c0_i32 = arith.constant 0 : i32
    %c0_i32_0 = arith.constant 0 : i32
    return %arg0, %c0_i32 : i32, i32
  }
  func.func @transform_2(%arg0: i32) -> (i32, i32) {
    %c0_i32 = arith.constant 0 : i32
    %c0_i32_0 = arith.constant 0 : i32
    %c0_i32_1 = arith.constant 0 : i32
    return %c0_i32, %c0_i32_0 : i32, i32
  }
  func.func @transform_3(%arg0: i32) -> (i32, i32) {
    %c0_i32 = arith.constant 0 : i32
    %c0_i32_0 = arith.constant 0 : i32
    %c0_i32_1 = arith.constant 0 : i32
    return %c0_i32, %c0_i32_0 : i32, i32
  }
  func.func @transform_4(%arg0: i32) -> (i32, i32) {
    %c0_i32 = arith.constant 0 : i32
    %c0_i32_0 = arith.constant 0 : i32
    %c0_i32_1 = arith.constant 0 : i32
    return %c0_i32, %c0_i32_0 : i32, i32
  }
  func.func @transform_5(%arg0: i32) -> (i32, i32) {
    %c0_i32 = arith.constant 0 : i32
    %c0_i32_0 = arith.constant 0 : i32
    %c0_i32_1 = arith.constant 0 : i32
    return %c0_i32, %c0_i32_0 : i32, i32
  }
  func.func @transform_6(%arg0: i32) -> (i32, i32) {
    %c0_i32 = arith.constant 0 : i32
    %c0_i32_0 = arith.constant 0 : i32
    %c0_i32_1 = arith.constant 0 : i32
    return %c0_i32, %c0_i32_0 : i32, i32
  }
  func.func @transform_7(%arg0: i32) -> (i32, i32) {
    %c0_i32 = arith.constant 0 : i32
    %c0_i32_0 = arith.constant 0 : i32
    %c0_i32_1 = arith.constant 0 : i32
    return %c0_i32, %c0_i32_0 : i32, i32
  }
  func.func @transform_8(%arg0: i32) -> (i32, i32) {
    %c0_i32 = arith.constant 0 : i32
    %c0_i32_0 = arith.constant 0 : i32
    %c0_i32_1 = arith.constant 0 : i32
    return %c0_i32, %c0_i32_0 : i32, i32
  }
  func.func @transform_9(%arg0: i32) -> (i32, i32) {
    %c0_i32 = arith.constant 0 : i32
    %c0_i32_0 = arith.constant 0 : i32
    %c0_i32_1 = arith.constant 0 : i32
    return %c0_i32, %c0_i32_0 : i32, i32
  }
  func.func @transform_10(%arg0: i32) -> (i32, i32) {
    %c0_i32 = arith.constant 0 : i32
    %c0_i32_0 = arith.constant 0 : i32
    return %arg0, %c0_i32 : i32, i32
  }
  func.func @transform_11(%arg0: i32) -> (i32, i32) {
    %c0_i32 = arith.constant 0 : i32
    %c0_i32_0 = arith.constant 0 : i32
    return %arg0, %c0_i32 : i32, i32
  }
}

module attributes {stable_mosaic.version = 11 : i64} {
  func.func @_vae_kernel(%arg0: i32, %arg1: memref<128x256xf32, #tpu.memory_space<vmem>>, %arg2: memref<128x128xf32, #tpu.memory_space<vmem>>, %arg3: memref<256x512xbf16, #tpu.memory_space<vmem>>, %arg4: memref<1x512xf32, #tpu.memory_space<vmem>>, %arg5: memref<512x128xbf16, #tpu.memory_space<vmem>>, %arg6: memref<1x128xf32, #tpu.memory_space<vmem>>, %arg7: memref<32x512xbf16, #tpu.memory_space<vmem>>, %arg8: memref<1x512xf32, #tpu.memory_space<vmem>>, %arg9: memref<512x256xbf16, #tpu.memory_space<vmem>>, %arg10: memref<1x256xf32, #tpu.memory_space<vmem>>, %arg11: memref<128x256xf32, #tpu.memory_space<vmem>>, %arg12: memref<128x128xf32, #tpu.memory_space<vmem>>) attributes {dimension_semantics = [#tpu.dimension_semantics<parallel>], iteration_bounds = array<i64: 2>, scalar_prefetch = 0 : i64, scratch_operands = 0 : i64, tpu.core_type = #tpu.core_type<tc>, window_params = [{transform_indices = @transform_0, window_bounds = array<i64: 128, 256>}, {transform_indices = @transform_1, window_bounds = array<i64: 128, 128>}, {pipeline_mode = #tpu.pipeline_mode<synchronous>, transform_indices = @transform_2, window_bounds = array<i64: 256, 512>}, {pipeline_mode = #tpu.pipeline_mode<synchronous>, transform_indices = @transform_3, window_bounds = array<i64: 1, 512>}, {pipeline_mode = #tpu.pipeline_mode<synchronous>, transform_indices = @transform_4, window_bounds = array<i64: 512, 128>}, {pipeline_mode = #tpu.pipeline_mode<synchronous>, transform_indices = @transform_5, window_bounds = array<i64: 1, 128>}, {pipeline_mode = #tpu.pipeline_mode<synchronous>, transform_indices = @transform_6, window_bounds = array<i64: 32, 512>}, {pipeline_mode = #tpu.pipeline_mode<synchronous>, transform_indices = @transform_7, window_bounds = array<i64: 1, 512>}, {pipeline_mode = #tpu.pipeline_mode<synchronous>, transform_indices = @transform_8, window_bounds = array<i64: 512, 256>}, {pipeline_mode = #tpu.pipeline_mode<synchronous>, transform_indices = @transform_9, window_bounds = array<i64: 1, 256>}, {transform_indices = @transform_10, window_bounds = array<i64: 128, 256>}, {transform_indices = @transform_11, window_bounds = array<i64: 128, 128>}]} {
    %c0 = arith.constant 0 : index
    %c0_0 = arith.constant 0 : index
    %0 = vector.load %arg1[%c0, %c0_0] : memref<128x256xf32, #tpu.memory_space<vmem>>, vector<128x256xf32>
    %1 = arith.truncf %0 : vector<128x256xf32> to vector<128x256xbf16>
    %c0_1 = arith.constant 0 : index
    %c0_2 = arith.constant 0 : index
    %2 = vector.load %arg3[%c0_1, %c0_2] : memref<256x512xbf16, #tpu.memory_space<vmem>>, vector<256x512xbf16>
    %cst = arith.constant dense<0.000000e+00> : vector<128x512xf32>
    %3 = tpu.matmul %1, %2, %cst {dimension_numbers = #tpu.dot_dimension_numbers<[1], [0], [0], [1], [0, 0, 1, 1], [], []>} : vector<128x256xbf16>, vector<256x512xbf16>, vector<128x512xf32> -> vector<128x512xf32>
    %c0_3 = arith.constant 0 : index
    %c0_4 = arith.constant 0 : index
    %4 = vector.load %arg4[%c0_3, %c0_4] : memref<1x512xf32, #tpu.memory_space<vmem>>, vector<1x512xf32>
    %5 = vector.broadcast %4 : vector<1x512xf32> to vector<128x512xf32>
    %6 = arith.addf %3, %5 : vector<128x512xf32>
    %cst_5 = arith.constant 0.000000e+00 : f32
    %7 = vector.broadcast %cst_5 : f32 to vector<128x512xf32>
    %8 = arith.maximumf %6, %7 : vector<128x512xf32>
    %9 = arith.truncf %8 : vector<128x512xf32> to vector<128x512xbf16>
    %c0_6 = arith.constant 0 : index
    %c0_7 = arith.constant 0 : index
    %10 = vector.load %arg5[%c0_6, %c0_7] : memref<512x128xbf16, #tpu.memory_space<vmem>>, vector<512x128xbf16>
    %cst_8 = arith.constant dense<0.000000e+00> : vector<128x128xf32>
    %11 = tpu.matmul %9, %10, %cst_8 {dimension_numbers = #tpu.dot_dimension_numbers<[1], [0], [0], [1], [0, 0, 1, 1], [], []>} : vector<128x512xbf16>, vector<512x128xbf16>, vector<128x128xf32> -> vector<128x128xf32>
    %c0_9 = arith.constant 0 : index
    %c0_10 = arith.constant 0 : index
    %12 = vector.load %arg6[%c0_9, %c0_10] : memref<1x128xf32, #tpu.memory_space<vmem>>, vector<1x128xf32>
    %13 = vector.broadcast %12 : vector<1x128xf32> to vector<128x128xf32>
    %14 = arith.addf %11, %13 : vector<128x128xf32>
    %15 = vector.extract_strided_slice %14 {offsets = [0, 0], sizes = [128, 32], strides = [1, 1]} : vector<128x128xf32> to vector<128x32xf32>
    %16 = vector.extract_strided_slice %14 {offsets = [0, 32], sizes = [128, 32], strides = [1, 1]} : vector<128x128xf32> to vector<128x32xf32>
    %cst_11 = arith.constant 5.000000e-01 : f32
    %17 = vector.broadcast %cst_11 : f32 to vector<128x32xf32>
    %18 = arith.mulf %17, %16 : vector<128x32xf32>
    %19 = math.exp %18 : vector<128x32xf32>
    %c0_12 = arith.constant 0 : index
    %c0_13 = arith.constant 0 : index
    %20 = vector.load %arg2[%c0_12, %c0_13] : memref<128x128xf32, #tpu.memory_space<vmem>>, vector<128x128xf32>
    %21 = vector.extract_strided_slice %20 {offsets = [0, 0], sizes = [128, 32], strides = [1, 1]} : vector<128x128xf32> to vector<128x32xf32>
    %22 = arith.mulf %21, %19 : vector<128x32xf32>
    %23 = arith.addf %15, %22 : vector<128x32xf32>
    %24 = arith.truncf %23 : vector<128x32xf32> to vector<128x32xbf16>
    %c0_14 = arith.constant 0 : index
    %c0_15 = arith.constant 0 : index
    %25 = vector.load %arg7[%c0_14, %c0_15] : memref<32x512xbf16, #tpu.memory_space<vmem>>, vector<32x512xbf16>
    %cst_16 = arith.constant dense<0.000000e+00> : vector<128x512xf32>
    %26 = tpu.matmul %24, %25, %cst_16 {dimension_numbers = #tpu.dot_dimension_numbers<[1], [0], [0], [1], [0, 0, 1, 1], [], []>} : vector<128x32xbf16>, vector<32x512xbf16>, vector<128x512xf32> -> vector<128x512xf32>
    %c0_17 = arith.constant 0 : index
    %c0_18 = arith.constant 0 : index
    %27 = vector.load %arg8[%c0_17, %c0_18] : memref<1x512xf32, #tpu.memory_space<vmem>>, vector<1x512xf32>
    %28 = vector.broadcast %27 : vector<1x512xf32> to vector<128x512xf32>
    %29 = arith.addf %26, %28 : vector<128x512xf32>
    %cst_19 = arith.constant 0.000000e+00 : f32
    %30 = vector.broadcast %cst_19 : f32 to vector<128x512xf32>
    %31 = arith.maximumf %29, %30 : vector<128x512xf32>
    %32 = arith.truncf %31 : vector<128x512xf32> to vector<128x512xbf16>
    %c0_20 = arith.constant 0 : index
    %c0_21 = arith.constant 0 : index
    %33 = vector.load %arg9[%c0_20, %c0_21] : memref<512x256xbf16, #tpu.memory_space<vmem>>, vector<512x256xbf16>
    %cst_22 = arith.constant dense<0.000000e+00> : vector<128x256xf32>
    %34 = tpu.matmul %32, %33, %cst_22 {dimension_numbers = #tpu.dot_dimension_numbers<[1], [0], [0], [1], [0, 0, 1, 1], [], []>} : vector<128x512xbf16>, vector<512x256xbf16>, vector<128x256xf32> -> vector<128x256xf32>
    %c0_23 = arith.constant 0 : index
    %c0_24 = arith.constant 0 : index
    %35 = vector.load %arg10[%c0_23, %c0_24] : memref<1x256xf32, #tpu.memory_space<vmem>>, vector<1x256xf32>
    %36 = vector.broadcast %35 : vector<1x256xf32> to vector<128x256xf32>
    %37 = arith.addf %34, %36 : vector<128x256xf32>
    %38 = arith.negf %37 : vector<128x256xf32>
    %39 = math.exp %38 : vector<128x256xf32>
    %cst_25 = arith.constant 1.000000e+00 : f32
    %40 = vector.broadcast %cst_25 : f32 to vector<128x256xf32>
    %41 = arith.addf %40, %39 : vector<128x256xf32>
    %42 = arith.divf %40, %41 : vector<128x256xf32>
    %c0_26 = arith.constant 0 : index
    %c0_27 = arith.constant 0 : index
    %43 = vector.load %arg11[%c0_26, %c0_27] : memref<128x256xf32, #tpu.memory_space<vmem>>, vector<128x256xf32>
    tpu.vector_store %arg11[%c0_26, %c0_27], %42 {strides = array<i32>} : memref<128x256xf32, #tpu.memory_space<vmem>>, vector<128x256xf32>,
    %c0_28 = arith.constant 0 : index
    %c0_29 = arith.constant 0 : index
    %44 = vector.load %arg12[%c0_28, %c0_29] : memref<128x128xf32, #tpu.memory_space<vmem>>, vector<128x128xf32>
    tpu.vector_store %arg12[%c0_28, %c0_29], %14 {strides = array<i32>} : memref<128x128xf32, #tpu.memory_space<vmem>>, vector<128x128xf32>,
    return
  }
  func.func @transform_0(%arg0: i32) -> (i32, i32) {
    %c0_i32 = arith.constant 0 : i32
    %c0_i32_0 = arith.constant 0 : i32
    return %arg0, %c0_i32 : i32, i32
  }
  func.func @transform_1(%arg0: i32) -> (i32, i32) {
    %c0_i32 = arith.constant 0 : i32
    %c0_i32_0 = arith.constant 0 : i32
    return %arg0, %c0_i32 : i32, i32
  }
  func.func @transform_2(%arg0: i32) -> (i32, i32) {
    %c0_i32 = arith.constant 0 : i32
    %c0_i32_0 = arith.constant 0 : i32
    %c0_i32_1 = arith.constant 0 : i32
    return %c0_i32, %c0_i32_0 : i32, i32
  }
  func.func @transform_3(%arg0: i32) -> (i32, i32) {
    %c0_i32 = arith.constant 0 : i32
    %c0_i32_0 = arith.constant 0 : i32
    %c0_i32_1 = arith.constant 0 : i32
    return %c0_i32, %c0_i32_0 : i32, i32
  }
  func.func @transform_4(%arg0: i32) -> (i32, i32) {
    %c0_i32 = arith.constant 0 : i32
    %c0_i32_0 = arith.constant 0 : i32
    %c0_i32_1 = arith.constant 0 : i32
    return %c0_i32, %c0_i32_0 : i32, i32
  }
  func.func @transform_5(%arg0: i32) -> (i32, i32) {
    %c0_i32 = arith.constant 0 : i32
    %c0_i32_0 = arith.constant 0 : i32
    %c0_i32_1 = arith.constant 0 : i32
    return %c0_i32, %c0_i32_0 : i32, i32
  }
  func.func @transform_6(%arg0: i32) -> (i32, i32) {
    %c0_i32 = arith.constant 0 : i32
    %c0_i32_0 = arith.constant 0 : i32
    %c0_i32_1 = arith.constant 0 : i32
    return %c0_i32, %c0_i32_0 : i32, i32
  }
  func.func @transform_7(%arg0: i32) -> (i32, i32) {
    %c0_i32 = arith.constant 0 : i32
    %c0_i32_0 = arith.constant 0 : i32
    %c0_i32_1 = arith.constant 0 : i32
    return %c0_i32, %c0_i32_0 : i32, i32
  }
  func.func @transform_8(%arg0: i32) -> (i32, i32) {
    %c0_i32 = arith.constant 0 : i32
    %c0_i32_0 = arith.constant 0 : i32
    %c0_i32_1 = arith.constant 0 : i32
    return %c0_i32, %c0_i32_0 : i32, i32
  }
  func.func @transform_9(%arg0: i32) -> (i32, i32) {
    %c0_i32 = arith.constant 0 : i32
    %c0_i32_0 = arith.constant 0 : i32
    %c0_i32_1 = arith.constant 0 : i32
    return %c0_i32, %c0_i32_0 : i32, i32
  }
  func.func @transform_10(%arg0: i32) -> (i32, i32) {
    %c0_i32 = arith.constant 0 : i32
    %c0_i32_0 = arith.constant 0 : i32
    return %arg0, %c0_i32 : i32, i32
  }
  func.func @transform_11(%arg0: i32) -> (i32, i32) {
    %c0_i32 = arith.constant 0 : i32
    %c0_i32_0 = arith.constant 0 : i32
    return %arg0, %c0_i32 : i32, i32
  }
}

</mosaic_0001>

<llo_original>
// kernel: tpu_custom_call.1
$region0: #{tpu_custom_call.1}
  #allocation0 [shape = 'u32[]', space=smem, size = 0x4, offset = 0x4, fixed_abs, tag = 'smem constant byte address 0x4 - core index']
  #allocation1 [shape = 'u32[72,128]{1,0:T(1,128)}', space=vmem, size = 0x9000, scoped, tag = 'internal scratch']
  %s0 = inlined_call_operand.hbm [shape: f32[256,256], index: 0, kind: input, shape index: {}]
  %s1 = inlined_call_operand.hbm [shape: f32[256,128], index: 1, kind: input, shape index: {}]
  %s2 = inlined_call_operand.hbm [shape: bf16[256,512], index: 2, kind: input, shape index: {}]
  %s3 = inlined_call_operand.hbm [shape: f32[1,512], index: 3, kind: input, shape index: {}]
  %s4 = inlined_call_operand.hbm [shape: bf16[512,128], index: 4, kind: input, shape index: {}]
  %s5 = inlined_call_operand.hbm [shape: f32[1,128], index: 5, kind: input, shape index: {}]
  %s6 = inlined_call_operand.hbm [shape: bf16[32,512], index: 6, kind: input, shape index: {}]
  %s7 = inlined_call_operand.vmem [shape: f32[1,512], index: 7, kind: input, shape index: {}]
  %s8 = inlined_call_operand.hbm [shape: bf16[512,256], index: 8, kind: input, shape index: {}]
  %s9 = inlined_call_operand.vmem [shape: f32[1,256], index: 9, kind: input, shape index: {}]
  %s10 = inlined_call_operand.hbm [shape: f32[256,256], index: 10, kind: output, shape index: {0}]
  %s11 = inlined_call_operand.hbm [shape: f32[256,128], index: 11, kind: output, shape index: {1}]
  %12 = xla_tuple %s10, %s11
  %s13 = sld [smem:[#allocation0]]
  $region113: #{tpu_custom_call.1} parent=0
    _
  %s15 = ssub.s32 1, %s13
  %s16 = scalar_select 0, %s15, %s13
  $region1: #{tpu_custom_call.1} parent=0
    #allocation2 [shape = 'u8[262144]{0}', space=vmem, size = 0x40000, scoped, tag = 'input window, operand 0']
    #allocation3 [shape = 's32[2]{0}', space=sflag, size = 0x8, scoped, tag = 'scoped memory for tpu_custom_call.1']
    #allocation4 [shape = 's32[2]{0}', space=sflag, size = 0x8, scoped, tag = 'scoped memory for tpu_custom_call.1']
    #allocation5 [shape = 'u8[131072]{0}', space=vmem, size = 0x20000, scoped, tag = 'input window, operand 1']
    #allocation6 [shape = 's32[2]{0}', space=sflag, size = 0x8, scoped, tag = 'scoped memory for tpu_custom_call.1']
    #allocation7 [shape = 'u8[262144]{0}', space=vmem, size = 0x40000, scoped, tag = 'input window, operand 2, single buffered']
    #allocation8 [shape = 'u8[2048]{0}', space=vmem, size = 0x800, scoped, tag = 'input window, operand 3, single buffered']
    #allocation9 [shape = 's32[1]{0}', space=sflag, size = 0x4, scoped, tag = 'scoped memory for tpu_custom_call.1']
    #allocation10 [shape = 'u8[131072]{0}', space=vmem, size = 0x20000, scoped, tag = 'input window, operand 4, single buffered']
    #allocation11 [shape = 'u8[512]{0}', space=vmem, size = 0x400, scoped, tag = 'input window, operand 5, single buffered']
    #allocation12 [shape = 's32[1]{0}', space=sflag, size = 0x4, scoped, tag = 'scoped memory for tpu_custom_call.1']
    #allocation13 [shape = 'u8[32768]{0}', space=vmem, size = 0x8000, scoped, tag = 'input window, operand 6, single buffered']
    #allocation14 [shape = 'u8[262144]{0}', space=vmem, size = 0x40000, scoped, tag = 'input window, operand 8, single buffered']
    #allocation15 [shape = 's32[1]{0}', space=sflag, size = 0x4, scoped, tag = 'scoped memory for tpu_custom_call.1']
    #allocation16 [shape = 'u8[262144]{0}', space=vmem, size = 0x40000, scoped, tag = 'output window, operand 0']
    #allocation17 [shape = 'u8[131072]{0}', space=vmem, size = 0x20000, scoped, tag = 'output window, operand 1']
    #allocation18 [shape = 's32[2]{0}', space=sflag, size = 0x8, scoped, tag = 'scoped memory for tpu_custom_call.1']
    %17 = vsyncpa [#allocation3], 0
    %s18 = scalar_lea.sflag [#allocation3], 1
    %19 = vsyncpa %s18, 0
    %20 = vsyncpa [#allocation6], 0
    %s21 = scalar_lea.sflag [#allocation6], 1
    %22 = vsyncpa %s21, 0
    %23 = vsyncpa [#allocation9], 0
    %24 = vsyncpa [#allocation12], 0
    %25 = vsyncpa [#allocation15], 0
    %26 = vsyncpa [#allocation4], 0
    %s27 = scalar_lea.sflag [#allocation4], 1
    %28 = vsyncpa %s27, 0
    %29 = vsyncpa [#allocation18], 0
    %s30 = scalar_lea.sflag [#allocation18], 1
    %31 = vsyncpa %s30, 0
    loop: start=0, step=1, limit=4
    $region2: #{tpu_custom_call.1} parent=1 // loop_pre_header
      _
    $region3: #{tpu_custom_call.1} parent=1 // loop_header
      %s33 = sphi 0, %s37
      %p34 = scmp.ge.s32.totalorder %s33, 4
      %s43 = sphi 0, %s45
      %s46 = sphi 0, %s43
      %s47 = sphi 0, %s46
      %s63 = sphi 0, %s47
      %s69 = sphi 0, %s71
      %s72 = sphi 0, %s69
      %s73 = sphi 0, %s72
      %s89 = sphi 0, %s73
      %s93 = sphi 0, %s93
      %s95 = sphi 0, %s93
      %s96 = sphi 0, %s95
      %s110 = sphi 0, %s96
      %s114 = sphi 0, %s114
      %s116 = sphi 0, %s114
      %s117 = sphi 0, %s116
      %s131 = sphi 0, %s117
      %s135 = sphi 0, %s135
      %s137 = sphi 0, %s135
      %s138 = sphi 0, %s137
      %s152 = sphi 0, %s138
      %s156 = sphi 0, %s156
      %s158 = sphi 0, %s156
      %s159 = sphi 0, %s158
      %s173 = sphi 0, %s159
      %s177 = sphi 0, %s177
      %s179 = sphi 0, %s177
      %s180 = sphi 0, %s179
      %s194 = sphi 0, %s180
      %s198 = sphi 0, %s198
      %s200 = sphi 0, %s198
      %s201 = sphi 0, %s200
      %s215 = sphi 0, %s201
      %s219 = sphi 0, %s219
      %s221 = sphi 0, %s219
      %s222 = sphi 0, %s221
      %s236 = sphi 0, %s222
      %s240 = sphi 0, %s240
      %s242 = sphi 0, %s240
      %s243 = sphi 0, %s242
      %s257 = sphi 0, %s243
      %s263 = sphi 0, %s265
      %s266 = sphi 0, %s263
      %s267 = sphi 0, %s266
      %s283 = sphi 0, %s267
      %s289 = sphi 0, %s291
      %s292 = sphi 0, %s289
      %s293 = sphi 0, %s292
      %s309 = sphi 0, %s293
    $region4: #{tpu_custom_call.1} parent=1 // loop_header_branch
      %36 = sbr.rel (%p34) target = $region8
    $region5: #{tpu_custom_call.1} parent=1 // loop_body
      %s38 = ssub.s32 %s33, 1
      %s39 = ssub.s32 %s33, 2
      %s40 = sadd.s32 %s33, 1
      %s41 = ssub.s32 %s33, %s40
      %p42 = scmp.eq.s32.totalorder %s41, 0
      %s44 = sadd.s32 %s43, 1
      %s45 = scalar_select %p42, %s43, %s44
      %p48 = pneg %p42
      %p49 = scmp.eq.s32.totalorder %s33, 1
      %p50 = por %p48, %p49
      %p51 = scmp.ne.s32.totalorder %s43, %s46
      %p52 = scmp.eq.s32.totalorder %s33, 0
      %p53 = por %p51, %p52
      %p54 = scmp.ne.s32.totalorder %s43, %s46
      %p55 = scmp.eq.s32.totalorder %s38, 1
      %p56 = por %p54, %p55
      %p57 = scmp.ne.s32.totalorder %s46, %s47
      %p58 = scmp.eq.s32.totalorder %s38, 0
      %p59 = por %p57, %p58
      %p60 = scmp.ne.s32.totalorder %s46, %s47
      %p61 = scmp.eq.s32.totalorder %s39, 1
      %p62 = por %p60, %p61
      %p64 = scmp.ne.s32.totalorder %s47, %s63
      %p65 = scmp.eq.s32.totalorder %s39, 0
      %p66 = por %p64, %p65
      %s67 = ssub.s32 %s33, %s40
      %p68 = scmp.eq.s32.totalorder %s67, 0
      %s70 = sadd.s32 %s69, 1
      %s71 = scalar_select %p68, %s69, %s70
      %p74 = pneg %p68
      %p75 = scmp.eq.s32.totalorder %s33, 1
      %p76 = por %p74, %p75
      %p77 = scmp.ne.s32.totalorder %s69, %s72
      %p78 = scmp.eq.s32.totalorder %s33, 0
      %p79 = por %p77, %p78
      %p80 = scmp.ne.s32.totalorder %s69, %s72
      %p81 = scmp.eq.s32.totalorder %s38, 1
      %p82 = por %p80, %p81
      %p83 = scmp.ne.s32.totalorder %s72, %s73
      %p84 = scmp.eq.s32.totalorder %s38, 0
      %p85 = por %p83, %p84
      %p86 = scmp.ne.s32.totalorder %s72, %s73
      %p87 = scmp.eq.s32.totalorder %s39, 1
      %p88 = por %p86, %p87
      %p90 = scmp.ne.s32.totalorder %s73, %s89
      %p91 = scmp.eq.s32.totalorder %s39, 0
      %p92 = por %p90, %p91
      %s94 = sadd.s32 %s93, 1
      %p97 = scmp.eq.s32.totalorder %s33, 1
      %p98 = scmp.ne.s32.totalorder %s93, %s95
      %p99 = scmp.eq.s32.totalorder %s33, 0
      %p100 = por %p98, %p99
      %p101 = scmp.ne.s32.totalorder %s93, %s95
      %p102 = scmp.eq.s32.totalorder %s38, 1
      %p103 = por %p101, %p102
      %p104 = scmp.ne.s32.totalorder %s95, %s96
      %p105 = scmp.eq.s32.totalorder %s38, 0
      %p106 = por %p104, %p105
      %p107 = scmp.ne.s32.totalorder %s95, %s96
      %p108 = scmp.eq.s32.totalorder %s39, 1
      %p109 = por %p107, %p108
      %p111 = scmp.ne.s32.totalorder %s96, %s110
      %p112 = scmp.eq.s32.totalorder %s39, 0
      %p113 = por %p111, %p112
      %s115 = sadd.s32 %s114, 1
      %p118 = scmp.eq.s32.totalorder %s33, 1
      %p119 = scmp.ne.s32.totalorder %s114, %s116
      %p120 = scmp.eq.s32.totalorder %s33, 0
      %p121 = por %p119, %p120
      %p122 = scmp.ne.s32.totalorder %s114, %s116
      %p123 = scmp.eq.s32.totalorder %s38, 1
      %p124 = por %p122, %p123
      %p125 = scmp.ne.s32.totalorder %s116, %s117
      %p126 = scmp.eq.s32.totalorder %s38, 0
      %p127 = por %p125, %p126
      %p128 = scmp.ne.s32.totalorder %s116, %s117
      %p129 = scmp.eq.s32.totalorder %s39, 1
      %p130 = por %p128, %p129
      %p132 = scmp.ne.s32.totalorder %s117, %s131
      %p133 = scmp.eq.s32.totalorder %s39, 0
      %p134 = por %p132, %p133
      %s136 = sadd.s32 %s135, 1
      %p139 = scmp.eq.s32.totalorder %s33, 1
      %p140 = scmp.ne.s32.totalorder %s135, %s137
      %p141 = scmp.eq.s32.totalorder %s33, 0
      %p142 = por %p140, %p141
      %p143 = scmp.ne.s32.totalorder %s135, %s137
      %p144 = scmp.eq.s32.totalorder %s38, 1
      %p145 = por %p143, %p144
      %p146 = scmp.ne.s32.totalorder %s137, %s138
      %p147 = scmp.eq.s32.totalorder %s38, 0
      %p148 = por %p146, %p147
      %p149 = scmp.ne.s32.totalorder %s137, %s138
      %p150 = scmp.eq.s32.totalorder %s39, 1
      %p151 = por %p149, %p150
      %p153 = scmp.ne.s32.totalorder %s138, %s152
      %p154 = scmp.eq.s32.totalorder %s39, 0
      %p155 = por %p153, %p154
      %s157 = sadd.s32 %s156, 1
      %p160 = scmp.eq.s32.totalorder %s33, 1
      %p161 = scmp.ne.s32.totalorder %s156, %s158
      %p162 = scmp.eq.s32.totalorder %s33, 0
      %p163 = por %p161, %p162
      %p164 = scmp.ne.s32.totalorder %s156, %s158
      %p165 = scmp.eq.s32.totalorder %s38, 1
      %p166 = por %p164, %p165
      %p167 = scmp.ne.s32.totalorder %s158, %s159
      %p168 = scmp.eq.s32.totalorder %s38, 0
      %p169 = por %p167, %p168
      %p170 = scmp.ne.s32.totalorder %s158, %s159
      %p171 = scmp.eq.s32.totalorder %s39, 1
      %p172 = por %p170, %p171
      %p174 = scmp.ne.s32.totalorder %s159, %s173
      %p175 = scmp.eq.s32.totalorder %s39, 0
      %p176 = por %p174, %p175
      %s178 = sadd.s32 %s177, 1
      %p181 = scmp.eq.s32.totalorder %s33, 1
      %p182 = scmp.ne.s32.totalorder %s177, %s179
      %p183 = scmp.eq.s32.totalorder %s33, 0
      %p184 = por %p182, %p183
      %p185 = scmp.ne.s32.totalorder %s177, %s179
      %p186 = scmp.eq.s32.totalorder %s38, 1
      %p187 = por %p185, %p186
      %p188 = scmp.ne.s32.totalorder %s179, %s180
      %p189 = scmp.eq.s32.totalorder %s38, 0
      %p190 = por %p188, %p189
      %p191 = scmp.ne.s32.totalorder %s179, %s180
      %p192 = scmp.eq.s32.totalorder %s39, 1
      %p193 = por %p191, %p192
      %p195 = scmp.ne.s32.totalorder %s180, %s194
      %p196 = scmp.eq.s32.totalorder %s39, 0
      %p197 = por %p195, %p196
      %s199 = sadd.s32 %s198, 1
      %p202 = scmp.eq.s32.totalorder %s33, 1
      %p203 = scmp.ne.s32.totalorder %s198, %s200
      %p204 = scmp.eq.s32.totalorder %s33, 0
      %p205 = por %p203, %p204
      %p206 = scmp.ne.s32.totalorder %s198, %s200
      %p207 = scmp.eq.s32.totalorder %s38, 1
      %p208 = por %p206, %p207
      %p209 = scmp.ne.s32.totalorder %s200, %s201
      %p210 = scmp.eq.s32.totalorder %s38, 0
      %p211 = por %p209, %p210
      %p212 = scmp.ne.s32.totalorder %s200, %s201
      %p213 = scmp.eq.s32.totalorder %s39, 1
      %p214 = por %p212, %p213
      %p216 = scmp.ne.s32.totalorder %s201, %s215
      %p217 = scmp.eq.s32.totalorder %s39, 0
      %p218 = por %p216, %p217
      %s220 = sadd.s32 %s219, 1
      %p223 = scmp.eq.s32.totalorder %s33, 1
      %p224 = scmp.ne.s32.totalorder %s219, %s221
      %p225 = scmp.eq.s32.totalorder %s33, 0
      %p226 = por %p224, %p225
      %p227 = scmp.ne.s32.totalorder %s219, %s221
      %p228 = scmp.eq.s32.totalorder %s38, 1
      %p229 = por %p227, %p228
      %p230 = scmp.ne.s32.totalorder %s221, %s222
      %p231 = scmp.eq.s32.totalorder %s38, 0
      %p232 = por %p230, %p231
      %p233 = scmp.ne.s32.totalorder %s221, %s222
      %p234 = scmp.eq.s32.totalorder %s39, 1
      %p235 = por %p233, %p234
      %p237 = scmp.ne.s32.totalorder %s222, %s236
      %p238 = scmp.eq.s32.totalorder %s39, 0
      %p239 = por %p237, %p238
      %s241 = sadd.s32 %s240, 1
      %p244 = scmp.eq.s32.totalorder %s33, 1
      %p245 = scmp.ne.s32.totalorder %s240, %s242
      %p246 = scmp.eq.s32.totalorder %s33, 0
      %p247 = por %p245, %p246
      %p248 = scmp.ne.s32.totalorder %s240, %s242
      %p249 = scmp.eq.s32.totalorder %s38, 1
      %p250 = por %p248, %p249
      %p251 = scmp.ne.s32.totalorder %s242, %s243
      %p252 = scmp.eq.s32.totalorder %s38, 0
      %p253 = por %p251, %p252
      %p254 = scmp.ne.s32.totalorder %s242, %s243
      %p255 = scmp.eq.s32.totalorder %s39, 1
      %p256 = por %p254, %p255
      %p258 = scmp.ne.s32.totalorder %s243, %s257
      %p259 = scmp.eq.s32.totalorder %s39, 0
      %p260 = por %p258, %p259
      %s261 = ssub.s32 %s33, %s40
      %p262 = scmp.eq.s32.totalorder %s261, 0
      %s264 = sadd.s32 %s263, 1
      %s265 = scalar_select %p262, %s263, %s264
      %p268 = pneg %p262
      %p269 = scmp.eq.s32.totalorder %s33, 1
      %p270 = por %p268, %p269
      %p271 = scmp.ne.s32.totalorder %s263, %s266
      %p272 = scmp.eq.s32.totalorder %s33, 0
      %p273 = por %p271, %p272
      %p274 = scmp.ne.s32.totalorder %s263, %s266
      %p275 = scmp.eq.s32.totalorder %s38, 1
      %p276 = por %p274, %p275
      %p277 = scmp.ne.s32.totalorder %s266, %s267
      %p278 = scmp.eq.s32.totalorder %s38, 0
      %p279 = por %p277, %p278
      %p280 = scmp.ne.s32.totalorder %s266, %s267
      %p281 = scmp.eq.s32.totalorder %s39, 1
      %p282 = por %p280, %p281
      %p284 = scmp.ne.s32.totalorder %s267, %s283
      %p285 = scmp.eq.s32.totalorder %s39, 0
      %p286 = por %p284, %p285
      %s287 = ssub.s32 %s33, %s40
      %p288 = scmp.eq.s32.totalorder %s287, 0
      %s290 = sadd.s32 %s289, 1
      %s291 = scalar_select %p288, %s289, %s290
      %p294 = pneg %p288
      %p295 = scmp.eq.s32.totalorder %s33, 1
      %p296 = por %p294, %p295
      %p297 = scmp.ne.s32.totalorder %s289, %s292
      %p298 = scmp.eq.s32.totalorder %s33, 0
      %p299 = por %p297, %p298
      %p300 = scmp.ne.s32.totalorder %s289, %s292
      %p301 = scmp.eq.s32.totalorder %s38, 1
      %p302 = por %p300, %p301
      %p303 = scmp.ne.s32.totalorder %s292, %s293
      %p304 = scmp.eq.s32.totalorder %s38, 0
      %p305 = por %p303, %p304
      %p306 = scmp.ne.s32.totalorder %s292, %s293
      %p307 = scmp.eq.s32.totalorder %s39, 1
      %p308 = por %p306, %p307
      %p310 = scmp.ne.s32.totalorder %s293, %s309
      %p311 = scmp.eq.s32.totalorder %s39, 0
      %p312 = por %p310, %p311
      %p313 = scmp.le.s32.totalorder 1, %s33
      %p314 = scmp.lt.s32.totalorder %s33, 3
      %p315 = pnand %p313, %p314
      %p316 = pneg %p315
      // Predicated region
      $region9: #{tpu_custom_call.1} parent=5 // pred_check
        _
      $region10: #{tpu_custom_call.1} parent=5 // pred_check_branch
        %318 = sbr.rel (%p315) target = $region12
      $region11: #{tpu_custom_call.1} parent=5 // pred_region
        %s319 = ssub.s32 %s33, 1
        // Predicated region
        $region13: #{tpu_custom_call.1} parent=11 // pred_check
          %p320 = pneg %p106
        $region14: #{tpu_custom_call.1} parent=11 // pred_check_branch
          %322 = sbr.rel (%p320) target = $region16
        $region15: #{tpu_custom_call.1} parent=11 // pred_region
          %324 = vsyncadd [#allocation6], 0
          %s325 = sshll.u32 %s2, 4
          %s326 = int_to_ptr.hbm [resolvable:$true] %s325
          %s327 = sshll.u32 [#allocation7], 4
          %s328 = int_to_ptr.vmem [resolvable:$true] %s327
          %333 = dma.hbm_to_vmem [thread:$0]  %s326, 8192, %s328, [#allocation6], 256, 256, 16
        $region16: #{tpu_custom_call.1} parent=11 // pred_fallthru
          _
        // Predicated region
        $region17: #{tpu_custom_call.1} parent=11 // pred_check
          %p334 = pneg %p127
        $region18: #{tpu_custom_call.1} parent=11 // pred_check_branch
          %336 = sbr.rel (%p334) target = $region20
        $region19: #{tpu_custom_call.1} parent=11 // pred_region
          %338 = vsyncadd [#allocation9], 0
          %s340 = sshll.u32 %s3, 4
          %s341 = int_to_ptr.hbm [resolvable:$true] %s340
          %s342 = sshll.u32 [#allocation8], 4
          %s343 = int_to_ptr.vmem [resolvable:$true] %s342
          %345 = dma.hbm_to_vmem [thread:$0]  %s341, 64, %s343, [#allocation9]
        $region20: #{tpu_custom_call.1} parent=11 // pred_fallthru
          _
        // Predicated region
        $region21: #{tpu_custom_call.1} parent=11 // pred_check
          %p346 = pneg %p148
        $region22: #{tpu_custom_call.1} parent=11 // pred_check_branch
          %348 = sbr.rel (%p346) target = $region24
        $region23: #{tpu_custom_call.1} parent=11 // pred_region
          %350 = vsyncadd [#allocation9], 0
          %s351 = sshll.u32 %s4, 4
          %s352 = int_to_ptr.hbm [resolvable:$true] %s351
          %s353 = sshll.u32 [#allocation10], 4
          %s354 = int_to_ptr.vmem [resolvable:$true] %s353
          %359 = dma.hbm_to_vmem [thread:$0]  %s352, 4096, %s354, [#allocation9], 64, 64, 4
        $region24: #{tpu_custom_call.1} parent=11 // pred_fallthru
          _
        // Predicated region
        $region25: #{tpu_custom_call.1} parent=11 // pred_check
          %p360 = pneg %p169
        $region26: #{tpu_custom_call.1} parent=11 // pred_check_branch
          %362 = sbr.rel (%p360) target = $region28
        $region27: #{tpu_custom_call.1} parent=11 // pred_region
          %364 = vsyncadd [#allocation12], 0
          %s366 = sshll.u32 %s5, 4
          %s367 = int_to_ptr.hbm [resolvable:$true] %s366
          %s368 = sshll.u32 [#allocation11], 4
          %s369 = int_to_ptr.vmem [resolvable:$true] %s368
          %371 = dma.hbm_to_vmem [thread:$0]  %s367, 16, %s369, [#allocation12]
        $region28: #{tpu_custom_call.1} parent=11 // pred_fallthru
          _
        // Predicated region
        $region29: #{tpu_custom_call.1} parent=11 // pred_check
          %p372 = pneg %p190
        $region30: #{tpu_custom_call.1} parent=11 // pred_check_branch
          %374 = sbr.rel (%p372) target = $region32
        $region31: #{tpu_custom_call.1} parent=11 // pred_region
          %376 = vsyncadd [#allocation12], 0
          %s377 = sshll.u32 %s6, 4
          %s378 = int_to_ptr.hbm [resolvable:$true] %s377
          %s379 = sshll.u32 [#allocation13], 4
          %s380 = int_to_ptr.vmem [resolvable:$true] %s379
          %385 = dma.hbm_to_vmem [thread:$0]  %s378, 1024, %s380, [#allocation12], 256, 256, 16
        $region32: #{tpu_custom_call.1} parent=11 // pred_fallthru
          _
        // Predicated region
        $region33: #{tpu_custom_call.1} parent=11 // pred_check
          %p386 = pneg %p211
        $region34: #{tpu_custom_call.1} parent=11 // pred_check_branch
          %388 = sbr.rel (%p386) target = $region36
        $region35: #{tpu_custom_call.1} parent=11 // pred_region
          _
        $region36: #{tpu_custom_call.1} parent=11 // pred_fallthru
          _
        // Predicated region
        $region37: #{tpu_custom_call.1} parent=11 // pred_check
          %p389 = pneg %p232
        $region38: #{tpu_custom_call.1} parent=11 // pred_check_branch
          %391 = sbr.rel (%p389) target = $region40
        $region39: #{tpu_custom_call.1} parent=11 // pred_region
          %393 = vsyncadd [#allocation15], 0
          %s394 = sshll.u32 %s8, 4
          %s395 = int_to_ptr.hbm [resolvable:$true] %s394
          %s396 = sshll.u32 [#allocation14], 4
          %s397 = int_to_ptr.vmem [resolvable:$true] %s396
          %402 = dma.hbm_to_vmem [thread:$0]  %s395, 8192, %s397, [#allocation15], 128, 128, 8
        $region40: #{tpu_custom_call.1} parent=11 // pred_fallthru
          _
        // Predicated region
        $region41: #{tpu_custom_call.1} parent=11 // pred_check
          %p403 = pneg %p253
        $region42: #{tpu_custom_call.1} parent=11 // pred_check_branch
          %405 = sbr.rel (%p403) target = $region44
        $region43: #{tpu_custom_call.1} parent=11 // pred_region
          _
        $region44: #{tpu_custom_call.1} parent=11 // pred_fallthru
          _
      $region12: #{tpu_custom_call.1} parent=5 // pred_fallthru
        _
      %p406 = scmp.lt.s32.totalorder %s33, 2
      // Predicated region
      $region45: #{tpu_custom_call.1} parent=5 // pred_check
        %p407 = pneg %p406
      $region46: #{tpu_custom_call.1} parent=5 // pred_check_branch
        %409 = sbr.rel (%p407) target = $region48
      $region47: #{tpu_custom_call.1} parent=5 // pred_region
        // Predicated region
        $region49: #{tpu_custom_call.1} parent=47 // pred_check
          %p410 = pneg %p53
        $region50: #{tpu_custom_call.1} parent=47 // pred_check_branch
          %412 = sbr.rel (%p410) target = $region52
        $region51: #{tpu_custom_call.1} parent=47 // pred_region
          %s413 = sand.u32 %s43, 1
          %s414 = scalar_lea.sflag [#allocation3], %s413
          %s415 = sand.u32 %s43, 1
          %s416 = smul.addr %s415, 256
          %s417 = scalar_lea.vmem [#allocation2], %s416
          %s418 = smul.u32 16, %s33
          %420 = vsyncadd %s414, 0
          %s421 = smul.addr %s418, 2
          %s422 = smul.addr %s421, 8
          %s423 = scalar_lea.hbm %s0, %s422
          %s424 = sshll.u32 %s423, 4
          %s425 = int_to_ptr.hbm [resolvable:$true] %s424
          %s426 = sshll.u32 %s417, 4
          %s427 = int_to_ptr.vmem [resolvable:$true] %s426
          %432 = dma.hbm_to_vmem [thread:$0]  %s425, 4096, %s427, %s414, 256, 256, 16
        $region52: #{tpu_custom_call.1} parent=47 // pred_fallthru
          _
        // Predicated region
        $region53: #{tpu_custom_call.1} parent=47 // pred_check
          %p433 = pneg %p79
        $region54: #{tpu_custom_call.1} parent=47 // pred_check_branch
          %435 = sbr.rel (%p433) target = $region56
        $region55: #{tpu_custom_call.1} parent=47 // pred_region
          %s436 = sand.u32 %s33, 1
          %s437 = scalar_lea.sflag [#allocation6], %s436
          %s438 = sand.u32 %s69, 1
          %s439 = smul.addr %s438, 128
          %s440 = scalar_lea.vmem [#allocation5], %s439
          %s441 = smul.u32 16, %s33
          %443 = vsyncadd %s437, 0
          %s444 = smul.addr %s441, 8
          %s445 = scalar_lea.hbm %s1, %s444
          %s446 = sshll.u32 %s445, 4
          %s447 = int_to_ptr.hbm [resolvable:$true] %s446
          %s448 = sshll.u32 %s440, 4
          %s449 = int_to_ptr.vmem [resolvable:$true] %s448
          %454 = dma.hbm_to_vmem [thread:$0]  %s447, 2048, %s449, %s437, 128, 128, 8
        $region56: #{tpu_custom_call.1} parent=47 // pred_fallthru
          _
      $region48: #{tpu_custom_call.1} parent=5 // pred_fallthru
        _
      %p455 = scmp.le.s32.totalorder 1, %s33
      %p456 = scmp.lt.s32.totalorder %s33, 3
      %p457 = pnand %p455, %p456
      %p458 = pneg %p457
      // Predicated region
      $region57: #{tpu_custom_call.1} parent=5 // pred_check
        _
      $region58: #{tpu_custom_call.1} parent=5 // pred_check_branch
        %460 = sbr.rel (%p457) target = $region60
      $region59: #{tpu_custom_call.1} parent=5 // pred_region
        %s461 = ssub.s32 %s33, 1
        %s462 = sand.u32 %s46, 1
        %s463 = scalar_lea.sflag [#allocation3], %s462
        %s464 = sand.u32 %s46, 1
        %s465 = smul.addr %s464, 256
        %s466 = scalar_lea.vmem [#allocation2], %s465
        // Predicated region
        $region61: #{tpu_custom_call.1} parent=59 // pred_check
          %p467 = pneg %p59
        $region62: #{tpu_custom_call.1} parent=59 // pred_check_branch
          %469 = sbr.rel (%p467) target = $region64
        $region63: #{tpu_custom_call.1} parent=59 // pred_region
          %471 = dma.done %s463, 4096
        $region64: #{tpu_custom_call.1} parent=59 // pred_fallthru
          _
        %s472 = sand.u32 %s38, 1
        %s473 = scalar_lea.sflag [#allocation6], %s472
        %s474 = sand.u32 %s72, 1
        %s475 = smul.addr %s474, 128
        %s476 = scalar_lea.vmem [#allocation5], %s475
        // Predicated region
        $region65: #{tpu_custom_call.1} parent=59 // pred_check
          %p477 = pneg %p85
        $region66: #{tpu_custom_call.1} parent=59 // pred_check_branch
          %479 = sbr.rel (%p477) target = $region68
        $region67: #{tpu_custom_call.1} parent=59 // pred_region
          %481 = dma.done %s473, 2048
        $region68: #{tpu_custom_call.1} parent=59 // pred_fallthru
          _
        // Predicated region
        $region69: #{tpu_custom_call.1} parent=59 // pred_check
          %p482 = pneg %p106
        $region70: #{tpu_custom_call.1} parent=59 // pred_check_branch
          %484 = sbr.rel (%p482) target = $region72
        $region71: #{tpu_custom_call.1} parent=59 // pred_region
          %486 = dma.done [#allocation6], 8192
        $region72: #{tpu_custom_call.1} parent=59 // pred_fallthru
          _
        // Predicated region
        $region73: #{tpu_custom_call.1} parent=59 // pred_check
          %p487 = pneg %p127
        $region74: #{tpu_custom_call.1} parent=59 // pred_check_branch
          %489 = sbr.rel (%p487) target = $region76
        $region75: #{tpu_custom_call.1} parent=59 // pred_region
          %491 = dma.done [#allocation9], 64
        $region76: #{tpu_custom_call.1} parent=59 // pred_fallthru
          _
        // Predicated region
        $region77: #{tpu_custom_call.1} parent=59 // pred_check
          %p492 = pneg %p148
        $region78: #{tpu_custom_call.1} parent=59 // pred_check_branch
          %494 = sbr.rel (%p492) target = $region80
        $region79: #{tpu_custom_call.1} parent=59 // pred_region
          %496 = dma.done [#allocation9], 4096
        $region80: #{tpu_custom_call.1} parent=59 // pred_fallthru
          _
        // Predicated region
        $region81: #{tpu_custom_call.1} parent=59 // pred_check
          %p497 = pneg %p169
        $region82: #{tpu_custom_call.1} parent=59 // pred_check_branch
          %499 = sbr.rel (%p497) target = $region84
        $region83: #{tpu_custom_call.1} parent=59 // pred_region
          %501 = dma.done [#allocation12], 16
        $region84: #{tpu_custom_call.1} parent=59 // pred_fallthru
          _
        // Predicated region
        $region85: #{tpu_custom_call.1} parent=59 // pred_check
          %p502 = pneg %p190
        $region86: #{tpu_custom_call.1} parent=59 // pred_check_branch
          %504 = sbr.rel (%p502) target = $region88
        $region87: #{tpu_custom_call.1} parent=59 // pred_region
          %506 = dma.done [#allocation12], 1024
        $region88: #{tpu_custom_call.1} parent=59 // pred_fallthru
          _
        // Predicated region
        $region89: #{tpu_custom_call.1} parent=59 // pred_check
          %p507 = pneg %p232
        $region90: #{tpu_custom_call.1} parent=59 // pred_check_branch
          %509 = sbr.rel (%p507) target = $region92
        $region91: #{tpu_custom_call.1} parent=59 // pred_region
          %511 = dma.done [#allocation15], 8192
        $region92: #{tpu_custom_call.1} parent=59 // pred_fallthru
          _
        %s512 = sand.u32 %s46, 1
        %s513 = scalar_lea.sflag [#allocation3], %s512
        %s514 = sand.u32 %s46, 1
        %s515 = smul.addr %s514, 256
        %s516 = scalar_lea.vmem [#allocation2], %s515
        %p517 = pneg %p59
        %p518 = pneg %p56
        %s519 = sand.u32 %s38, 1
        %s520 = scalar_lea.sflag [#allocation6], %s519
        %s521 = sand.u32 %s72, 1
        %s522 = smul.addr %s521, 128
        %s523 = scalar_lea.vmem [#allocation5], %s522
        %p524 = pneg %p85
        %p525 = pneg %p82
        %p526 = pneg %p106
        %p527 = pneg %p103
        %p528 = pneg %p127
        %p529 = pneg %p124
        %p530 = pneg %p148
        %p531 = pneg %p145
        %p532 = pneg %p169
        %p533 = pneg %p166
        %p534 = pneg %p190
        %p535 = pneg %p187
        %p536 = pneg %p211
        %p537 = pneg %p208
        %p538 = pneg %p232
        %p539 = pneg %p229
        %p540 = pneg %p253
        %p541 = pneg %p250
        %p542 = pneg %p279
        %p543 = pneg %p276
        %s544 = sand.u32 %s266, 1
        %s545 = scalar_lea.sflag [#allocation4], %s544
        %s546 = sand.u32 %s266, 1
        %s547 = smul.addr %s546, 256
        %s548 = scalar_lea.vmem [#allocation16], %s547
        %p549 = pneg %p305
        %p550 = pneg %p302
        %s551 = sand.u32 %s292, 1
        %s552 = scalar_lea.sflag [#allocation18], %s551
        %s553 = sand.u32 %s292, 1
        %s554 = smul.addr %s553, 128
        %s555 = scalar_lea.vmem [#allocation17], %s554
        %s556 = smul.u32 16, %s38
        %s557 = smul.u32 16, %s38
        %s558 = smul.u32 16, %s38
        %s559 = smul.u32 16, %s38
        %v561 = vld [vmem:[%s466] sm:$0xff]
        %v562 = vld [vmem:[%s466 + $0x8] sm:$0xff]
        %v563 = vld [vmem:[%s466 + $0x10] sm:$0xff]
        %v564 = vld [vmem:[%s466 + $0x18] sm:$0xff]
        %v565 = vld [vmem:[%s466 + $0x20] sm:$0xff]
        %v566 = vld [vmem:[%s466 + $0x28] sm:$0xff]
        %v567 = vld [vmem:[%s466 + $0x30] sm:$0xff]
        %v568 = vld [vmem:[%s466 + $0x38] sm:$0xff]
        %v569 = vld [vmem:[%s466 + $0x40] sm:$0xff]
        %v570 = vld [vmem:[%s466 + $0x48] sm:$0xff]
        %v571 = vld [vmem:[%s466 + $0x50] sm:$0xff]
        %v572 = vld [vmem:[%s466 + $0x58] sm:$0xff]
        %v573 = vld [vmem:[%s466 + $0x60] sm:$0xff]
        %v574 = vld [vmem:[%s466 + $0x68] sm:$0xff]
        %v575 = vld [vmem:[%s466 + $0x70] sm:$0xff]
        %v576 = vld [vmem:[%s466 + $0x78] sm:$0xff]
        %v577 = vld [vmem:[%s466 + $0x80] sm:$0xff]
        %v578 = vld [vmem:[%s466 + $0x88] sm:$0xff]
        %v579 = vld [vmem:[%s466 + $0x90] sm:$0xff]
        %v580 = vld [vmem:[%s466 + $0x98] sm:$0xff]
        %v581 = vld [vmem:[%s466 + $0xa0] sm:$0xff]
        %v582 = vld [vmem:[%s466 + $0xa8] sm:$0xff]
        %v583 = vld [vmem:[%s466 + $0xb0] sm:$0xff]
        %v584 = vld [vmem:[%s466 + $0xb8] sm:$0xff]
        %v585 = vld [vmem:[%s466 + $0xc0] sm:$0xff]
        %v586 = vld [vmem:[%s466 + $0xc8] sm:$0xff]
        %v587 = vld [vmem:[%s466 + $0xd0] sm:$0xff]
        %v588 = vld [vmem:[%s466 + $0xd8] sm:$0xff]
        %v589 = vld [vmem:[%s466 + $0xe0] sm:$0xff]
        %v590 = vld [vmem:[%s466 + $0xe8] sm:$0xff]
        %v591 = vld [vmem:[%s466 + $0xf0] sm:$0xff]
        %v592 = vld [vmem:[%s466 + $0xf8] sm:$0xff]
        %v593 = vpack.c.bf16 %v563, %v561
        %v594 = vpack.c.bf16 %v564, %v562
        %v595 = vpack.c.bf16 %v567, %v565
        %v596 = vpack.c.bf16 %v568, %v566
        %v597 = vpack.c.bf16 %v571, %v569
        %v598 = vpack.c.bf16 %v572, %v570
        %v599 = vpack.c.bf16 %v575, %v573
        %v600 = vpack.c.bf16 %v576, %v574
        %v601 = vpack.c.bf16 %v579, %v577
        %v602 = vpack.c.bf16 %v580, %v578
        %v603 = vpack.c.bf16 %v583, %v581
        %v604 = vpack.c.bf16 %v584, %v582
        %v605 = vpack.c.bf16 %v587, %v585
        %v606 = vpack.c.bf16 %v588, %v586
        %v607 = vpack.c.bf16 %v591, %v589
        %v608 = vpack.c.bf16 %v592, %v590
        %v609 = vld [vmem:[#allocation7] sm:$0xff]
        %v610 = vld [vmem:[#allocation7 + $0x8] sm:$0xff]
        %v611 = vld [vmem:[#allocation7 + $0x10] sm:$0xff]
        %v612 = vld [vmem:[#allocation7 + $0x18] sm:$0xff]
        %v613 = vld [vmem:[#allocation7 + $0x20] sm:$0xff]
        %v614 = vld [vmem:[#allocation7 + $0x28] sm:$0xff]
        %v615 = vld [vmem:[#allocation7 + $0x30] sm:$0xff]
        %v616 = vld [vmem:[#allocation7 + $0x38] sm:$0xff]
        %v617 = vld [vmem:[#allocation7 + $0x40] sm:$0xff]
        %v618 = vld [vmem:[#allocation7 + $0x48] sm:$0xff]
        %v619 = vld [vmem:[#allocation7 + $0x50] sm:$0xff]
        %v620 = vld [vmem:[#allocation7 + $0x58] sm:$0xff]
        %v621 = vld [vmem:[#allocation7 + $0x60] sm:$0xff]
        %v622 = vld [vmem:[#allocation7 + $0x68] sm:$0xff]
        %v623 = vld [vmem:[#allocation7 + $0x70] sm:$0xff]
        %v624 = vld [vmem:[#allocation7 + $0x78] sm:$0xff]
        %v625 = vld [vmem:[#allocation7 + $0x80] sm:$0xff]
        %v626 = vld [vmem:[#allocation7 + $0x88] sm:$0xff]
        %v627 = vld [vmem:[#allocation7 + $0x90] sm:$0xff]
        %v628 = vld [vmem:[#allocation7 + $0x98] sm:$0xff]
        %v629 = vld [vmem:[#allocation7 + $0xa0] sm:$0xff]
        %v630 = vld [vmem:[#allocation7 + $0xa8] sm:$0xff]
        %v631 = vld [vmem:[#allocation7 + $0xb0] sm:$0xff]
        %v632 = vld [vmem:[#allocation7 + $0xb8] sm:$0xff]
        %v633 = vld [vmem:[#allocation7 + $0xc0] sm:$0xff]
        %v634 = vld [vmem:[#allocation7 + $0xc8] sm:$0xff]
        %v635 = vld [vmem:[#allocation7 + $0xd0] sm:$0xff]
        %v636 = vld [vmem:[#allocation7 + $0xd8] sm:$0xff]
        %v637 = vld [vmem:[#allocation7 + $0xe0] sm:$0xff]
        %v638 = vld [vmem:[#allocation7 + $0xe8] sm:$0xff]
        %v639 = vld [vmem:[#allocation7 + $0xf0] sm:$0xff]
        %v640 = vld [vmem:[#allocation7 + $0xf8] sm:$0xff]
        %v641 = vld [vmem:[#allocation7 + $0x100] sm:$0xff]
        %v642 = vld [vmem:[#allocation7 + $0x108] sm:$0xff]
        %v643 = vld [vmem:[#allocation7 + $0x110] sm:$0xff]
        %v644 = vld [vmem:[#allocation7 + $0x118] sm:$0xff]
        %v645 = vld [vmem:[#allocation7 + $0x120] sm:$0xff]
        %v646 = vld [vmem:[#allocation7 + $0x128] sm:$0xff]
        %v647 = vld [vmem:[#allocation7 + $0x130] sm:$0xff]
        %v648 = vld [vmem:[#allocation7 + $0x138] sm:$0xff]
        %v649 = vld [vmem:[#allocation7 + $0x140] sm:$0xff]
        %v650 = vld [vmem:[#allocation7 + $0x148] sm:$0xff]
        %v651 = vld [vmem:[#allocation7 + $0x150] sm:$0xff]
        %v652 = vld [vmem:[#allocation7 + $0x158] sm:$0xff]
        %v653 = vld [vmem:[#allocation7 + $0x160] sm:$0xff]
        %v654 = vld [vmem:[#allocation7 + $0x168] sm:$0xff]
        %v655 = vld [vmem:[#allocation7 + $0x170] sm:$0xff]
        %v656 = vld [vmem:[#allocation7 + $0x178] sm:$0xff]
        %v657 = vld [vmem:[#allocation7 + $0x180] sm:$0xff]
        %v658 = vld [vmem:[#allocation7 + $0x188] sm:$0xff]
        %v659 = vld [vmem:[#allocation7 + $0x190] sm:$0xff]
        %v660 = vld [vmem:[#allocation7 + $0x198] sm:$0xff]
        %v661 = vld [vmem:[#allocation7 + $0x1a0] sm:$0xff]
        %v662 = vld [vmem:[#allocation7 + $0x1a8] sm:$0xff]
        %v663 = vld [vmem:[#allocation7 + $0x1b0] sm:$0xff]
        %v664 = vld [vmem:[#allocation7 + $0x1b8] sm:$0xff]
        %v665 = vld [vmem:[#allocation7 + $0x1c0] sm:$0xff]
        %v666 = vld [vmem:[#allocation7 + $0x1c8] sm:$0xff]
        %v667 = vld [vmem:[#allocation7 + $0x1d0] sm:$0xff]
        %v668 = vld [vmem:[#allocation7 + $0x1d8] sm:$0xff]
        %v669 = vld [vmem:[#allocation7 + $0x1e0] sm:$0xff]
        %v670 = vld [vmem:[#allocation7 + $0x1e8] sm:$0xff]
        %v671 = vld [vmem:[#allocation7 + $0x1f0] sm:$0xff]
        %v672 = vld [vmem:[#allocation7 + $0x1f8] sm:$0xff]
        %v673 = vld [vmem:[#allocation8] sm:$0xf]
        %v675 = vperm.slane %v673, 0
        %v676 = vperm.slane %v673, 1
        %v677 = vperm.slane %v673, 2
        %v678 = vperm.slane %v673, 3
        %v747 = vunpack.c.l.b16 %v609
        %v748 = vunpack.c.h.b16 %v609
        %v749 = vunpack.c.l.b16 %v610
        %v750 = vunpack.c.h.b16 %v610
        %v751 = vunpack.c.l.b16 %v611
        %v752 = vunpack.c.h.b16 %v611
        %v753 = vunpack.c.l.b16 %v612
        %v754 = vunpack.c.h.b16 %v612
        %v755 = vunpack.c.l.b16 %v613
        %v756 = vunpack.c.h.b16 %v613
        %v757 = vunpack.c.l.b16 %v614
        %v758 = vunpack.c.h.b16 %v614
        %v759 = vunpack.c.l.b16 %v615
        %v760 = vunpack.c.h.b16 %v615
        %v761 = vunpack.c.l.b16 %v616
        %v762 = vunpack.c.h.b16 %v616
        %v763 = vunpack.c.l.b16 %v617
        %v764 = vunpack.c.h.b16 %v617
        %v765 = vunpack.c.l.b16 %v618
        %v766 = vunpack.c.h.b16 %v618
        %v767 = vunpack.c.l.b16 %v619
        %v768 = vunpack.c.h.b16 %v619
        %v769 = vunpack.c.l.b16 %v620
        %v770 = vunpack.c.h.b16 %v620
        %v771 = vunpack.c.l.b16 %v621
        %v772 = vunpack.c.h.b16 %v621
        %v773 = vunpack.c.l.b16 %v622
        %v774 = vunpack.c.h.b16 %v622
        %v775 = vunpack.c.l.b16 %v623
        %v776 = vunpack.c.h.b16 %v623
        %v777 = vunpack.c.l.b16 %v624
        %v778 = vunpack.c.h.b16 %v624
        %v779 = vunpack.c.l.b16 %v625
        %v780 = vunpack.c.h.b16 %v625
        %v781 = vunpack.c.l.b16 %v626
        %v782 = vunpack.c.h.b16 %v626
        %v783 = vunpack.c.l.b16 %v627
        %v784 = vunpack.c.h.b16 %v627
        %v785 = vunpack.c.l.b16 %v628
        %v786 = vunpack.c.h.b16 %v628
        %v787 = vunpack.c.l.b16 %v629
        %v788 = vunpack.c.h.b16 %v629
        %v789 = vunpack.c.l.b16 %v630
        %v790 = vunpack.c.h.b16 %v630
        %v791 = vunpack.c.l.b16 %v631
        %v792 = vunpack.c.h.b16 %v631
        %v793 = vunpack.c.l.b16 %v632
        %v794 = vunpack.c.h.b16 %v632
        %v795 = vunpack.c.l.b16 %v633
        %v796 = vunpack.c.h.b16 %v633
        %v797 = vunpack.c.l.b16 %v634
        %v798 = vunpack.c.h.b16 %v634
        %v799 = vunpack.c.l.b16 %v635
        %v800 = vunpack.c.h.b16 %v635
        %v801 = vunpack.c.l.b16 %v636
        %v802 = vunpack.c.h.b16 %v636
        %v803 = vunpack.c.l.b16 %v637
        %v804 = vunpack.c.h.b16 %v637
        %v805 = vunpack.c.l.b16 %v638
        %v806 = vunpack.c.h.b16 %v638
        %v807 = vunpack.c.l.b16 %v639
        %v808 = vunpack.c.h.b16 %v639
        %v809 = vunpack.c.l.b16 %v640
        %v810 = vunpack.c.h.b16 %v640
        %v811 = vunpack.c.l.b16 %v641
        %v812 = vunpack.c.h.b16 %v641
        %v813 = vunpack.c.l.b16 %v642
        %v814 = vunpack.c.h.b16 %v642
        %v815 = vunpack.c.l.b16 %v643
        %v816 = vunpack.c.h.b16 %v643
        %v817 = vunpack.c.l.b16 %v644
        %v818 = vunpack.c.h.b16 %v644
        %v819 = vunpack.c.l.b16 %v645
        %v820 = vunpack.c.h.b16 %v645
        %v821 = vunpack.c.l.b16 %v646
        %v822 = vunpack.c.h.b16 %v646
        %v823 = vunpack.c.l.b16 %v647
        %v824 = vunpack.c.h.b16 %v647
        %v825 = vunpack.c.l.b16 %v648
        %v826 = vunpack.c.h.b16 %v648
        %v827 = vunpack.c.l.b16 %v649
        %v828 = vunpack.c.h.b16 %v649
        %v829 = vunpack.c.l.b16 %v650
        %v830 = vunpack.c.h.b16 %v650
        %v831 = vunpack.c.l.b16 %v651
        %v832 = vunpack.c.h.b16 %v651
        %v833 = vunpack.c.l.b16 %v652
        %v834 = vunpack.c.h.b16 %v652
        %v835 = vunpack.c.l.b16 %v653
        %v836 = vunpack.c.h.b16 %v653
        %v837 = vunpack.c.l.b16 %v654
        %v838 = vunpack.c.h.b16 %v654
        %v839 = vunpack.c.l.b16 %v655
        %v840 = vunpack.c.h.b16 %v655
        %v841 = vunpack.c.l.b16 %v656
        %v842 = vunpack.c.h.b16 %v656
        %v843 = vunpack.c.l.b16 %v657
        %v844 = vunpack.c.h.b16 %v657
        %v845 = vunpack.c.l.b16 %v658
        %v846 = vunpack.c.h.b16 %v658
        %v847 = vunpack.c.l.b16 %v659
        %v848 = vunpack.c.h.b16 %v659
        %v849 = vunpack.c.l.b16 %v660
        %v850 = vunpack.c.h.b16 %v660
        %v851 = vunpack.c.l.b16 %v661
        %v852 = vunpack.c.h.b16 %v661
        %v853 = vunpack.c.l.b16 %v662
        %v854 = vunpack.c.h.b16 %v662
        %v855 = vunpack.c.l.b16 %v663
        %v856 = vunpack.c.h.b16 %v663
        %v857 = vunpack.c.l.b16 %v664
        %v858 = vunpack.c.h.b16 %v664
        %v859 = vunpack.c.l.b16 %v665
        %v860 = vunpack.c.h.b16 %v665
        %v861 = vunpack.c.l.b16 %v666
        %v862 = vunpack.c.h.b16 %v666
        %v863 = vunpack.c.l.b16 %v667
        %v864 = vunpack.c.h.b16 %v667
        %v865 = vunpack.c.l.b16 %v668
        %v866 = vunpack.c.h.b16 %v668
        %v867 = vunpack.c.l.b16 %v669
        %v868 = vunpack.c.h.b16 %v669
        %v869 = vunpack.c.l.b16 %v670
        %v870 = vunpack.c.h.b16 %v670
        %v871 = vunpack.c.l.b16 %v671
        %v872 = vunpack.c.h.b16 %v671
        %v873 = vunpack.c.l.b16 %v672
        %v874 = vunpack.c.h.b16 %v672
        %v875 = vpack.c.b16 %v751, %v747
        %v876 = vpack.c.b16 %v752, %v748
        %v877 = vpack.c.b16 %v753, %v749
        %v878 = vpack.c.b16 %v754, %v750
        %v879 = vpack.c.b16 %v759, %v755
        %v880 = vpack.c.b16 %v760, %v756
        %v881 = vpack.c.b16 %v761, %v757
        %v882 = vpack.c.b16 %v762, %v758
        %v883 = vpack.c.b16 %v767, %v763
        %v884 = vpack.c.b16 %v768, %v764
        %v885 = vpack.c.b16 %v769, %v765
        %v886 = vpack.c.b16 %v770, %v766
        %v887 = vpack.c.b16 %v775, %v771
        %v888 = vpack.c.b16 %v776, %v772
        %v889 = vpack.c.b16 %v777, %v773
        %v890 = vpack.c.b16 %v778, %v774
        %v891 = vpack.c.b16 %v783, %v779
        %v892 = vpack.c.b16 %v784, %v780
        %v893 = vpack.c.b16 %v785, %v781
        %v894 = vpack.c.b16 %v786, %v782
        %v895 = vpack.c.b16 %v791, %v787
        %v896 = vpack.c.b16 %v792, %v788
        %v897 = vpack.c.b16 %v793, %v789
        %v898 = vpack.c.b16 %v794, %v790
        %v899 = vpack.c.b16 %v799, %v795
        %v900 = vpack.c.b16 %v800, %v796
        %v901 = vpack.c.b16 %v801, %v797
        %v902 = vpack.c.b16 %v802, %v798
        %v903 = vpack.c.b16 %v807, %v803
        %v904 = vpack.c.b16 %v808, %v804
        %v905 = vpack.c.b16 %v809, %v805
        %v906 = vpack.c.b16 %v810, %v806
        %v907 = vpack.c.b16 %v815, %v811
        %v908 = vpack.c.b16 %v816, %v812
        %v909 = vpack.c.b16 %v817, %v813
        %v910 = vpack.c.b16 %v818, %v814
        %v911 = vpack.c.b16 %v823, %v819
        %v912 = vpack.c.b16 %v824, %v820
        %v913 = vpack.c.b16 %v825, %v821
        %v914 = vpack.c.b16 %v826, %v822
        %v915 = vpack.c.b16 %v831, %v827
        %v916 = vpack.c.b16 %v832, %v828
        %v917 = vpack.c.b16 %v833, %v829
        %v918 = vpack.c.b16 %v834, %v830
        %v919 = vpack.c.b16 %v839, %v835
        %v920 = vpack.c.b16 %v840, %v836
        %v921 = vpack.c.b16 %v841, %v837
        %v922 = vpack.c.b16 %v842, %v838
        %v923 = vpack.c.b16 %v847, %v843
        %v924 = vpack.c.b16 %v848, %v844
        %v925 = vpack.c.b16 %v849, %v845
        %v926 = vpack.c.b16 %v850, %v846
        %v927 = vpack.c.b16 %v855, %v851
        %v928 = vpack.c.b16 %v856, %v852
        %v929 = vpack.c.b16 %v857, %v853
        %v930 = vpack.c.b16 %v858, %v854
        %v931 = vpack.c.b16 %v863, %v859
        %v932 = vpack.c.b16 %v864, %v860
        %v933 = vpack.c.b16 %v865, %v861
        %v934 = vpack.c.b16 %v866, %v862
        %v935 = vpack.c.b16 %v871, %v867
        %v936 = vpack.c.b16 %v872, %v868
        %v937 = vpack.c.b16 %v873, %v869
        %v938 = vpack.c.b16 %v874, %v870
        %1003 = vmatpush.bf16.msra.mxu0 %v903
        %1004 = vmatpush.bf16.msra.mxu0 %v899
        %1005 = vmatpush.bf16.msra.mxu0 %v895
        %1006 = vmatpush.bf16.msra.mxu0 %v891
        %1007 = vmatpush.bf16.msra.mxu0 %v887
        %1008 = vmatpush.bf16.msra.mxu0 %v883
        %1009 = vmatpush.bf16.msra.mxu0 %v879
        %1010 = vmatpush.bf16.msra.mxu0 %v875
        %1011 = vmatmul.bf16.gmra.mxu0 %v593
        %v1012 = vpop.f32.mrf.mxu0
        %v1013 = vadd.f32 %v675, %v1012
        %v1014 = vpop.f32.mrf.mxu0
        %v1015 = vadd.f32 %v675, %v1014
        %1016 = vmatmul.bf16.gmra.mxu0 %v595
        %v1017 = vpop.f32.mrf.mxu0
        %v1018 = vadd.f32 %v675, %v1017
        %v1019 = vpop.f32.mrf.mxu0
        %v1020 = vadd.f32 %v675, %v1019
        %1021 = vmatmul.bf16.gmra.mxu0 %v597
        %v1022 = vpop.f32.mrf.mxu0
        %v1023 = vadd.f32 %v675, %v1022
        %v1024 = vpop.f32.mrf.mxu0
        %v1025 = vadd.f32 %v675, %v1024
        %1026 = vmatmul.bf16.gmra.mxu0 %v599
        %v1027 = vpop.f32.mrf.mxu0
        %v1028 = vadd.f32 %v675, %v1027
        %v1029 = vpop.f32.mrf.mxu0
        %v1030 = vadd.f32 %v675, %v1029
        %1031 = vmatmul.bf16.gmra.mxu0 %v601
        %v1032 = vpop.f32.mrf.mxu0
        %v1033 = vadd.f32 %v675, %v1032
        %v1034 = vpop.f32.mrf.mxu0
        %v1035 = vadd.f32 %v675, %v1034
        %1036 = vmatmul.bf16.gmra.mxu0 %v603
        %v1037 = vpop.f32.mrf.mxu0
        %v1038 = vadd.f32 %v675, %v1037
        %v1039 = vpop.f32.mrf.mxu0
        %v1040 = vadd.f32 %v675, %v1039
        %1041 = vmatmul.bf16.gmra.mxu0 %v605
        %v1042 = vpop.f32.mrf.mxu0
        %v1043 = vadd.f32 %v675, %v1042
        %v1044 = vpop.f32.mrf.mxu0
        %v1045 = vadd.f32 %v675, %v1044
        %1046 = vmatmul.bf16.gmra.mxu0 %v607
        %v1047 = vpop.f32.mrf.mxu0
        %v1048 = vadd.f32 %v675, %v1047
        %v1049 = vpop.f32.mrf.mxu0
        %v1050 = vadd.f32 %v675, %v1049
        %1051 = vdwg.mxu0
        %1052 = vmatpush.bf16.msra.mxu0 %v935
        %1053 = vmatpush.bf16.msra.mxu0 %v931
        %1054 = vmatpush.bf16.msra.mxu0 %v927
        %1055 = vmatpush.bf16.msra.mxu0 %v923
        %1056 = vmatpush.bf16.msra.mxu0 %v919
        %1057 = vmatpush.bf16.msra.mxu0 %v915
        %1058 = vmatpush.bf16.msra.mxu0 %v911
        %1059 = vmatpush.bf16.msra.mxu0 %v907
        %1060 = vmatmul.bf16.gmra.mxu0 %v594
        %v1061 = vpop.f32.mrf.mxu0
        %v1062 = vadd.f32 %v1013, %v1061
        %v1063 = vpop.f32.mrf.mxu0
        %v1064 = vadd.f32 %v1015, %v1063
        %1065 = vmatmul.bf16.gmra.mxu0 %v596
        %v1066 = vpop.f32.mrf.mxu0
        %v1067 = vadd.f32 %v1018, %v1066
        %v1068 = vpop.f32.mrf.mxu0
        %v1069 = vadd.f32 %v1020, %v1068
        %1070 = vmatmul.bf16.gmra.mxu0 %v598
        %v1071 = vpop.f32.mrf.mxu0
        %v1072 = vadd.f32 %v1023, %v1071
        %v1073 = vpop.f32.mrf.mxu0
        %v1074 = vadd.f32 %v1025, %v1073
        %1075 = vmatmul.bf16.gmra.mxu0 %v600
        %v1076 = vpop.f32.mrf.mxu0
        %v1077 = vadd.f32 %v1028, %v1076
        %v1078 = vpop.f32.mrf.mxu0
        %v1079 = vadd.f32 %v1030, %v1078
        %1080 = vmatmul.bf16.gmra.mxu0 %v602
        %v1081 = vpop.f32.mrf.mxu0
        %v1082 = vadd.f32 %v1033, %v1081
        %v1083 = vpop.f32.mrf.mxu0
        %v1084 = vadd.f32 %v1035, %v1083
        %1085 = vmatmul.bf16.gmra.mxu0 %v604
        %v1086 = vpop.f32.mrf.mxu0
        %v1087 = vadd.f32 %v1038, %v1086
        %v1088 = vpop.f32.mrf.mxu0
        %v1089 = vadd.f32 %v1040, %v1088
        %1090 = vmatmul.bf16.gmra.mxu0 %v606
        %v1091 = vpop.f32.mrf.mxu0
        %v1092 = vadd.f32 %v1043, %v1091
        %v1093 = vpop.f32.mrf.mxu0
        %v1094 = vadd.f32 %v1045, %v1093
        %1095 = vmatmul.bf16.gmra.mxu0 %v608
        %v1096 = vpop.f32.mrf.mxu0
        %v1097 = vadd.f32 %v1048, %v1096
        %v1098 = vpop.f32.mrf.mxu0
        %v1099 = vadd.f32 %v1050, %v1098
        %1100 = vdwg.mxu0
        %1101 = vmatpush.bf16.msra.mxu0 %v904
        %1102 = vmatpush.bf16.msra.mxu0 %v900
        %1103 = vmatpush.bf16.msra.mxu0 %v896
        %1104 = vmatpush.bf16.msra.mxu0 %v892
        %1105 = vmatpush.bf16.msra.mxu0 %v888
        %1106 = vmatpush.bf16.msra.mxu0 %v884
        %1107 = vmatpush.bf16.msra.mxu0 %v880
        %1108 = vmatpush.bf16.msra.mxu0 %v876
        %1109 = vmatmul.bf16.gmra.mxu0 %v593
        %v1110 = vpop.f32.mrf.mxu0
        %v1111 = vadd.f32 %v676, %v1110
        %v1112 = vpop.f32.mrf.mxu0
        %v1113 = vadd.f32 %v676, %v1112
        %1114 = vmatmul.bf16.gmra.mxu0 %v595
        %v1115 = vpop.f32.mrf.mxu0
        %v1116 = vadd.f32 %v676, %v1115
        %v1117 = vpop.f32.mrf.mxu0
        %v1118 = vadd.f32 %v676, %v1117
        %1119 = vmatmul.bf16.gmra.mxu0 %v597
        %v1120 = vpop.f32.mrf.mxu0
        %v1121 = vadd.f32 %v676, %v1120
        %v1122 = vpop.f32.mrf.mxu0
        %v1123 = vadd.f32 %v676, %v1122
        %1124 = vmatmul.bf16.gmra.mxu0 %v599
        %v1125 = vpop.f32.mrf.mxu0
        %v1126 = vadd.f32 %v676, %v1125
        %v1127 = vpop.f32.mrf.mxu0
        %v1128 = vadd.f32 %v676, %v1127
        %1129 = vmatmul.bf16.gmra.mxu0 %v601
        %v1130 = vpop.f32.mrf.mxu0
        %v1131 = vadd.f32 %v676, %v1130
        %v1132 = vpop.f32.mrf.mxu0
        %v1133 = vadd.f32 %v676, %v1132
        %1134 = vmatmul.bf16.gmra.mxu0 %v603
        %v1135 = vpop.f32.mrf.mxu0
        %v1136 = vadd.f32 %v676, %v1135
        %v1137 = vpop.f32.mrf.mxu0
        %v1138 = vadd.f32 %v676, %v1137
        %1139 = vmatmul.bf16.gmra.mxu0 %v605
        %v1140 = vpop.f32.mrf.mxu0
        %v1141 = vadd.f32 %v676, %v1140
        %v1142 = vpop.f32.mrf.mxu0
        %v1143 = vadd.f32 %v676, %v1142
        %1144 = vmatmul.bf16.gmra.mxu0 %v607
        %v1145 = vpop.f32.mrf.mxu0
        %v1146 = vadd.f32 %v676, %v1145
        %v1147 = vpop.f32.mrf.mxu0
        %v1148 = vadd.f32 %v676, %v1147
        %1149 = vdwg.mxu0
        %1150 = vmatpush.bf16.msra.mxu0 %v936
        %1151 = vmatpush.bf16.msra.mxu0 %v932
        %1152 = vmatpush.bf16.msra.mxu0 %v928
        %1153 = vmatpush.bf16.msra.mxu0 %v924
        %1154 = vmatpush.bf16.msra.mxu0 %v920
        %1155 = vmatpush.bf16.msra.mxu0 %v916
        %1156 = vmatpush.bf16.msra.mxu0 %v912
        %1157 = vmatpush.bf16.msra.mxu0 %v908
        %1158 = vmatmul.bf16.gmra.mxu0 %v594
        %v1159 = vpop.f32.mrf.mxu0
        %v1160 = vadd.f32 %v1111, %v1159
        %v1161 = vpop.f32.mrf.mxu0
        %v1162 = vadd.f32 %v1113, %v1161
        %1163 = vmatmul.bf16.gmra.mxu0 %v596
        %v1164 = vpop.f32.mrf.mxu0
        %v1165 = vadd.f32 %v1116, %v1164
        %v1166 = vpop.f32.mrf.mxu0
        %v1167 = vadd.f32 %v1118, %v1166
        %1168 = vmatmul.bf16.gmra.mxu0 %v598
        %v1169 = vpop.f32.mrf.mxu0
        %v1170 = vadd.f32 %v1121, %v1169
        %v1171 = vpop.f32.mrf.mxu0
        %v1172 = vadd.f32 %v1123, %v1171
        %1173 = vmatmul.bf16.gmra.mxu0 %v600
        %v1174 = vpop.f32.mrf.mxu0
        %v1175 = vadd.f32 %v1126, %v1174
        %v1176 = vpop.f32.mrf.mxu0
        %v1177 = vadd.f32 %v1128, %v1176
        %1178 = vmatmul.bf16.gmra.mxu0 %v602
        %v1179 = vpop.f32.mrf.mxu0
        %v1180 = vadd.f32 %v1131, %v1179
        %v1181 = vpop.f32.mrf.mxu0
        %v1182 = vadd.f32 %v1133, %v1181
        %1183 = vmatmul.bf16.gmra.mxu0 %v604
        %v1184 = vpop.f32.mrf.mxu0
        %v1185 = vadd.f32 %v1136, %v1184
        %v1186 = vpop.f32.mrf.mxu0
        %v1187 = vadd.f32 %v1138, %v1186
        %1188 = vmatmul.bf16.gmra.mxu0 %v606
        %v1189 = vpop.f32.mrf.mxu0
        %v1190 = vadd.f32 %v1141, %v1189
        %v1191 = vpop.f32.mrf.mxu0
        %v1192 = vadd.f32 %v1143, %v1191
        %1193 = vmatmul.bf16.gmra.mxu0 %v608
        %v1194 = vpop.f32.mrf.mxu0
        %v1195 = vadd.f32 %v1146, %v1194
        %v1196 = vpop.f32.mrf.mxu0
        %v1197 = vadd.f32 %v1148, %v1196
        %1198 = vdwg.mxu0
        %1199 = vmatpush.bf16.msra.mxu0 %v905
        %1200 = vmatpush.bf16.msra.mxu0 %v901
        %1201 = vmatpush.bf16.msra.mxu0 %v897
        %1202 = vmatpush.bf16.msra.mxu0 %v893
        %1203 = vmatpush.bf16.msra.mxu0 %v889
        %1204 = vmatpush.bf16.msra.mxu0 %v885
        %1205 = vmatpush.bf16.msra.mxu0 %v881
        %1206 = vmatpush.bf16.msra.mxu0 %v877
        %1207 = vmatmul.bf16.gmra.mxu0 %v593
        %v1208 = vpop.f32.mrf.mxu0
        %v1209 = vadd.f32 %v677, %v1208
        %v1210 = vpop.f32.mrf.mxu0
        %v1211 = vadd.f32 %v677, %v1210
        %1212 = vmatmul.bf16.gmra.mxu0 %v595
        %v1213 = vpop.f32.mrf.mxu0
        %v1214 = vadd.f32 %v677, %v1213
        %v1215 = vpop.f32.mrf.mxu0
        %v1216 = vadd.f32 %v677, %v1215
        %1217 = vmatmul.bf16.gmra.mxu0 %v597
        %v1218 = vpop.f32.mrf.mxu0
        %v1219 = vadd.f32 %v677, %v1218
        %v1220 = vpop.f32.mrf.mxu0
        %v1221 = vadd.f32 %v677, %v1220
        %1222 = vmatmul.bf16.gmra.mxu0 %v599
        %v1223 = vpop.f32.mrf.mxu0
        %v1224 = vadd.f32 %v677, %v1223
        %v1225 = vpop.f32.mrf.mxu0
        %v1226 = vadd.f32 %v677, %v1225
        %1227 = vmatmul.bf16.gmra.mxu0 %v601
        %v1228 = vpop.f32.mrf.mxu0
        %v1229 = vadd.f32 %v677, %v1228
        %v1230 = vpop.f32.mrf.mxu0
        %v1231 = vadd.f32 %v677, %v1230
        %1232 = vmatmul.bf16.gmra.mxu0 %v603
        %v1233 = vpop.f32.mrf.mxu0
        %v1234 = vadd.f32 %v677, %v1233
        %v1235 = vpop.f32.mrf.mxu0
        %v1236 = vadd.f32 %v677, %v1235
        %1237 = vmatmul.bf16.gmra.mxu0 %v605
        %v1238 = vpop.f32.mrf.mxu0
        %v1239 = vadd.f32 %v677, %v1238
        %v1240 = vpop.f32.mrf.mxu0
        %v1241 = vadd.f32 %v677, %v1240
        %1242 = vmatmul.bf16.gmra.mxu0 %v607
        %v1243 = vpop.f32.mrf.mxu0
        %v1244 = vadd.f32 %v677, %v1243
        %v1245 = vpop.f32.mrf.mxu0
        %v1246 = vadd.f32 %v677, %v1245
        %1247 = vdwg.mxu0
        %1248 = vmatpush.bf16.msra.mxu0 %v937
        %1249 = vmatpush.bf16.msra.mxu0 %v933
        %1250 = vmatpush.bf16.msra.mxu0 %v929
        %1251 = vmatpush.bf16.msra.mxu0 %v925
        %1252 = vmatpush.bf16.msra.mxu0 %v921
        %1253 = vmatpush.bf16.msra.mxu0 %v917
        %1254 = vmatpush.bf16.msra.mxu0 %v913
        %1255 = vmatpush.bf16.msra.mxu0 %v909
        %1256 = vmatmul.bf16.gmra.mxu0 %v594
        %v1257 = vpop.f32.mrf.mxu0
        %v1258 = vadd.f32 %v1209, %v1257
        %v1259 = vpop.f32.mrf.mxu0
        %v1260 = vadd.f32 %v1211, %v1259
        %1261 = vmatmul.bf16.gmra.mxu0 %v596
        %v1262 = vpop.f32.mrf.mxu0
        %v1263 = vadd.f32 %v1214, %v1262
        %v1264 = vpop.f32.mrf.mxu0
        %v1265 = vadd.f32 %v1216, %v1264
        %1266 = vmatmul.bf16.gmra.mxu0 %v598
        %v1267 = vpop.f32.mrf.mxu0
        %v1268 = vadd.f32 %v1219, %v1267
        %v1269 = vpop.f32.mrf.mxu0
        %v1270 = vadd.f32 %v1221, %v1269
        %1271 = vmatmul.bf16.gmra.mxu0 %v600
        %v1272 = vpop.f32.mrf.mxu0
        %v1273 = vadd.f32 %v1224, %v1272
        %v1274 = vpop.f32.mrf.mxu0
        %v1275 = vadd.f32 %v1226, %v1274
        %1276 = vmatmul.bf16.gmra.mxu0 %v602
        %v1277 = vpop.f32.mrf.mxu0
        %v1278 = vadd.f32 %v1229, %v1277
        %v1279 = vpop.f32.mrf.mxu0
        %v1280 = vadd.f32 %v1231, %v1279
        %1281 = vmatmul.bf16.gmra.mxu0 %v604
        %v1282 = vpop.f32.mrf.mxu0
        %v1283 = vadd.f32 %v1234, %v1282
        %v1284 = vpop.f32.mrf.mxu0
        %v1285 = vadd.f32 %v1236, %v1284
        %1286 = vmatmul.bf16.gmra.mxu0 %v606
        %v1287 = vpop.f32.mrf.mxu0
        %v1288 = vadd.f32 %v1239, %v1287
        %v1289 = vpop.f32.mrf.mxu0
        %v1290 = vadd.f32 %v1241, %v1289
        %1291 = vmatmul.bf16.gmra.mxu0 %v608
        %v1292 = vpop.f32.mrf.mxu0
        %v1293 = vadd.f32 %v1244, %v1292
        %v1294 = vpop.f32.mrf.mxu0
        %v1295 = vadd.f32 %v1246, %v1294
        %1296 = vdwg.mxu0
        %1297 = vmatpush.bf16.msra.mxu0 %v906
        %1298 = vmatpush.bf16.msra.mxu0 %v902
        %1299 = vmatpush.bf16.msra.mxu0 %v898
        %1300 = vmatpush.bf16.msra.mxu0 %v894
        %1301 = vmatpush.bf16.msra.mxu0 %v890
        %1302 = vmatpush.bf16.msra.mxu0 %v886
        %1303 = vmatpush.bf16.msra.mxu0 %v882
        %1304 = vmatpush.bf16.msra.mxu0 %v878
        %1305 = vmatmul.bf16.gmra.mxu0 %v593
        %v1306 = vpop.f32.mrf.mxu0
        %v1307 = vadd.f32 %v678, %v1306
        %v1308 = vpop.f32.mrf.mxu0
        %v1309 = vadd.f32 %v678, %v1308
        %1310 = vmatmul.bf16.gmra.mxu0 %v595
        %v1311 = vpop.f32.mrf.mxu0
        %v1312 = vadd.f32 %v678, %v1311
        %v1313 = vpop.f32.mrf.mxu0
        %v1314 = vadd.f32 %v678, %v1313
        %1315 = vmatmul.bf16.gmra.mxu0 %v597
        %v1316 = vpop.f32.mrf.mxu0
        %v1317 = vadd.f32 %v678, %v1316
        %v1318 = vpop.f32.mrf.mxu0
        %v1319 = vadd.f32 %v678, %v1318
        %1320 = vmatmul.bf16.gmra.mxu0 %v599
        %v1321 = vpop.f32.mrf.mxu0
        %v1322 = vadd.f32 %v678, %v1321
        %v1323 = vpop.f32.mrf.mxu0
        %v1324 = vadd.f32 %v678, %v1323
        %1325 = vmatmul.bf16.gmra.mxu0 %v601
        %v1326 = vpop.f32.mrf.mxu0
        %v1327 = vadd.f32 %v678, %v1326
        %v1328 = vpop.f32.mrf.mxu0
        %v1329 = vadd.f32 %v678, %v1328
        %1330 = vmatmul.bf16.gmra.mxu0 %v603
        %v1331 = vpop.f32.mrf.mxu0
        %v1332 = vadd.f32 %v678, %v1331
        %v1333 = vpop.f32.mrf.mxu0
        %v1334 = vadd.f32 %v678, %v1333
        %1335 = vmatmul.bf16.gmra.mxu0 %v605
        %v1336 = vpop.f32.mrf.mxu0
        %v1337 = vadd.f32 %v678, %v1336
        %v1338 = vpop.f32.mrf.mxu0
        %v1339 = vadd.f32 %v678, %v1338
        %1340 = vmatmul.bf16.gmra.mxu0 %v607
        %v1341 = vpop.f32.mrf.mxu0
        %v1342 = vadd.f32 %v678, %v1341
        %v1343 = vpop.f32.mrf.mxu0
        %v1344 = vadd.f32 %v678, %v1343
        %1345 = vdwg.mxu0
        %1346 = vmatpush.bf16.msra.mxu0 %v938
        %1347 = vmatpush.bf16.msra.mxu0 %v934
        %1348 = vmatpush.bf16.msra.mxu0 %v930
        %1349 = vmatpush.bf16.msra.mxu0 %v926
        %1350 = vmatpush.bf16.msra.mxu0 %v922
        %1351 = vmatpush.bf16.msra.mxu0 %v918
        %1352 = vmatpush.bf16.msra.mxu0 %v914
        %1353 = vmatpush.bf16.msra.mxu0 %v910
        %1354 = vmatmul.bf16.gmra.mxu0 %v594
        %v1355 = vpop.f32.mrf.mxu0
        %v1356 = vadd.f32 %v1307, %v1355
        %v1357 = vpop.f32.mrf.mxu0
        %v1358 = vadd.f32 %v1309, %v1357
        %1359 = vmatmul.bf16.gmra.mxu0 %v596
        %v1360 = vpop.f32.mrf.mxu0
        %v1361 = vadd.f32 %v1312, %v1360
        %v1362 = vpop.f32.mrf.mxu0
        %v1363 = vadd.f32 %v1314, %v1362
        %1364 = vmatmul.bf16.gmra.mxu0 %v598
        %v1365 = vpop.f32.mrf.mxu0
        %v1366 = vadd.f32 %v1317, %v1365
        %v1367 = vpop.f32.mrf.mxu0
        %v1368 = vadd.f32 %v1319, %v1367
        %1369 = vmatmul.bf16.gmra.mxu0 %v600
        %v1370 = vpop.f32.mrf.mxu0
        %v1371 = vadd.f32 %v1322, %v1370
        %v1372 = vpop.f32.mrf.mxu0
        %v1373 = vadd.f32 %v1324, %v1372
        %1374 = vmatmul.bf16.gmra.mxu0 %v602
        %v1375 = vpop.f32.mrf.mxu0
        %v1376 = vadd.f32 %v1327, %v1375
        %v1377 = vpop.f32.mrf.mxu0
        %v1378 = vadd.f32 %v1329, %v1377
        %1379 = vmatmul.bf16.gmra.mxu0 %v604
        %v1380 = vpop.f32.mrf.mxu0
        %v1381 = vadd.f32 %v1332, %v1380
        %v1382 = vpop.f32.mrf.mxu0
        %v1383 = vadd.f32 %v1334, %v1382
        %1384 = vmatmul.bf16.gmra.mxu0 %v606
        %v1385 = vpop.f32.mrf.mxu0
        %v1386 = vadd.f32 %v1337, %v1385
        %v1387 = vpop.f32.mrf.mxu0
        %v1388 = vadd.f32 %v1339, %v1387
        %1389 = vmatmul.bf16.gmra.mxu0 %v608
        %v1390 = vpop.f32.mrf.mxu0
        %v1391 = vadd.f32 %v1342, %v1390
        %v1392 = vpop.f32.mrf.mxu0
        %v1393 = vadd.f32 %v1344, %v1392
        %1394 = vdwg.mxu0
        %v1395 = vmax.f32 %v1062, 0.0
        %v1396 = vmax.f32 %v1160, 0.0
        %v1397 = vmax.f32 %v1258, 0.0
        %v1398 = vmax.f32 %v1356, 0.0
        %v1399 = vmax.f32 %v1064, 0.0
        %v1400 = vmax.f32 %v1162, 0.0
        %v1401 = vmax.f32 %v1260, 0.0
        %v1402 = vmax.f32 %v1358, 0.0
        %v1403 = vmax.f32 %v1067, 0.0
        %v1404 = vmax.f32 %v1165, 0.0
        %v1405 = vmax.f32 %v1263, 0.0
        %v1406 = vmax.f32 %v1361, 0.0
        %v1407 = vmax.f32 %v1069, 0.0
        %v1408 = vmax.f32 %v1167, 0.0
        %v1409 = vmax.f32 %v1265, 0.0
        %v1410 = vmax.f32 %v1363, 0.0
        %v1411 = vmax.f32 %v1072, 0.0
        %v1412 = vmax.f32 %v1170, 0.0
        %v1413 = vmax.f32 %v1268, 0.0
        %v1414 = vmax.f32 %v1366, 0.0
        %v1415 = vmax.f32 %v1074, 0.0
        %v1416 = vmax.f32 %v1172, 0.0
        %v1417 = vmax.f32 %v1270, 0.0
        %v1418 = vmax.f32 %v1368, 0.0
        %v1419 = vmax.f32 %v1077, 0.0
        %v1420 = vmax.f32 %v1175, 0.0
        %v1421 = vmax.f32 %v1273, 0.0
        %v1422 = vmax.f32 %v1371, 0.0
        %v1423 = vmax.f32 %v1079, 0.0
        %v1424 = vmax.f32 %v1177, 0.0
        %v1425 = vmax.f32 %v1275, 0.0
        %v1426 = vmax.f32 %v1373, 0.0
        %v1427 = vmax.f32 %v1082, 0.0
        %v1428 = vmax.f32 %v1180, 0.0
        %v1429 = vmax.f32 %v1278, 0.0
        %v1430 = vmax.f32 %v1376, 0.0
        %v1431 = vmax.f32 %v1084, 0.0
        %v1432 = vmax.f32 %v1182, 0.0
        %v1433 = vmax.f32 %v1280, 0.0
        %v1434 = vmax.f32 %v1378, 0.0
        %v1435 = vmax.f32 %v1087, 0.0
        %v1436 = vmax.f32 %v1185, 0.0
        %v1437 = vmax.f32 %v1283, 0.0
        %v1438 = vmax.f32 %v1381, 0.0
        %v1439 = vmax.f32 %v1089, 0.0
        %v1440 = vmax.f32 %v1187, 0.0
        %v1441 = vmax.f32 %v1285, 0.0
        %v1442 = vmax.f32 %v1383, 0.0
        %v1443 = vmax.f32 %v1092, 0.0
        %v1444 = vmax.f32 %v1190, 0.0
        %v1445 = vmax.f32 %v1288, 0.0
        %v1446 = vmax.f32 %v1386, 0.0
        %v1447 = vmax.f32 %v1094, 0.0
        %v1448 = vmax.f32 %v1192, 0.0
        %v1449 = vmax.f32 %v1290, 0.0
        %v1450 = vmax.f32 %v1388, 0.0
        %v1451 = vmax.f32 %v1097, 0.0
        %v1452 = vmax.f32 %v1195, 0.0
        %v1453 = vmax.f32 %v1293, 0.0
        %v1454 = vmax.f32 %v1391, 0.0
        %v1455 = vmax.f32 %v1099, 0.0
        %v1456 = vmax.f32 %v1197, 0.0
        %v1457 = vmax.f32 %v1295, 0.0
        %v1458 = vmax.f32 %v1393, 0.0
        %v1459 = vpack.c.bf16 %v1399, %v1395
        %v1460 = vpack.c.bf16 %v1400, %v1396
        %v1461 = vpack.c.bf16 %v1401, %v1397
        %v1462 = vpack.c.bf16 %v1402, %v1398
        %v1463 = vpack.c.bf16 %v1407, %v1403
        %v1464 = vpack.c.bf16 %v1408, %v1404
        %v1465 = vpack.c.bf16 %v1409, %v1405
        %v1466 = vpack.c.bf16 %v1410, %v1406
        %v1467 = vpack.c.bf16 %v1415, %v1411
        %v1468 = vpack.c.bf16 %v1416, %v1412
        %v1469 = vpack.c.bf16 %v1417, %v1413
        %v1470 = vpack.c.bf16 %v1418, %v1414
        %v1471 = vpack.c.bf16 %v1423, %v1419
        %v1472 = vpack.c.bf16 %v1424, %v1420
        %v1473 = vpack.c.bf16 %v1425, %v1421
        %v1474 = vpack.c.bf16 %v1426, %v1422
        %v1475 = vpack.c.bf16 %v1431, %v1427
        %v1476 = vpack.c.bf16 %v1432, %v1428
        %v1477 = vpack.c.bf16 %v1433, %v1429
        %v1478 = vpack.c.bf16 %v1434, %v1430
        %v1479 = vpack.c.bf16 %v1439, %v1435
        %v1480 = vpack.c.bf16 %v1440, %v1436
        %v1481 = vpack.c.bf16 %v1441, %v1437
        %v1482 = vpack.c.bf16 %v1442, %v1438
        %v1483 = vpack.c.bf16 %v1447, %v1443
        %v1484 = vpack.c.bf16 %v1448, %v1444
        %v1485 = vpack.c.bf16 %v1449, %v1445
        %v1486 = vpack.c.bf16 %v1450, %v1446
        %v1487 = vpack.c.bf16 %v1455, %v1451
        %v1488 = vpack.c.bf16 %v1456, %v1452
        %v1489 = vpack.c.bf16 %v1457, %v1453
        %v1490 = vpack.c.bf16 %v1458, %v1454
        %v1491 = vld [vmem:[#allocation10] sm:$0xf]
        %v1492 = vld [vmem:[#allocation10 + $0x4] sm:$0xf]
        %v1493 = vld [vmem:[#allocation10 + $0x8] sm:$0xf]
        %v1494 = vld [vmem:[#allocation10 + $0xc] sm:$0xf]
        %v1495 = vld [vmem:[#allocation10 + $0x10] sm:$0xf]
        %v1496 = vld [vmem:[#allocation10 + $0x14] sm:$0xf]
        %v1497 = vld [vmem:[#allocation10 + $0x18] sm:$0xf]
        %v1498 = vld [vmem:[#allocation10 + $0x1c] sm:$0xf]
        %v1499 = vld [vmem:[#allocation10 + $0x20] sm:$0xf]
        %v1500 = vld [vmem:[#allocation10 + $0x24] sm:$0xf]
        %v1501 = vld [vmem:[#allocation10 + $0x28] sm:$0xf]
        %v1502 = vld [vmem:[#allocation10 + $0x2c] sm:$0xf]
        %v1503 = vld [vmem:[#allocation10 + $0x30] sm:$0xf]
        %v1504 = vld [vmem:[#allocation10 + $0x34] sm:$0xf]
        %v1505 = vld [vmem:[#allocation10 + $0x38] sm:$0xf]
        %v1506 = vld [vmem:[#allocation10 + $0x3c] sm:$0xf]
        %v1507 = vld [vmem:[#allocation10 + $0x40] sm:$0xf]
        %v1508 = vld [vmem:[#allocation10 + $0x44] sm:$0xf]
        %v1509 = vld [vmem:[#allocation10 + $0x48] sm:$0xf]
        %v1510 = vld [vmem:[#allocation10 + $0x4c] sm:$0xf]
        %v1511 = vld [vmem:[#allocation10 + $0x50] sm:$0xf]
        %v1512 = vld [vmem:[#allocation10 + $0x54] sm:$0xf]
        %v1513 = vld [vmem:[#allocation10 + $0x58] sm:$0xf]
        %v1514 = vld [vmem:[#allocation10 + $0x5c] sm:$0xf]
        %v1515 = vld [vmem:[#allocation10 + $0x60] sm:$0xf]
        %v1516 = vld [vmem:[#allocation10 + $0x64] sm:$0xf]
        %v1517 = vld [vmem:[#allocation10 + $0x68] sm:$0xf]
        %v1518 = vld [vmem:[#allocation10 + $0x6c] sm:$0xf]
        %v1519 = vld [vmem:[#allocation10 + $0x70] sm:$0xf]
        %v1520 = vld [vmem:[#allocation10 + $0x74] sm:$0xf]
        %v1521 = vld [vmem:[#allocation10 + $0x78] sm:$0xf]
        %v1522 = vld [vmem:[#allocation10 + $0x7c] sm:$0xf]
        %v1523 = vld [vmem:[#allocation10 + $0x80] sm:$0xf]
        %v1524 = vld [vmem:[#allocation10 + $0x84] sm:$0xf]
        %v1525 = vld [vmem:[#allocation10 + $0x88] sm:$0xf]
        %v1526 = vld [vmem:[#allocation10 + $0x8c] sm:$0xf]
        %v1527 = vld [vmem:[#allocation10 + $0x90] sm:$0xf]
        %v1528 = vld [vmem:[#allocation10 + $0x94] sm:$0xf]
        %v1529 = vld [vmem:[#allocation10 + $0x98] sm:$0xf]
        %v1530 = vld [vmem:[#allocation10 + $0x9c] sm:$0xf]
        %v1531 = vld [vmem:[#allocation10 + $0xa0] sm:$0xf]
        %v1532 = vld [vmem:[#allocation10 + $0xa4] sm:$0xf]
        %v1533 = vld [vmem:[#allocation10 + $0xa8] sm:$0xf]
        %v1534 = vld [vmem:[#allocation10 + $0xac] sm:$0xf]
        %v1535 = vld [vmem:[#allocation10 + $0xb0] sm:$0xf]
        %v1536 = vld [vmem:[#allocation10 + $0xb4] sm:$0xf]
        %v1537 = vld [vmem:[#allocation10 + $0xb8] sm:$0xf]
        %v1538 = vld [vmem:[#allocation10 + $0xbc] sm:$0xf]
        %v1539 = vld [vmem:[#allocation10 + $0xc0] sm:$0xf]
        %v1540 = vld [vmem:[#allocation10 + $0xc4] sm:$0xf]
        %v1541 = vld [vmem:[#allocation10 + $0xc8] sm:$0xf]
        %v1542 = vld [vmem:[#allocation10 + $0xcc] sm:$0xf]
        %v1543 = vld [vmem:[#allocation10 + $0xd0] sm:$0xf]
        %v1544 = vld [vmem:[#allocation10 + $0xd4] sm:$0xf]
        %v1545 = vld [vmem:[#allocation10 + $0xd8] sm:$0xf]
        %v1546 = vld [vmem:[#allocation10 + $0xdc] sm:$0xf]
        %v1547 = vld [vmem:[#allocation10 + $0xe0] sm:$0xf]
        %v1548 = vld [vmem:[#allocation10 + $0xe4] sm:$0xf]
        %v1549 = vld [vmem:[#allocation10 + $0xe8] sm:$0xf]
        %v1550 = vld [vmem:[#allocation10 + $0xec] sm:$0xf]
        %v1551 = vld [vmem:[#allocation10 + $0xf0] sm:$0xf]
        %v1552 = vld [vmem:[#allocation10 + $0xf4] sm:$0xf]
        %v1553 = vld [vmem:[#allocation10 + $0xf8] sm:$0xf]
        %v1554 = vld [vmem:[#allocation10 + $0xfc] sm:$0xf]
        %v1555 = vld [vmem:[#allocation11] sm:$0x1]
        %v1557 = vperm.slane %v1555, 0
        %v1623 = vunpack.c.l.b16 %v1491
        %v1624 = vunpack.c.l.b16 %v1492
        %v1625 = vunpack.c.l.b16 %v1493
        %v1626 = vunpack.c.l.b16 %v1494
        %v1627 = vunpack.c.l.b16 %v1495
        %v1628 = vunpack.c.l.b16 %v1496
        %v1629 = vunpack.c.l.b16 %v1497
        %v1630 = vunpack.c.l.b16 %v1498
        %v1631 = vunpack.c.l.b16 %v1499
        %v1632 = vunpack.c.l.b16 %v1500
        %v1633 = vunpack.c.l.b16 %v1501
        %v1634 = vunpack.c.l.b16 %v1502
        %v1635 = vunpack.c.l.b16 %v1503
        %v1636 = vunpack.c.l.b16 %v1504
        %v1637 = vunpack.c.l.b16 %v1505
        %v1638 = vunpack.c.l.b16 %v1506
        %v1639 = vunpack.c.l.b16 %v1507
        %v1640 = vunpack.c.l.b16 %v1508
        %v1641 = vunpack.c.l.b16 %v1509
        %v1642 = vunpack.c.l.b16 %v1510
        %v1643 = vunpack.c.l.b16 %v1511
        %v1644 = vunpack.c.l.b16 %v1512
        %v1645 = vunpack.c.l.b16 %v1513
        %v1646 = vunpack.c.l.b16 %v1514
        %v1647 = vunpack.c.l.b16 %v1515
        %v1648 = vunpack.c.l.b16 %v1516
        %v1649 = vunpack.c.l.b16 %v1517
        %v1650 = vunpack.c.l.b16 %v1518
        %v1651 = vunpack.c.l.b16 %v1519
        %v1652 = vunpack.c.l.b16 %v1520
        %v1653 = vunpack.c.l.b16 %v1521
        %v1654 = vunpack.c.l.b16 %v1522
        %v1655 = vunpack.c.l.b16 %v1523
        %v1656 = vunpack.c.l.b16 %v1524
        %v1657 = vunpack.c.l.b16 %v1525
        %v1658 = vunpack.c.l.b16 %v1526
        %v1659 = vunpack.c.l.b16 %v1527
        %v1660 = vunpack.c.l.b16 %v1528
        %v1661 = vunpack.c.l.b16 %v1529
        %v1662 = vunpack.c.l.b16 %v1530
        %v1663 = vunpack.c.l.b16 %v1531
        %v1664 = vunpack.c.l.b16 %v1532
        %v1665 = vunpack.c.l.b16 %v1533
        %v1666 = vunpack.c.l.b16 %v1534
        %v1667 = vunpack.c.l.b16 %v1535
        %v1668 = vunpack.c.l.b16 %v1536
        %v1669 = vunpack.c.l.b16 %v1537
        %v1670 = vunpack.c.l.b16 %v1538
        %v1671 = vunpack.c.l.b16 %v1539
        %v1672 = vunpack.c.l.b16 %v1540
        %v1673 = vunpack.c.l.b16 %v1541
        %v1674 = vunpack.c.l.b16 %v1542
        %v1675 = vunpack.c.l.b16 %v1543
        %v1676 = vunpack.c.l.b16 %v1544
        %v1677 = vunpack.c.l.b16 %v1545
        %v1678 = vunpack.c.l.b16 %v1546
        %v1679 = vunpack.c.l.b16 %v1547
        %v1680 = vunpack.c.l.b16 %v1548
        %v1681 = vunpack.c.l.b16 %v1549
        %v1682 = vunpack.c.l.b16 %v1550
        %v1683 = vunpack.c.l.b16 %v1551
        %v1684 = vunpack.c.l.b16 %v1552
        %v1685 = vunpack.c.l.b16 %v1553
        %v1686 = vunpack.c.l.b16 %v1554
        %v1687 = vpack.c.b16 %v1624, %v1623
        %v1688 = vpack.c.b16 %v1626, %v1625
        %v1689 = vpack.c.b16 %v1628, %v1627
        %v1690 = vpack.c.b16 %v1630, %v1629
        %v1691 = vpack.c.b16 %v1632, %v1631
        %v1692 = vpack.c.b16 %v1634, %v1633
        %v1693 = vpack.c.b16 %v1636, %v1635
        %v1694 = vpack.c.b16 %v1638, %v1637
        %v1695 = vpack.c.b16 %v1640, %v1639
        %v1696 = vpack.c.b16 %v1642, %v1641
        %v1697 = vpack.c.b16 %v1644, %v1643
        %v1698 = vpack.c.b16 %v1646, %v1645
        %v1699 = vpack.c.b16 %v1648, %v1647
        %v1700 = vpack.c.b16 %v1650, %v1649
        %v1701 = vpack.c.b16 %v1652, %v1651
        %v1702 = vpack.c.b16 %v1654, %v1653
        %v1703 = vpack.c.b16 %v1656, %v1655
        %v1704 = vpack.c.b16 %v1658, %v1657
        %v1705 = vpack.c.b16 %v1660, %v1659
        %v1706 = vpack.c.b16 %v1662, %v1661
        %v1707 = vpack.c.b16 %v1664, %v1663
        %v1708 = vpack.c.b16 %v1666, %v1665
        %v1709 = vpack.c.b16 %v1668, %v1667
        %v1710 = vpack.c.b16 %v1670, %v1669
        %v1711 = vpack.c.b16 %v1672, %v1671
        %v1712 = vpack.c.b16 %v1674, %v1673
        %v1713 = vpack.c.b16 %v1676, %v1675
        %v1714 = vpack.c.b16 %v1678, %v1677
        %v1715 = vpack.c.b16 %v1680, %v1679
        %v1716 = vpack.c.b16 %v1682, %v1681
        %v1717 = vpack.c.b16 %v1684, %v1683
        %v1718 = vpack.c.b16 %v1686, %v1685
        %1751 = vmatpush.bf16.msra.mxu0 %v1694
        %1752 = vmatpush.bf16.msra.mxu0 %v1693
        %1753 = vmatpush.bf16.msra.mxu0 %v1692
        %1754 = vmatpush.bf16.msra.mxu0 %v1691
        %1755 = vmatpush.bf16.msra.mxu0 %v1690
        %1756 = vmatpush.bf16.msra.mxu0 %v1689
        %1757 = vmatpush.bf16.msra.mxu0 %v1688
        %1758 = vmatpush.bf16.msra.mxu0 %v1687
        %1759 = vmatmul.bf16.gmra.mxu0 %v1459
        %v1760 = vpop.f32.mrf.mxu0
        %v1761 = vadd.f32 %v1557, %v1760
        %v1762 = vpop.f32.mrf.mxu0
        %v1763 = vadd.f32 %v1557, %v1762
        %1764 = vmatmul.bf16.gmra.mxu0 %v1463
        %v1765 = vpop.f32.mrf.mxu0
        %v1766 = vadd.f32 %v1557, %v1765
        %v1767 = vpop.f32.mrf.mxu0
        %v1768 = vadd.f32 %v1557, %v1767
        %1769 = vmatmul.bf16.gmra.mxu0 %v1467
        %v1770 = vpop.f32.mrf.mxu0
        %v1771 = vadd.f32 %v1557, %v1770
        %v1772 = vpop.f32.mrf.mxu0
        %v1773 = vadd.f32 %v1557, %v1772
        %1774 = vmatmul.bf16.gmra.mxu0 %v1471
        %v1775 = vpop.f32.mrf.mxu0
        %v1776 = vadd.f32 %v1557, %v1775
        %v1777 = vpop.f32.mrf.mxu0
        %v1778 = vadd.f32 %v1557, %v1777
        %1779 = vmatmul.bf16.gmra.mxu0 %v1475
        %v1780 = vpop.f32.mrf.mxu0
        %v1781 = vadd.f32 %v1557, %v1780
        %v1782 = vpop.f32.mrf.mxu0
        %v1783 = vadd.f32 %v1557, %v1782
        %1784 = vmatmul.bf16.gmra.mxu0 %v1479
        %v1785 = vpop.f32.mrf.mxu0
        %v1786 = vadd.f32 %v1557, %v1785
        %v1787 = vpop.f32.mrf.mxu0
        %v1788 = vadd.f32 %v1557, %v1787
        %1789 = vmatmul.bf16.gmra.mxu0 %v1483
        %v1790 = vpop.f32.mrf.mxu0
        %v1791 = vadd.f32 %v1557, %v1790
        %v1792 = vpop.f32.mrf.mxu0
        %v1793 = vadd.f32 %v1557, %v1792
        %1794 = vmatmul.bf16.gmra.mxu0 %v1487
        %v1795 = vpop.f32.mrf.mxu0
        %v1796 = vadd.f32 %v1557, %v1795
        %v1797 = vpop.f32.mrf.mxu0
        %v1798 = vadd.f32 %v1557, %v1797
        %1799 = vdwg.mxu0
        %1800 = vmatpush.bf16.msra.mxu0 %v1702
        %1801 = vmatpush.bf16.msra.mxu0 %v1701
        %1802 = vmatpush.bf16.msra.mxu0 %v1700
        %1803 = vmatpush.bf16.msra.mxu0 %v1699
        %1804 = vmatpush.bf16.msra.mxu0 %v1698
        %1805 = vmatpush.bf16.msra.mxu0 %v1697
        %1806 = vmatpush.bf16.msra.mxu0 %v1696
        %1807 = vmatpush.bf16.msra.mxu0 %v1695
        %1808 = vmatmul.bf16.gmra.mxu0 %v1460
        %v1809 = vpop.f32.mrf.mxu0
        %v1810 = vadd.f32 %v1761, %v1809
        %v1811 = vpop.f32.mrf.mxu0
        %v1812 = vadd.f32 %v1763, %v1811
        %1813 = vmatmul.bf16.gmra.mxu0 %v1464
        %v1814 = vpop.f32.mrf.mxu0
        %v1815 = vadd.f32 %v1766, %v1814
        %v1816 = vpop.f32.mrf.mxu0
        %v1817 = vadd.f32 %v1768, %v1816
        %1818 = vmatmul.bf16.gmra.mxu0 %v1468
        %v1819 = vpop.f32.mrf.mxu0
        %v1820 = vadd.f32 %v1771, %v1819
        %v1821 = vpop.f32.mrf.mxu0
        %v1822 = vadd.f32 %v1773, %v1821
        %1823 = vmatmul.bf16.gmra.mxu0 %v1472
        %v1824 = vpop.f32.mrf.mxu0
        %v1825 = vadd.f32 %v1776, %v1824
        %v1826 = vpop.f32.mrf.mxu0
        %v1827 = vadd.f32 %v1778, %v1826
        %1828 = vmatmul.bf16.gmra.mxu0 %v1476
        %v1829 = vpop.f32.mrf.mxu0
        %v1830 = vadd.f32 %v1781, %v1829
        %v1831 = vpop.f32.mrf.mxu0
        %v1832 = vadd.f32 %v1783, %v1831
        %1833 = vmatmul.bf16.gmra.mxu0 %v1480
        %v1834 = vpop.f32.mrf.mxu0
        %v1835 = vadd.f32 %v1786, %v1834
        %v1836 = vpop.f32.mrf.mxu0
        %v1837 = vadd.f32 %v1788, %v1836
        %1838 = vmatmul.bf16.gmra.mxu0 %v1484
        %v1839 = vpop.f32.mrf.mxu0
        %v1840 = vadd.f32 %v1791, %v1839
        %v1841 = vpop.f32.mrf.mxu0
        %v1842 = vadd.f32 %v1793, %v1841
        %1843 = vmatmul.bf16.gmra.mxu0 %v1488
        %v1844 = vpop.f32.mrf.mxu0
        %v1845 = vadd.f32 %v1796, %v1844
        %v1846 = vpop.f32.mrf.mxu0
        %v1847 = vadd.f32 %v1798, %v1846
        %1848 = vdwg.mxu0
        %1849 = vmatpush.bf16.msra.mxu0 %v1710
        %1850 = vmatpush.bf16.msra.mxu0 %v1709
        %1851 = vmatpush.bf16.msra.mxu0 %v1708
        %1852 = vmatpush.bf16.msra.mxu0 %v1707
        %1853 = vmatpush.bf16.msra.mxu0 %v1706
        %1854 = vmatpush.bf16.msra.mxu0 %v1705
        %1855 = vmatpush.bf16.msra.mxu0 %v1704
        %1856 = vmatpush.bf16.msra.mxu0 %v1703
        %1857 = vmatmul.bf16.gmra.mxu0 %v1461
        %v1858 = vpop.f32.mrf.mxu0
        %v1859 = vadd.f32 %v1810, %v1858
        %v1860 = vpop.f32.mrf.mxu0
        %v1861 = vadd.f32 %v1812, %v1860
        %1862 = vmatmul.bf16.gmra.mxu0 %v1465
        %v1863 = vpop.f32.mrf.mxu0
        %v1864 = vadd.f32 %v1815, %v1863
        %v1865 = vpop.f32.mrf.mxu0
        %v1866 = vadd.f32 %v1817, %v1865
        %1867 = vmatmul.bf16.gmra.mxu0 %v1469
        %v1868 = vpop.f32.mrf.mxu0
        %v1869 = vadd.f32 %v1820, %v1868
        %v1870 = vpop.f32.mrf.mxu0
        %v1871 = vadd.f32 %v1822, %v1870
        %1872 = vmatmul.bf16.gmra.mxu0 %v1473
        %v1873 = vpop.f32.mrf.mxu0
        %v1874 = vadd.f32 %v1825, %v1873
        %v1875 = vpop.f32.mrf.mxu0
        %v1876 = vadd.f32 %v1827, %v1875
        %1877 = vmatmul.bf16.gmra.mxu0 %v1477
        %v1878 = vpop.f32.mrf.mxu0
        %v1879 = vadd.f32 %v1830, %v1878
        %v1880 = vpop.f32.mrf.mxu0
        %v1881 = vadd.f32 %v1832, %v1880
        %1882 = vmatmul.bf16.gmra.mxu0 %v1481
        %v1883 = vpop.f32.mrf.mxu0
        %v1884 = vadd.f32 %v1835, %v1883
        %v1885 = vpop.f32.mrf.mxu0
        %v1886 = vadd.f32 %v1837, %v1885
        %1887 = vmatmul.bf16.gmra.mxu0 %v1485
        %v1888 = vpop.f32.mrf.mxu0
        %v1889 = vadd.f32 %v1840, %v1888
        %v1890 = vpop.f32.mrf.mxu0
        %v1891 = vadd.f32 %v1842, %v1890
        %1892 = vmatmul.bf16.gmra.mxu0 %v1489
        %v1893 = vpop.f32.mrf.mxu0
        %v1894 = vadd.f32 %v1845, %v1893
        %v1895 = vpop.f32.mrf.mxu0
        %v1896 = vadd.f32 %v1847, %v1895
        %1897 = vdwg.mxu0
        %1898 = vmatpush.bf16.msra.mxu0 %v1718
        %1899 = vmatpush.bf16.msra.mxu0 %v1717
        %1900 = vmatpush.bf16.msra.mxu0 %v1716
        %1901 = vmatpush.bf16.msra.mxu0 %v1715
        %1902 = vmatpush.bf16.msra.mxu0 %v1714
        %1903 = vmatpush.bf16.msra.mxu0 %v1713
        %1904 = vmatpush.bf16.msra.mxu0 %v1712
        %1905 = vmatpush.bf16.msra.mxu0 %v1711
        %1906 = vmatmul.bf16.gmra.mxu0 %v1462
        %v1907 = vpop.f32.mrf.mxu0
        %v1908 = vadd.f32 %v1859, %v1907
        %v1909 = vpop.f32.mrf.mxu0
        %v1910 = vadd.f32 %v1861, %v1909
        %1911 = vmatmul.bf16.gmra.mxu0 %v1466
        %v1912 = vpop.f32.mrf.mxu0
        %v1913 = vadd.f32 %v1864, %v1912
        %v1914 = vpop.f32.mrf.mxu0
        %v1915 = vadd.f32 %v1866, %v1914
        %1916 = vmatmul.bf16.gmra.mxu0 %v1470
        %v1917 = vpop.f32.mrf.mxu0
        %v1918 = vadd.f32 %v1869, %v1917
        %v1919 = vpop.f32.mrf.mxu0
        %v1920 = vadd.f32 %v1871, %v1919
        %1921 = vmatmul.bf16.gmra.mxu0 %v1474
        %v1922 = vpop.f32.mrf.mxu0
        %v1923 = vadd.f32 %v1874, %v1922
        %v1924 = vpop.f32.mrf.mxu0
        %v1925 = vadd.f32 %v1876, %v1924
        %1926 = vmatmul.bf16.gmra.mxu0 %v1478
        %v1927 = vpop.f32.mrf.mxu0
        %v1928 = vadd.f32 %v1879, %v1927
        %v1929 = vpop.f32.mrf.mxu0
        %v1930 = vadd.f32 %v1881, %v1929
        %1931 = vmatmul.bf16.gmra.mxu0 %v1482
        %v1932 = vpop.f32.mrf.mxu0
        %v1933 = vadd.f32 %v1884, %v1932
        %v1934 = vpop.f32.mrf.mxu0
        %v1935 = vadd.f32 %v1886, %v1934
        %1936 = vmatmul.bf16.gmra.mxu0 %v1486
        %v1937 = vpop.f32.mrf.mxu0
        %v1938 = vadd.f32 %v1889, %v1937
        %v1939 = vpop.f32.mrf.mxu0
        %v1940 = vadd.f32 %v1891, %v1939
        %1941 = vmatmul.bf16.gmra.mxu0 %v1490
        %v1942 = vpop.f32.mrf.mxu0
        %v1943 = vadd.f32 %v1894, %v1942
        %v1944 = vpop.f32.mrf.mxu0
        %v1945 = vadd.f32 %v1896, %v1944
        %1946 = vdwg.mxu0
        %v1947 = vmul.f32 %v1908, 0.5
        %v1948 = vmul.f32 %v1910, 0.5
        %v1949 = vmul.f32 %v1913, 0.5
        %v1950 = vmul.f32 %v1915, 0.5
        %v1951 = vmul.f32 %v1918, 0.5
        %v1952 = vmul.f32 %v1920, 0.5
        %v1953 = vmul.f32 %v1923, 0.5
        %v1954 = vmul.f32 %v1925, 0.5
        %v1955 = vmul.f32 %v1928, 0.5
        %v1956 = vmul.f32 %v1930, 0.5
        %v1957 = vmul.f32 %v1933, 0.5
        %v1958 = vmul.f32 %v1935, 0.5
        %v1959 = vmul.f32 %v1938, 0.5
        %v1960 = vmul.f32 %v1940, 0.5
        %v1961 = vmul.f32 %v1943, 0.5
        %v1962 = vmul.f32 %v1945, 0.5
        %v1963 = vmul.f32 %v1947, 1.442695
        %v1964 = vpow.pop %v1963
        %v1965 = vmul.f32 %v1948, 1.442695
        %v1966 = vpow.pop %v1965
        %v1967 = vmul.f32 %v1949, 1.442695
        %v1968 = vpow.pop %v1967
        %v1969 = vmul.f32 %v1950, 1.442695
        %v1970 = vpow.pop %v1969
        %v1971 = vmul.f32 %v1951, 1.442695
        %v1972 = vpow.pop %v1971
        %v1973 = vmul.f32 %v1952, 1.442695
        %v1974 = vpow.pop %v1973
        %v1975 = vmul.f32 %v1953, 1.442695
        %v1976 = vpow.pop %v1975
        %v1977 = vmul.f32 %v1954, 1.442695
        %v1978 = vpow.pop %v1977
        %v1979 = vmul.f32 %v1955, 1.442695
        %v1980 = vpow.pop %v1979
        %v1981 = vmul.f32 %v1956, 1.442695
        %v1982 = vpow.pop %v1981
        %v1983 = vmul.f32 %v1957, 1.442695
        %v1984 = vpow.pop %v1983
        %v1985 = vmul.f32 %v1958, 1.442695
        %v1986 = vpow.pop %v1985
        %v1987 = vmul.f32 %v1959, 1.442695
        %v1988 = vpow.pop %v1987
        %v1989 = vmul.f32 %v1960, 1.442695
        %v1990 = vpow.pop %v1989
        %v1991 = vmul.f32 %v1961, 1.442695
        %v1992 = vpow.pop %v1991
        %v1993 = vmul.f32 %v1962, 1.442695
        %v1994 = vpow.pop %v1993
        %v1995 = vld [vmem:[%s476] sm:$0xff]
        %v1996 = vld [vmem:[%s476 + $0x8] sm:$0xff]
        %v1997 = vld [vmem:[%s476 + $0x10] sm:$0xff]
        %v1998 = vld [vmem:[%s476 + $0x18] sm:$0xff]
        %v1999 = vld [vmem:[%s476 + $0x20] sm:$0xff]
        %v2000 = vld [vmem:[%s476 + $0x28] sm:$0xff]
        %v2001 = vld [vmem:[%s476 + $0x30] sm:$0xff]
        %v2002 = vld [vmem:[%s476 + $0x38] sm:$0xff]
        %v2003 = vld [vmem:[%s476 + $0x40] sm:$0xff]
        %v2004 = vld [vmem:[%s476 + $0x48] sm:$0xff]
        %v2005 = vld [vmem:[%s476 + $0x50] sm:$0xff]
        %v2006 = vld [vmem:[%s476 + $0x58] sm:$0xff]
        %v2007 = vld [vmem:[%s476 + $0x60] sm:$0xff]
        %v2008 = vld [vmem:[%s476 + $0x68] sm:$0xff]
        %v2009 = vld [vmem:[%s476 + $0x70] sm:$0xff]
        %v2010 = vld [vmem:[%s476 + $0x78] sm:$0xff]
        %2027 = vrot.lane.b32.xlu0 %v1964, 96
        %v2028 = vpop.permute.xlu0 %2027
        %2029 = vrot.lane.b32.xlu0 %v1966, 96
        %v2030 = vpop.permute.xlu0 %2029
        %2031 = vrot.lane.b32.xlu0 %v1968, 96
        %v2032 = vpop.permute.xlu0 %2031
        %2033 = vrot.lane.b32.xlu0 %v1970, 96
        %v2034 = vpop.permute.xlu0 %2033
        %2035 = vrot.lane.b32.xlu0 %v1972, 96
        %v2036 = vpop.permute.xlu0 %2035
        %2037 = vrot.lane.b32.xlu0 %v1974, 96
        %v2038 = vpop.permute.xlu0 %2037
        %2039 = vrot.lane.b32.xlu0 %v1976, 96
        %v2040 = vpop.permute.xlu0 %2039
        %2041 = vrot.lane.b32.xlu0 %v1978, 96
        %v2042 = vpop.permute.xlu0 %2041
        %2043 = vrot.lane.b32.xlu0 %v1980, 96
        %v2044 = vpop.permute.xlu0 %2043
        %2045 = vrot.lane.b32.xlu0 %v1982, 96
        %v2046 = vpop.permute.xlu0 %2045
        %2047 = vrot.lane.b32.xlu0 %v1984, 96
        %v2048 = vpop.permute.xlu0 %2047
        %2049 = vrot.lane.b32.xlu0 %v1986, 96
        %v2050 = vpop.permute.xlu0 %2049
        %2051 = vrot.lane.b32.xlu0 %v1988, 96
        %v2052 = vpop.permute.xlu0 %2051
        %2053 = vrot.lane.b32.xlu0 %v1990, 96
        %v2054 = vpop.permute.xlu0 %2053
        %2055 = vrot.lane.b32.xlu0 %v1992, 96
        %v2056 = vpop.permute.xlu0 %2055
        %2057 = vrot.lane.b32.xlu0 %v1994, 96
        %v2058 = vpop.permute.xlu0 %2057
        %v2075 = vmul.f32 %v1995, %v2028
        %v2076 = vmul.f32 %v1996, %v2030
        %v2077 = vmul.f32 %v1997, %v2032
        %v2078 = vmul.f32 %v1998, %v2034
        %v2079 = vmul.f32 %v1999, %v2036
        %v2080 = vmul.f32 %v2000, %v2038
        %v2081 = vmul.f32 %v2001, %v2040
        %v2082 = vmul.f32 %v2002, %v2042
        %v2083 = vmul.f32 %v2003, %v2044
        %v2084 = vmul.f32 %v2004, %v2046
        %v2085 = vmul.f32 %v2005, %v2048
        %v2086 = vmul.f32 %v2006, %v2050
        %v2087 = vmul.f32 %v2007, %v2052
        %v2088 = vmul.f32 %v2008, %v2054
        %v2089 = vmul.f32 %v2009, %v2056
        %v2090 = vmul.f32 %v2010, %v2058
        %v2091 = vadd.f32 %v1908, %v2075
        %v2092 = vadd.f32 %v1910, %v2076
        %v2093 = vadd.f32 %v1913, %v2077
        %v2094 = vadd.f32 %v1915, %v2078
        %v2095 = vadd.f32 %v1918, %v2079
        %v2096 = vadd.f32 %v1920, %v2080
        %v2097 = vadd.f32 %v1923, %v2081
        %v2098 = vadd.f32 %v1925, %v2082
        %v2099 = vadd.f32 %v1928, %v2083
        %v2100 = vadd.f32 %v1930, %v2084
        %v2101 = vadd.f32 %v1933, %v2085
        %v2102 = vadd.f32 %v1935, %v2086
        %v2103 = vadd.f32 %v1938, %v2087
        %v2104 = vadd.f32 %v1940, %v2088
        %v2105 = vadd.f32 %v1943, %v2089
        %v2106 = vadd.f32 %v1945, %v2090
        %v2107 = vpack.c.bf16 %v2092, %v2091
        %v2108 = vpack.c.bf16 %v2094, %v2093
        %v2109 = vpack.c.bf16 %v2096, %v2095
        %v2110 = vpack.c.bf16 %v2098, %v2097
        %v2111 = vpack.c.bf16 %v2100, %v2099
        %v2112 = vpack.c.bf16 %v2102, %v2101
        %v2113 = vpack.c.bf16 %v2104, %v2103
        %v2114 = vpack.c.bf16 %v2106, %v2105
        %v2115 = vld [vmem:[#allocation13] sm:$0xff]
        %v2116 = vld [vmem:[#allocation13 + $0x8] sm:$0xff]
        %v2117 = vld [vmem:[#allocation13 + $0x10] sm:$0xff]
        %v2118 = vld [vmem:[#allocation13 + $0x18] sm:$0xff]
        %v2119 = vld [vmem:[#allocation13 + $0x20] sm:$0xff]
        %v2120 = vld [vmem:[#allocation13 + $0x28] sm:$0xff]
        %v2121 = vld [vmem:[#allocation13 + $0x30] sm:$0xff]
        %v2122 = vld [vmem:[#allocation13 + $0x38] sm:$0xff]
        %v2123 = vld [vmem:[%s7] sm:$0xf]
        %v2125 = vperm.slane %v2123, 0
        %v2126 = vperm.slane %v2123, 1
        %v2127 = vperm.slane %v2123, 2
        %v2128 = vperm.slane %v2123, 3
        %v2141 = vunpack.c.l.b16 %v2115
        %v2142 = vunpack.c.h.b16 %v2115
        %v2143 = vunpack.c.l.b16 %v2116
        %v2144 = vunpack.c.h.b16 %v2116
        %v2145 = vunpack.c.l.b16 %v2117
        %v2146 = vunpack.c.h.b16 %v2117
        %v2147 = vunpack.c.l.b16 %v2118
        %v2148 = vunpack.c.h.b16 %v2118
        %v2149 = vunpack.c.l.b16 %v2119
        %v2150 = vunpack.c.h.b16 %v2119
        %v2151 = vunpack.c.l.b16 %v2120
        %v2152 = vunpack.c.h.b16 %v2120
        %v2153 = vunpack.c.l.b16 %v2121
        %v2154 = vunpack.c.h.b16 %v2121
        %v2155 = vunpack.c.l.b16 %v2122
        %v2156 = vunpack.c.h.b16 %v2122
        %v2157 = vpack.c.b16 %v2145, %v2141
        %v2158 = vpack.c.b16 %v2146, %v2142
        %v2159 = vpack.c.b16 %v2147, %v2143
        %v2160 = vpack.c.b16 %v2148, %v2144
        %v2161 = vpack.c.b16 %v2153, %v2149
        %v2162 = vpack.c.b16 %v2154, %v2150
        %v2163 = vpack.c.b16 %v2155, %v2151
        %v2164 = vpack.c.b16 %v2156, %v2152
        %vm2173 = vcmask 261120
        %v2175 = vsel %vm2173, %v2107, 0
        %v2178 = vsel %vm2173, %v2108, 0
        %v2181 = vsel %vm2173, %v2109, 0
        %v2184 = vsel %vm2173, %v2110, 0
        %v2187 = vsel %vm2173, %v2111, 0
        %v2190 = vsel %vm2173, %v2112, 0
        %v2193 = vsel %vm2173, %v2113, 0
        %v2196 = vsel %vm2173, %v2114, 0
        %2198 = vmatpush.bf16.msra.mxu0 0
        %2199 = vmatpush.bf16.msra.mxu0 0
        %2200 = vmatpush.bf16.msra.mxu0 0
        %2201 = vmatpush.bf16.msra.mxu0 0
        %2202 = vmatpush.bf16.msra.mxu0 0
        %2203 = vmatpush.bf16.msra.mxu0 0
        %2204 = vmatpush.bf16.msra.mxu0 %v2161
        %2205 = vmatpush.bf16.msra.mxu0 %v2157
        %2206 = vmatmul.bf16.gmra.mxu0 %v2175
        %v2207 = vpop.f32.mrf.mxu0
        %v2208 = vadd.f32 %v2125, %v2207
        %v2209 = vpop.f32.mrf.mxu0
        %v2210 = vadd.f32 %v2125, %v2209
        %2211 = vmatmul.bf16.gmra.mxu0 %v2178
        %v2212 = vpop.f32.mrf.mxu0
        %v2213 = vadd.f32 %v2125, %v2212
        %v2214 = vpop.f32.mrf.mxu0
        %v2215 = vadd.f32 %v2125, %v2214
        %2216 = vmatmul.bf16.gmra.mxu0 %v2181
        %v2217 = vpop.f32.mrf.mxu0
        %v2218 = vadd.f32 %v2125, %v2217
        %v2219 = vpop.f32.mrf.mxu0
        %v2220 = vadd.f32 %v2125, %v2219
        %2221 = vmatmul.bf16.gmra.mxu0 %v2184
        %v2222 = vpop.f32.mrf.mxu0
        %v2223 = vadd.f32 %v2125, %v2222
        %v2224 = vpop.f32.mrf.mxu0
        %v2225 = vadd.f32 %v2125, %v2224
        %2226 = vmatmul.bf16.gmra.mxu0 %v2187
        %v2227 = vpop.f32.mrf.mxu0
        %v2228 = vadd.f32 %v2125, %v2227
        %v2229 = vpop.f32.mrf.mxu0
        %v2230 = vadd.f32 %v2125, %v2229
        %2231 = vmatmul.bf16.gmra.mxu0 %v2190
        %v2232 = vpop.f32.mrf.mxu0
        %v2233 = vadd.f32 %v2125, %v2232
        %v2234 = vpop.f32.mrf.mxu0
        %v2235 = vadd.f32 %v2125, %v2234
        %2236 = vmatmul.bf16.gmra.mxu0 %v2193
        %v2237 = vpop.f32.mrf.mxu0
        %v2238 = vadd.f32 %v2125, %v2237
        %v2239 = vpop.f32.mrf.mxu0
        %v2240 = vadd.f32 %v2125, %v2239
        %2241 = vmatmul.bf16.gmra.mxu0 %v2196
        %v2242 = vpop.f32.mrf.mxu0
        %v2243 = vadd.f32 %v2125, %v2242
        %v2244 = vpop.f32.mrf.mxu0
        %v2245 = vadd.f32 %v2125, %v2244
        %2246 = vdwg.mxu0
        %2247 = vmatpush.bf16.msra.mxu0 0
        %2248 = vmatpush.bf16.msra.mxu0 0
        %2249 = vmatpush.bf16.msra.mxu0 0
        %2250 = vmatpush.bf16.msra.mxu0 0
        %2251 = vmatpush.bf16.msra.mxu0 0
        %2252 = vmatpush.bf16.msra.mxu0 0
        %2253 = vmatpush.bf16.msra.mxu0 %v2162
        %2254 = vmatpush.bf16.msra.mxu0 %v2158
        %2255 = vmatmul.bf16.gmra.mxu0 %v2175
        %v2256 = vpop.f32.mrf.mxu0
        %v2257 = vadd.f32 %v2126, %v2256
        %v2258 = vpop.f32.mrf.mxu0
        %v2259 = vadd.f32 %v2126, %v2258
        %2260 = vmatmul.bf16.gmra.mxu0 %v2178
        %v2261 = vpop.f32.mrf.mxu0
        %v2262 = vadd.f32 %v2126, %v2261
        %v2263 = vpop.f32.mrf.mxu0
        %v2264 = vadd.f32 %v2126, %v2263
        %2265 = vmatmul.bf16.gmra.mxu0 %v2181
        %v2266 = vpop.f32.mrf.mxu0
        %v2267 = vadd.f32 %v2126, %v2266
        %v2268 = vpop.f32.mrf.mxu0
        %v2269 = vadd.f32 %v2126, %v2268
        %2270 = vmatmul.bf16.gmra.mxu0 %v2184
        %v2271 = vpop.f32.mrf.mxu0
        %v2272 = vadd.f32 %v2126, %v2271
        %v2273 = vpop.f32.mrf.mxu0
        %v2274 = vadd.f32 %v2126, %v2273
        %2275 = vmatmul.bf16.gmra.mxu0 %v2187
        %v2276 = vpop.f32.mrf.mxu0
        %v2277 = vadd.f32 %v2126, %v2276
        %v2278 = vpop.f32.mrf.mxu0
        %v2279 = vadd.f32 %v2126, %v2278
        %2280 = vmatmul.bf16.gmra.mxu0 %v2190
        %v2281 = vpop.f32.mrf.mxu0
        %v2282 = vadd.f32 %v2126, %v2281
        %v2283 = vpop.f32.mrf.mxu0
        %v2284 = vadd.f32 %v2126, %v2283
        %2285 = vmatmul.bf16.gmra.mxu0 %v2193
        %v2286 = vpop.f32.mrf.mxu0
        %v2287 = vadd.f32 %v2126, %v2286
        %v2288 = vpop.f32.mrf.mxu0
        %v2289 = vadd.f32 %v2126, %v2288
        %2290 = vmatmul.bf16.gmra.mxu0 %v2196
        %v2291 = vpop.f32.mrf.mxu0
        %v2292 = vadd.f32 %v2126, %v2291
        %v2293 = vpop.f32.mrf.mxu0
        %v2294 = vadd.f32 %v2126, %v2293
        %2295 = vdwg.mxu0
        %2296 = vmatpush.bf16.msra.mxu0 0
        %2297 = vmatpush.bf16.msra.mxu0 0
        %2298 = vmatpush.bf16.msra.mxu0 0
        %2299 = vmatpush.bf16.msra.mxu0 0
        %2300 = vmatpush.bf16.msra.mxu0 0
        %2301 = vmatpush.bf16.msra.mxu0 0
        %2302 = vmatpush.bf16.msra.mxu0 %v2163
        %2303 = vmatpush.bf16.msra.mxu0 %v2159
        %2304 = vmatmul.bf16.gmra.mxu0 %v2175
        %v2305 = vpop.f32.mrf.mxu0
        %v2306 = vadd.f32 %v2127, %v2305
        %v2307 = vpop.f32.mrf.mxu0
        %v2308 = vadd.f32 %v2127, %v2307
        %2309 = vmatmul.bf16.gmra.mxu0 %v2178
        %v2310 = vpop.f32.mrf.mxu0
        %v2311 = vadd.f32 %v2127, %v2310
        %v2312 = vpop.f32.mrf.mxu0
        %v2313 = vadd.f32 %v2127, %v2312
        %2314 = vmatmul.bf16.gmra.mxu0 %v2181
        %v2315 = vpop.f32.mrf.mxu0
        %v2316 = vadd.f32 %v2127, %v2315
        %v2317 = vpop.f32.mrf.mxu0
        %v2318 = vadd.f32 %v2127, %v2317
        %2319 = vmatmul.bf16.gmra.mxu0 %v2184
        %v2320 = vpop.f32.mrf.mxu0
        %v2321 = vadd.f32 %v2127, %v2320
        %v2322 = vpop.f32.mrf.mxu0
        %v2323 = vadd.f32 %v2127, %v2322
        %2324 = vmatmul.bf16.gmra.mxu0 %v2187
        %v2325 = vpop.f32.mrf.mxu0
        %v2326 = vadd.f32 %v2127, %v2325
        %v2327 = vpop.f32.mrf.mxu0
        %v2328 = vadd.f32 %v2127, %v2327
        %2329 = vmatmul.bf16.gmra.mxu0 %v2190
        %v2330 = vpop.f32.mrf.mxu0
        %v2331 = vadd.f32 %v2127, %v2330
        %v2332 = vpop.f32.mrf.mxu0
        %v2333 = vadd.f32 %v2127, %v2332
        %2334 = vmatmul.bf16.gmra.mxu0 %v2193
        %v2335 = vpop.f32.mrf.mxu0
        %v2336 = vadd.f32 %v2127, %v2335
        %v2337 = vpop.f32.mrf.mxu0
        %v2338 = vadd.f32 %v2127, %v2337
        %2339 = vmatmul.bf16.gmra.mxu0 %v2196
        %v2340 = vpop.f32.mrf.mxu0
        %v2341 = vadd.f32 %v2127, %v2340
        %v2342 = vpop.f32.mrf.mxu0
        %v2343 = vadd.f32 %v2127, %v2342
        %2344 = vdwg.mxu0
        %2345 = vmatpush.bf16.msra.mxu0 0
        %2346 = vmatpush.bf16.msra.mxu0 0
        %2347 = vmatpush.bf16.msra.mxu0 0
        %2348 = vmatpush.bf16.msra.mxu0 0
        %2349 = vmatpush.bf16.msra.mxu0 0
        %2350 = vmatpush.bf16.msra.mxu0 0
        %2351 = vmatpush.bf16.msra.mxu0 %v2164
        %2352 = vmatpush.bf16.msra.mxu0 %v2160
        %2353 = vmatmul.bf16.gmra.mxu0 %v2175
        %v2354 = vpop.f32.mrf.mxu0
        %v2355 = vadd.f32 %v2128, %v2354
        %v2356 = vpop.f32.mrf.mxu0
        %v2357 = vadd.f32 %v2128, %v2356
        %2358 = vmatmul.bf16.gmra.mxu0 %v2178
        %v2359 = vpop.f32.mrf.mxu0
        %v2360 = vadd.f32 %v2128, %v2359
        %v2361 = vpop.f32.mrf.mxu0
        %v2362 = vadd.f32 %v2128, %v2361
        %2363 = vmatmul.bf16.gmra.mxu0 %v2181
        %v2364 = vpop.f32.mrf.mxu0
        %v2365 = vadd.f32 %v2128, %v2364
        %v2366 = vpop.f32.mrf.mxu0
        %v2367 = vadd.f32 %v2128, %v2366
        %2368 = vmatmul.bf16.gmra.mxu0 %v2184
        %v2369 = vpop.f32.mrf.mxu0
        %v2370 = vadd.f32 %v2128, %v2369
        %v2371 = vpop.f32.mrf.mxu0
        %v2372 = vadd.f32 %v2128, %v2371
        %2373 = vmatmul.bf16.gmra.mxu0 %v2187
        %v2374 = vpop.f32.mrf.mxu0
        %v2375 = vadd.f32 %v2128, %v2374
        %v2376 = vpop.f32.mrf.mxu0
        %v2377 = vadd.f32 %v2128, %v2376
        %2378 = vmatmul.bf16.gmra.mxu0 %v2190
        %v2379 = vpop.f32.mrf.mxu0
        %v2380 = vadd.f32 %v2128, %v2379
        %v2381 = vpop.f32.mrf.mxu0
        %v2382 = vadd.f32 %v2128, %v2381
        %2383 = vmatmul.bf16.gmra.mxu0 %v2193
        %v2384 = vpop.f32.mrf.mxu0
        %v2385 = vadd.f32 %v2128, %v2384
        %v2386 = vpop.f32.mrf.mxu0
        %v2387 = vadd.f32 %v2128, %v2386
        %2388 = vmatmul.bf16.gmra.mxu0 %v2196
        %v2389 = vpop.f32.mrf.mxu0
        %v2390 = vadd.f32 %v2128, %v2389
        %v2391 = vpop.f32.mrf.mxu0
        %v2392 = vadd.f32 %v2128, %v2391
        %2393 = vdwg.mxu0
        %v2394 = vmax.f32 %v2208, 0.0
        %v2395 = vmax.f32 %v2257, 0.0
        %v2396 = vmax.f32 %v2306, 0.0
        %v2397 = vmax.f32 %v2355, 0.0
        %v2398 = vmax.f32 %v2210, 0.0
        %v2399 = vmax.f32 %v2259, 0.0
        %v2400 = vmax.f32 %v2308, 0.0
        %v2401 = vmax.f32 %v2357, 0.0
        %v2402 = vmax.f32 %v2213, 0.0
        %v2403 = vmax.f32 %v2262, 0.0
        %v2404 = vmax.f32 %v2311, 0.0
        %v2405 = vmax.f32 %v2360, 0.0
        %v2406 = vmax.f32 %v2215, 0.0
        %v2407 = vmax.f32 %v2264, 0.0
        %v2408 = vmax.f32 %v2313, 0.0
        %v2409 = vmax.f32 %v2362, 0.0
        %v2410 = vmax.f32 %v2218, 0.0
        %v2411 = vmax.f32 %v2267, 0.0
        %v2412 = vmax.f32 %v2316, 0.0
        %v2413 = vmax.f32 %v2365, 0.0
        %v2414 = vmax.f32 %v2220, 0.0
        %v2415 = vmax.f32 %v2269, 0.0
        %v2416 = vmax.f32 %v2318, 0.0
        %v2417 = vmax.f32 %v2367, 0.0
        %v2418 = vmax.f32 %v2223, 0.0
        %v2419 = vmax.f32 %v2272, 0.0
        %v2420 = vmax.f32 %v2321, 0.0
        %v2421 = vmax.f32 %v2370, 0.0
        %v2422 = vmax.f32 %v2225, 0.0
        %v2423 = vmax.f32 %v2274, 0.0
        %v2424 = vmax.f32 %v2323, 0.0
        %v2425 = vmax.f32 %v2372, 0.0
        %v2426 = vmax.f32 %v2228, 0.0
        %v2427 = vmax.f32 %v2277, 0.0
        %v2428 = vmax.f32 %v2326, 0.0
        %v2429 = vmax.f32 %v2375, 0.0
        %v2430 = vmax.f32 %v2230, 0.0
        %v2431 = vmax.f32 %v2279, 0.0
        %v2432 = vmax.f32 %v2328, 0.0
        %v2433 = vmax.f32 %v2377, 0.0
        %v2434 = vmax.f32 %v2233, 0.0
        %v2435 = vmax.f32 %v2282, 0.0
        %v2436 = vmax.f32 %v2331, 0.0
        %v2437 = vmax.f32 %v2380, 0.0
        %v2438 = vmax.f32 %v2235, 0.0
        %v2439 = vmax.f32 %v2284, 0.0
        %v2440 = vmax.f32 %v2333, 0.0
        %v2441 = vmax.f32 %v2382, 0.0
        %v2442 = vmax.f32 %v2238, 0.0
        %v2443 = vmax.f32 %v2287, 0.0
        %v2444 = vmax.f32 %v2336, 0.0
        %v2445 = vmax.f32 %v2385, 0.0
        %v2446 = vmax.f32 %v2240, 0.0
        %v2447 = vmax.f32 %v2289, 0.0
        %v2448 = vmax.f32 %v2338, 0.0
        %v2449 = vmax.f32 %v2387, 0.0
        %v2450 = vmax.f32 %v2243, 0.0
        %v2451 = vmax.f32 %v2292, 0.0
        %v2452 = vmax.f32 %v2341, 0.0
        %v2453 = vmax.f32 %v2390, 0.0
        %v2454 = vmax.f32 %v2245, 0.0
        %v2455 = vmax.f32 %v2294, 0.0
        %v2456 = vmax.f32 %v2343, 0.0
        %v2457 = vmax.f32 %v2392, 0.0
        %v2458 = vpack.c.bf16 %v2398, %v2394
        %v2459 = vpack.c.bf16 %v2399, %v2395
        %v2460 = vpack.c.bf16 %v2400, %v2396
        %v2461 = vpack.c.bf16 %v2401, %v2397
        %v2462 = vpack.c.bf16 %v2406, %v2402
        %v2463 = vpack.c.bf16 %v2407, %v2403
        %v2464 = vpack.c.bf16 %v2408, %v2404
        %v2465 = vpack.c.bf16 %v2409, %v2405
        %v2466 = vpack.c.bf16 %v2414, %v2410
        %v2467 = vpack.c.bf16 %v2415, %v2411
        %v2468 = vpack.c.bf16 %v2416, %v2412
        %v2469 = vpack.c.bf16 %v2417, %v2413
        %v2470 = vpack.c.bf16 %v2422, %v2418
        %v2471 = vpack.c.bf16 %v2423, %v2419
        %v2472 = vpack.c.bf16 %v2424, %v2420
        %v2473 = vpack.c.bf16 %v2425, %v2421
        %v2474 = vpack.c.bf16 %v2430, %v2426
        %v2475 = vpack.c.bf16 %v2431, %v2427
        %v2476 = vpack.c.bf16 %v2432, %v2428
        %v2477 = vpack.c.bf16 %v2433, %v2429
        %v2478 = vpack.c.bf16 %v2438, %v2434
        %v2479 = vpack.c.bf16 %v2439, %v2435
        %v2480 = vpack.c.bf16 %v2440, %v2436
        %v2481 = vpack.c.bf16 %v2441, %v2437
        %v2482 = vpack.c.bf16 %v2446, %v2442
        %v2483 = vpack.c.bf16 %v2447, %v2443
        %v2484 = vpack.c.bf16 %v2448, %v2444
        %v2485 = vpack.c.bf16 %v2449, %v2445
        %v2486 = vpack.c.bf16 %v2454, %v2450
        %v2487 = vpack.c.bf16 %v2455, %v2451
        %v2488 = vpack.c.bf16 %v2456, %v2452
        %v2489 = vpack.c.bf16 %v2457, %v2453
        %v2490 = vld [vmem:[#allocation14] sm:$0xff]
        %v2491 = vld [vmem:[#allocation14 + $0x8] sm:$0xff]
        %v2492 = vld [vmem:[#allocation14 + $0x10] sm:$0xff]
        %v2493 = vld [vmem:[#allocation14 + $0x18] sm:$0xff]
        %v2494 = vld [vmem:[#allocation14 + $0x20] sm:$0xff]
        %v2495 = vld [vmem:[#allocation14 + $0x28] sm:$0xff]
        %v2496 = vld [vmem:[#allocation14 + $0x30] sm:$0xff]
        %v2497 = vld [vmem:[#allocation14 + $0x38] sm:$0xff]
        %v2498 = vld [vmem:[#allocation14 + $0x40] sm:$0xff]
        %v2499 = vld [vmem:[#allocation14 + $0x48] sm:$0xff]
        %v2500 = vld [vmem:[#allocation14 + $0x50] sm:$0xff]
        %v2501 = vld [vmem:[#allocation14 + $0x58] sm:$0xff]
        %v2502 = vld [vmem:[#allocation14 + $0x60] sm:$0xff]
        %v2503 = vld [vmem:[#allocation14 + $0x68] sm:$0xff]
        %v2504 = vld [vmem:[#allocation14 + $0x70] sm:$0xff]
        %v2505 = vld [vmem:[#allocation14 + $0x78] sm:$0xff]
        %v2506 = vld [vmem:[#allocation14 + $0x80] sm:$0xff]
        %v2507 = vld [vmem:[#allocation14 + $0x88] sm:$0xff]
        %v2508 = vld [vmem:[#allocation14 + $0x90] sm:$0xff]
        %v2509 = vld [vmem:[#allocation14 + $0x98] sm:$0xff]
        %v2510 = vld [vmem:[#allocation14 + $0xa0] sm:$0xff]
        %v2511 = vld [vmem:[#allocation14 + $0xa8] sm:$0xff]
        %v2512 = vld [vmem:[#allocation14 + $0xb0] sm:$0xff]
        %v2513 = vld [vmem:[#allocation14 + $0xb8] sm:$0xff]
        %v2514 = vld [vmem:[#allocation14 + $0xc0] sm:$0xff]
        %v2515 = vld [vmem:[#allocation14 + $0xc8] sm:$0xff]
        %v2516 = vld [vmem:[#allocation14 + $0xd0] sm:$0xff]
        %v2517 = vld [vmem:[#allocation14 + $0xd8] sm:$0xff]
        %v2518 = vld [vmem:[#allocation14 + $0xe0] sm:$0xff]
        %v2519 = vld [vmem:[#allocation14 + $0xe8] sm:$0xff]
        %v2520 = vld [vmem:[#allocation14 + $0xf0] sm:$0xff]
        %v2521 = vld [vmem:[#allocation14 + $0xf8] sm:$0xff]
        %v2522 = vld [vmem:[#allocation14 + $0x100] sm:$0xff]
        %v2523 = vld [vmem:[#allocation14 + $0x108] sm:$0xff]
        %v2524 = vld [vmem:[#allocation14 + $0x110] sm:$0xff]
        %v2525 = vld [vmem:[#allocation14 + $0x118] sm:$0xff]
        %v2526 = vld [vmem:[#allocation14 + $0x120] sm:$0xff]
        %v2527 = vld [vmem:[#allocation14 + $0x128] sm:$0xff]
        %v2528 = vld [vmem:[#allocation14 + $0x130] sm:$0xff]
        %v2529 = vld [vmem:[#allocation14 + $0x138] sm:$0xff]
        %v2530 = vld [vmem:[#allocation14 + $0x140] sm:$0xff]
        %v2531 = vld [vmem:[#allocation14 + $0x148] sm:$0xff]
        %v2532 = vld [vmem:[#allocation14 + $0x150] sm:$0xff]
        %v2533 = vld [vmem:[#allocation14 + $0x158] sm:$0xff]
        %v2534 = vld [vmem:[#allocation14 + $0x160] sm:$0xff]
        %v2535 = vld [vmem:[#allocation14 + $0x168] sm:$0xff]
        %v2536 = vld [vmem:[#allocation14 + $0x170] sm:$0xff]
        %v2537 = vld [vmem:[#allocation14 + $0x178] sm:$0xff]
        %v2538 = vld [vmem:[#allocation14 + $0x180] sm:$0xff]
        %v2539 = vld [vmem:[#allocation14 + $0x188] sm:$0xff]
        %v2540 = vld [vmem:[#allocation14 + $0x190] sm:$0xff]
        %v2541 = vld [vmem:[#allocation14 + $0x198] sm:$0xff]
        %v2542 = vld [vmem:[#allocation14 + $0x1a0] sm:$0xff]
        %v2543 = vld [vmem:[#allocation14 + $0x1a8] sm:$0xff]
        %v2544 = vld [vmem:[#allocation14 + $0x1b0] sm:$0xff]
        %v2545 = vld [vmem:[#allocation14 + $0x1b8] sm:$0xff]
        %v2546 = vld [vmem:[#allocation14 + $0x1c0] sm:$0xff]
        %v2547 = vld [vmem:[#allocation14 + $0x1c8] sm:$0xff]
        %v2548 = vld [vmem:[#allocation14 + $0x1d0] sm:$0xff]
        %v2549 = vld [vmem:[#allocation14 + $0x1d8] sm:$0xff]
        %v2550 = vld [vmem:[#allocation14 + $0x1e0] sm:$0xff]
        %v2551 = vld [vmem:[#allocation14 + $0x1e8] sm:$0xff]
        %v2552 = vld [vmem:[#allocation14 + $0x1f0] sm:$0xff]
        %v2553 = vld [vmem:[#allocation14 + $0x1f8] sm:$0xff]
        %v2554 = vld [vmem:[%s9] sm:$0x3]
        %v2556 = vperm.slane %v2554, 0
        %v2557 = vperm.slane %v2554, 1
        %v2624 = vunpack.c.l.b16 %v2490
        %v2625 = vunpack.c.h.b16 %v2490
        %v2626 = vunpack.c.l.b16 %v2491
        %v2627 = vunpack.c.h.b16 %v2491
        %v2628 = vunpack.c.l.b16 %v2492
        %v2629 = vunpack.c.h.b16 %v2492
        %v2630 = vunpack.c.l.b16 %v2493
        %v2631 = vunpack.c.h.b16 %v2493
        %v2632 = vunpack.c.l.b16 %v2494
        %v2633 = vunpack.c.h.b16 %v2494
        %v2634 = vunpack.c.l.b16 %v2495
        %v2635 = vunpack.c.h.b16 %v2495
        %v2636 = vunpack.c.l.b16 %v2496
        %v2637 = vunpack.c.h.b16 %v2496
        %v2638 = vunpack.c.l.b16 %v2497
        %v2639 = vunpack.c.h.b16 %v2497
        %v2640 = vunpack.c.l.b16 %v2498
        %v2641 = vunpack.c.h.b16 %v2498
        %v2642 = vunpack.c.l.b16 %v2499
        %v2643 = vunpack.c.h.b16 %v2499
        %v2644 = vunpack.c.l.b16 %v2500
        %v2645 = vunpack.c.h.b16 %v2500
        %v2646 = vunpack.c.l.b16 %v2501
        %v2647 = vunpack.c.h.b16 %v2501
        %v2648 = vunpack.c.l.b16 %v2502
        %v2649 = vunpack.c.h.b16 %v2502
        %v2650 = vunpack.c.l.b16 %v2503
        %v2651 = vunpack.c.h.b16 %v2503
        %v2652 = vunpack.c.l.b16 %v2504
        %v2653 = vunpack.c.h.b16 %v2504
        %v2654 = vunpack.c.l.b16 %v2505
        %v2655 = vunpack.c.h.b16 %v2505
        %v2656 = vunpack.c.l.b16 %v2506
        %v2657 = vunpack.c.h.b16 %v2506
        %v2658 = vunpack.c.l.b16 %v2507
        %v2659 = vunpack.c.h.b16 %v2507
        %v2660 = vunpack.c.l.b16 %v2508
        %v2661 = vunpack.c.h.b16 %v2508
        %v2662 = vunpack.c.l.b16 %v2509
        %v2663 = vunpack.c.h.b16 %v2509
        %v2664 = vunpack.c.l.b16 %v2510
        %v2665 = vunpack.c.h.b16 %v2510
        %v2666 = vunpack.c.l.b16 %v2511
        %v2667 = vunpack.c.h.b16 %v2511
        %v2668 = vunpack.c.l.b16 %v2512
        %v2669 = vunpack.c.h.b16 %v2512
        %v2670 = vunpack.c.l.b16 %v2513
        %v2671 = vunpack.c.h.b16 %v2513
        %v2672 = vunpack.c.l.b16 %v2514
        %v2673 = vunpack.c.h.b16 %v2514
        %v2674 = vunpack.c.l.b16 %v2515
        %v2675 = vunpack.c.h.b16 %v2515
        %v2676 = vunpack.c.l.b16 %v2516
        %v2677 = vunpack.c.h.b16 %v2516
        %v2678 = vunpack.c.l.b16 %v2517
        %v2679 = vunpack.c.h.b16 %v2517
        %v2680 = vunpack.c.l.b16 %v2518
        %v2681 = vunpack.c.h.b16 %v2518
        %v2682 = vunpack.c.l.b16 %v2519
        %v2683 = vunpack.c.h.b16 %v2519
        %v2684 = vunpack.c.l.b16 %v2520
        %v2685 = vunpack.c.h.b16 %v2520
        %v2686 = vunpack.c.l.b16 %v2521
        %v2687 = vunpack.c.h.b16 %v2521
        %v2688 = vunpack.c.l.b16 %v2522
        %v2689 = vunpack.c.h.b16 %v2522
        %v2690 = vunpack.c.l.b16 %v2523
        %v2691 = vunpack.c.h.b16 %v2523
        %v2692 = vunpack.c.l.b16 %v2524
        %v2693 = vunpack.c.h.b16 %v2524
        %v2694 = vunpack.c.l.b16 %v2525
        %v2695 = vunpack.c.h.b16 %v2525
        %v2696 = vunpack.c.l.b16 %v2526
        %v2697 = vunpack.c.h.b16 %v2526
        %v2698 = vunpack.c.l.b16 %v2527
        %v2699 = vunpack.c.h.b16 %v2527
        %v2700 = vunpack.c.l.b16 %v2528
        %v2701 = vunpack.c.h.b16 %v2528
        %v2702 = vunpack.c.l.b16 %v2529
        %v2703 = vunpack.c.h.b16 %v2529
        %v2704 = vunpack.c.l.b16 %v2530
        %v2705 = vunpack.c.h.b16 %v2530
        %v2706 = vunpack.c.l.b16 %v2531
        %v2707 = vunpack.c.h.b16 %v2531
        %v2708 = vunpack.c.l.b16 %v2532
        %v2709 = vunpack.c.h.b16 %v2532
        %v2710 = vunpack.c.l.b16 %v2533
        %v2711 = vunpack.c.h.b16 %v2533
        %v2712 = vunpack.c.l.b16 %v2534
        %v2713 = vunpack.c.h.b16 %v2534
        %v2714 = vunpack.c.l.b16 %v2535
        %v2715 = vunpack.c.h.b16 %v2535
        %v2716 = vunpack.c.l.b16 %v2536
        %v2717 = vunpack.c.h.b16 %v2536
        %v2718 = vunpack.c.l.b16 %v2537
        %v2719 = vunpack.c.h.b16 %v2537
        %v2720 = vunpack.c.l.b16 %v2538
        %v2721 = vunpack.c.h.b16 %v2538
        %v2722 = vunpack.c.l.b16 %v2539
        %v2723 = vunpack.c.h.b16 %v2539
        %v2724 = vunpack.c.l.b16 %v2540
        %v2725 = vunpack.c.h.b16 %v2540
        %v2726 = vunpack.c.l.b16 %v2541
        %v2727 = vunpack.c.h.b16 %v2541
        %v2728 = vunpack.c.l.b16 %v2542
        %v2729 = vunpack.c.h.b16 %v2542
        %v2730 = vunpack.c.l.b16 %v2543
        %v2731 = vunpack.c.h.b16 %v2543
        %v2732 = vunpack.c.l.b16 %v2544
        %v2733 = vunpack.c.h.b16 %v2544
        %v2734 = vunpack.c.l.b16 %v2545
        %v2735 = vunpack.c.h.b16 %v2545
        %v2736 = vunpack.c.l.b16 %v2546
        %v2737 = vunpack.c.h.b16 %v2546
        %v2738 = vunpack.c.l.b16 %v2547
        %v2739 = vunpack.c.h.b16 %v2547
        %v2740 = vunpack.c.l.b16 %v2548
        %v2741 = vunpack.c.h.b16 %v2548
        %v2742 = vunpack.c.l.b16 %v2549
        %v2743 = vunpack.c.h.b16 %v2549
        %v2744 = vunpack.c.l.b16 %v2550
        %v2745 = vunpack.c.h.b16 %v2550
        %v2746 = vunpack.c.l.b16 %v2551
        %v2747 = vunpack.c.h.b16 %v2551
        %v2748 = vunpack.c.l.b16 %v2552
        %v2749 = vunpack.c.h.b16 %v2552
        %v2750 = vunpack.c.l.b16 %v2553
        %v2751 = vunpack.c.h.b16 %v2553
        %v2752 = vpack.c.b16 %v2626, %v2624
        %v2753 = vpack.c.b16 %v2627, %v2625
        %v2754 = vpack.c.b16 %v2630, %v2628
        %v2755 = vpack.c.b16 %v2631, %v2629
        %v2756 = vpack.c.b16 %v2634, %v2632
        %v2757 = vpack.c.b16 %v2635, %v2633
        %v2758 = vpack.c.b16 %v2638, %v2636
        %v2759 = vpack.c.b16 %v2639, %v2637
        %v2760 = vpack.c.b16 %v2642, %v2640
        %v2761 = vpack.c.b16 %v2643, %v2641
        %v2762 = vpack.c.b16 %v2646, %v2644
        %v2763 = vpack.c.b16 %v2647, %v2645
        %v2764 = vpack.c.b16 %v2650, %v2648
        %v2765 = vpack.c.b16 %v2651, %v2649
        %v2766 = vpack.c.b16 %v2654, %v2652
        %v2767 = vpack.c.b16 %v2655, %v2653
        %v2768 = vpack.c.b16 %v2658, %v2656
        %v2769 = vpack.c.b16 %v2659, %v2657
        %v2770 = vpack.c.b16 %v2662, %v2660
        %v2771 = vpack.c.b16 %v2663, %v2661
        %v2772 = vpack.c.b16 %v2666, %v2664
        %v2773 = vpack.c.b16 %v2667, %v2665
        %v2774 = vpack.c.b16 %v2670, %v2668
        %v2775 = vpack.c.b16 %v2671, %v2669
        %v2776 = vpack.c.b16 %v2674, %v2672
        %v2777 = vpack.c.b16 %v2675, %v2673
        %v2778 = vpack.c.b16 %v2678, %v2676
        %v2779 = vpack.c.b16 %v2679, %v2677
        %v2780 = vpack.c.b16 %v2682, %v2680
        %v2781 = vpack.c.b16 %v2683, %v2681
        %v2782 = vpack.c.b16 %v2686, %v2684
        %v2783 = vpack.c.b16 %v2687, %v2685
        %v2784 = vpack.c.b16 %v2690, %v2688
        %v2785 = vpack.c.b16 %v2691, %v2689
        %v2786 = vpack.c.b16 %v2694, %v2692
        %v2787 = vpack.c.b16 %v2695, %v2693
        %v2788 = vpack.c.b16 %v2698, %v2696
        %v2789 = vpack.c.b16 %v2699, %v2697
        %v2790 = vpack.c.b16 %v2702, %v2700
        %v2791 = vpack.c.b16 %v2703, %v2701
        %v2792 = vpack.c.b16 %v2706, %v2704
        %v2793 = vpack.c.b16 %v2707, %v2705
        %v2794 = vpack.c.b16 %v2710, %v2708
        %v2795 = vpack.c.b16 %v2711, %v2709
        %v2796 = vpack.c.b16 %v2714, %v2712
        %v2797 = vpack.c.b16 %v2715, %v2713
        %v2798 = vpack.c.b16 %v2718, %v2716
        %v2799 = vpack.c.b16 %v2719, %v2717
        %v2800 = vpack.c.b16 %v2722, %v2720
        %v2801 = vpack.c.b16 %v2723, %v2721
        %v2802 = vpack.c.b16 %v2726, %v2724
        %v2803 = vpack.c.b16 %v2727, %v2725
        %v2804 = vpack.c.b16 %v2730, %v2728
        %v2805 = vpack.c.b16 %v2731, %v2729
        %v2806 = vpack.c.b16 %v2734, %v2732
        %v2807 = vpack.c.b16 %v2735, %v2733
        %v2808 = vpack.c.b16 %v2738, %v2736
        %v2809 = vpack.c.b16 %v2739, %v2737
        %v2810 = vpack.c.b16 %v2742, %v2740
        %v2811 = vpack.c.b16 %v2743, %v2741
        %v2812 = vpack.c.b16 %v2746, %v2744
        %v2813 = vpack.c.b16 %v2747, %v2745
        %v2814 = vpack.c.b16 %v2750, %v2748
        %v2815 = vpack.c.b16 %v2751, %v2749
        %2880 = vmatpush.bf16.msra.mxu0 %v2766
        %2881 = vmatpush.bf16.msra.mxu0 %v2764
        %2882 = vmatpush.bf16.msra.mxu0 %v2762
        %2883 = vmatpush.bf16.msra.mxu0 %v2760
        %2884 = vmatpush.bf16.msra.mxu0 %v2758
        %2885 = vmatpush.bf16.msra.mxu0 %v2756
        %2886 = vmatpush.bf16.msra.mxu0 %v2754
        %2887 = vmatpush.bf16.msra.mxu0 %v2752
        %2888 = vmatmul.bf16.gmra.mxu0 %v2458
        %v2889 = vpop.f32.mrf.mxu0
        %v2890 = vadd.f32 %v2556, %v2889
        %v2891 = vpop.f32.mrf.mxu0
        %v2892 = vadd.f32 %v2556, %v2891
        %2893 = vmatmul.bf16.gmra.mxu0 %v2462
        %v2894 = vpop.f32.mrf.mxu0
        %v2895 = vadd.f32 %v2556, %v2894
        %v2896 = vpop.f32.mrf.mxu0
        %v2897 = vadd.f32 %v2556, %v2896
        %2898 = vmatmul.bf16.gmra.mxu0 %v2466
        %v2899 = vpop.f32.mrf.mxu0
        %v2900 = vadd.f32 %v2556, %v2899
        %v2901 = vpop.f32.mrf.mxu0
        %v2902 = vadd.f32 %v2556, %v2901
        %2903 = vmatmul.bf16.gmra.mxu0 %v2470
        %v2904 = vpop.f32.mrf.mxu0
        %v2905 = vadd.f32 %v2556, %v2904
        %v2906 = vpop.f32.mrf.mxu0
        %v2907 = vadd.f32 %v2556, %v2906
        %2908 = vmatmul.bf16.gmra.mxu0 %v2474
        %v2909 = vpop.f32.mrf.mxu0
        %v2910 = vadd.f32 %v2556, %v2909
        %v2911 = vpop.f32.mrf.mxu0
        %v2912 = vadd.f32 %v2556, %v2911
        %2913 = vmatmul.bf16.gmra.mxu0 %v2478
        %v2914 = vpop.f32.mrf.mxu0
        %v2915 = vadd.f32 %v2556, %v2914
        %v2916 = vpop.f32.mrf.mxu0
        %v2917 = vadd.f32 %v2556, %v2916
        %2918 = vmatmul.bf16.gmra.mxu0 %v2482
        %v2919 = vpop.f32.mrf.mxu0
        %v2920 = vadd.f32 %v2556, %v2919
        %v2921 = vpop.f32.mrf.mxu0
        %v2922 = vadd.f32 %v2556, %v2921
        %2923 = vmatmul.bf16.gmra.mxu0 %v2486
        %v2924 = vpop.f32.mrf.mxu0
        %v2925 = vadd.f32 %v2556, %v2924
        %v2926 = vpop.f32.mrf.mxu0
        %v2927 = vadd.f32 %v2556, %v2926
        %2928 = vdwg.mxu0
        %2929 = vmatpush.bf16.msra.mxu0 %v2782
        %2930 = vmatpush.bf16.msra.mxu0 %v2780
        %2931 = vmatpush.bf16.msra.mxu0 %v2778
        %2932 = vmatpush.bf16.msra.mxu0 %v2776
        %2933 = vmatpush.bf16.msra.mxu0 %v2774
        %2934 = vmatpush.bf16.msra.mxu0 %v2772
        %2935 = vmatpush.bf16.msra.mxu0 %v2770
        %2936 = vmatpush.bf16.msra.mxu0 %v2768
        %2937 = vmatmul.bf16.gmra.mxu0 %v2459
        %v2938 = vpop.f32.mrf.mxu0
        %v2939 = vadd.f32 %v2890, %v2938
        %v2940 = vpop.f32.mrf.mxu0
        %v2941 = vadd.f32 %v2892, %v2940
        %2942 = vmatmul.bf16.gmra.mxu0 %v2463
        %v2943 = vpop.f32.mrf.mxu0
        %v2944 = vadd.f32 %v2895, %v2943
        %v2945 = vpop.f32.mrf.mxu0
        %v2946 = vadd.f32 %v2897, %v2945
        %2947 = vmatmul.bf16.gmra.mxu0 %v2467
        %v2948 = vpop.f32.mrf.mxu0
        %v2949 = vadd.f32 %v2900, %v2948
        %v2950 = vpop.f32.mrf.mxu0
        %v2951 = vadd.f32 %v2902, %v2950
        %2952 = vmatmul.bf16.gmra.mxu0 %v2471
        %v2953 = vpop.f32.mrf.mxu0
        %v2954 = vadd.f32 %v2905, %v2953
        %v2955 = vpop.f32.mrf.mxu0
        %v2956 = vadd.f32 %v2907, %v2955
        %2957 = vmatmul.bf16.gmra.mxu0 %v2475
        %v2958 = vpop.f32.mrf.mxu0
        %v2959 = vadd.f32 %v2910, %v2958
        %v2960 = vpop.f32.mrf.mxu0
        %v2961 = vadd.f32 %v2912, %v2960
        %2962 = vmatmul.bf16.gmra.mxu0 %v2479
        %v2963 = vpop.f32.mrf.mxu0
        %v2964 = vadd.f32 %v2915, %v2963
        %v2965 = vpop.f32.mrf.mxu0
        %v2966 = vadd.f32 %v2917, %v2965
        %2967 = vmatmul.bf16.gmra.mxu0 %v2483
        %v2968 = vpop.f32.mrf.mxu0
        %v2969 = vadd.f32 %v2920, %v2968
        %v2970 = vpop.f32.mrf.mxu0
        %v2971 = vadd.f32 %v2922, %v2970
        %2972 = vmatmul.bf16.gmra.mxu0 %v2487
        %v2973 = vpop.f32.mrf.mxu0
        %v2974 = vadd.f32 %v2925, %v2973
        %v2975 = vpop.f32.mrf.mxu0
        %v2976 = vadd.f32 %v2927, %v2975
        %2977 = vdwg.mxu0
        %2978 = vmatpush.bf16.msra.mxu0 %v2798
        %2979 = vmatpush.bf16.msra.mxu0 %v2796
        %2980 = vmatpush.bf16.msra.mxu0 %v2794
        %2981 = vmatpush.bf16.msra.mxu0 %v2792
        %2982 = vmatpush.bf16.msra.mxu0 %v2790
        %2983 = vmatpush.bf16.msra.mxu0 %v2788
        %2984 = vmatpush.bf16.msra.mxu0 %v2786
        %2985 = vmatpush.bf16.msra.mxu0 %v2784
        %2986 = vmatmul.bf16.gmra.mxu0 %v2460
        %v2987 = vpop.f32.mrf.mxu0
        %v2988 = vadd.f32 %v2939, %v2987
        %v2989 = vpop.f32.mrf.mxu0
        %v2990 = vadd.f32 %v2941, %v2989
        %2991 = vmatmul.bf16.gmra.mxu0 %v2464
        %v2992 = vpop.f32.mrf.mxu0
        %v2993 = vadd.f32 %v2944, %v2992
        %v2994 = vpop.f32.mrf.mxu0
        %v2995 = vadd.f32 %v2946, %v2994
        %2996 = vmatmul.bf16.gmra.mxu0 %v2468
        %v2997 = vpop.f32.mrf.mxu0
        %v2998 = vadd.f32 %v2949, %v2997
        %v2999 = vpop.f32.mrf.mxu0
        %v3000 = vadd.f32 %v2951, %v2999
        %3001 = vmatmul.bf16.gmra.mxu0 %v2472
        %v3002 = vpop.f32.mrf.mxu0
        %v3003 = vadd.f32 %v2954, %v3002
        %v3004 = vpop.f32.mrf.mxu0
        %v3005 = vadd.f32 %v2956, %v3004
        %3006 = vmatmul.bf16.gmra.mxu0 %v2476
        %v3007 = vpop.f32.mrf.mxu0
        %v3008 = vadd.f32 %v2959, %v3007
        %v3009 = vpop.f32.mrf.mxu0
        %v3010 = vadd.f32 %v2961, %v3009
        %3011 = vmatmul.bf16.gmra.mxu0 %v2480
        %v3012 = vpop.f32.mrf.mxu0
        %v3013 = vadd.f32 %v2964, %v3012
        %v3014 = vpop.f32.mrf.mxu0
        %v3015 = vadd.f32 %v2966, %v3014
        %3016 = vmatmul.bf16.gmra.mxu0 %v2484
        %v3017 = vpop.f32.mrf.mxu0
        %v3018 = vadd.f32 %v2969, %v3017
        %v3019 = vpop.f32.mrf.mxu0
        %v3020 = vadd.f32 %v2971, %v3019
        %3021 = vmatmul.bf16.gmra.mxu0 %v2488
        %v3022 = vpop.f32.mrf.mxu0
        %v3023 = vadd.f32 %v2974, %v3022
        %v3024 = vpop.f32.mrf.mxu0
        %v3025 = vadd.f32 %v2976, %v3024
        %3026 = vdwg.mxu0
        %3027 = vmatpush.bf16.msra.mxu0 %v2814
        %3028 = vmatpush.bf16.msra.mxu0 %v2812
        %3029 = vmatpush.bf16.msra.mxu0 %v2810
        %3030 = vmatpush.bf16.msra.mxu0 %v2808
        %3031 = vmatpush.bf16.msra.mxu0 %v2806
        %3032 = vmatpush.bf16.msra.mxu0 %v2804
        %3033 = vmatpush.bf16.msra.mxu0 %v2802
        %3034 = vmatpush.bf16.msra.mxu0 %v2800
        %3035 = vmatmul.bf16.gmra.mxu0 %v2461
        %v3036 = vpop.f32.mrf.mxu0
        %v3037 = vadd.f32 %v2988, %v3036
        %v3038 = vpop.f32.mrf.mxu0
        %v3039 = vadd.f32 %v2990, %v3038
        %3040 = vmatmul.bf16.gmra.mxu0 %v2465
        %v3041 = vpop.f32.mrf.mxu0
        %v3042 = vadd.f32 %v2993, %v3041
        %v3043 = vpop.f32.mrf.mxu0
        %v3044 = vadd.f32 %v2995, %v3043
        %3045 = vmatmul.bf16.gmra.mxu0 %v2469
        %v3046 = vpop.f32.mrf.mxu0
        %v3047 = vadd.f32 %v2998, %v3046
        %v3048 = vpop.f32.mrf.mxu0
        %v3049 = vadd.f32 %v3000, %v3048
        %3050 = vmatmul.bf16.gmra.mxu0 %v2473
        %v3051 = vpop.f32.mrf.mxu0
        %v3052 = vadd.f32 %v3003, %v3051
        %v3053 = vpop.f32.mrf.mxu0
        %v3054 = vadd.f32 %v3005, %v3053
        %3055 = vmatmul.bf16.gmra.mxu0 %v2477
        %v3056 = vpop.f32.mrf.mxu0
        %v3057 = vadd.f32 %v3008, %v3056
        %v3058 = vpop.f32.mrf.mxu0
        %v3059 = vadd.f32 %v3010, %v3058
        %3060 = vmatmul.bf16.gmra.mxu0 %v2481
        %v3061 = vpop.f32.mrf.mxu0
        %v3062 = vadd.f32 %v3013, %v3061
        %v3063 = vpop.f32.mrf.mxu0
        %v3064 = vadd.f32 %v3015, %v3063
        %3065 = vmatmul.bf16.gmra.mxu0 %v2485
        %v3066 = vpop.f32.mrf.mxu0
        %v3067 = vadd.f32 %v3018, %v3066
        %v3068 = vpop.f32.mrf.mxu0
        %v3069 = vadd.f32 %v3020, %v3068
        %3070 = vmatmul.bf16.gmra.mxu0 %v2489
        %v3071 = vpop.f32.mrf.mxu0
        %v3072 = vadd.f32 %v3023, %v3071
        %v3073 = vpop.f32.mrf.mxu0
        %v3074 = vadd.f32 %v3025, %v3073
        %3075 = vdwg.mxu0
        %3076 = vmatpush.bf16.msra.mxu0 %v2767
        %3077 = vmatpush.bf16.msra.mxu0 %v2765
        %3078 = vmatpush.bf16.msra.mxu0 %v2763
        %3079 = vmatpush.bf16.msra.mxu0 %v2761
        %3080 = vmatpush.bf16.msra.mxu0 %v2759
        %3081 = vmatpush.bf16.msra.mxu0 %v2757
        %3082 = vmatpush.bf16.msra.mxu0 %v2755
        %3083 = vmatpush.bf16.msra.mxu0 %v2753
        %3084 = vmatmul.bf16.gmra.mxu0 %v2458
        %v3085 = vpop.f32.mrf.mxu0
        %v3086 = vadd.f32 %v2557, %v3085
        %v3087 = vpop.f32.mrf.mxu0
        %v3088 = vadd.f32 %v2557, %v3087
        %3089 = vmatmul.bf16.gmra.mxu0 %v2462
        %v3090 = vpop.f32.mrf.mxu0
        %v3091 = vadd.f32 %v2557, %v3090
        %v3092 = vpop.f32.mrf.mxu0
        %v3093 = vadd.f32 %v2557, %v3092
        %3094 = vmatmul.bf16.gmra.mxu0 %v2466
        %v3095 = vpop.f32.mrf.mxu0
        %v3096 = vadd.f32 %v2557, %v3095
        %v3097 = vpop.f32.mrf.mxu0
        %v3098 = vadd.f32 %v2557, %v3097
        %3099 = vmatmul.bf16.gmra.mxu0 %v2470
        %v3100 = vpop.f32.mrf.mxu0
        %v3101 = vadd.f32 %v2557, %v3100
        %v3102 = vpop.f32.mrf.mxu0
        %v3103 = vadd.f32 %v2557, %v3102
        %3104 = vmatmul.bf16.gmra.mxu0 %v2474
        %v3105 = vpop.f32.mrf.mxu0
        %v3106 = vadd.f32 %v2557, %v3105
        %v3107 = vpop.f32.mrf.mxu0
        %v3108 = vadd.f32 %v2557, %v3107
        %3109 = vmatmul.bf16.gmra.mxu0 %v2478
        %v3110 = vpop.f32.mrf.mxu0
        %v3111 = vadd.f32 %v2557, %v3110
        %v3112 = vpop.f32.mrf.mxu0
        %v3113 = vadd.f32 %v2557, %v3112
        %3114 = vmatmul.bf16.gmra.mxu0 %v2482
        %v3115 = vpop.f32.mrf.mxu0
        %v3116 = vadd.f32 %v2557, %v3115
        %v3117 = vpop.f32.mrf.mxu0
        %v3118 = vadd.f32 %v2557, %v3117
        %3119 = vmatmul.bf16.gmra.mxu0 %v2486
        %v3120 = vpop.f32.mrf.mxu0
        %v3121 = vadd.f32 %v2557, %v3120
        %v3122 = vpop.f32.mrf.mxu0
        %v3123 = vadd.f32 %v2557, %v3122
        %3124 = vdwg.mxu0
        %3125 = vmatpush.bf16.msra.mxu0 %v2783
        %3126 = vmatpush.bf16.msra.mxu0 %v2781
        %3127 = vmatpush.bf16.msra.mxu0 %v2779
        %3128 = vmatpush.bf16.msra.mxu0 %v2777
        %3129 = vmatpush.bf16.msra.mxu0 %v2775
        %3130 = vmatpush.bf16.msra.mxu0 %v2773
        %3131 = vmatpush.bf16.msra.mxu0 %v2771
        %3132 = vmatpush.bf16.msra.mxu0 %v2769
        %3133 = vmatmul.bf16.gmra.mxu0 %v2459
        %v3134 = vpop.f32.mrf.mxu0
        %v3135 = vadd.f32 %v3086, %v3134
        %v3136 = vpop.f32.mrf.mxu0
        %v3137 = vadd.f32 %v3088, %v3136
        %3138 = vmatmul.bf16.gmra.mxu0 %v2463
        %v3139 = vpop.f32.mrf.mxu0
        %v3140 = vadd.f32 %v3091, %v3139
        %v3141 = vpop.f32.mrf.mxu0
        %v3142 = vadd.f32 %v3093, %v3141
        %3143 = vmatmul.bf16.gmra.mxu0 %v2467
        %v3144 = vpop.f32.mrf.mxu0
        %v3145 = vadd.f32 %v3096, %v3144
        %v3146 = vpop.f32.mrf.mxu0
        %v3147 = vadd.f32 %v3098, %v3146
        %3148 = vmatmul.bf16.gmra.mxu0 %v2471
        %v3149 = vpop.f32.mrf.mxu0
        %v3150 = vadd.f32 %v3101, %v3149
        %v3151 = vpop.f32.mrf.mxu0
        %v3152 = vadd.f32 %v3103, %v3151
        %3153 = vmatmul.bf16.gmra.mxu0 %v2475
        %v3154 = vpop.f32.mrf.mxu0
        %v3155 = vadd.f32 %v3106, %v3154
        %v3156 = vpop.f32.mrf.mxu0
        %v3157 = vadd.f32 %v3108, %v3156
        %3158 = vmatmul.bf16.gmra.mxu0 %v2479
        %v3159 = vpop.f32.mrf.mxu0
        %v3160 = vadd.f32 %v3111, %v3159
        %v3161 = vpop.f32.mrf.mxu0
        %v3162 = vadd.f32 %v3113, %v3161
        %3163 = vmatmul.bf16.gmra.mxu0 %v2483
        %v3164 = vpop.f32.mrf.mxu0
        %v3165 = vadd.f32 %v3116, %v3164
        %v3166 = vpop.f32.mrf.mxu0
        %v3167 = vadd.f32 %v3118, %v3166
        %3168 = vmatmul.bf16.gmra.mxu0 %v2487
        %v3169 = vpop.f32.mrf.mxu0
        %v3170 = vadd.f32 %v3121, %v3169
        %v3171 = vpop.f32.mrf.mxu0
        %v3172 = vadd.f32 %v3123, %v3171
        %3173 = vdwg.mxu0
        %3174 = vmatpush.bf16.msra.mxu0 %v2799
        %3175 = vmatpush.bf16.msra.mxu0 %v2797
        %3176 = vmatpush.bf16.msra.mxu0 %v2795
        %3177 = vmatpush.bf16.msra.mxu0 %v2793
        %3178 = vmatpush.bf16.msra.mxu0 %v2791
        %3179 = vmatpush.bf16.msra.mxu0 %v2789
        %3180 = vmatpush.bf16.msra.mxu0 %v2787
        %3181 = vmatpush.bf16.msra.mxu0 %v2785
        %3182 = vmatmul.bf16.gmra.mxu0 %v2460
        %v3183 = vpop.f32.mrf.mxu0
        %v3184 = vadd.f32 %v3135, %v3183
        %v3185 = vpop.f32.mrf.mxu0
        %v3186 = vadd.f32 %v3137, %v3185
        %3187 = vmatmul.bf16.gmra.mxu0 %v2464
        %v3188 = vpop.f32.mrf.mxu0
        %v3189 = vadd.f32 %v3140, %v3188
        %v3190 = vpop.f32.mrf.mxu0
        %v3191 = vadd.f32 %v3142, %v3190
        %3192 = vmatmul.bf16.gmra.mxu0 %v2468
        %v3193 = vpop.f32.mrf.mxu0
        %v3194 = vadd.f32 %v3145, %v3193
        %v3195 = vpop.f32.mrf.mxu0
        %v3196 = vadd.f32 %v3147, %v3195
        %3197 = vmatmul.bf16.gmra.mxu0 %v2472
        %v3198 = vpop.f32.mrf.mxu0
        %v3199 = vadd.f32 %v3150, %v3198
        %v3200 = vpop.f32.mrf.mxu0
        %v3201 = vadd.f32 %v3152, %v3200
        %3202 = vmatmul.bf16.gmra.mxu0 %v2476
        %v3203 = vpop.f32.mrf.mxu0
        %v3204 = vadd.f32 %v3155, %v3203
        %v3205 = vpop.f32.mrf.mxu0
        %v3206 = vadd.f32 %v3157, %v3205
        %3207 = vmatmul.bf16.gmra.mxu0 %v2480
        %v3208 = vpop.f32.mrf.mxu0
        %v3209 = vadd.f32 %v3160, %v3208
        %v3210 = vpop.f32.mrf.mxu0
        %v3211 = vadd.f32 %v3162, %v3210
        %3212 = vmatmul.bf16.gmra.mxu0 %v2484
        %v3213 = vpop.f32.mrf.mxu0
        %v3214 = vadd.f32 %v3165, %v3213
        %v3215 = vpop.f32.mrf.mxu0
        %v3216 = vadd.f32 %v3167, %v3215
        %3217 = vmatmul.bf16.gmra.mxu0 %v2488
        %v3218 = vpop.f32.mrf.mxu0
        %v3219 = vadd.f32 %v3170, %v3218
        %v3220 = vpop.f32.mrf.mxu0
        %v3221 = vadd.f32 %v3172, %v3220
        %3222 = vdwg.mxu0
        %3223 = vmatpush.bf16.msra.mxu0 %v2815
        %3224 = vmatpush.bf16.msra.mxu0 %v2813
        %3225 = vmatpush.bf16.msra.mxu0 %v2811
        %3226 = vmatpush.bf16.msra.mxu0 %v2809
        %3227 = vmatpush.bf16.msra.mxu0 %v2807
        %3228 = vmatpush.bf16.msra.mxu0 %v2805
        %3229 = vmatpush.bf16.msra.mxu0 %v2803
        %3230 = vmatpush.bf16.msra.mxu0 %v2801
        %3231 = vmatmul.bf16.gmra.mxu0 %v2461
        %v3232 = vpop.f32.mrf.mxu0
        %v3233 = vadd.f32 %v3184, %v3232
        %v3234 = vpop.f32.mrf.mxu0
        %v3235 = vadd.f32 %v3186, %v3234
        %3236 = vmatmul.bf16.gmra.mxu0 %v2465
        %v3237 = vpop.f32.mrf.mxu0
        %v3238 = vadd.f32 %v3189, %v3237
        %v3239 = vpop.f32.mrf.mxu0
        %v3240 = vadd.f32 %v3191, %v3239
        %3241 = vmatmul.bf16.gmra.mxu0 %v2469
        %v3242 = vpop.f32.mrf.mxu0
        %v3243 = vadd.f32 %v3194, %v3242
        %v3244 = vpop.f32.mrf.mxu0
        %v3245 = vadd.f32 %v3196, %v3244
        %3246 = vmatmul.bf16.gmra.mxu0 %v2473
        %v3247 = vpop.f32.mrf.mxu0
        %v3248 = vadd.f32 %v3199, %v3247
        %v3249 = vpop.f32.mrf.mxu0
        %v3250 = vadd.f32 %v3201, %v3249
        %3251 = vmatmul.bf16.gmra.mxu0 %v2477
        %v3252 = vpop.f32.mrf.mxu0
        %v3253 = vadd.f32 %v3204, %v3252
        %v3254 = vpop.f32.mrf.mxu0
        %v3255 = vadd.f32 %v3206, %v3254
        %3256 = vmatmul.bf16.gmra.mxu0 %v2481
        %v3257 = vpop.f32.mrf.mxu0
        %v3258 = vadd.f32 %v3209, %v3257
        %v3259 = vpop.f32.mrf.mxu0
        %v3260 = vadd.f32 %v3211, %v3259
        %3261 = vmatmul.bf16.gmra.mxu0 %v2485
        %v3262 = vpop.f32.mrf.mxu0
        %v3263 = vadd.f32 %v3214, %v3262
        %v3264 = vpop.f32.mrf.mxu0
        %v3265 = vadd.f32 %v3216, %v3264
        %3266 = vmatmul.bf16.gmra.mxu0 %v2489
        %v3267 = vpop.f32.mrf.mxu0
        %v3268 = vadd.f32 %v3219, %v3267
        %v3269 = vpop.f32.mrf.mxu0
        %v3270 = vadd.f32 %v3221, %v3269
        %3271 = vdwg.mxu0
        %v3272 = vxor.u32 %v3037, 2147483648
        %v3273 = vxor.u32 %v3233, 2147483648
        %v3274 = vxor.u32 %v3039, 2147483648
        %v3275 = vxor.u32 %v3235, 2147483648
        %v3276 = vxor.u32 %v3042, 2147483648
        %v3277 = vxor.u32 %v3238, 2147483648
        %v3278 = vxor.u32 %v3044, 2147483648
        %v3279 = vxor.u32 %v3240, 2147483648
        %v3280 = vxor.u32 %v3047, 2147483648
        %v3281 = vxor.u32 %v3243, 2147483648
        %v3282 = vxor.u32 %v3049, 2147483648
        %v3283 = vxor.u32 %v3245, 2147483648
        %v3284 = vxor.u32 %v3052, 2147483648
        %v3285 = vxor.u32 %v3248, 2147483648
        %v3286 = vxor.u32 %v3054, 2147483648
        %v3287 = vxor.u32 %v3250, 2147483648
        %v3288 = vxor.u32 %v3057, 2147483648
        %v3289 = vxor.u32 %v3253, 2147483648
        %v3290 = vxor.u32 %v3059, 2147483648
        %v3291 = vxor.u32 %v3255, 2147483648
        %v3292 = vxor.u32 %v3062, 2147483648
        %v3293 = vxor.u32 %v3258, 2147483648
        %v3294 = vxor.u32 %v3064, 2147483648
        %v3295 = vxor.u32 %v3260, 2147483648
        %v3296 = vxor.u32 %v3067, 2147483648
        %v3297 = vxor.u32 %v3263, 2147483648
        %v3298 = vxor.u32 %v3069, 2147483648
        %v3299 = vxor.u32 %v3265, 2147483648
        %v3300 = vxor.u32 %v3072, 2147483648
        %v3301 = vxor.u32 %v3268, 2147483648
        %v3302 = vxor.u32 %v3074, 2147483648
        %v3303 = vxor.u32 %v3270, 2147483648
        %v3304 = vmul.f32 %v3272, 1.442695
        %v3305 = vpow.pop %v3304
        %v3306 = vmul.f32 %v3273, 1.442695
        %v3307 = vpow.pop %v3306
        %v3308 = vmul.f32 %v3274, 1.442695
        %v3309 = vpow.pop %v3308
        %v3310 = vmul.f32 %v3275, 1.442695
        %v3311 = vpow.pop %v3310
        %v3312 = vmul.f32 %v3276, 1.442695
        %v3313 = vpow.pop %v3312
        %v3314 = vmul.f32 %v3277, 1.442695
        %v3315 = vpow.pop %v3314
        %v3316 = vmul.f32 %v3278, 1.442695
        %v3317 = vpow.pop %v3316
        %v3318 = vmul.f32 %v3279, 1.442695
        %v3319 = vpow.pop %v3318
        %v3320 = vmul.f32 %v3280, 1.442695
        %v3321 = vpow.pop %v3320
        %v3322 = vmul.f32 %v3281, 1.442695
        %v3323 = vpow.pop %v3322
        %v3324 = vmul.f32 %v3282, 1.442695
        %v3325 = vpow.pop %v3324
        %v3326 = vmul.f32 %v3283, 1.442695
        %v3327 = vpow.pop %v3326
        %v3328 = vmul.f32 %v3284, 1.442695
        %v3329 = vpow.pop %v3328
        %v3330 = vmul.f32 %v3285, 1.442695
        %v3331 = vpow.pop %v3330
        %v3332 = vmul.f32 %v3286, 1.442695
        %v3333 = vpow.pop %v3332
        %v3334 = vmul.f32 %v3287, 1.442695
        %v3335 = vpow.pop %v3334
        %v3336 = vmul.f32 %v3288, 1.442695
        %v3337 = vpow.pop %v3336
        %v3338 = vmul.f32 %v3289, 1.442695
        %v3339 = vpow.pop %v3338
        %v3340 = vmul.f32 %v3290, 1.442695
        %v3341 = vpow.pop %v3340
        %v3342 = vmul.f32 %v3291, 1.442695
        %v3343 = vpow.pop %v3342
        %v3344 = vmul.f32 %v3292, 1.442695
        %v3345 = vpow.pop %v3344
        %v3346 = vmul.f32 %v3293, 1.442695
        %v3347 = vpow.pop %v3346
        %v3348 = vmul.f32 %v3294, 1.442695
        %v3349 = vpow.pop %v3348
        %v3350 = vmul.f32 %v3295, 1.442695
        %v3351 = vpow.pop %v3350
        %v3352 = vmul.f32 %v3296, 1.442695
        %v3353 = vpow.pop %v3352
        %v3354 = vmul.f32 %v3297, 1.442695
        %v3355 = vpow.pop %v3354
        %v3356 = vmul.f32 %v3298, 1.442695
        %v3357 = vpow.pop %v3356
        %v3358 = vmul.f32 %v3299, 1.442695
        %v3359 = vpow.pop %v3358
        %v3360 = vmul.f32 %v3300, 1.442695
        %v3361 = vpow.pop %v3360
        %v3362 = vmul.f32 %v3301, 1.442695
        %v3363 = vpow.pop %v3362
        %v3364 = vmul.f32 %v3302, 1.442695
        %v3365 = vpow.pop %v3364
        %v3366 = vmul.f32 %v3303, 1.442695
        %v3367 = vpow.pop %v3366
        %v3368 = vadd.f32 %v3305, 1.0
        %v3369 = vadd.f32 %v3307, 1.0
        %v3370 = vadd.f32 %v3309, 1.0
        %v3371 = vadd.f32 %v3311, 1.0
        %v3372 = vadd.f32 %v3313, 1.0
        %v3373 = vadd.f32 %v3315, 1.0
        %v3374 = vadd.f32 %v3317, 1.0
        %v3375 = vadd.f32 %v3319, 1.0
        %v3376 = vadd.f32 %v3321, 1.0
        %v3377 = vadd.f32 %v3323, 1.0
        %v3378 = vadd.f32 %v3325, 1.0
        %v3379 = vadd.f32 %v3327, 1.0
        %v3380 = vadd.f32 %v3329, 1.0
        %v3381 = vadd.f32 %v3331, 1.0
        %v3382 = vadd.f32 %v3333, 1.0
        %v3383 = vadd.f32 %v3335, 1.0
        %v3384 = vadd.f32 %v3337, 1.0
        %v3385 = vadd.f32 %v3339, 1.0
        %v3386 = vadd.f32 %v3341, 1.0
        %v3387 = vadd.f32 %v3343, 1.0
        %v3388 = vadd.f32 %v3345, 1.0
        %v3389 = vadd.f32 %v3347, 1.0
        %v3390 = vadd.f32 %v3349, 1.0
        %v3391 = vadd.f32 %v3351, 1.0
        %v3392 = vadd.f32 %v3353, 1.0
        %v3393 = vadd.f32 %v3355, 1.0
        %v3394 = vadd.f32 %v3357, 1.0
        %v3395 = vadd.f32 %v3359, 1.0
        %v3396 = vadd.f32 %v3361, 1.0
        %v3397 = vadd.f32 %v3363, 1.0
        %v3398 = vadd.f32 %v3365, 1.0
        %v3399 = vadd.f32 %v3367, 1.0
        %v3400 = vrcp.pop %v3368
        %v3401 = vmul.f32 %v3368, %v3400
        %v3402 = vsub.f32 1.0, %v3401
        %v3403 = vmul.f32 %v3400, %v3402
        %v3404 = vadd.f32 %v3400, %v3403
        %vm3405 = vweird.f32 %v3368
        %vm3406 = vweird.f32 %v3400
        %vm3407 = vmor %vm3405, %vm3406
        %v3408 = vsel %vm3407, %v3400, %v3404
        %v3409 = vand.u32 2147483647, %v3368
        %vm3410 = vcmp.eq.f32.partialorder %v3409, 8.507059e+37
        %v3411 = vand.u32 %v3368, 2147483648
        %v3412 = vor.u32 1.1754944e-38, %v3411
        %v3413 = vsel %vm3410, %v3412, %v3408
        %v3414 = vmul.f32 1.0, %v3413
        %v3415 = vrcp.pop %v3369
        %v3416 = vmul.f32 %v3369, %v3415
        %v3417 = vsub.f32 1.0, %v3416
        %v3418 = vmul.f32 %v3415, %v3417
        %v3419 = vadd.f32 %v3415, %v3418
        %vm3420 = vweird.f32 %v3369
        %vm3421 = vweird.f32 %v3415
        %vm3422 = vmor %vm3420, %vm3421
        %v3423 = vsel %vm3422, %v3415, %v3419
        %v3424 = vand.u32 2147483647, %v3369
        %vm3425 = vcmp.eq.f32.partialorder %v3424, 8.507059e+37
        %v3426 = vand.u32 %v3369, 2147483648
        %v3427 = vor.u32 1.1754944e-38, %v3426
        %v3428 = vsel %vm3425, %v3427, %v3423
        %v3429 = vmul.f32 1.0, %v3428
        %v3430 = vrcp.pop %v3370
        %v3431 = vmul.f32 %v3370, %v3430
        %v3432 = vsub.f32 1.0, %v3431
        %v3433 = vmul.f32 %v3430, %v3432
        %v3434 = vadd.f32 %v3430, %v3433
        %vm3435 = vweird.f32 %v3370
        %vm3436 = vweird.f32 %v3430
        %vm3437 = vmor %vm3435, %vm3436
        %v3438 = vsel %vm3437, %v3430, %v3434
        %v3439 = vand.u32 2147483647, %v3370
        %vm3440 = vcmp.eq.f32.partialorder %v3439, 8.507059e+37
        %v3441 = vand.u32 %v3370, 2147483648
        %v3442 = vor.u32 1.1754944e-38, %v3441
        %v3443 = vsel %vm3440, %v3442, %v3438
        %v3444 = vmul.f32 1.0, %v3443
        %v3445 = vrcp.pop %v3371
        %v3446 = vmul.f32 %v3371, %v3445
        %v3447 = vsub.f32 1.0, %v3446
        %v3448 = vmul.f32 %v3445, %v3447
        %v3449 = vadd.f32 %v3445, %v3448
        %vm3450 = vweird.f32 %v3371
        %vm3451 = vweird.f32 %v3445
        %vm3452 = vmor %vm3450, %vm3451
        %v3453 = vsel %vm3452, %v3445, %v3449
        %v3454 = vand.u32 2147483647, %v3371
        %vm3455 = vcmp.eq.f32.partialorder %v3454, 8.507059e+37
        %v3456 = vand.u32 %v3371, 2147483648
        %v3457 = vor.u32 1.1754944e-38, %v3456
        %v3458 = vsel %vm3455, %v3457, %v3453
        %v3459 = vmul.f32 1.0, %v3458
        %v3460 = vrcp.pop %v3372
        %v3461 = vmul.f32 %v3372, %v3460
        %v3462 = vsub.f32 1.0, %v3461
        %v3463 = vmul.f32 %v3460, %v3462
        %v3464 = vadd.f32 %v3460, %v3463
        %vm3465 = vweird.f32 %v3372
        %vm3466 = vweird.f32 %v3460
        %vm3467 = vmor %vm3465, %vm3466
        %v3468 = vsel %vm3467, %v3460, %v3464
        %v3469 = vand.u32 2147483647, %v3372
        %vm3470 = vcmp.eq.f32.partialorder %v3469, 8.507059e+37
        %v3471 = vand.u32 %v3372, 2147483648
        %v3472 = vor.u32 1.1754944e-38, %v3471
        %v3473 = vsel %vm3470, %v3472, %v3468
        %v3474 = vmul.f32 1.0, %v3473
        %v3475 = vrcp.pop %v3373
        %v3476 = vmul.f32 %v3373, %v3475
        %v3477 = vsub.f32 1.0, %v3476
        %v3478 = vmul.f32 %v3475, %v3477
        %v3479 = vadd.f32 %v3475, %v3478
        %vm3480 = vweird.f32 %v3373
        %vm3481 = vweird.f32 %v3475
        %vm3482 = vmor %vm3480, %vm3481
        %v3483 = vsel %vm3482, %v3475, %v3479
        %v3484 = vand.u32 2147483647, %v3373
        %vm3485 = vcmp.eq.f32.partialorder %v3484, 8.507059e+37
        %v3486 = vand.u32 %v3373, 2147483648
        %v3487 = vor.u32 1.1754944e-38, %v3486
        %v3488 = vsel %vm3485, %v3487, %v3483
        %v3489 = vmul.f32 1.0, %v3488
        %v3490 = vrcp.pop %v3374
        %v3491 = vmul.f32 %v3374, %v3490
        %v3492 = vsub.f32 1.0, %v3491
        %v3493 = vmul.f32 %v3490, %v3492
        %v3494 = vadd.f32 %v3490, %v3493
        %vm3495 = vweird.f32 %v3374
        %vm3496 = vweird.f32 %v3490
        %vm3497 = vmor %vm3495, %vm3496
        %v3498 = vsel %vm3497, %v3490, %v3494
        %v3499 = vand.u32 2147483647, %v3374
        %vm3500 = vcmp.eq.f32.partialorder %v3499, 8.507059e+37
        %v3501 = vand.u32 %v3374, 2147483648
        %v3502 = vor.u32 1.1754944e-38, %v3501
        %v3503 = vsel %vm3500, %v3502, %v3498
        %v3504 = vmul.f32 1.0, %v3503
        %v3505 = vrcp.pop %v3375
        %v3506 = vmul.f32 %v3375, %v3505
        %v3507 = vsub.f32 1.0, %v3506
        %v3508 = vmul.f32 %v3505, %v3507
        %v3509 = vadd.f32 %v3505, %v3508
        %vm3510 = vweird.f32 %v3375
        %vm3511 = vweird.f32 %v3505
        %vm3512 = vmor %vm3510, %vm3511
        %v3513 = vsel %vm3512, %v3505, %v3509
        %v3514 = vand.u32 2147483647, %v3375
        %vm3515 = vcmp.eq.f32.partialorder %v3514, 8.507059e+37
        %v3516 = vand.u32 %v3375, 2147483648
        %v3517 = vor.u32 1.1754944e-38, %v3516
        %v3518 = vsel %vm3515, %v3517, %v3513
        %v3519 = vmul.f32 1.0, %v3518
        %v3520 = vrcp.pop %v3376
        %v3521 = vmul.f32 %v3376, %v3520
        %v3522 = vsub.f32 1.0, %v3521
        %v3523 = vmul.f32 %v3520, %v3522
        %v3524 = vadd.f32 %v3520, %v3523
        %vm3525 = vweird.f32 %v3376
        %vm3526 = vweird.f32 %v3520
        %vm3527 = vmor %vm3525, %vm3526
        %v3528 = vsel %vm3527, %v3520, %v3524
        %v3529 = vand.u32 2147483647, %v3376
        %vm3530 = vcmp.eq.f32.partialorder %v3529, 8.507059e+37
        %v3531 = vand.u32 %v3376, 2147483648
        %v3532 = vor.u32 1.1754944e-38, %v3531
        %v3533 = vsel %vm3530, %v3532, %v3528
        %v3534 = vmul.f32 1.0, %v3533
        %v3535 = vrcp.pop %v3377
        %v3536 = vmul.f32 %v3377, %v3535
        %v3537 = vsub.f32 1.0, %v3536
        %v3538 = vmul.f32 %v3535, %v3537
        %v3539 = vadd.f32 %v3535, %v3538
        %vm3540 = vweird.f32 %v3377
        %vm3541 = vweird.f32 %v3535
        %vm3542 = vmor %vm3540, %vm3541
        %v3543 = vsel %vm3542, %v3535, %v3539
        %v3544 = vand.u32 2147483647, %v3377
        %vm3545 = vcmp.eq.f32.partialorder %v3544, 8.507059e+37
        %v3546 = vand.u32 %v3377, 2147483648
        %v3547 = vor.u32 1.1754944e-38, %v3546
        %v3548 = vsel %vm3545, %v3547, %v3543
        %v3549 = vmul.f32 1.0, %v3548
        %v3550 = vrcp.pop %v3378
        %v3551 = vmul.f32 %v3378, %v3550
        %v3552 = vsub.f32 1.0, %v3551
        %v3553 = vmul.f32 %v3550, %v3552
        %v3554 = vadd.f32 %v3550, %v3553
        %vm3555 = vweird.f32 %v3378
        %vm3556 = vweird.f32 %v3550
        %vm3557 = vmor %vm3555, %vm3556
        %v3558 = vsel %vm3557, %v3550, %v3554
        %v3559 = vand.u32 2147483647, %v3378
        %vm3560 = vcmp.eq.f32.partialorder %v3559, 8.507059e+37
        %v3561 = vand.u32 %v3378, 2147483648
        %v3562 = vor.u32 1.1754944e-38, %v3561
        %v3563 = vsel %vm3560, %v3562, %v3558
        %v3564 = vmul.f32 1.0, %v3563
        %v3565 = vrcp.pop %v3379
        %v3566 = vmul.f32 %v3379, %v3565
        %v3567 = vsub.f32 1.0, %v3566
        %v3568 = vmul.f32 %v3565, %v3567
        %v3569 = vadd.f32 %v3565, %v3568
        %vm3570 = vweird.f32 %v3379
        %vm3571 = vweird.f32 %v3565
        %vm3572 = vmor %vm3570, %vm3571
        %v3573 = vsel %vm3572, %v3565, %v3569
        %v3574 = vand.u32 2147483647, %v3379
        %vm3575 = vcmp.eq.f32.partialorder %v3574, 8.507059e+37
        %v3576 = vand.u32 %v3379, 2147483648
        %v3577 = vor.u32 1.1754944e-38, %v3576
        %v3578 = vsel %vm3575, %v3577, %v3573
        %v3579 = vmul.f32 1.0, %v3578
        %v3580 = vrcp.pop %v3380
        %v3581 = vmul.f32 %v3380, %v3580
        %v3582 = vsub.f32 1.0, %v3581
        %v3583 = vmul.f32 %v3580, %v3582
        %v3584 = vadd.f32 %v3580, %v3583
        %vm3585 = vweird.f32 %v3380
        %vm3586 = vweird.f32 %v3580
        %vm3587 = vmor %vm3585, %vm3586
        %v3588 = vsel %vm3587, %v3580, %v3584
        %v3589 = vand.u32 2147483647, %v3380
        %vm3590 = vcmp.eq.f32.partialorder %v3589, 8.507059e+37
        %v3591 = vand.u32 %v3380, 2147483648
        %v3592 = vor.u32 1.1754944e-38, %v3591
        %v3593 = vsel %vm3590, %v3592, %v3588
        %v3594 = vmul.f32 1.0, %v3593
        %v3595 = vrcp.pop %v3381
        %v3596 = vmul.f32 %v3381, %v3595
        %v3597 = vsub.f32 1.0, %v3596
        %v3598 = vmul.f32 %v3595, %v3597
        %v3599 = vadd.f32 %v3595, %v3598
        %vm3600 = vweird.f32 %v3381
        %vm3601 = vweird.f32 %v3595
        %vm3602 = vmor %vm3600, %vm3601
        %v3603 = vsel %vm3602, %v3595, %v3599
        %v3604 = vand.u32 2147483647, %v3381
        %vm3605 = vcmp.eq.f32.partialorder %v3604, 8.507059e+37
        %v3606 = vand.u32 %v3381, 2147483648
        %v3607 = vor.u32 1.1754944e-38, %v3606
        %v3608 = vsel %vm3605, %v3607, %v3603
        %v3609 = vmul.f32 1.0, %v3608
        %v3610 = vrcp.pop %v3382
        %v3611 = vmul.f32 %v3382, %v3610
        %v3612 = vsub.f32 1.0, %v3611
        %v3613 = vmul.f32 %v3610, %v3612
        %v3614 = vadd.f32 %v3610, %v3613
        %vm3615 = vweird.f32 %v3382
        %vm3616 = vweird.f32 %v3610
        %vm3617 = vmor %vm3615, %vm3616
        %v3618 = vsel %vm3617, %v3610, %v3614
        %v3619 = vand.u32 2147483647, %v3382
        %vm3620 = vcmp.eq.f32.partialorder %v3619, 8.507059e+37
        %v3621 = vand.u32 %v3382, 2147483648
        %v3622 = vor.u32 1.1754944e-38, %v3621
        %v3623 = vsel %vm3620, %v3622, %v3618
        %v3624 = vmul.f32 1.0, %v3623
        %v3625 = vrcp.pop %v3383
        %v3626 = vmul.f32 %v3383, %v3625
        %v3627 = vsub.f32 1.0, %v3626
        %v3628 = vmul.f32 %v3625, %v3627
        %v3629 = vadd.f32 %v3625, %v3628
        %vm3630 = vweird.f32 %v3383
        %vm3631 = vweird.f32 %v3625
        %vm3632 = vmor %vm3630, %vm3631
        %v3633 = vsel %vm3632, %v3625, %v3629
        %v3634 = vand.u32 2147483647, %v3383
        %vm3635 = vcmp.eq.f32.partialorder %v3634, 8.507059e+37
        %v3636 = vand.u32 %v3383, 2147483648
        %v3637 = vor.u32 1.1754944e-38, %v3636
        %v3638 = vsel %vm3635, %v3637, %v3633
        %v3639 = vmul.f32 1.0, %v3638
        %v3640 = vrcp.pop %v3384
        %v3641 = vmul.f32 %v3384, %v3640
        %v3642 = vsub.f32 1.0, %v3641
        %v3643 = vmul.f32 %v3640, %v3642
        %v3644 = vadd.f32 %v3640, %v3643
        %vm3645 = vweird.f32 %v3384
        %vm3646 = vweird.f32 %v3640
        %vm3647 = vmor %vm3645, %vm3646
        %v3648 = vsel %vm3647, %v3640, %v3644
        %v3649 = vand.u32 2147483647, %v3384
        %vm3650 = vcmp.eq.f32.partialorder %v3649, 8.507059e+37
        %v3651 = vand.u32 %v3384, 2147483648
        %v3652 = vor.u32 1.1754944e-38, %v3651
        %v3653 = vsel %vm3650, %v3652, %v3648
        %v3654 = vmul.f32 1.0, %v3653
        %v3655 = vrcp.pop %v3385
        %v3656 = vmul.f32 %v3385, %v3655
        %v3657 = vsub.f32 1.0, %v3656
        %v3658 = vmul.f32 %v3655, %v3657
        %v3659 = vadd.f32 %v3655, %v3658
        %vm3660 = vweird.f32 %v3385
        %vm3661 = vweird.f32 %v3655
        %vm3662 = vmor %vm3660, %vm3661
        %v3663 = vsel %vm3662, %v3655, %v3659
        %v3664 = vand.u32 2147483647, %v3385
        %vm3665 = vcmp.eq.f32.partialorder %v3664, 8.507059e+37
        %v3666 = vand.u32 %v3385, 2147483648
        %v3667 = vor.u32 1.1754944e-38, %v3666
        %v3668 = vsel %vm3665, %v3667, %v3663
        %v3669 = vmul.f32 1.0, %v3668
        %v3670 = vrcp.pop %v3386
        %v3671 = vmul.f32 %v3386, %v3670
        %v3672 = vsub.f32 1.0, %v3671
        %v3673 = vmul.f32 %v3670, %v3672
        %v3674 = vadd.f32 %v3670, %v3673
        %vm3675 = vweird.f32 %v3386
        %vm3676 = vweird.f32 %v3670
        %vm3677 = vmor %vm3675, %vm3676
        %v3678 = vsel %vm3677, %v3670, %v3674
        %v3679 = vand.u32 2147483647, %v3386
        %vm3680 = vcmp.eq.f32.partialorder %v3679, 8.507059e+37
        %v3681 = vand.u32 %v3386, 2147483648
        %v3682 = vor.u32 1.1754944e-38, %v3681
        %v3683 = vsel %vm3680, %v3682, %v3678
        %v3684 = vmul.f32 1.0, %v3683
        %v3685 = vrcp.pop %v3387
        %v3686 = vmul.f32 %v3387, %v3685
        %v3687 = vsub.f32 1.0, %v3686
        %v3688 = vmul.f32 %v3685, %v3687
        %v3689 = vadd.f32 %v3685, %v3688
        %vm3690 = vweird.f32 %v3387
        %vm3691 = vweird.f32 %v3685
        %vm3692 = vmor %vm3690, %vm3691
        %v3693 = vsel %vm3692, %v3685, %v3689
        %v3694 = vand.u32 2147483647, %v3387
        %vm3695 = vcmp.eq.f32.partialorder %v3694, 8.507059e+37
        %v3696 = vand.u32 %v3387, 2147483648
        %v3697 = vor.u32 1.1754944e-38, %v3696
        %v3698 = vsel %vm3695, %v3697, %v3693
        %v3699 = vmul.f32 1.0, %v3698
        %v3700 = vrcp.pop %v3388
        %v3701 = vmul.f32 %v3388, %v3700
        %v3702 = vsub.f32 1.0, %v3701
        %v3703 = vmul.f32 %v3700, %v3702
        %v3704 = vadd.f32 %v3700, %v3703
        %vm3705 = vweird.f32 %v3388
        %vm3706 = vweird.f32 %v3700
        %vm3707 = vmor %vm3705, %vm3706
        %v3708 = vsel %vm3707, %v3700, %v3704
        %v3709 = vand.u32 2147483647, %v3388
        %vm3710 = vcmp.eq.f32.partialorder %v3709, 8.507059e+37
        %v3711 = vand.u32 %v3388, 2147483648
        %v3712 = vor.u32 1.1754944e-38, %v3711
        %v3713 = vsel %vm3710, %v3712, %v3708
        %v3714 = vmul.f32 1.0, %v3713
        %v3715 = vrcp.pop %v3389
        %v3716 = vmul.f32 %v3389, %v3715
        %v3717 = vsub.f32 1.0, %v3716
        %v3718 = vmul.f32 %v3715, %v3717
        %v3719 = vadd.f32 %v3715, %v3718
        %vm3720 = vweird.f32 %v3389
        %vm3721 = vweird.f32 %v3715
        %vm3722 = vmor %vm3720, %vm3721
        %v3723 = vsel %vm3722, %v3715, %v3719
        %v3724 = vand.u32 2147483647, %v3389
        %vm3725 = vcmp.eq.f32.partialorder %v3724, 8.507059e+37
        %v3726 = vand.u32 %v3389, 2147483648
        %v3727 = vor.u32 1.1754944e-38, %v3726
        %v3728 = vsel %vm3725, %v3727, %v3723
        %v3729 = vmul.f32 1.0, %v3728
        %v3730 = vrcp.pop %v3390
        %v3731 = vmul.f32 %v3390, %v3730
        %v3732 = vsub.f32 1.0, %v3731
        %v3733 = vmul.f32 %v3730, %v3732
        %v3734 = vadd.f32 %v3730, %v3733
        %vm3735 = vweird.f32 %v3390
        %vm3736 = vweird.f32 %v3730
        %vm3737 = vmor %vm3735, %vm3736
        %v3738 = vsel %vm3737, %v3730, %v3734
        %v3739 = vand.u32 2147483647, %v3390
        %vm3740 = vcmp.eq.f32.partialorder %v3739, 8.507059e+37
        %v3741 = vand.u32 %v3390, 2147483648
        %v3742 = vor.u32 1.1754944e-38, %v3741
        %v3743 = vsel %vm3740, %v3742, %v3738
        %v3744 = vmul.f32 1.0, %v3743
        %v3745 = vrcp.pop %v3391
        %v3746 = vmul.f32 %v3391, %v3745
        %v3747 = vsub.f32 1.0, %v3746
        %v3748 = vmul.f32 %v3745, %v3747
        %v3749 = vadd.f32 %v3745, %v3748
        %vm3750 = vweird.f32 %v3391
        %vm3751 = vweird.f32 %v3745
        %vm3752 = vmor %vm3750, %vm3751
        %v3753 = vsel %vm3752, %v3745, %v3749
        %v3754 = vand.u32 2147483647, %v3391
        %vm3755 = vcmp.eq.f32.partialorder %v3754, 8.507059e+37
        %v3756 = vand.u32 %v3391, 2147483648
        %v3757 = vor.u32 1.1754944e-38, %v3756
        %v3758 = vsel %vm3755, %v3757, %v3753
        %v3759 = vmul.f32 1.0, %v3758
        %v3760 = vrcp.pop %v3392
        %v3761 = vmul.f32 %v3392, %v3760
        %v3762 = vsub.f32 1.0, %v3761
        %v3763 = vmul.f32 %v3760, %v3762
        %v3764 = vadd.f32 %v3760, %v3763
        %vm3765 = vweird.f32 %v3392
        %vm3766 = vweird.f32 %v3760
        %vm3767 = vmor %vm3765, %vm3766
        %v3768 = vsel %vm3767, %v3760, %v3764
        %v3769 = vand.u32 2147483647, %v3392
        %vm3770 = vcmp.eq.f32.partialorder %v3769, 8.507059e+37
        %v3771 = vand.u32 %v3392, 2147483648
        %v3772 = vor.u32 1.1754944e-38, %v3771
        %v3773 = vsel %vm3770, %v3772, %v3768
        %v3774 = vmul.f32 1.0, %v3773
        %v3775 = vrcp.pop %v3393
        %v3776 = vmul.f32 %v3393, %v3775
        %v3777 = vsub.f32 1.0, %v3776
        %v3778 = vmul.f32 %v3775, %v3777
        %v3779 = vadd.f32 %v3775, %v3778
        %vm3780 = vweird.f32 %v3393
        %vm3781 = vweird.f32 %v3775
        %vm3782 = vmor %vm3780, %vm3781
        %v3783 = vsel %vm3782, %v3775, %v3779
        %v3784 = vand.u32 2147483647, %v3393
        %vm3785 = vcmp.eq.f32.partialorder %v3784, 8.507059e+37
        %v3786 = vand.u32 %v3393, 2147483648
        %v3787 = vor.u32 1.1754944e-38, %v3786
        %v3788 = vsel %vm3785, %v3787, %v3783
        %v3789 = vmul.f32 1.0, %v3788
        %v3790 = vrcp.pop %v3394
        %v3791 = vmul.f32 %v3394, %v3790
        %v3792 = vsub.f32 1.0, %v3791
        %v3793 = vmul.f32 %v3790, %v3792
        %v3794 = vadd.f32 %v3790, %v3793
        %vm3795 = vweird.f32 %v3394
        %vm3796 = vweird.f32 %v3790
        %vm3797 = vmor %vm3795, %vm3796
        %v3798 = vsel %vm3797, %v3790, %v3794
        %v3799 = vand.u32 2147483647, %v3394
        %vm3800 = vcmp.eq.f32.partialorder %v3799, 8.507059e+37
        %v3801 = vand.u32 %v3394, 2147483648
        %v3802 = vor.u32 1.1754944e-38, %v3801
        %v3803 = vsel %vm3800, %v3802, %v3798
        %v3804 = vmul.f32 1.0, %v3803
        %v3805 = vrcp.pop %v3395
        %v3806 = vmul.f32 %v3395, %v3805
        %v3807 = vsub.f32 1.0, %v3806
        %v3808 = vmul.f32 %v3805, %v3807
        %v3809 = vadd.f32 %v3805, %v3808
        %vm3810 = vweird.f32 %v3395
        %vm3811 = vweird.f32 %v3805
        %vm3812 = vmor %vm3810, %vm3811
        %v3813 = vsel %vm3812, %v3805, %v3809
        %v3814 = vand.u32 2147483647, %v3395
        %vm3815 = vcmp.eq.f32.partialorder %v3814, 8.507059e+37
        %v3816 = vand.u32 %v3395, 2147483648
        %v3817 = vor.u32 1.1754944e-38, %v3816
        %v3818 = vsel %vm3815, %v3817, %v3813
        %v3819 = vmul.f32 1.0, %v3818
        %v3820 = vrcp.pop %v3396
        %v3821 = vmul.f32 %v3396, %v3820
        %v3822 = vsub.f32 1.0, %v3821
        %v3823 = vmul.f32 %v3820, %v3822
        %v3824 = vadd.f32 %v3820, %v3823
        %vm3825 = vweird.f32 %v3396
        %vm3826 = vweird.f32 %v3820
        %vm3827 = vmor %vm3825, %vm3826
        %v3828 = vsel %vm3827, %v3820, %v3824
        %v3829 = vand.u32 2147483647, %v3396
        %vm3830 = vcmp.eq.f32.partialorder %v3829, 8.507059e+37
        %v3831 = vand.u32 %v3396, 2147483648
        %v3832 = vor.u32 1.1754944e-38, %v3831
        %v3833 = vsel %vm3830, %v3832, %v3828
        %v3834 = vmul.f32 1.0, %v3833
        %v3835 = vrcp.pop %v3397
        %v3836 = vmul.f32 %v3397, %v3835
        %v3837 = vsub.f32 1.0, %v3836
        %v3838 = vmul.f32 %v3835, %v3837
        %v3839 = vadd.f32 %v3835, %v3838
        %vm3840 = vweird.f32 %v3397
        %vm3841 = vweird.f32 %v3835
        %vm3842 = vmor %vm3840, %vm3841
        %v3843 = vsel %vm3842, %v3835, %v3839
        %v3844 = vand.u32 2147483647, %v3397
        %vm3845 = vcmp.eq.f32.partialorder %v3844, 8.507059e+37
        %v3846 = vand.u32 %v3397, 2147483648
        %v3847 = vor.u32 1.1754944e-38, %v3846
        %v3848 = vsel %vm3845, %v3847, %v3843
        %v3849 = vmul.f32 1.0, %v3848
        %v3850 = vrcp.pop %v3398
        %v3851 = vmul.f32 %v3398, %v3850
        %v3852 = vsub.f32 1.0, %v3851
        %v3853 = vmul.f32 %v3850, %v3852
        %v3854 = vadd.f32 %v3850, %v3853
        %vm3855 = vweird.f32 %v3398
        %vm3856 = vweird.f32 %v3850
        %vm3857 = vmor %vm3855, %vm3856
        %v3858 = vsel %vm3857, %v3850, %v3854
        %v3859 = vand.u32 2147483647, %v3398
        %vm3860 = vcmp.eq.f32.partialorder %v3859, 8.507059e+37
        %v3861 = vand.u32 %v3398, 2147483648
        %v3862 = vor.u32 1.1754944e-38, %v3861
        %v3863 = vsel %vm3860, %v3862, %v3858
        %v3864 = vmul.f32 1.0, %v3863
        %v3865 = vrcp.pop %v3399
        %v3866 = vmul.f32 %v3399, %v3865
        %v3867 = vsub.f32 1.0, %v3866
        %v3868 = vmul.f32 %v3865, %v3867
        %v3869 = vadd.f32 %v3865, %v3868
        %vm3870 = vweird.f32 %v3399
        %vm3871 = vweird.f32 %v3865
        %vm3872 = vmor %vm3870, %vm3871
        %v3873 = vsel %vm3872, %v3865, %v3869
        %v3874 = vand.u32 2147483647, %v3399
        %vm3875 = vcmp.eq.f32.partialorder %v3874, 8.507059e+37
        %v3876 = vand.u32 %v3399, 2147483648
        %v3877 = vor.u32 1.1754944e-38, %v3876
        %v3878 = vsel %vm3875, %v3877, %v3873
        %v3879 = vmul.f32 1.0, %v3878
        %3880 = vst [vmem:[%s548] sm:$0xff] %v3414
        %3881 = vst [vmem:[%s548 + $0x8] sm:$0xff] %v3429
        %3882 = vst [vmem:[%s548 + $0x10] sm:$0xff] %v3444
        %3883 = vst [vmem:[%s548 + $0x18] sm:$0xff] %v3459
        %3884 = vst [vmem:[%s548 + $0x20] sm:$0xff] %v3474
        %3885 = vst [vmem:[%s548 + $0x28] sm:$0xff] %v3489
        %3886 = vst [vmem:[%s548 + $0x30] sm:$0xff] %v3504
        %3887 = vst [vmem:[%s548 + $0x38] sm:$0xff] %v3519
        %3888 = vst [vmem:[%s548 + $0x40] sm:$0xff] %v3534
        %3889 = vst [vmem:[%s548 + $0x48] sm:$0xff] %v3549
        %3890 = vst [vmem:[%s548 + $0x50] sm:$0xff] %v3564
        %3891 = vst [vmem:[%s548 + $0x58] sm:$0xff] %v3579
        %3892 = vst [vmem:[%s548 + $0x60] sm:$0xff] %v3594
        %3893 = vst [vmem:[%s548 + $0x68] sm:$0xff] %v3609
        %3894 = vst [vmem:[%s548 + $0x70] sm:$0xff] %v3624
        %3895 = vst [vmem:[%s548 + $0x78] sm:$0xff] %v3639
        %3896 = vst [vmem:[%s548 + $0x80] sm:$0xff] %v3654
        %3897 = vst [vmem:[%s548 + $0x88] sm:$0xff] %v3669
        %3898 = vst [vmem:[%s548 + $0x90] sm:$0xff] %v3684
        %3899 = vst [vmem:[%s548 + $0x98] sm:$0xff] %v3699
        %3900 = vst [vmem:[%s548 + $0xa0] sm:$0xff] %v3714
        %3901 = vst [vmem:[%s548 + $0xa8] sm:$0xff] %v3729
        %3902 = vst [vmem:[%s548 + $0xb0] sm:$0xff] %v3744
        %3903 = vst [vmem:[%s548 + $0xb8] sm:$0xff] %v3759
        %3904 = vst [vmem:[%s548 + $0xc0] sm:$0xff] %v3774
        %3905 = vst [vmem:[%s548 + $0xc8] sm:$0xff] %v3789
        %3906 = vst [vmem:[%s548 + $0xd0] sm:$0xff] %v3804
        %3907 = vst [vmem:[%s548 + $0xd8] sm:$0xff] %v3819
        %3908 = vst [vmem:[%s548 + $0xe0] sm:$0xff] %v3834
        %3909 = vst [vmem:[%s548 + $0xe8] sm:$0xff] %v3849
        %3910 = vst [vmem:[%s548 + $0xf0] sm:$0xff] %v3864
        %3911 = vst [vmem:[%s548 + $0xf8] sm:$0xff] %v3879
        %3912 = vst [vmem:[%s555] sm:$0xff] %v1908
        %3913 = vst [vmem:[%s555 + $0x8] sm:$0xff] %v1910
        %3914 = vst [vmem:[%s555 + $0x10] sm:$0xff] %v1913
        %3915 = vst [vmem:[%s555 + $0x18] sm:$0xff] %v1915
        %3916 = vst [vmem:[%s555 + $0x20] sm:$0xff] %v1918
        %3917 = vst [vmem:[%s555 + $0x28] sm:$0xff] %v1920
        %3918 = vst [vmem:[%s555 + $0x30] sm:$0xff] %v1923
        %3919 = vst [vmem:[%s555 + $0x38] sm:$0xff] %v1925
        %3920 = vst [vmem:[%s555 + $0x40] sm:$0xff] %v1928
        %3921 = vst [vmem:[%s555 + $0x48] sm:$0xff] %v1930
        %3922 = vst [vmem:[%s555 + $0x50] sm:$0xff] %v1933
        %3923 = vst [vmem:[%s555 + $0x58] sm:$0xff] %v1935
        %3924 = vst [vmem:[%s555 + $0x60] sm:$0xff] %v1938
        %3925 = vst [vmem:[%s555 + $0x68] sm:$0xff] %v1940
        %3926 = vst [vmem:[%s555 + $0x70] sm:$0xff] %v1943
        %3927 = vst [vmem:[%s555 + $0x78] sm:$0xff] %v1945
        %s3928 = sand.u32 %s266, 1
        %s3929 = scalar_lea.sflag [#allocation4], %s3928
        %s3930 = sand.u32 %s266, 1
        %s3931 = smul.addr %s3930, 256
        %s3932 = scalar_lea.vmem [#allocation16], %s3931
        %s3933 = sand.u32 %s292, 1
        %s3934 = scalar_lea.sflag [#allocation18], %s3933
        %s3935 = sand.u32 %s292, 1
        %s3936 = smul.addr %s3935, 128
        %s3937 = scalar_lea.vmem [#allocation17], %s3936
        // Predicated region
        $region93: #{tpu_custom_call.1} parent=59 // pred_check
          %p3938 = pneg %p276
        $region94: #{tpu_custom_call.1} parent=59 // pred_check_branch
          %3940 = sbr.rel (%p3938) target = $region96
        $region95: #{tpu_custom_call.1} parent=59 // pred_region
          %s3941 = smul.u32 16, %s38
          %3943 = vsyncadd %s3929, 0
          %s3944 = smul.addr %s3941, 2
          %s3945 = smul.addr %s3944, 8
          %s3946 = scalar_lea.hbm %s10, %s3945
          %s3947 = sshll.u32 %s3932, 4
          %s3948 = int_to_ptr.vmem [resolvable:$true] %s3947
          %s3949 = sshll.u32 %s3946, 4
          %s3950 = int_to_ptr.hbm [resolvable:$true] %s3949
          %3955 = dma.vmem_to_hbm [thread:$0]  %s3948, 4096, %s3950, %s3929, 256, 256, 16
        $region96: #{tpu_custom_call.1} parent=59 // pred_fallthru
          _
        // Predicated region
        $region97: #{tpu_custom_call.1} parent=59 // pred_check
          %p3956 = pneg %p302
        $region98: #{tpu_custom_call.1} parent=59 // pred_check_branch
          %3958 = sbr.rel (%p3956) target = $region100
        $region99: #{tpu_custom_call.1} parent=59 // pred_region
          %s3959 = smul.u32 16, %s38
          %3961 = vsyncadd %s3934, 0
          %s3962 = smul.addr %s3959, 8
          %s3963 = scalar_lea.hbm %s11, %s3962
          %s3964 = sshll.u32 %s3937, 4
          %s3965 = int_to_ptr.vmem [resolvable:$true] %s3964
          %s3966 = sshll.u32 %s3963, 4
          %s3967 = int_to_ptr.hbm [resolvable:$true] %s3966
          %3972 = dma.vmem_to_hbm [thread:$0]  %s3965, 2048, %s3967, %s3934, 128, 128, 8
        $region100: #{tpu_custom_call.1} parent=59 // pred_fallthru
          _
      $region60: #{tpu_custom_call.1} parent=5 // pred_fallthru
        _
      %p3973 = scmp.le.s32.totalorder 2, %s33
      // Predicated region
      $region101: #{tpu_custom_call.1} parent=5 // pred_check
        %p3974 = pneg %p3973
      $region102: #{tpu_custom_call.1} parent=5 // pred_check_branch
        %3976 = sbr.rel (%p3974) target = $region104
      $region103: #{tpu_custom_call.1} parent=5 // pred_region
        %s3977 = ssub.s32 %s33, 2
        // Predicated region
        $region105: #{tpu_custom_call.1} parent=103 // pred_check
          %p3978 = pneg %p282
        $region106: #{tpu_custom_call.1} parent=103 // pred_check_branch
          %3980 = sbr.rel (%p3978) target = $region108
        $region107: #{tpu_custom_call.1} parent=103 // pred_region
          %s3981 = sand.u32 %s267, 1
          %s3982 = scalar_lea.sflag [#allocation4], %s3981
          %s3983 = sand.u32 %s267, 1
          %s3984 = smul.addr %s3983, 256
          %s3985 = scalar_lea.vmem [#allocation16], %s3984
          %3987 = dma.done %s3982, 4096
        $region108: #{tpu_custom_call.1} parent=103 // pred_fallthru
          _
        // Predicated region
        $region109: #{tpu_custom_call.1} parent=103 // pred_check
          %p3988 = pneg %p308
        $region110: #{tpu_custom_call.1} parent=103 // pred_check_branch
          %3990 = sbr.rel (%p3988) target = $region112
        $region111: #{tpu_custom_call.1} parent=103 // pred_region
          %s3991 = sand.u32 %s293, 1
          %s3992 = scalar_lea.sflag [#allocation18], %s3991
          %s3993 = sand.u32 %s293, 1
          %s3994 = smul.addr %s3993, 128
          %s3995 = scalar_lea.vmem [#allocation17], %s3994
          %3997 = dma.done %s3992, 2048
        $region112: #{tpu_custom_call.1} parent=103 // pred_fallthru
          _
      $region104: #{tpu_custom_call.1} parent=5 // pred_fallthru
        _
    $region6: #{tpu_custom_call.1} parent=1 // loop_footer
      %s37 = sadd.s32 1, %s33
    $region7: #{tpu_custom_call.1} parent=1 // loop_footer_branch
      %32 = sbr.rel target = $region3
    $region8: #{tpu_custom_call.1} parent=1 // loop_exit
      _
    %3998 = vsyncpa [#allocation3], 1
    %s3999 = scalar_lea.sflag [#allocation3], 1
    %4000 = vsyncpa %s3999, 1
    %4001 = vsyncpa [#allocation6], 1
    %s4002 = scalar_lea.sflag [#allocation6], 1
    %4003 = vsyncpa %s4002, 1
    %4004 = vsyncpa [#allocation9], 1
    %4005 = vsyncpa [#allocation12], 1
    %4006 = vsyncpa [#allocation15], 1
    %4007 = vsyncpa [#allocation4], 1
    %s4008 = scalar_lea.sflag [#allocation4], 1
    %4009 = vsyncpa %s4008, 1
    %4010 = vsyncpa [#allocation18], 1
    %s4011 = scalar_lea.sflag [#allocation18], 1
    %4012 = vsyncpa %s4011, 1

// kernel: tpu_custom_call.1
$region0: #{tpu_custom_call.1}
  #allocation0 [shape = 'u32[]', space=smem, size = 0x4, offset = 0x4, fixed_abs, tag = 'smem constant byte address 0x4 - core index']
  #allocation1 [shape = 'u32[72,128]{1,0:T(1,128)}', space=vmem, size = 0x9000, scoped, tag = 'internal scratch']
  %s0 = inlined_call_operand.hbm [shape: f32[256,256], index: 0, kind: input, shape index: {}]
  %s1 = inlined_call_operand.hbm [shape: f32[256,128], index: 1, kind: input, shape index: {}]
  %s2 = inlined_call_operand.hbm [shape: bf16[256,512], index: 2, kind: input, shape index: {}]
  %s3 = inlined_call_operand.hbm [shape: f32[1,512], index: 3, kind: input, shape index: {}]
  %s4 = inlined_call_operand.hbm [shape: bf16[512,128], index: 4, kind: input, shape index: {}]
  %s5 = inlined_call_operand.hbm [shape: f32[1,128], index: 5, kind: input, shape index: {}]
  %s6 = inlined_call_operand.hbm [shape: bf16[32,512], index: 6, kind: input, shape index: {}]
  %s7 = inlined_call_operand.vmem [shape: f32[1,512], index: 7, kind: input, shape index: {}]
  %s8 = inlined_call_operand.hbm [shape: bf16[512,256], index: 8, kind: input, shape index: {}]
  %s9 = inlined_call_operand.vmem [shape: f32[1,256], index: 9, kind: input, shape index: {}]
  %s10 = inlined_call_operand.hbm [shape: f32[256,256], index: 10, kind: output, shape index: {0}]
  %s11 = inlined_call_operand.hbm [shape: f32[256,128], index: 11, kind: output, shape index: {1}]
  %12 = xla_tuple %s10, %s11
  %s13 = sld [smem:[#allocation0]]
  $region113: #{tpu_custom_call.1} parent=0
    _
  %s15 = ssub.s32 1, %s13
  %s16 = scalar_select 0, %s15, %s13
  $region1: #{tpu_custom_call.1} parent=0
    #allocation2 [shape = 'u8[262144]{0}', space=vmem, size = 0x40000, scoped, tag = 'input window, operand 0']
    #allocation3 [shape = 's32[2]{0}', space=sflag, size = 0x8, scoped, tag = 'scoped memory for tpu_custom_call.1']
    #allocation4 [shape = 's32[2]{0}', space=sflag, size = 0x8, scoped, tag = 'scoped memory for tpu_custom_call.1']
    #allocation5 [shape = 'u8[131072]{0}', space=vmem, size = 0x20000, scoped, tag = 'input window, operand 1']
    #allocation6 [shape = 's32[2]{0}', space=sflag, size = 0x8, scoped, tag = 'scoped memory for tpu_custom_call.1']
    #allocation7 [shape = 'u8[262144]{0}', space=vmem, size = 0x40000, scoped, tag = 'input window, operand 2, single buffered']
    #allocation8 [shape = 'u8[2048]{0}', space=vmem, size = 0x800, scoped, tag = 'input window, operand 3, single buffered']
    #allocation9 [shape = 's32[1]{0}', space=sflag, size = 0x4, scoped, tag = 'scoped memory for tpu_custom_call.1']
    #allocation10 [shape = 'u8[131072]{0}', space=vmem, size = 0x20000, scoped, tag = 'input window, operand 4, single buffered']
    #allocation11 [shape = 'u8[512]{0}', space=vmem, size = 0x400, scoped, tag = 'input window, operand 5, single buffered']
    #allocation12 [shape = 's32[1]{0}', space=sflag, size = 0x4, scoped, tag = 'scoped memory for tpu_custom_call.1']
    #allocation13 [shape = 'u8[32768]{0}', space=vmem, size = 0x8000, scoped, tag = 'input window, operand 6, single buffered']
    #allocation14 [shape = 'u8[262144]{0}', space=vmem, size = 0x40000, scoped, tag = 'input window, operand 8, single buffered']
    #allocation15 [shape = 's32[1]{0}', space=sflag, size = 0x4, scoped, tag = 'scoped memory for tpu_custom_call.1']
    #allocation16 [shape = 'u8[262144]{0}', space=vmem, size = 0x40000, scoped, tag = 'output window, operand 0']
    #allocation17 [shape = 'u8[131072]{0}', space=vmem, size = 0x20000, scoped, tag = 'output window, operand 1']
    #allocation18 [shape = 's32[2]{0}', space=sflag, size = 0x8, scoped, tag = 'scoped memory for tpu_custom_call.1']
    %17 = vsyncpa [#allocation3], 0
    %s18 = scalar_lea.sflag [#allocation3], 1
    %19 = vsyncpa %s18, 0
    %20 = vsyncpa [#allocation6], 0
    %s21 = scalar_lea.sflag [#allocation6], 1
    %22 = vsyncpa %s21, 0
    %23 = vsyncpa [#allocation9], 0
    %24 = vsyncpa [#allocation12], 0
    %25 = vsyncpa [#allocation15], 0
    %26 = vsyncpa [#allocation4], 0
    %s27 = scalar_lea.sflag [#allocation4], 1
    %28 = vsyncpa %s27, 0
    %29 = vsyncpa [#allocation18], 0
    %s30 = scalar_lea.sflag [#allocation18], 1
    %31 = vsyncpa %s30, 0
    loop: start=0, step=1, limit=4
    $region2: #{tpu_custom_call.1} parent=1 // loop_pre_header
      _
    $region3: #{tpu_custom_call.1} parent=1 // loop_header
      %s33 = sphi 0, %s37
      %p34 = scmp.ge.s32.totalorder %s33, 4
      %s43 = sphi 0, %s45
      %s46 = sphi 0, %s43
      %s47 = sphi 0, %s46
      %s63 = sphi 0, %s47
      %s69 = sphi 0, %s71
      %s72 = sphi 0, %s69
      %s73 = sphi 0, %s72
      %s89 = sphi 0, %s73
      %s93 = sphi 0, %s93
      %s95 = sphi 0, %s93
      %s96 = sphi 0, %s95
      %s110 = sphi 0, %s96
      %s114 = sphi 0, %s114
      %s116 = sphi 0, %s114
      %s117 = sphi 0, %s116
      %s131 = sphi 0, %s117
      %s135 = sphi 0, %s135
      %s137 = sphi 0, %s135
      %s138 = sphi 0, %s137
      %s152 = sphi 0, %s138
      %s156 = sphi 0, %s156
      %s158 = sphi 0, %s156
      %s159 = sphi 0, %s158
      %s173 = sphi 0, %s159
      %s177 = sphi 0, %s177
      %s179 = sphi 0, %s177
      %s180 = sphi 0, %s179
      %s194 = sphi 0, %s180
      %s198 = sphi 0, %s198
      %s200 = sphi 0, %s198
      %s201 = sphi 0, %s200
      %s215 = sphi 0, %s201
      %s219 = sphi 0, %s219
      %s221 = sphi 0, %s219
      %s222 = sphi 0, %s221
      %s236 = sphi 0, %s222
      %s240 = sphi 0, %s240
      %s242 = sphi 0, %s240
      %s243 = sphi 0, %s242
      %s257 = sphi 0, %s243
      %s263 = sphi 0, %s265
      %s266 = sphi 0, %s263
      %s267 = sphi 0, %s266
      %s283 = sphi 0, %s267
      %s289 = sphi 0, %s291
      %s292 = sphi 0, %s289
      %s293 = sphi 0, %s292
      %s309 = sphi 0, %s293
    $region4: #{tpu_custom_call.1} parent=1 // loop_header_branch
      %36 = sbr.rel (%p34) target = $region8
    $region5: #{tpu_custom_call.1} parent=1 // loop_body
      %s38 = ssub.s32 %s33, 1
      %s39 = ssub.s32 %s33, 2
      %s40 = sadd.s32 %s33, 1
      %s41 = ssub.s32 %s33, %s40
      %p42 = scmp.eq.s32.totalorder %s41, 0
      %s44 = sadd.s32 %s43, 1
      %s45 = scalar_select %p42, %s43, %s44
      %p48 = pneg %p42
      %p49 = scmp.eq.s32.totalorder %s33, 1
      %p50 = por %p48, %p49
      %p51 = scmp.ne.s32.totalorder %s43, %s46
      %p52 = scmp.eq.s32.totalorder %s33, 0
      %p53 = por %p51, %p52
      %p54 = scmp.ne.s32.totalorder %s43, %s46
      %p55 = scmp.eq.s32.totalorder %s38, 1
      %p56 = por %p54, %p55
      %p57 = scmp.ne.s32.totalorder %s46, %s47
      %p58 = scmp.eq.s32.totalorder %s38, 0
      %p59 = por %p57, %p58
      %p60 = scmp.ne.s32.totalorder %s46, %s47
      %p61 = scmp.eq.s32.totalorder %s39, 1
      %p62 = por %p60, %p61
      %p64 = scmp.ne.s32.totalorder %s47, %s63
      %p65 = scmp.eq.s32.totalorder %s39, 0
      %p66 = por %p64, %p65
      %s67 = ssub.s32 %s33, %s40
      %p68 = scmp.eq.s32.totalorder %s67, 0
      %s70 = sadd.s32 %s69, 1
      %s71 = scalar_select %p68, %s69, %s70
      %p74 = pneg %p68
      %p75 = scmp.eq.s32.totalorder %s33, 1
      %p76 = por %p74, %p75
      %p77 = scmp.ne.s32.totalorder %s69, %s72
      %p78 = scmp.eq.s32.totalorder %s33, 0
      %p79 = por %p77, %p78
      %p80 = scmp.ne.s32.totalorder %s69, %s72
      %p81 = scmp.eq.s32.totalorder %s38, 1
      %p82 = por %p80, %p81
      %p83 = scmp.ne.s32.totalorder %s72, %s73
      %p84 = scmp.eq.s32.totalorder %s38, 0
      %p85 = por %p83, %p84
      %p86 = scmp.ne.s32.totalorder %s72, %s73
      %p87 = scmp.eq.s32.totalorder %s39, 1
      %p88 = por %p86, %p87
      %p90 = scmp.ne.s32.totalorder %s73, %s89
      %p91 = scmp.eq.s32.totalorder %s39, 0
      %p92 = por %p90, %p91
      %s94 = sadd.s32 %s93, 1
      %p97 = scmp.eq.s32.totalorder %s33, 1
      %p98 = scmp.ne.s32.totalorder %s93, %s95
      %p99 = scmp.eq.s32.totalorder %s33, 0
      %p100 = por %p98, %p99
      %p101 = scmp.ne.s32.totalorder %s93, %s95
      %p102 = scmp.eq.s32.totalorder %s38, 1
      %p103 = por %p101, %p102
      %p104 = scmp.ne.s32.totalorder %s95, %s96
      %p105 = scmp.eq.s32.totalorder %s38, 0
      %p106 = por %p104, %p105
      %p107 = scmp.ne.s32.totalorder %s95, %s96
      %p108 = scmp.eq.s32.totalorder %s39, 1
      %p109 = por %p107, %p108
      %p111 = scmp.ne.s32.totalorder %s96, %s110
      %p112 = scmp.eq.s32.totalorder %s39, 0
      %p113 = por %p111, %p112
      %s115 = sadd.s32 %s114, 1
      %p118 = scmp.eq.s32.totalorder %s33, 1
      %p119 = scmp.ne.s32.totalorder %s114, %s116
      %p120 = scmp.eq.s32.totalorder %s33, 0
      %p121 = por %p119, %p120
      %p122 = scmp.ne.s32.totalorder %s114, %s116
      %p123 = scmp.eq.s32.totalorder %s38, 1
      %p124 = por %p122, %p123
      %p125 = scmp.ne.s32.totalorder %s116, %s117
      %p126 = scmp.eq.s32.totalorder %s38, 0
      %p127 = por %p125, %p126
      %p128 = scmp.ne.s32.totalorder %s116, %s117
      %p129 = scmp.eq.s32.totalorder %s39, 1
      %p130 = por %p128, %p129
      %p132 = scmp.ne.s32.totalorder %s117, %s131
      %p133 = scmp.eq.s32.totalorder %s39, 0
      %p134 = por %p132, %p133
      %s136 = sadd.s32 %s135, 1
      %p139 = scmp.eq.s32.totalorder %s33, 1
      %p140 = scmp.ne.s32.totalorder %s135, %s137
      %p141 = scmp.eq.s32.totalorder %s33, 0
      %p142 = por %p140, %p141
      %p143 = scmp.ne.s32.totalorder %s135, %s137
      %p144 = scmp.eq.s32.totalorder %s38, 1
      %p145 = por %p143, %p144
      %p146 = scmp.ne.s32.totalorder %s137, %s138
      %p147 = scmp.eq.s32.totalorder %s38, 0
      %p148 = por %p146, %p147
      %p149 = scmp.ne.s32.totalorder %s137, %s138
      %p150 = scmp.eq.s32.totalorder %s39, 1
      %p151 = por %p149, %p150
      %p153 = scmp.ne.s32.totalorder %s138, %s152
      %p154 = scmp.eq.s32.totalorder %s39, 0
      %p155 = por %p153, %p154
      %s157 = sadd.s32 %s156, 1
      %p160 = scmp.eq.s32.totalorder %s33, 1
      %p161 = scmp.ne.s32.totalorder %s156, %s158
      %p162 = scmp.eq.s32.totalorder %s33, 0
      %p163 = por %p161, %p162
      %p164 = scmp.ne.s32.totalorder %s156, %s158
      %p165 = scmp.eq.s32.totalorder %s38, 1
      %p166 = por %p164, %p165
      %p167 = scmp.ne.s32.totalorder %s158, %s159
      %p168 = scmp.eq.s32.totalorder %s38, 0
      %p169 = por %p167, %p168
      %p170 = scmp.ne.s32.totalorder %s158, %s159
      %p171 = scmp.eq.s32.totalorder %s39, 1
      %p172 = por %p170, %p171
      %p174 = scmp.ne.s32.totalorder %s159, %s173
      %p175 = scmp.eq.s32.totalorder %s39, 0
      %p176 = por %p174, %p175
      %s178 = sadd.s32 %s177, 1
      %p181 = scmp.eq.s32.totalorder %s33, 1
      %p182 = scmp.ne.s32.totalorder %s177, %s179
      %p183 = scmp.eq.s32.totalorder %s33, 0
      %p184 = por %p182, %p183
      %p185 = scmp.ne.s32.totalorder %s177, %s179
      %p186 = scmp.eq.s32.totalorder %s38, 1
      %p187 = por %p185, %p186
      %p188 = scmp.ne.s32.totalorder %s179, %s180
      %p189 = scmp.eq.s32.totalorder %s38, 0
      %p190 = por %p188, %p189
      %p191 = scmp.ne.s32.totalorder %s179, %s180
      %p192 = scmp.eq.s32.totalorder %s39, 1
      %p193 = por %p191, %p192
      %p195 = scmp.ne.s32.totalorder %s180, %s194
      %p196 = scmp.eq.s32.totalorder %s39, 0
      %p197 = por %p195, %p196
      %s199 = sadd.s32 %s198, 1
      %p202 = scmp.eq.s32.totalorder %s33, 1
      %p203 = scmp.ne.s32.totalorder %s198, %s200
      %p204 = scmp.eq.s32.totalorder %s33, 0
      %p205 = por %p203, %p204
      %p206 = scmp.ne.s32.totalorder %s198, %s200
      %p207 = scmp.eq.s32.totalorder %s38, 1
      %p208 = por %p206, %p207
      %p209 = scmp.ne.s32.totalorder %s200, %s201
      %p210 = scmp.eq.s32.totalorder %s38, 0
      %p211 = por %p209, %p210
      %p212 = scmp.ne.s32.totalorder %s200, %s201
      %p213 = scmp.eq.s32.totalorder %s39, 1
      %p214 = por %p212, %p213
      %p216 = scmp.ne.s32.totalorder %s201, %s215
      %p217 = scmp.eq.s32.totalorder %s39, 0
      %p218 = por %p216, %p217
      %s220 = sadd.s32 %s219, 1
      %p223 = scmp.eq.s32.totalorder %s33, 1
      %p224 = scmp.ne.s32.totalorder %s219, %s221
      %p225 = scmp.eq.s32.totalorder %s33, 0
      %p226 = por %p224, %p225
      %p227 = scmp.ne.s32.totalorder %s219, %s221
      %p228 = scmp.eq.s32.totalorder %s38, 1
      %p229 = por %p227, %p228
      %p230 = scmp.ne.s32.totalorder %s221, %s222
      %p231 = scmp.eq.s32.totalorder %s38, 0
      %p232 = por %p230, %p231
      %p233 = scmp.ne.s32.totalorder %s221, %s222
      %p234 = scmp.eq.s32.totalorder %s39, 1
      %p235 = por %p233, %p234
      %p237 = scmp.ne.s32.totalorder %s222, %s236
      %p238 = scmp.eq.s32.totalorder %s39, 0
      %p239 = por %p237, %p238
      %s241 = sadd.s32 %s240, 1
      %p244 = scmp.eq.s32.totalorder %s33, 1
      %p245 = scmp.ne.s32.totalorder %s240, %s242
      %p246 = scmp.eq.s32.totalorder %s33, 0
      %p247 = por %p245, %p246
      %p248 = scmp.ne.s32.totalorder %s240, %s242
      %p249 = scmp.eq.s32.totalorder %s38, 1
      %p250 = por %p248, %p249
      %p251 = scmp.ne.s32.totalorder %s242, %s243
      %p252 = scmp.eq.s32.totalorder %s38, 0
      %p253 = por %p251, %p252
      %p254 = scmp.ne.s32.totalorder %s242, %s243
      %p255 = scmp.eq.s32.totalorder %s39, 1
      %p256 = por %p254, %p255
      %p258 = scmp.ne.s32.totalorder %s243, %s257
      %p259 = scmp.eq.s32.totalorder %s39, 0
      %p260 = por %p258, %p259
      %s261 = ssub.s32 %s33, %s40
      %p262 = scmp.eq.s32.totalorder %s261, 0
      %s264 = sadd.s32 %s263, 1
      %s265 = scalar_select %p262, %s263, %s264
      %p268 = pneg %p262
      %p269 = scmp.eq.s32.totalorder %s33, 1
      %p270 = por %p268, %p269
      %p271 = scmp.ne.s32.totalorder %s263, %s266
      %p272 = scmp.eq.s32.totalorder %s33, 0
      %p273 = por %p271, %p272
      %p274 = scmp.ne.s32.totalorder %s263, %s266
      %p275 = scmp.eq.s32.totalorder %s38, 1
      %p276 = por %p274, %p275
      %p277 = scmp.ne.s32.totalorder %s266, %s267
      %p278 = scmp.eq.s32.totalorder %s38, 0
      %p279 = por %p277, %p278
      %p280 = scmp.ne.s32.totalorder %s266, %s267
      %p281 = scmp.eq.s32.totalorder %s39, 1
      %p282 = por %p280, %p281
      %p284 = scmp.ne.s32.totalorder %s267, %s283
      %p285 = scmp.eq.s32.totalorder %s39, 0
      %p286 = por %p284, %p285
      %s287 = ssub.s32 %s33, %s40
      %p288 = scmp.eq.s32.totalorder %s287, 0
      %s290 = sadd.s32 %s289, 1
      %s291 = scalar_select %p288, %s289, %s290
      %p294 = pneg %p288
      %p295 = scmp.eq.s32.totalorder %s33, 1
      %p296 = por %p294, %p295
      %p297 = scmp.ne.s32.totalorder %s289, %s292
      %p298 = scmp.eq.s32.totalorder %s33, 0
      %p299 = por %p297, %p298
      %p300 = scmp.ne.s32.totalorder %s289, %s292
      %p301 = scmp.eq.s32.totalorder %s38, 1
      %p302 = por %p300, %p301
      %p303 = scmp.ne.s32.totalorder %s292, %s293
      %p304 = scmp.eq.s32.totalorder %s38, 0
      %p305 = por %p303, %p304
      %p306 = scmp.ne.s32.totalorder %s292, %s293
      %p307 = scmp.eq.s32.totalorder %s39, 1
      %p308 = por %p306, %p307
      %p310 = scmp.ne.s32.totalorder %s293, %s309
      %p311 = scmp.eq.s32.totalorder %s39, 0
      %p312 = por %p310, %p311
      %p313 = scmp.le.s32.totalorder 1, %s33
      %p314 = scmp.lt.s32.totalorder %s33, 3
      %p315 = pnand %p313, %p314
      %p316 = pneg %p315
      // Predicated region
      $region9: #{tpu_custom_call.1} parent=5 // pred_check
        _
      $region10: #{tpu_custom_call.1} parent=5 // pred_check_branch
        %318 = sbr.rel (%p315) target = $region12
      $region11: #{tpu_custom_call.1} parent=5 // pred_region
        %s319 = ssub.s32 %s33, 1
        // Predicated region
        $region13: #{tpu_custom_call.1} parent=11 // pred_check
          %p320 = pneg %p106
        $region14: #{tpu_custom_call.1} parent=11 // pred_check_branch
          %322 = sbr.rel (%p320) target = $region16
        $region15: #{tpu_custom_call.1} parent=11 // pred_region
          %324 = vsyncadd [#allocation6], 0
          %s325 = sshll.u32 %s2, 4
          %s326 = int_to_ptr.hbm [resolvable:$true] %s325
          %s327 = sshll.u32 [#allocation7], 4
          %s328 = int_to_ptr.vmem [resolvable:$true] %s327
          %333 = dma.hbm_to_vmem [thread:$0]  %s326, 8192, %s328, [#allocation6], 256, 256, 16
        $region16: #{tpu_custom_call.1} parent=11 // pred_fallthru
          _
        // Predicated region
        $region17: #{tpu_custom_call.1} parent=11 // pred_check
          %p334 = pneg %p127
        $region18: #{tpu_custom_call.1} parent=11 // pred_check_branch
          %336 = sbr.rel (%p334) target = $region20
        $region19: #{tpu_custom_call.1} parent=11 // pred_region
          %338 = vsyncadd [#allocation9], 0
          %s340 = sshll.u32 %s3, 4
          %s341 = int_to_ptr.hbm [resolvable:$true] %s340
          %s342 = sshll.u32 [#allocation8], 4
          %s343 = int_to_ptr.vmem [resolvable:$true] %s342
          %345 = dma.hbm_to_vmem [thread:$0]  %s341, 64, %s343, [#allocation9]
        $region20: #{tpu_custom_call.1} parent=11 // pred_fallthru
          _
        // Predicated region
        $region21: #{tpu_custom_call.1} parent=11 // pred_check
          %p346 = pneg %p148
        $region22: #{tpu_custom_call.1} parent=11 // pred_check_branch
          %348 = sbr.rel (%p346) target = $region24
        $region23: #{tpu_custom_call.1} parent=11 // pred_region
          %350 = vsyncadd [#allocation9], 0
          %s351 = sshll.u32 %s4, 4
          %s352 = int_to_ptr.hbm [resolvable:$true] %s351
          %s353 = sshll.u32 [#allocation10], 4
          %s354 = int_to_ptr.vmem [resolvable:$true] %s353
          %359 = dma.hbm_to_vmem [thread:$0]  %s352, 4096, %s354, [#allocation9], 64, 64, 4
        $region24: #{tpu_custom_call.1} parent=11 // pred_fallthru
          _
        // Predicated region
        $region25: #{tpu_custom_call.1} parent=11 // pred_check
          %p360 = pneg %p169
        $region26: #{tpu_custom_call.1} parent=11 // pred_check_branch
          %362 = sbr.rel (%p360) target = $region28
        $region27: #{tpu_custom_call.1} parent=11 // pred_region
          %364 = vsyncadd [#allocation12], 0
          %s366 = sshll.u32 %s5, 4
          %s367 = int_to_ptr.hbm [resolvable:$true] %s366
          %s368 = sshll.u32 [#allocation11], 4
          %s369 = int_to_ptr.vmem [resolvable:$true] %s368
          %371 = dma.hbm_to_vmem [thread:$0]  %s367, 16, %s369, [#allocation12]
        $region28: #{tpu_custom_call.1} parent=11 // pred_fallthru
          _
        // Predicated region
        $region29: #{tpu_custom_call.1} parent=11 // pred_check
          %p372 = pneg %p190
        $region30: #{tpu_custom_call.1} parent=11 // pred_check_branch
          %374 = sbr.rel (%p372) target = $region32
        $region31: #{tpu_custom_call.1} parent=11 // pred_region
          %376 = vsyncadd [#allocation12], 0
          %s377 = sshll.u32 %s6, 4
          %s378 = int_to_ptr.hbm [resolvable:$true] %s377
          %s379 = sshll.u32 [#allocation13], 4
          %s380 = int_to_ptr.vmem [resolvable:$true] %s379
          %385 = dma.hbm_to_vmem [thread:$0]  %s378, 1024, %s380, [#allocation12], 256, 256, 16
        $region32: #{tpu_custom_call.1} parent=11 // pred_fallthru
          _
        // Predicated region
        $region33: #{tpu_custom_call.1} parent=11 // pred_check
          %p386 = pneg %p211
        $region34: #{tpu_custom_call.1} parent=11 // pred_check_branch
          %388 = sbr.rel (%p386) target = $region36
        $region35: #{tpu_custom_call.1} parent=11 // pred_region
          _
        $region36: #{tpu_custom_call.1} parent=11 // pred_fallthru
          _
        // Predicated region
        $region37: #{tpu_custom_call.1} parent=11 // pred_check
          %p389 = pneg %p232
        $region38: #{tpu_custom_call.1} parent=11 // pred_check_branch
          %391 = sbr.rel (%p389) target = $region40
        $region39: #{tpu_custom_call.1} parent=11 // pred_region
          %393 = vsyncadd [#allocation15], 0
          %s394 = sshll.u32 %s8, 4
          %s395 = int_to_ptr.hbm [resolvable:$true] %s394
          %s396 = sshll.u32 [#allocation14], 4
          %s397 = int_to_ptr.vmem [resolvable:$true] %s396
          %402 = dma.hbm_to_vmem [thread:$0]  %s395, 8192, %s397, [#allocation15], 128, 128, 8
        $region40: #{tpu_custom_call.1} parent=11 // pred_fallthru
          _
        // Predicated region
        $region41: #{tpu_custom_call.1} parent=11 // pred_check
          %p403 = pneg %p253
        $region42: #{tpu_custom_call.1} parent=11 // pred_check_branch
          %405 = sbr.rel (%p403) target = $region44
        $region43: #{tpu_custom_call.1} parent=11 // pred_region
          _
        $region44: #{tpu_custom_call.1} parent=11 // pred_fallthru
          _
      $region12: #{tpu_custom_call.1} parent=5 // pred_fallthru
        _
      %p406 = scmp.lt.s32.totalorder %s33, 2
      // Predicated region
      $region45: #{tpu_custom_call.1} parent=5 // pred_check
        %p407 = pneg %p406
      $region46: #{tpu_custom_call.1} parent=5 // pred_check_branch
        %409 = sbr.rel (%p407) target = $region48
      $region47: #{tpu_custom_call.1} parent=5 // pred_region
        // Predicated region
        $region49: #{tpu_custom_call.1} parent=47 // pred_check
          %p410 = pneg %p53
        $region50: #{tpu_custom_call.1} parent=47 // pred_check_branch
          %412 = sbr.rel (%p410) target = $region52
        $region51: #{tpu_custom_call.1} parent=47 // pred_region
          %s413 = sand.u32 %s43, 1
          %s414 = scalar_lea.sflag [#allocation3], %s413
          %s415 = sand.u32 %s43, 1
          %s416 = smul.addr %s415, 256
          %s417 = scalar_lea.vmem [#allocation2], %s416
          %s418 = smul.u32 16, %s33
          %420 = vsyncadd %s414, 0
          %s421 = smul.addr %s418, 2
          %s422 = smul.addr %s421, 8
          %s423 = scalar_lea.hbm %s0, %s422
          %s424 = sshll.u32 %s423, 4
          %s425 = int_to_ptr.hbm [resolvable:$true] %s424
          %s426 = sshll.u32 %s417, 4
          %s427 = int_to_ptr.vmem [resolvable:$true] %s426
          %432 = dma.hbm_to_vmem [thread:$0]  %s425, 4096, %s427, %s414, 256, 256, 16
        $region52: #{tpu_custom_call.1} parent=47 // pred_fallthru
          _
        // Predicated region
        $region53: #{tpu_custom_call.1} parent=47 // pred_check
          %p433 = pneg %p79
        $region54: #{tpu_custom_call.1} parent=47 // pred_check_branch
          %435 = sbr.rel (%p433) target = $region56
        $region55: #{tpu_custom_call.1} parent=47 // pred_region
          %s436 = sand.u32 %s33, 1
          %s437 = scalar_lea.sflag [#allocation6], %s436
          %s438 = sand.u32 %s69, 1
          %s439 = smul.addr %s438, 128
          %s440 = scalar_lea.vmem [#allocation5], %s439
          %s441 = smul.u32 16, %s33
          %443 = vsyncadd %s437, 0
          %s444 = smul.addr %s441, 8
          %s445 = scalar_lea.hbm %s1, %s444
          %s446 = sshll.u32 %s445, 4
          %s447 = int_to_ptr.hbm [resolvable:$true] %s446
          %s448 = sshll.u32 %s440, 4
          %s449 = int_to_ptr.vmem [resolvable:$true] %s448
          %454 = dma.hbm_to_vmem [thread:$0]  %s447, 2048, %s449, %s437, 128, 128, 8
        $region56: #{tpu_custom_call.1} parent=47 // pred_fallthru
          _
      $region48: #{tpu_custom_call.1} parent=5 // pred_fallthru
        _
      %p455 = scmp.le.s32.totalorder 1, %s33
      %p456 = scmp.lt.s32.totalorder %s33, 3
      %p457 = pnand %p455, %p456
      %p458 = pneg %p457
      // Predicated region
      $region57: #{tpu_custom_call.1} parent=5 // pred_check
        _
      $region58: #{tpu_custom_call.1} parent=5 // pred_check_branch
        %460 = sbr.rel (%p457) target = $region60
      $region59: #{tpu_custom_call.1} parent=5 // pred_region
        %s461 = ssub.s32 %s33, 1
        %s462 = sand.u32 %s46, 1
        %s463 = scalar_lea.sflag [#allocation3], %s462
        %s464 = sand.u32 %s46, 1
        %s465 = smul.addr %s464, 256
        %s466 = scalar_lea.vmem [#allocation2], %s465
        // Predicated region
        $region61: #{tpu_custom_call.1} parent=59 // pred_check
          %p467 = pneg %p59
        $region62: #{tpu_custom_call.1} parent=59 // pred_check_branch
          %469 = sbr.rel (%p467) target = $region64
        $region63: #{tpu_custom_call.1} parent=59 // pred_region
          %471 = dma.done %s463, 4096
        $region64: #{tpu_custom_call.1} parent=59 // pred_fallthru
          _
        %s472 = sand.u32 %s38, 1
        %s473 = scalar_lea.sflag [#allocation6], %s472
        %s474 = sand.u32 %s72, 1
        %s475 = smul.addr %s474, 128
        %s476 = scalar_lea.vmem [#allocation5], %s475
        // Predicated region
        $region65: #{tpu_custom_call.1} parent=59 // pred_check
          %p477 = pneg %p85
        $region66: #{tpu_custom_call.1} parent=59 // pred_check_branch
          %479 = sbr.rel (%p477) target = $region68
        $region67: #{tpu_custom_call.1} parent=59 // pred_region
          %481 = dma.done %s473, 2048
        $region68: #{tpu_custom_call.1} parent=59 // pred_fallthru
          _
        // Predicated region
        $region69: #{tpu_custom_call.1} parent=59 // pred_check
          %p482 = pneg %p106
        $region70: #{tpu_custom_call.1} parent=59 // pred_check_branch
          %484 = sbr.rel (%p482) target = $region72
        $region71: #{tpu_custom_call.1} parent=59 // pred_region
          %486 = dma.done [#allocation6], 8192
        $region72: #{tpu_custom_call.1} parent=59 // pred_fallthru
          _
        // Predicated region
        $region73: #{tpu_custom_call.1} parent=59 // pred_check
          %p487 = pneg %p127
        $region74: #{tpu_custom_call.1} parent=59 // pred_check_branch
          %489 = sbr.rel (%p487) target = $region76
        $region75: #{tpu_custom_call.1} parent=59 // pred_region
          %491 = dma.done [#allocation9], 64
        $region76: #{tpu_custom_call.1} parent=59 // pred_fallthru
          _
        // Predicated region
        $region77: #{tpu_custom_call.1} parent=59 // pred_check
          %p492 = pneg %p148
        $region78: #{tpu_custom_call.1} parent=59 // pred_check_branch
          %494 = sbr.rel (%p492) target = $region80
        $region79: #{tpu_custom_call.1} parent=59 // pred_region
          %496 = dma.done [#allocation9], 4096
        $region80: #{tpu_custom_call.1} parent=59 // pred_fallthru
          _
        // Predicated region
        $region81: #{tpu_custom_call.1} parent=59 // pred_check
          %p497 = pneg %p169
        $region82: #{tpu_custom_call.1} parent=59 // pred_check_branch
          %499 = sbr.rel (%p497) target = $region84
        $region83: #{tpu_custom_call.1} parent=59 // pred_region
          %501 = dma.done [#allocation12], 16
        $region84: #{tpu_custom_call.1} parent=59 // pred_fallthru
          _
        // Predicated region
        $region85: #{tpu_custom_call.1} parent=59 // pred_check
          %p502 = pneg %p190
        $region86: #{tpu_custom_call.1} parent=59 // pred_check_branch
          %504 = sbr.rel (%p502) target = $region88
        $region87: #{tpu_custom_call.1} parent=59 // pred_region
          %506 = dma.done [#allocation12], 1024
        $region88: #{tpu_custom_call.1} parent=59 // pred_fallthru
          _
        // Predicated region
        $region89: #{tpu_custom_call.1} parent=59 // pred_check
          %p507 = pneg %p232
        $region90: #{tpu_custom_call.1} parent=59 // pred_check_branch
          %509 = sbr.rel (%p507) target = $region92
        $region91: #{tpu_custom_call.1} parent=59 // pred_region
          %511 = dma.done [#allocation15], 8192
        $region92: #{tpu_custom_call.1} parent=59 // pred_fallthru
          _
        %s512 = sand.u32 %s46, 1
        %s513 = scalar_lea.sflag [#allocation3], %s512
        %s514 = sand.u32 %s46, 1
        %s515 = smul.addr %s514, 256
        %s516 = scalar_lea.vmem [#allocation2], %s515
        %p517 = pneg %p59
        %p518 = pneg %p56
        %s519 = sand.u32 %s38, 1
        %s520 = scalar_lea.sflag [#allocation6], %s519
        %s521 = sand.u32 %s72, 1
        %s522 = smul.addr %s521, 128
        %s523 = scalar_lea.vmem [#allocation5], %s522
        %p524 = pneg %p85
        %p525 = pneg %p82
        %p526 = pneg %p106
        %p527 = pneg %p103
        %p528 = pneg %p127
        %p529 = pneg %p124
        %p530 = pneg %p148
        %p531 = pneg %p145
        %p532 = pneg %p169
        %p533 = pneg %p166
        %p534 = pneg %p190
        %p535 = pneg %p187
        %p536 = pneg %p211
        %p537 = pneg %p208
        %p538 = pneg %p232
        %p539 = pneg %p229
        %p540 = pneg %p253
        %p541 = pneg %p250
        %p542 = pneg %p279
        %p543 = pneg %p276
        %s544 = sand.u32 %s266, 1
        %s545 = scalar_lea.sflag [#allocation4], %s544
        %s546 = sand.u32 %s266, 1
        %s547 = smul.addr %s546, 256
        %s548 = scalar_lea.vmem [#allocation16], %s547
        %p549 = pneg %p305
        %p550 = pneg %p302
        %s551 = sand.u32 %s292, 1
        %s552 = scalar_lea.sflag [#allocation18], %s551
        %s553 = sand.u32 %s292, 1
        %s554 = smul.addr %s553, 128
        %s555 = scalar_lea.vmem [#allocation17], %s554
        %s556 = smul.u32 16, %s38
        %s557 = smul.u32 16, %s38
        %s558 = smul.u32 16, %s38
        %s559 = smul.u32 16, %s38
        %v561 = vld [vmem:[%s466] sm:$0xff]
        %v562 = vld [vmem:[%s466 + $0x8] sm:$0xff]
        %v563 = vld [vmem:[%s466 + $0x10] sm:$0xff]
        %v564 = vld [vmem:[%s466 + $0x18] sm:$0xff]
        %v565 = vld [vmem:[%s466 + $0x20] sm:$0xff]
        %v566 = vld [vmem:[%s466 + $0x28] sm:$0xff]
        %v567 = vld [vmem:[%s466 + $0x30] sm:$0xff]
        %v568 = vld [vmem:[%s466 + $0x38] sm:$0xff]
        %v569 = vld [vmem:[%s466 + $0x40] sm:$0xff]
        %v570 = vld [vmem:[%s466 + $0x48] sm:$0xff]
        %v571 = vld [vmem:[%s466 + $0x50] sm:$0xff]
        %v572 = vld [vmem:[%s466 + $0x58] sm:$0xff]
        %v573 = vld [vmem:[%s466 + $0x60] sm:$0xff]
        %v574 = vld [vmem:[%s466 + $0x68] sm:$0xff]
        %v575 = vld [vmem:[%s466 + $0x70] sm:$0xff]
        %v576 = vld [vmem:[%s466 + $0x78] sm:$0xff]
        %v577 = vld [vmem:[%s466 + $0x80] sm:$0xff]
        %v578 = vld [vmem:[%s466 + $0x88] sm:$0xff]
        %v579 = vld [vmem:[%s466 + $0x90] sm:$0xff]
        %v580 = vld [vmem:[%s466 + $0x98] sm:$0xff]
        %v581 = vld [vmem:[%s466 + $0xa0] sm:$0xff]
        %v582 = vld [vmem:[%s466 + $0xa8] sm:$0xff]
        %v583 = vld [vmem:[%s466 + $0xb0] sm:$0xff]
        %v584 = vld [vmem:[%s466 + $0xb8] sm:$0xff]
        %v585 = vld [vmem:[%s466 + $0xc0] sm:$0xff]
        %v586 = vld [vmem:[%s466 + $0xc8] sm:$0xff]
        %v587 = vld [vmem:[%s466 + $0xd0] sm:$0xff]
        %v588 = vld [vmem:[%s466 + $0xd8] sm:$0xff]
        %v589 = vld [vmem:[%s466 + $0xe0] sm:$0xff]
        %v590 = vld [vmem:[%s466 + $0xe8] sm:$0xff]
        %v591 = vld [vmem:[%s466 + $0xf0] sm:$0xff]
        %v592 = vld [vmem:[%s466 + $0xf8] sm:$0xff]
        %v593 = vpack.c.bf16 %v563, %v561
        %v594 = vpack.c.bf16 %v564, %v562
        %v595 = vpack.c.bf16 %v567, %v565
        %v596 = vpack.c.bf16 %v568, %v566
        %v597 = vpack.c.bf16 %v571, %v569
        %v598 = vpack.c.bf16 %v572, %v570
        %v599 = vpack.c.bf16 %v575, %v573
        %v600 = vpack.c.bf16 %v576, %v574
        %v601 = vpack.c.bf16 %v579, %v577
        %v602 = vpack.c.bf16 %v580, %v578
        %v603 = vpack.c.bf16 %v583, %v581
        %v604 = vpack.c.bf16 %v584, %v582
        %v605 = vpack.c.bf16 %v587, %v585
        %v606 = vpack.c.bf16 %v588, %v586
        %v607 = vpack.c.bf16 %v591, %v589
        %v608 = vpack.c.bf16 %v592, %v590
        %v609 = vld [vmem:[#allocation7] sm:$0xff]
        %v610 = vld [vmem:[#allocation7 + $0x8] sm:$0xff]
        %v611 = vld [vmem:[#allocation7 + $0x10] sm:$0xff]
        %v612 = vld [vmem:[#allocation7 + $0x18] sm:$0xff]
        %v613 = vld [vmem:[#allocation7 + $0x20] sm:$0xff]
        %v614 = vld [vmem:[#allocation7 + $0x28] sm:$0xff]
        %v615 = vld [vmem:[#allocation7 + $0x30] sm:$0xff]
        %v616 = vld [vmem:[#allocation7 + $0x38] sm:$0xff]
        %v617 = vld [vmem:[#allocation7 + $0x40] sm:$0xff]
        %v618 = vld [vmem:[#allocation7 + $0x48] sm:$0xff]
        %v619 = vld [vmem:[#allocation7 + $0x50] sm:$0xff]
        %v620 = vld [vmem:[#allocation7 + $0x58] sm:$0xff]
        %v621 = vld [vmem:[#allocation7 + $0x60] sm:$0xff]
        %v622 = vld [vmem:[#allocation7 + $0x68] sm:$0xff]
        %v623 = vld [vmem:[#allocation7 + $0x70] sm:$0xff]
        %v624 = vld [vmem:[#allocation7 + $0x78] sm:$0xff]
        %v625 = vld [vmem:[#allocation7 + $0x80] sm:$0xff]
        %v626 = vld [vmem:[#allocation7 + $0x88] sm:$0xff]
        %v627 = vld [vmem:[#allocation7 + $0x90] sm:$0xff]
        %v628 = vld [vmem:[#allocation7 + $0x98] sm:$0xff]
        %v629 = vld [vmem:[#allocation7 + $0xa0] sm:$0xff]
        %v630 = vld [vmem:[#allocation7 + $0xa8] sm:$0xff]
        %v631 = vld [vmem:[#allocation7 + $0xb0] sm:$0xff]
        %v632 = vld [vmem:[#allocation7 + $0xb8] sm:$0xff]
        %v633 = vld [vmem:[#allocation7 + $0xc0] sm:$0xff]
        %v634 = vld [vmem:[#allocation7 + $0xc8] sm:$0xff]
        %v635 = vld [vmem:[#allocation7 + $0xd0] sm:$0xff]
        %v636 = vld [vmem:[#allocation7 + $0xd8] sm:$0xff]
        %v637 = vld [vmem:[#allocation7 + $0xe0] sm:$0xff]
        %v638 = vld [vmem:[#allocation7 + $0xe8] sm:$0xff]
        %v639 = vld [vmem:[#allocation7 + $0xf0] sm:$0xff]
        %v640 = vld [vmem:[#allocation7 + $0xf8] sm:$0xff]
        %v641 = vld [vmem:[#allocation7 + $0x100] sm:$0xff]
        %v642 = vld [vmem:[#allocation7 + $0x108] sm:$0xff]
        %v643 = vld [vmem:[#allocation7 + $0x110] sm:$0xff]
        %v644 = vld [vmem:[#allocation7 + $0x118] sm:$0xff]
        %v645 = vld [vmem:[#allocation7 + $0x120] sm:$0xff]
        %v646 = vld [vmem:[#allocation7 + $0x128] sm:$0xff]
        %v647 = vld [vmem:[#allocation7 + $0x130] sm:$0xff]
        %v648 = vld [vmem:[#allocation7 + $0x138] sm:$0xff]
        %v649 = vld [vmem:[#allocation7 + $0x140] sm:$0xff]
        %v650 = vld [vmem:[#allocation7 + $0x148] sm:$0xff]
        %v651 = vld [vmem:[#allocation7 + $0x150] sm:$0xff]
        %v652 = vld [vmem:[#allocation7 + $0x158] sm:$0xff]
        %v653 = vld [vmem:[#allocation7 + $0x160] sm:$0xff]
        %v654 = vld [vmem:[#allocation7 + $0x168] sm:$0xff]
        %v655 = vld [vmem:[#allocation7 + $0x170] sm:$0xff]
        %v656 = vld [vmem:[#allocation7 + $0x178] sm:$0xff]
        %v657 = vld [vmem:[#allocation7 + $0x180] sm:$0xff]
        %v658 = vld [vmem:[#allocation7 + $0x188] sm:$0xff]
        %v659 = vld [vmem:[#allocation7 + $0x190] sm:$0xff]
        %v660 = vld [vmem:[#allocation7 + $0x198] sm:$0xff]
        %v661 = vld [vmem:[#allocation7 + $0x1a0] sm:$0xff]
        %v662 = vld [vmem:[#allocation7 + $0x1a8] sm:$0xff]
        %v663 = vld [vmem:[#allocation7 + $0x1b0] sm:$0xff]
        %v664 = vld [vmem:[#allocation7 + $0x1b8] sm:$0xff]
        %v665 = vld [vmem:[#allocation7 + $0x1c0] sm:$0xff]
        %v666 = vld [vmem:[#allocation7 + $0x1c8] sm:$0xff]
        %v667 = vld [vmem:[#allocation7 + $0x1d0] sm:$0xff]
        %v668 = vld [vmem:[#allocation7 + $0x1d8] sm:$0xff]
        %v669 = vld [vmem:[#allocation7 + $0x1e0] sm:$0xff]
        %v670 = vld [vmem:[#allocation7 + $0x1e8] sm:$0xff]
        %v671 = vld [vmem:[#allocation7 + $0x1f0] sm:$0xff]
        %v672 = vld [vmem:[#allocation7 + $0x1f8] sm:$0xff]
        %v673 = vld [vmem:[#allocation8] sm:$0xf]
        %v675 = vperm.slane %v673, 0
        %v676 = vperm.slane %v673, 1
        %v677 = vperm.slane %v673, 2
        %v678 = vperm.slane %v673, 3
        %v747 = vunpack.c.l.b16 %v609
        %v748 = vunpack.c.h.b16 %v609
        %v749 = vunpack.c.l.b16 %v610
        %v750 = vunpack.c.h.b16 %v610
        %v751 = vunpack.c.l.b16 %v611
        %v752 = vunpack.c.h.b16 %v611
        %v753 = vunpack.c.l.b16 %v612
        %v754 = vunpack.c.h.b16 %v612
        %v755 = vunpack.c.l.b16 %v613
        %v756 = vunpack.c.h.b16 %v613
        %v757 = vunpack.c.l.b16 %v614
        %v758 = vunpack.c.h.b16 %v614
        %v759 = vunpack.c.l.b16 %v615
        %v760 = vunpack.c.h.b16 %v615
        %v761 = vunpack.c.l.b16 %v616
        %v762 = vunpack.c.h.b16 %v616
        %v763 = vunpack.c.l.b16 %v617
        %v764 = vunpack.c.h.b16 %v617
        %v765 = vunpack.c.l.b16 %v618
        %v766 = vunpack.c.h.b16 %v618
        %v767 = vunpack.c.l.b16 %v619
        %v768 = vunpack.c.h.b16 %v619
        %v769 = vunpack.c.l.b16 %v620
        %v770 = vunpack.c.h.b16 %v620
        %v771 = vunpack.c.l.b16 %v621
        %v772 = vunpack.c.h.b16 %v621
        %v773 = vunpack.c.l.b16 %v622
        %v774 = vunpack.c.h.b16 %v622
        %v775 = vunpack.c.l.b16 %v623
        %v776 = vunpack.c.h.b16 %v623
        %v777 = vunpack.c.l.b16 %v624
        %v778 = vunpack.c.h.b16 %v624
        %v779 = vunpack.c.l.b16 %v625
        %v780 = vunpack.c.h.b16 %v625
        %v781 = vunpack.c.l.b16 %v626
        %v782 = vunpack.c.h.b16 %v626
        %v783 = vunpack.c.l.b16 %v627
        %v784 = vunpack.c.h.b16 %v627
        %v785 = vunpack.c.l.b16 %v628
        %v786 = vunpack.c.h.b16 %v628
        %v787 = vunpack.c.l.b16 %v629
        %v788 = vunpack.c.h.b16 %v629
        %v789 = vunpack.c.l.b16 %v630
        %v790 = vunpack.c.h.b16 %v630
        %v791 = vunpack.c.l.b16 %v631
        %v792 = vunpack.c.h.b16 %v631
        %v793 = vunpack.c.l.b16 %v632
        %v794 = vunpack.c.h.b16 %v632
        %v795 = vunpack.c.l.b16 %v633
        %v796 = vunpack.c.h.b16 %v633
        %v797 = vunpack.c.l.b16 %v634
        %v798 = vunpack.c.h.b16 %v634
        %v799 = vunpack.c.l.b16 %v635
        %v800 = vunpack.c.h.b16 %v635
        %v801 = vunpack.c.l.b16 %v636
        %v802 = vunpack.c.h.b16 %v636
        %v803 = vunpack.c.l.b16 %v637
        %v804 = vunpack.c.h.b16 %v637
        %v805 = vunpack.c.l.b16 %v638
        %v806 = vunpack.c.h.b16 %v638
        %v807 = vunpack.c.l.b16 %v639
        %v808 = vunpack.c.h.b16 %v639
        %v809 = vunpack.c.l.b16 %v640
        %v810 = vunpack.c.h.b16 %v640
        %v811 = vunpack.c.l.b16 %v641
        %v812 = vunpack.c.h.b16 %v641
        %v813 = vunpack.c.l.b16 %v642
        %v814 = vunpack.c.h.b16 %v642
        %v815 = vunpack.c.l.b16 %v643
        %v816 = vunpack.c.h.b16 %v643
        %v817 = vunpack.c.l.b16 %v644
        %v818 = vunpack.c.h.b16 %v644
        %v819 = vunpack.c.l.b16 %v645
        %v820 = vunpack.c.h.b16 %v645
        %v821 = vunpack.c.l.b16 %v646
        %v822 = vunpack.c.h.b16 %v646
        %v823 = vunpack.c.l.b16 %v647
        %v824 = vunpack.c.h.b16 %v647
        %v825 = vunpack.c.l.b16 %v648
        %v826 = vunpack.c.h.b16 %v648
        %v827 = vunpack.c.l.b16 %v649
        %v828 = vunpack.c.h.b16 %v649
        %v829 = vunpack.c.l.b16 %v650
        %v830 = vunpack.c.h.b16 %v650
        %v831 = vunpack.c.l.b16 %v651
        %v832 = vunpack.c.h.b16 %v651
        %v833 = vunpack.c.l.b16 %v652
        %v834 = vunpack.c.h.b16 %v652
        %v835 = vunpack.c.l.b16 %v653
        %v836 = vunpack.c.h.b16 %v653
        %v837 = vunpack.c.l.b16 %v654
        %v838 = vunpack.c.h.b16 %v654
        %v839 = vunpack.c.l.b16 %v655
        %v840 = vunpack.c.h.b16 %v655
        %v841 = vunpack.c.l.b16 %v656
        %v842 = vunpack.c.h.b16 %v656
        %v843 = vunpack.c.l.b16 %v657
        %v844 = vunpack.c.h.b16 %v657
        %v845 = vunpack.c.l.b16 %v658
        %v846 = vunpack.c.h.b16 %v658
        %v847 = vunpack.c.l.b16 %v659
        %v848 = vunpack.c.h.b16 %v659
        %v849 = vunpack.c.l.b16 %v660
        %v850 = vunpack.c.h.b16 %v660
        %v851 = vunpack.c.l.b16 %v661
        %v852 = vunpack.c.h.b16 %v661
        %v853 = vunpack.c.l.b16 %v662
        %v854 = vunpack.c.h.b16 %v662
        %v855 = vunpack.c.l.b16 %v663
        %v856 = vunpack.c.h.b16 %v663
        %v857 = vunpack.c.l.b16 %v664
        %v858 = vunpack.c.h.b16 %v664
        %v859 = vunpack.c.l.b16 %v665
        %v860 = vunpack.c.h.b16 %v665
        %v861 = vunpack.c.l.b16 %v666
        %v862 = vunpack.c.h.b16 %v666
        %v863 = vunpack.c.l.b16 %v667
        %v864 = vunpack.c.h.b16 %v667
        %v865 = vunpack.c.l.b16 %v668
        %v866 = vunpack.c.h.b16 %v668
        %v867 = vunpack.c.l.b16 %v669
        %v868 = vunpack.c.h.b16 %v669
        %v869 = vunpack.c.l.b16 %v670
        %v870 = vunpack.c.h.b16 %v670
        %v871 = vunpack.c.l.b16 %v671
        %v872 = vunpack.c.h.b16 %v671
        %v873 = vunpack.c.l.b16 %v672
        %v874 = vunpack.c.h.b16 %v672
        %v875 = vpack.c.b16 %v751, %v747
        %v876 = vpack.c.b16 %v752, %v748
        %v877 = vpack.c.b16 %v753, %v749
        %v878 = vpack.c.b16 %v754, %v750
        %v879 = vpack.c.b16 %v759, %v755
        %v880 = vpack.c.b16 %v760, %v756
        %v881 = vpack.c.b16 %v761, %v757
        %v882 = vpack.c.b16 %v762, %v758
        %v883 = vpack.c.b16 %v767, %v763
        %v884 = vpack.c.b16 %v768, %v764
        %v885 = vpack.c.b16 %v769, %v765
        %v886 = vpack.c.b16 %v770, %v766
        %v887 = vpack.c.b16 %v775, %v771
        %v888 = vpack.c.b16 %v776, %v772
        %v889 = vpack.c.b16 %v777, %v773
        %v890 = vpack.c.b16 %v778, %v774
        %v891 = vpack.c.b16 %v783, %v779
        %v892 = vpack.c.b16 %v784, %v780
        %v893 = vpack.c.b16 %v785, %v781
        %v894 = vpack.c.b16 %v786, %v782
        %v895 = vpack.c.b16 %v791, %v787
        %v896 = vpack.c.b16 %v792, %v788
        %v897 = vpack.c.b16 %v793, %v789
        %v898 = vpack.c.b16 %v794, %v790
        %v899 = vpack.c.b16 %v799, %v795
        %v900 = vpack.c.b16 %v800, %v796
        %v901 = vpack.c.b16 %v801, %v797
        %v902 = vpack.c.b16 %v802, %v798
        %v903 = vpack.c.b16 %v807, %v803
        %v904 = vpack.c.b16 %v808, %v804
        %v905 = vpack.c.b16 %v809, %v805
        %v906 = vpack.c.b16 %v810, %v806
        %v907 = vpack.c.b16 %v815, %v811
        %v908 = vpack.c.b16 %v816, %v812
        %v909 = vpack.c.b16 %v817, %v813
        %v910 = vpack.c.b16 %v818, %v814
        %v911 = vpack.c.b16 %v823, %v819
        %v912 = vpack.c.b16 %v824, %v820
        %v913 = vpack.c.b16 %v825, %v821
        %v914 = vpack.c.b16 %v826, %v822
        %v915 = vpack.c.b16 %v831, %v827
        %v916 = vpack.c.b16 %v832, %v828
        %v917 = vpack.c.b16 %v833, %v829
        %v918 = vpack.c.b16 %v834, %v830
        %v919 = vpack.c.b16 %v839, %v835
        %v920 = vpack.c.b16 %v840, %v836
        %v921 = vpack.c.b16 %v841, %v837
        %v922 = vpack.c.b16 %v842, %v838
        %v923 = vpack.c.b16 %v847, %v843
        %v924 = vpack.c.b16 %v848, %v844
        %v925 = vpack.c.b16 %v849, %v845
        %v926 = vpack.c.b16 %v850, %v846
        %v927 = vpack.c.b16 %v855, %v851
        %v928 = vpack.c.b16 %v856, %v852
        %v929 = vpack.c.b16 %v857, %v853
        %v930 = vpack.c.b16 %v858, %v854
        %v931 = vpack.c.b16 %v863, %v859
        %v932 = vpack.c.b16 %v864, %v860
        %v933 = vpack.c.b16 %v865, %v861
        %v934 = vpack.c.b16 %v866, %v862
        %v935 = vpack.c.b16 %v871, %v867
        %v936 = vpack.c.b16 %v872, %v868
        %v937 = vpack.c.b16 %v873, %v869
        %v938 = vpack.c.b16 %v874, %v870
        %1003 = vmatpush.bf16.msra.mxu0 %v903
        %1004 = vmatpush.bf16.msra.mxu0 %v899
        %1005 = vmatpush.bf16.msra.mxu0 %v895
        %1006 = vmatpush.bf16.msra.mxu0 %v891
        %1007 = vmatpush.bf16.msra.mxu0 %v887
        %1008 = vmatpush.bf16.msra.mxu0 %v883
        %1009 = vmatpush.bf16.msra.mxu0 %v879
        %1010 = vmatpush.bf16.msra.mxu0 %v875
        %1011 = vmatmul.bf16.gmra.mxu0 %v593
        %v1012 = vpop.f32.mrf.mxu0
        %v1013 = vadd.f32 %v675, %v1012
        %v1014 = vpop.f32.mrf.mxu0
        %v1015 = vadd.f32 %v675, %v1014
        %1016 = vmatmul.bf16.gmra.mxu0 %v595
        %v1017 = vpop.f32.mrf.mxu0
        %v1018 = vadd.f32 %v675, %v1017
        %v1019 = vpop.f32.mrf.mxu0
        %v1020 = vadd.f32 %v675, %v1019
        %1021 = vmatmul.bf16.gmra.mxu0 %v597
        %v1022 = vpop.f32.mrf.mxu0
        %v1023 = vadd.f32 %v675, %v1022
        %v1024 = vpop.f32.mrf.mxu0
        %v1025 = vadd.f32 %v675, %v1024
        %1026 = vmatmul.bf16.gmra.mxu0 %v599
        %v1027 = vpop.f32.mrf.mxu0
        %v1028 = vadd.f32 %v675, %v1027
        %v1029 = vpop.f32.mrf.mxu0
        %v1030 = vadd.f32 %v675, %v1029
        %1031 = vmatmul.bf16.gmra.mxu0 %v601
        %v1032 = vpop.f32.mrf.mxu0
        %v1033 = vadd.f32 %v675, %v1032
        %v1034 = vpop.f32.mrf.mxu0
        %v1035 = vadd.f32 %v675, %v1034
        %1036 = vmatmul.bf16.gmra.mxu0 %v603
        %v1037 = vpop.f32.mrf.mxu0
        %v1038 = vadd.f32 %v675, %v1037
        %v1039 = vpop.f32.mrf.mxu0
        %v1040 = vadd.f32 %v675, %v1039
        %1041 = vmatmul.bf16.gmra.mxu0 %v605
        %v1042 = vpop.f32.mrf.mxu0
        %v1043 = vadd.f32 %v675, %v1042
        %v1044 = vpop.f32.mrf.mxu0
        %v1045 = vadd.f32 %v675, %v1044
        %1046 = vmatmul.bf16.gmra.mxu0 %v607
        %v1047 = vpop.f32.mrf.mxu0
        %v1048 = vadd.f32 %v675, %v1047
        %v1049 = vpop.f32.mrf.mxu0
        %v1050 = vadd.f32 %v675, %v1049
        %1051 = vdwg.mxu0
        %1052 = vmatpush.bf16.msra.mxu0 %v935
        %1053 = vmatpush.bf16.msra.mxu0 %v931
        %1054 = vmatpush.bf16.msra.mxu0 %v927
        %1055 = vmatpush.bf16.msra.mxu0 %v923
        %1056 = vmatpush.bf16.msra.mxu0 %v919
        %1057 = vmatpush.bf16.msra.mxu0 %v915
        %1058 = vmatpush.bf16.msra.mxu0 %v911
        %1059 = vmatpush.bf16.msra.mxu0 %v907
        %1060 = vmatmul.bf16.gmra.mxu0 %v594
        %v1061 = vpop.f32.mrf.mxu0
        %v1062 = vadd.f32 %v1013, %v1061
        %v1063 = vpop.f32.mrf.mxu0
        %v1064 = vadd.f32 %v1015, %v1063
        %1065 = vmatmul.bf16.gmra.mxu0 %v596
        %v1066 = vpop.f32.mrf.mxu0
        %v1067 = vadd.f32 %v1018, %v1066
        %v1068 = vpop.f32.mrf.mxu0
        %v1069 = vadd.f32 %v1020, %v1068
        %1070 = vmatmul.bf16.gmra.mxu0 %v598
        %v1071 = vpop.f32.mrf.mxu0
        %v1072 = vadd.f32 %v1023, %v1071
        %v1073 = vpop.f32.mrf.mxu0
        %v1074 = vadd.f32 %v1025, %v1073
        %1075 = vmatmul.bf16.gmra.mxu0 %v600
        %v1076 = vpop.f32.mrf.mxu0
        %v1077 = vadd.f32 %v1028, %v1076
        %v1078 = vpop.f32.mrf.mxu0
        %v1079 = vadd.f32 %v1030, %v1078
        %1080 = vmatmul.bf16.gmra.mxu0 %v602
        %v1081 = vpop.f32.mrf.mxu0
        %v1082 = vadd.f32 %v1033, %v1081
        %v1083 = vpop.f32.mrf.mxu0
        %v1084 = vadd.f32 %v1035, %v1083
        %1085 = vmatmul.bf16.gmra.mxu0 %v604
        %v1086 = vpop.f32.mrf.mxu0
        %v1087 = vadd.f32 %v1038, %v1086
        %v1088 = vpop.f32.mrf.mxu0
        %v1089 = vadd.f32 %v1040, %v1088
        %1090 = vmatmul.bf16.gmra.mxu0 %v606
        %v1091 = vpop.f32.mrf.mxu0
        %v1092 = vadd.f32 %v1043, %v1091
        %v1093 = vpop.f32.mrf.mxu0
        %v1094 = vadd.f32 %v1045, %v1093
        %1095 = vmatmul.bf16.gmra.mxu0 %v608
        %v1096 = vpop.f32.mrf.mxu0
        %v1097 = vadd.f32 %v1048, %v1096
        %v1098 = vpop.f32.mrf.mxu0
        %v1099 = vadd.f32 %v1050, %v1098
        %1100 = vdwg.mxu0
        %1101 = vmatpush.bf16.msra.mxu0 %v904
        %1102 = vmatpush.bf16.msra.mxu0 %v900
        %1103 = vmatpush.bf16.msra.mxu0 %v896
        %1104 = vmatpush.bf16.msra.mxu0 %v892
        %1105 = vmatpush.bf16.msra.mxu0 %v888
        %1106 = vmatpush.bf16.msra.mxu0 %v884
        %1107 = vmatpush.bf16.msra.mxu0 %v880
        %1108 = vmatpush.bf16.msra.mxu0 %v876
        %1109 = vmatmul.bf16.gmra.mxu0 %v593
        %v1110 = vpop.f32.mrf.mxu0
        %v1111 = vadd.f32 %v676, %v1110
        %v1112 = vpop.f32.mrf.mxu0
        %v1113 = vadd.f32 %v676, %v1112
        %1114 = vmatmul.bf16.gmra.mxu0 %v595
        %v1115 = vpop.f32.mrf.mxu0
        %v1116 = vadd.f32 %v676, %v1115
        %v1117 = vpop.f32.mrf.mxu0
        %v1118 = vadd.f32 %v676, %v1117
        %1119 = vmatmul.bf16.gmra.mxu0 %v597
        %v1120 = vpop.f32.mrf.mxu0
        %v1121 = vadd.f32 %v676, %v1120
        %v1122 = vpop.f32.mrf.mxu0
        %v1123 = vadd.f32 %v676, %v1122
        %1124 = vmatmul.bf16.gmra.mxu0 %v599
        %v1125 = vpop.f32.mrf.mxu0
        %v1126 = vadd.f32 %v676, %v1125
        %v1127 = vpop.f32.mrf.mxu0
        %v1128 = vadd.f32 %v676, %v1127
        %1129 = vmatmul.bf16.gmra.mxu0 %v601
        %v1130 = vpop.f32.mrf.mxu0
        %v1131 = vadd.f32 %v676, %v1130
        %v1132 = vpop.f32.mrf.mxu0
        %v1133 = vadd.f32 %v676, %v1132
        %1134 = vmatmul.bf16.gmra.mxu0 %v603
        %v1135 = vpop.f32.mrf.mxu0
        %v1136 = vadd.f32 %v676, %v1135
        %v1137 = vpop.f32.mrf.mxu0
        %v1138 = vadd.f32 %v676, %v1137
        %1139 = vmatmul.bf16.gmra.mxu0 %v605
        %v1140 = vpop.f32.mrf.mxu0
        %v1141 = vadd.f32 %v676, %v1140
        %v1142 = vpop.f32.mrf.mxu0
        %v1143 = vadd.f32 %v676, %v1142
        %1144 = vmatmul.bf16.gmra.mxu0 %v607
        %v1145 = vpop.f32.mrf.mxu0
        %v1146 = vadd.f32 %v676, %v1145
        %v1147 = vpop.f32.mrf.mxu0
        %v1148 = vadd.f32 %v676, %v1147
        %1149 = vdwg.mxu0
        %1150 = vmatpush.bf16.msra.mxu0 %v936
        %1151 = vmatpush.bf16.msra.mxu0 %v932
        %1152 = vmatpush.bf16.msra.mxu0 %v928
        %1153 = vmatpush.bf16.msra.mxu0 %v924
        %1154 = vmatpush.bf16.msra.mxu0 %v920
        %1155 = vmatpush.bf16.msra.mxu0 %v916
        %1156 = vmatpush.bf16.msra.mxu0 %v912
        %1157 = vmatpush.bf16.msra.mxu0 %v908
        %1158 = vmatmul.bf16.gmra.mxu0 %v594
        %v1159 = vpop.f32.mrf.mxu0
        %v1160 = vadd.f32 %v1111, %v1159
        %v1161 = vpop.f32.mrf.mxu0
        %v1162 = vadd.f32 %v1113, %v1161
        %1163 = vmatmul.bf16.gmra.mxu0 %v596
        %v1164 = vpop.f32.mrf.mxu0
        %v1165 = vadd.f32 %v1116, %v1164
        %v1166 = vpop.f32.mrf.mxu0
        %v1167 = vadd.f32 %v1118, %v1166
        %1168 = vmatmul.bf16.gmra.mxu0 %v598
        %v1169 = vpop.f32.mrf.mxu0
        %v1170 = vadd.f32 %v1121, %v1169
        %v1171 = vpop.f32.mrf.mxu0
        %v1172 = vadd.f32 %v1123, %v1171
        %1173 = vmatmul.bf16.gmra.mxu0 %v600
        %v1174 = vpop.f32.mrf.mxu0
        %v1175 = vadd.f32 %v1126, %v1174
        %v1176 = vpop.f32.mrf.mxu0
        %v1177 = vadd.f32 %v1128, %v1176
        %1178 = vmatmul.bf16.gmra.mxu0 %v602
        %v1179 = vpop.f32.mrf.mxu0
        %v1180 = vadd.f32 %v1131, %v1179
        %v1181 = vpop.f32.mrf.mxu0
        %v1182 = vadd.f32 %v1133, %v1181
        %1183 = vmatmul.bf16.gmra.mxu0 %v604
        %v1184 = vpop.f32.mrf.mxu0
        %v1185 = vadd.f32 %v1136, %v1184
        %v1186 = vpop.f32.mrf.mxu0
        %v1187 = vadd.f32 %v1138, %v1186
        %1188 = vmatmul.bf16.gmra.mxu0 %v606
        %v1189 = vpop.f32.mrf.mxu0
        %v1190 = vadd.f32 %v1141, %v1189
        %v1191 = vpop.f32.mrf.mxu0
        %v1192 = vadd.f32 %v1143, %v1191
        %1193 = vmatmul.bf16.gmra.mxu0 %v608
        %v1194 = vpop.f32.mrf.mxu0
        %v1195 = vadd.f32 %v1146, %v1194
        %v1196 = vpop.f32.mrf.mxu0
        %v1197 = vadd.f32 %v1148, %v1196
        %1198 = vdwg.mxu0
        %1199 = vmatpush.bf16.msra.mxu0 %v905
        %1200 = vmatpush.bf16.msra.mxu0 %v901
        %1201 = vmatpush.bf16.msra.mxu0 %v897
        %1202 = vmatpush.bf16.msra.mxu0 %v893
        %1203 = vmatpush.bf16.msra.mxu0 %v889
        %1204 = vmatpush.bf16.msra.mxu0 %v885
        %1205 = vmatpush.bf16.msra.mxu0 %v881
        %1206 = vmatpush.bf16.msra.mxu0 %v877
        %1207 = vmatmul.bf16.gmra.mxu0 %v593
        %v1208 = vpop.f32.mrf.mxu0
        %v1209 = vadd.f32 %v677, %v1208
        %v1210 = vpop.f32.mrf.mxu0
        %v1211 = vadd.f32 %v677, %v1210
        %1212 = vmatmul.bf16.gmra.mxu0 %v595
        %v1213 = vpop.f32.mrf.mxu0
        %v1214 = vadd.f32 %v677, %v1213
        %v1215 = vpop.f32.mrf.mxu0
        %v1216 = vadd.f32 %v677, %v1215
        %1217 = vmatmul.bf16.gmra.mxu0 %v597
        %v1218 = vpop.f32.mrf.mxu0
        %v1219 = vadd.f32 %v677, %v1218
        %v1220 = vpop.f32.mrf.mxu0
        %v1221 = vadd.f32 %v677, %v1220
        %1222 = vmatmul.bf16.gmra.mxu0 %v599
        %v1223 = vpop.f32.mrf.mxu0
        %v1224 = vadd.f32 %v677, %v1223
        %v1225 = vpop.f32.mrf.mxu0
        %v1226 = vadd.f32 %v677, %v1225
        %1227 = vmatmul.bf16.gmra.mxu0 %v601
        %v1228 = vpop.f32.mrf.mxu0
        %v1229 = vadd.f32 %v677, %v1228
        %v1230 = vpop.f32.mrf.mxu0
        %v1231 = vadd.f32 %v677, %v1230
        %1232 = vmatmul.bf16.gmra.mxu0 %v603
        %v1233 = vpop.f32.mrf.mxu0
        %v1234 = vadd.f32 %v677, %v1233
        %v1235 = vpop.f32.mrf.mxu0
        %v1236 = vadd.f32 %v677, %v1235
        %1237 = vmatmul.bf16.gmra.mxu0 %v605
        %v1238 = vpop.f32.mrf.mxu0
        %v1239 = vadd.f32 %v677, %v1238
        %v1240 = vpop.f32.mrf.mxu0
        %v1241 = vadd.f32 %v677, %v1240
        %1242 = vmatmul.bf16.gmra.mxu0 %v607
        %v1243 = vpop.f32.mrf.mxu0
        %v1244 = vadd.f32 %v677, %v1243
        %v1245 = vpop.f32.mrf.mxu0
        %v1246 = vadd.f32 %v677, %v1245
        %1247 = vdwg.mxu0
        %1248 = vmatpush.bf16.msra.mxu0 %v937
        %1249 = vmatpush.bf16.msra.mxu0 %v933
        %1250 = vmatpush.bf16.msra.mxu0 %v929
        %1251 = vmatpush.bf16.msra.mxu0 %v925
        %1252 = vmatpush.bf16.msra.mxu0 %v921
        %1253 = vmatpush.bf16.msra.mxu0 %v917
        %1254 = vmatpush.bf16.msra.mxu0 %v913
        %1255 = vmatpush.bf16.msra.mxu0 %v909
        %1256 = vmatmul.bf16.gmra.mxu0 %v594
        %v1257 = vpop.f32.mrf.mxu0
        %v1258 = vadd.f32 %v1209, %v1257
        %v1259 = vpop.f32.mrf.mxu0
        %v1260 = vadd.f32 %v1211, %v1259
        %1261 = vmatmul.bf16.gmra.mxu0 %v596
        %v1262 = vpop.f32.mrf.mxu0
        %v1263 = vadd.f32 %v1214, %v1262
        %v1264 = vpop.f32.mrf.mxu0
        %v1265 = vadd.f32 %v1216, %v1264
        %1266 = vmatmul.bf16.gmra.mxu0 %v598
        %v1267 = vpop.f32.mrf.mxu0
        %v1268 = vadd.f32 %v1219, %v1267
        %v1269 = vpop.f32.mrf.mxu0
        %v1270 = vadd.f32 %v1221, %v1269
        %1271 = vmatmul.bf16.gmra.mxu0 %v600
        %v1272 = vpop.f32.mrf.mxu0
        %v1273 = vadd.f32 %v1224, %v1272
        %v1274 = vpop.f32.mrf.mxu0
        %v1275 = vadd.f32 %v1226, %v1274
        %1276 = vmatmul.bf16.gmra.mxu0 %v602
        %v1277 = vpop.f32.mrf.mxu0
        %v1278 = vadd.f32 %v1229, %v1277
        %v1279 = vpop.f32.mrf.mxu0
        %v1280 = vadd.f32 %v1231, %v1279
        %1281 = vmatmul.bf16.gmra.mxu0 %v604
        %v1282 = vpop.f32.mrf.mxu0
        %v1283 = vadd.f32 %v1234, %v1282
        %v1284 = vpop.f32.mrf.mxu0
        %v1285 = vadd.f32 %v1236, %v1284
        %1286 = vmatmul.bf16.gmra.mxu0 %v606
        %v1287 = vpop.f32.mrf.mxu0
        %v1288 = vadd.f32 %v1239, %v1287
        %v1289 = vpop.f32.mrf.mxu0
        %v1290 = vadd.f32 %v1241, %v1289
        %1291 = vmatmul.bf16.gmra.mxu0 %v608
        %v1292 = vpop.f32.mrf.mxu0
        %v1293 = vadd.f32 %v1244, %v1292
        %v1294 = vpop.f32.mrf.mxu0
        %v1295 = vadd.f32 %v1246, %v1294
        %1296 = vdwg.mxu0
        %1297 = vmatpush.bf16.msra.mxu0 %v906
        %1298 = vmatpush.bf16.msra.mxu0 %v902
        %1299 = vmatpush.bf16.msra.mxu0 %v898
        %1300 = vmatpush.bf16.msra.mxu0 %v894
        %1301 = vmatpush.bf16.msra.mxu0 %v890
        %1302 = vmatpush.bf16.msra.mxu0 %v886
        %1303 = vmatpush.bf16.msra.mxu0 %v882
        %1304 = vmatpush.bf16.msra.mxu0 %v878
        %1305 = vmatmul.bf16.gmra.mxu0 %v593
        %v1306 = vpop.f32.mrf.mxu0
        %v1307 = vadd.f32 %v678, %v1306
        %v1308 = vpop.f32.mrf.mxu0
        %v1309 = vadd.f32 %v678, %v1308
        %1310 = vmatmul.bf16.gmra.mxu0 %v595
        %v1311 = vpop.f32.mrf.mxu0
        %v1312 = vadd.f32 %v678, %v1311
        %v1313 = vpop.f32.mrf.mxu0
        %v1314 = vadd.f32 %v678, %v1313
        %1315 = vmatmul.bf16.gmra.mxu0 %v597
        %v1316 = vpop.f32.mrf.mxu0
        %v1317 = vadd.f32 %v678, %v1316
        %v1318 = vpop.f32.mrf.mxu0
        %v1319 = vadd.f32 %v678, %v1318
        %1320 = vmatmul.bf16.gmra.mxu0 %v599
        %v1321 = vpop.f32.mrf.mxu0
        %v1322 = vadd.f32 %v678, %v1321
        %v1323 = vpop.f32.mrf.mxu0
        %v1324 = vadd.f32 %v678, %v1323
        %1325 = vmatmul.bf16.gmra.mxu0 %v601
        %v1326 = vpop.f32.mrf.mxu0
        %v1327 = vadd.f32 %v678, %v1326
        %v1328 = vpop.f32.mrf.mxu0
        %v1329 = vadd.f32 %v678, %v1328
        %1330 = vmatmul.bf16.gmra.mxu0 %v603
        %v1331 = vpop.f32.mrf.mxu0
        %v1332 = vadd.f32 %v678, %v1331
        %v1333 = vpop.f32.mrf.mxu0
        %v1334 = vadd.f32 %v678, %v1333
        %1335 = vmatmul.bf16.gmra.mxu0 %v605
        %v1336 = vpop.f32.mrf.mxu0
        %v1337 = vadd.f32 %v678, %v1336
        %v1338 = vpop.f32.mrf.mxu0
        %v1339 = vadd.f32 %v678, %v1338
        %1340 = vmatmul.bf16.gmra.mxu0 %v607
        %v1341 = vpop.f32.mrf.mxu0
        %v1342 = vadd.f32 %v678, %v1341
        %v1343 = vpop.f32.mrf.mxu0
        %v1344 = vadd.f32 %v678, %v1343
        %1345 = vdwg.mxu0
        %1346 = vmatpush.bf16.msra.mxu0 %v938
        %1347 = vmatpush.bf16.msra.mxu0 %v934
        %1348 = vmatpush.bf16.msra.mxu0 %v930
        %1349 = vmatpush.bf16.msra.mxu0 %v926
        %1350 = vmatpush.bf16.msra.mxu0 %v922
        %1351 = vmatpush.bf16.msra.mxu0 %v918
        %1352 = vmatpush.bf16.msra.mxu0 %v914
        %1353 = vmatpush.bf16.msra.mxu0 %v910
        %1354 = vmatmul.bf16.gmra.mxu0 %v594
        %v1355 = vpop.f32.mrf.mxu0
        %v1356 = vadd.f32 %v1307, %v1355
        %v1357 = vpop.f32.mrf.mxu0
        %v1358 = vadd.f32 %v1309, %v1357
        %1359 = vmatmul.bf16.gmra.mxu0 %v596
        %v1360 = vpop.f32.mrf.mxu0
        %v1361 = vadd.f32 %v1312, %v1360
        %v1362 = vpop.f32.mrf.mxu0
        %v1363 = vadd.f32 %v1314, %v1362
        %1364 = vmatmul.bf16.gmra.mxu0 %v598
        %v1365 = vpop.f32.mrf.mxu0
        %v1366 = vadd.f32 %v1317, %v1365
        %v1367 = vpop.f32.mrf.mxu0
        %v1368 = vadd.f32 %v1319, %v1367
        %1369 = vmatmul.bf16.gmra.mxu0 %v600
        %v1370 = vpop.f32.mrf.mxu0
        %v1371 = vadd.f32 %v1322, %v1370
        %v1372 = vpop.f32.mrf.mxu0
        %v1373 = vadd.f32 %v1324, %v1372
        %1374 = vmatmul.bf16.gmra.mxu0 %v602
        %v1375 = vpop.f32.mrf.mxu0
        %v1376 = vadd.f32 %v1327, %v1375
        %v1377 = vpop.f32.mrf.mxu0
        %v1378 = vadd.f32 %v1329, %v1377
        %1379 = vmatmul.bf16.gmra.mxu0 %v604
        %v1380 = vpop.f32.mrf.mxu0
        %v1381 = vadd.f32 %v1332, %v1380
        %v1382 = vpop.f32.mrf.mxu0
        %v1383 = vadd.f32 %v1334, %v1382
        %1384 = vmatmul.bf16.gmra.mxu0 %v606
        %v1385 = vpop.f32.mrf.mxu0
        %v1386 = vadd.f32 %v1337, %v1385
        %v1387 = vpop.f32.mrf.mxu0
        %v1388 = vadd.f32 %v1339, %v1387
        %1389 = vmatmul.bf16.gmra.mxu0 %v608
        %v1390 = vpop.f32.mrf.mxu0
        %v1391 = vadd.f32 %v1342, %v1390
        %v1392 = vpop.f32.mrf.mxu0
        %v1393 = vadd.f32 %v1344, %v1392
        %1394 = vdwg.mxu0
        %v1395 = vmax.f32 %v1062, 0.0
        %v1396 = vmax.f32 %v1160, 0.0
        %v1397 = vmax.f32 %v1258, 0.0
        %v1398 = vmax.f32 %v1356, 0.0
        %v1399 = vmax.f32 %v1064, 0.0
        %v1400 = vmax.f32 %v1162, 0.0
        %v1401 = vmax.f32 %v1260, 0.0
        %v1402 = vmax.f32 %v1358, 0.0
        %v1403 = vmax.f32 %v1067, 0.0
        %v1404 = vmax.f32 %v1165, 0.0
        %v1405 = vmax.f32 %v1263, 0.0
        %v1406 = vmax.f32 %v1361, 0.0
        %v1407 = vmax.f32 %v1069, 0.0
        %v1408 = vmax.f32 %v1167, 0.0
        %v1409 = vmax.f32 %v1265, 0.0
        %v1410 = vmax.f32 %v1363, 0.0
        %v1411 = vmax.f32 %v1072, 0.0
        %v1412 = vmax.f32 %v1170, 0.0
        %v1413 = vmax.f32 %v1268, 0.0
        %v1414 = vmax.f32 %v1366, 0.0
        %v1415 = vmax.f32 %v1074, 0.0
        %v1416 = vmax.f32 %v1172, 0.0
        %v1417 = vmax.f32 %v1270, 0.0
        %v1418 = vmax.f32 %v1368, 0.0
        %v1419 = vmax.f32 %v1077, 0.0
        %v1420 = vmax.f32 %v1175, 0.0
        %v1421 = vmax.f32 %v1273, 0.0
        %v1422 = vmax.f32 %v1371, 0.0
        %v1423 = vmax.f32 %v1079, 0.0
        %v1424 = vmax.f32 %v1177, 0.0
        %v1425 = vmax.f32 %v1275, 0.0
        %v1426 = vmax.f32 %v1373, 0.0
        %v1427 = vmax.f32 %v1082, 0.0
        %v1428 = vmax.f32 %v1180, 0.0
        %v1429 = vmax.f32 %v1278, 0.0
        %v1430 = vmax.f32 %v1376, 0.0
        %v1431 = vmax.f32 %v1084, 0.0
        %v1432 = vmax.f32 %v1182, 0.0
        %v1433 = vmax.f32 %v1280, 0.0
        %v1434 = vmax.f32 %v1378, 0.0
        %v1435 = vmax.f32 %v1087, 0.0
        %v1436 = vmax.f32 %v1185, 0.0
        %v1437 = vmax.f32 %v1283, 0.0
        %v1438 = vmax.f32 %v1381, 0.0
        %v1439 = vmax.f32 %v1089, 0.0
        %v1440 = vmax.f32 %v1187, 0.0
        %v1441 = vmax.f32 %v1285, 0.0
        %v1442 = vmax.f32 %v1383, 0.0
        %v1443 = vmax.f32 %v1092, 0.0
        %v1444 = vmax.f32 %v1190, 0.0
        %v1445 = vmax.f32 %v1288, 0.0
        %v1446 = vmax.f32 %v1386, 0.0
        %v1447 = vmax.f32 %v1094, 0.0
        %v1448 = vmax.f32 %v1192, 0.0
        %v1449 = vmax.f32 %v1290, 0.0
        %v1450 = vmax.f32 %v1388, 0.0
        %v1451 = vmax.f32 %v1097, 0.0
        %v1452 = vmax.f32 %v1195, 0.0
        %v1453 = vmax.f32 %v1293, 0.0
        %v1454 = vmax.f32 %v1391, 0.0
        %v1455 = vmax.f32 %v1099, 0.0
        %v1456 = vmax.f32 %v1197, 0.0
        %v1457 = vmax.f32 %v1295, 0.0
        %v1458 = vmax.f32 %v1393, 0.0
        %v1459 = vpack.c.bf16 %v1399, %v1395
        %v1460 = vpack.c.bf16 %v1400, %v1396
        %v1461 = vpack.c.bf16 %v1401, %v1397
        %v1462 = vpack.c.bf16 %v1402, %v1398
        %v1463 = vpack.c.bf16 %v1407, %v1403
        %v1464 = vpack.c.bf16 %v1408, %v1404
        %v1465 = vpack.c.bf16 %v1409, %v1405
        %v1466 = vpack.c.bf16 %v1410, %v1406
        %v1467 = vpack.c.bf16 %v1415, %v1411
        %v1468 = vpack.c.bf16 %v1416, %v1412
        %v1469 = vpack.c.bf16 %v1417, %v1413
        %v1470 = vpack.c.bf16 %v1418, %v1414
        %v1471 = vpack.c.bf16 %v1423, %v1419
        %v1472 = vpack.c.bf16 %v1424, %v1420
        %v1473 = vpack.c.bf16 %v1425, %v1421
        %v1474 = vpack.c.bf16 %v1426, %v1422
        %v1475 = vpack.c.bf16 %v1431, %v1427
        %v1476 = vpack.c.bf16 %v1432, %v1428
        %v1477 = vpack.c.bf16 %v1433, %v1429
        %v1478 = vpack.c.bf16 %v1434, %v1430
        %v1479 = vpack.c.bf16 %v1439, %v1435
        %v1480 = vpack.c.bf16 %v1440, %v1436
        %v1481 = vpack.c.bf16 %v1441, %v1437
        %v1482 = vpack.c.bf16 %v1442, %v1438
        %v1483 = vpack.c.bf16 %v1447, %v1443
        %v1484 = vpack.c.bf16 %v1448, %v1444
        %v1485 = vpack.c.bf16 %v1449, %v1445
        %v1486 = vpack.c.bf16 %v1450, %v1446
        %v1487 = vpack.c.bf16 %v1455, %v1451
        %v1488 = vpack.c.bf16 %v1456, %v1452
        %v1489 = vpack.c.bf16 %v1457, %v1453
        %v1490 = vpack.c.bf16 %v1458, %v1454
        %v1491 = vld [vmem:[#allocation10] sm:$0xf]
        %v1492 = vld [vmem:[#allocation10 + $0x4] sm:$0xf]
        %v1493 = vld [vmem:[#allocation10 + $0x8] sm:$0xf]
        %v1494 = vld [vmem:[#allocation10 + $0xc] sm:$0xf]
        %v1495 = vld [vmem:[#allocation10 + $0x10] sm:$0xf]
        %v1496 = vld [vmem:[#allocation10 + $0x14] sm:$0xf]
        %v1497 = vld [vmem:[#allocation10 + $0x18] sm:$0xf]
        %v1498 = vld [vmem:[#allocation10 + $0x1c] sm:$0xf]
        %v1499 = vld [vmem:[#allocation10 + $0x20] sm:$0xf]
        %v1500 = vld [vmem:[#allocation10 + $0x24] sm:$0xf]
        %v1501 = vld [vmem:[#allocation10 + $0x28] sm:$0xf]
        %v1502 = vld [vmem:[#allocation10 + $0x2c] sm:$0xf]
        %v1503 = vld [vmem:[#allocation10 + $0x30] sm:$0xf]
        %v1504 = vld [vmem:[#allocation10 + $0x34] sm:$0xf]
        %v1505 = vld [vmem:[#allocation10 + $0x38] sm:$0xf]
        %v1506 = vld [vmem:[#allocation10 + $0x3c] sm:$0xf]
        %v1507 = vld [vmem:[#allocation10 + $0x40] sm:$0xf]
        %v1508 = vld [vmem:[#allocation10 + $0x44] sm:$0xf]
        %v1509 = vld [vmem:[#allocation10 + $0x48] sm:$0xf]
        %v1510 = vld [vmem:[#allocation10 + $0x4c] sm:$0xf]
        %v1511 = vld [vmem:[#allocation10 + $0x50] sm:$0xf]
        %v1512 = vld [vmem:[#allocation10 + $0x54] sm:$0xf]
        %v1513 = vld [vmem:[#allocation10 + $0x58] sm:$0xf]
        %v1514 = vld [vmem:[#allocation10 + $0x5c] sm:$0xf]
        %v1515 = vld [vmem:[#allocation10 + $0x60] sm:$0xf]
        %v1516 = vld [vmem:[#allocation10 + $0x64] sm:$0xf]
        %v1517 = vld [vmem:[#allocation10 + $0x68] sm:$0xf]
        %v1518 = vld [vmem:[#allocation10 + $0x6c] sm:$0xf]
        %v1519 = vld [vmem:[#allocation10 + $0x70] sm:$0xf]
        %v1520 = vld [vmem:[#allocation10 + $0x74] sm:$0xf]
        %v1521 = vld [vmem:[#allocation10 + $0x78] sm:$0xf]
        %v1522 = vld [vmem:[#allocation10 + $0x7c] sm:$0xf]
        %v1523 = vld [vmem:[#allocation10 + $0x80] sm:$0xf]
        %v1524 = vld [vmem:[#allocation10 + $0x84] sm:$0xf]
        %v1525 = vld [vmem:[#allocation10 + $0x88] sm:$0xf]
        %v1526 = vld [vmem:[#allocation10 + $0x8c] sm:$0xf]
        %v1527 = vld [vmem:[#allocation10 + $0x90] sm:$0xf]
        %v1528 = vld [vmem:[#allocation10 + $0x94] sm:$0xf]
        %v1529 = vld [vmem:[#allocation10 + $0x98] sm:$0xf]
        %v1530 = vld [vmem:[#allocation10 + $0x9c] sm:$0xf]
        %v1531 = vld [vmem:[#allocation10 + $0xa0] sm:$0xf]
        %v1532 = vld [vmem:[#allocation10 + $0xa4] sm:$0xf]
        %v1533 = vld [vmem:[#allocation10 + $0xa8] sm:$0xf]
        %v1534 = vld [vmem:[#allocation10 + $0xac] sm:$0xf]
        %v1535 = vld [vmem:[#allocation10 + $0xb0] sm:$0xf]
        %v1536 = vld [vmem:[#allocation10 + $0xb4] sm:$0xf]
        %v1537 = vld [vmem:[#allocation10 + $0xb8] sm:$0xf]
        %v1538 = vld [vmem:[#allocation10 + $0xbc] sm:$0xf]
        %v1539 = vld [vmem:[#allocation10 + $0xc0] sm:$0xf]
        %v1540 = vld [vmem:[#allocation10 + $0xc4] sm:$0xf]
        %v1541 = vld [vmem:[#allocation10 + $0xc8] sm:$0xf]
        %v1542 = vld [vmem:[#allocation10 + $0xcc] sm:$0xf]
        %v1543 = vld [vmem:[#allocation10 + $0xd0] sm:$0xf]
        %v1544 = vld [vmem:[#allocation10 + $0xd4] sm:$0xf]
        %v1545 = vld [vmem:[#allocation10 + $0xd8] sm:$0xf]
        %v1546 = vld [vmem:[#allocation10 + $0xdc] sm:$0xf]
        %v1547 = vld [vmem:[#allocation10 + $0xe0] sm:$0xf]
        %v1548 = vld [vmem:[#allocation10 + $0xe4] sm:$0xf]
        %v1549 = vld [vmem:[#allocation10 + $0xe8] sm:$0xf]
        %v1550 = vld [vmem:[#allocation10 + $0xec] sm:$0xf]
        %v1551 = vld [vmem:[#allocation10 + $0xf0] sm:$0xf]
        %v1552 = vld [vmem:[#allocation10 + $0xf4] sm:$0xf]
        %v1553 = vld [vmem:[#allocation10 + $0xf8] sm:$0xf]
        %v1554 = vld [vmem:[#allocation10 + $0xfc] sm:$0xf]
        %v1555 = vld [vmem:[#allocation11] sm:$0x1]
        %v1557 = vperm.slane %v1555, 0
        %v1623 = vunpack.c.l.b16 %v1491
        %v1624 = vunpack.c.l.b16 %v1492
        %v1625 = vunpack.c.l.b16 %v1493
        %v1626 = vunpack.c.l.b16 %v1494
        %v1627 = vunpack.c.l.b16 %v1495
        %v1628 = vunpack.c.l.b16 %v1496
        %v1629 = vunpack.c.l.b16 %v1497
        %v1630 = vunpack.c.l.b16 %v1498
        %v1631 = vunpack.c.l.b16 %v1499
        %v1632 = vunpack.c.l.b16 %v1500
        %v1633 = vunpack.c.l.b16 %v1501
        %v1634 = vunpack.c.l.b16 %v1502
        %v1635 = vunpack.c.l.b16 %v1503
        %v1636 = vunpack.c.l.b16 %v1504
        %v1637 = vunpack.c.l.b16 %v1505
        %v1638 = vunpack.c.l.b16 %v1506
        %v1639 = vunpack.c.l.b16 %v1507
        %v1640 = vunpack.c.l.b16 %v1508
        %v1641 = vunpack.c.l.b16 %v1509
        %v1642 = vunpack.c.l.b16 %v1510
        %v1643 = vunpack.c.l.b16 %v1511
        %v1644 = vunpack.c.l.b16 %v1512
        %v1645 = vunpack.c.l.b16 %v1513
        %v1646 = vunpack.c.l.b16 %v1514
        %v1647 = vunpack.c.l.b16 %v1515
        %v1648 = vunpack.c.l.b16 %v1516
        %v1649 = vunpack.c.l.b16 %v1517
        %v1650 = vunpack.c.l.b16 %v1518
        %v1651 = vunpack.c.l.b16 %v1519
        %v1652 = vunpack.c.l.b16 %v1520
        %v1653 = vunpack.c.l.b16 %v1521
        %v1654 = vunpack.c.l.b16 %v1522
        %v1655 = vunpack.c.l.b16 %v1523
        %v1656 = vunpack.c.l.b16 %v1524
        %v1657 = vunpack.c.l.b16 %v1525
        %v1658 = vunpack.c.l.b16 %v1526
        %v1659 = vunpack.c.l.b16 %v1527
        %v1660 = vunpack.c.l.b16 %v1528
        %v1661 = vunpack.c.l.b16 %v1529
        %v1662 = vunpack.c.l.b16 %v1530
        %v1663 = vunpack.c.l.b16 %v1531
        %v1664 = vunpack.c.l.b16 %v1532
        %v1665 = vunpack.c.l.b16 %v1533
        %v1666 = vunpack.c.l.b16 %v1534
        %v1667 = vunpack.c.l.b16 %v1535
        %v1668 = vunpack.c.l.b16 %v1536
        %v1669 = vunpack.c.l.b16 %v1537
        %v1670 = vunpack.c.l.b16 %v1538
        %v1671 = vunpack.c.l.b16 %v1539
        %v1672 = vunpack.c.l.b16 %v1540
        %v1673 = vunpack.c.l.b16 %v1541
        %v1674 = vunpack.c.l.b16 %v1542
        %v1675 = vunpack.c.l.b16 %v1543
        %v1676 = vunpack.c.l.b16 %v1544
        %v1677 = vunpack.c.l.b16 %v1545
        %v1678 = vunpack.c.l.b16 %v1546
        %v1679 = vunpack.c.l.b16 %v1547
        %v1680 = vunpack.c.l.b16 %v1548
        %v1681 = vunpack.c.l.b16 %v1549
        %v1682 = vunpack.c.l.b16 %v1550
        %v1683 = vunpack.c.l.b16 %v1551
        %v1684 = vunpack.c.l.b16 %v1552
        %v1685 = vunpack.c.l.b16 %v1553
        %v1686 = vunpack.c.l.b16 %v1554
        %v1687 = vpack.c.b16 %v1624, %v1623
        %v1688 = vpack.c.b16 %v1626, %v1625
        %v1689 = vpack.c.b16 %v1628, %v1627
        %v1690 = vpack.c.b16 %v1630, %v1629
        %v1691 = vpack.c.b16 %v1632, %v1631
        %v1692 = vpack.c.b16 %v1634, %v1633
        %v1693 = vpack.c.b16 %v1636, %v1635
        %v1694 = vpack.c.b16 %v1638, %v1637
        %v1695 = vpack.c.b16 %v1640, %v1639
        %v1696 = vpack.c.b16 %v1642, %v1641
        %v1697 = vpack.c.b16 %v1644, %v1643
        %v1698 = vpack.c.b16 %v1646, %v1645
        %v1699 = vpack.c.b16 %v1648, %v1647
        %v1700 = vpack.c.b16 %v1650, %v1649
        %v1701 = vpack.c.b16 %v1652, %v1651
        %v1702 = vpack.c.b16 %v1654, %v1653
        %v1703 = vpack.c.b16 %v1656, %v1655
        %v1704 = vpack.c.b16 %v1658, %v1657
        %v1705 = vpack.c.b16 %v1660, %v1659
        %v1706 = vpack.c.b16 %v1662, %v1661
        %v1707 = vpack.c.b16 %v1664, %v1663
        %v1708 = vpack.c.b16 %v1666, %v1665
        %v1709 = vpack.c.b16 %v1668, %v1667
        %v1710 = vpack.c.b16 %v1670, %v1669
        %v1711 = vpack.c.b16 %v1672, %v1671
        %v1712 = vpack.c.b16 %v1674, %v1673
        %v1713 = vpack.c.b16 %v1676, %v1675
        %v1714 = vpack.c.b16 %v1678, %v1677
        %v1715 = vpack.c.b16 %v1680, %v1679
        %v1716 = vpack.c.b16 %v1682, %v1681
        %v1717 = vpack.c.b16 %v1684, %v1683
        %v1718 = vpack.c.b16 %v1686, %v1685
        %1751 = vmatpush.bf16.msra.mxu0 %v1694
        %1752 = vmatpush.bf16.msra.mxu0 %v1693
        %1753 = vmatpush.bf16.msra.mxu0 %v1692
        %1754 = vmatpush.bf16.msra.mxu0 %v1691
        %1755 = vmatpush.bf16.msra.mxu0 %v1690
        %1756 = vmatpush.bf16.msra.mxu0 %v1689
        %1757 = vmatpush.bf16.msra.mxu0 %v1688
        %1758 = vmatpush.bf16.msra.mxu0 %v1687
        %1759 = vmatmul.bf16.gmra.mxu0 %v1459
        %v1760 = vpop.f32.mrf.mxu0
        %v1761 = vadd.f32 %v1557, %v1760
        %v1762 = vpop.f32.mrf.mxu0
        %v1763 = vadd.f32 %v1557, %v1762
        %1764 = vmatmul.bf16.gmra.mxu0 %v1463
        %v1765 = vpop.f32.mrf.mxu0
        %v1766 = vadd.f32 %v1557, %v1765
        %v1767 = vpop.f32.mrf.mxu0
        %v1768 = vadd.f32 %v1557, %v1767
        %1769 = vmatmul.bf16.gmra.mxu0 %v1467
        %v1770 = vpop.f32.mrf.mxu0
        %v1771 = vadd.f32 %v1557, %v1770
        %v1772 = vpop.f32.mrf.mxu0
        %v1773 = vadd.f32 %v1557, %v1772
        %1774 = vmatmul.bf16.gmra.mxu0 %v1471
        %v1775 = vpop.f32.mrf.mxu0
        %v1776 = vadd.f32 %v1557, %v1775
        %v1777 = vpop.f32.mrf.mxu0
        %v1778 = vadd.f32 %v1557, %v1777
        %1779 = vmatmul.bf16.gmra.mxu0 %v1475
        %v1780 = vpop.f32.mrf.mxu0
        %v1781 = vadd.f32 %v1557, %v1780
        %v1782 = vpop.f32.mrf.mxu0
        %v1783 = vadd.f32 %v1557, %v1782
        %1784 = vmatmul.bf16.gmra.mxu0 %v1479
        %v1785 = vpop.f32.mrf.mxu0
        %v1786 = vadd.f32 %v1557, %v1785
        %v1787 = vpop.f32.mrf.mxu0
        %v1788 = vadd.f32 %v1557, %v1787
        %1789 = vmatmul.bf16.gmra.mxu0 %v1483
        %v1790 = vpop.f32.mrf.mxu0
        %v1791 = vadd.f32 %v1557, %v1790
        %v1792 = vpop.f32.mrf.mxu0
        %v1793 = vadd.f32 %v1557, %v1792
        %1794 = vmatmul.bf16.gmra.mxu0 %v1487
        %v1795 = vpop.f32.mrf.mxu0
        %v1796 = vadd.f32 %v1557, %v1795
        %v1797 = vpop.f32.mrf.mxu0
        %v1798 = vadd.f32 %v1557, %v1797
        %1799 = vdwg.mxu0
        %1800 = vmatpush.bf16.msra.mxu0 %v1702
        %1801 = vmatpush.bf16.msra.mxu0 %v1701
        %1802 = vmatpush.bf16.msra.mxu0 %v1700
        %1803 = vmatpush.bf16.msra.mxu0 %v1699
        %1804 = vmatpush.bf16.msra.mxu0 %v1698
        %1805 = vmatpush.bf16.msra.mxu0 %v1697
        %1806 = vmatpush.bf16.msra.mxu0 %v1696
        %1807 = vmatpush.bf16.msra.mxu0 %v1695
        %1808 = vmatmul.bf16.gmra.mxu0 %v1460
        %v1809 = vpop.f32.mrf.mxu0
        %v1810 = vadd.f32 %v1761, %v1809
        %v1811 = vpop.f32.mrf.mxu0
        %v1812 = vadd.f32 %v1763, %v1811
        %1813 = vmatmul.bf16.gmra.mxu0 %v1464
        %v1814 = vpop.f32.mrf.mxu0
        %v1815 = vadd.f32 %v1766, %v1814
        %v1816 = vpop.f32.mrf.mxu0
        %v1817 = vadd.f32 %v1768, %v1816
        %1818 = vmatmul.bf16.gmra.mxu0 %v1468
        %v1819 = vpop.f32.mrf.mxu0
        %v1820 = vadd.f32 %v1771, %v1819
        %v1821 = vpop.f32.mrf.mxu0
        %v1822 = vadd.f32 %v1773, %v1821
        %1823 = vmatmul.bf16.gmra.mxu0 %v1472
        %v1824 = vpop.f32.mrf.mxu0
        %v1825 = vadd.f32 %v1776, %v1824
        %v1826 = vpop.f32.mrf.mxu0
        %v1827 = vadd.f32 %v1778, %v1826
        %1828 = vmatmul.bf16.gmra.mxu0 %v1476
        %v1829 = vpop.f32.mrf.mxu0
        %v1830 = vadd.f32 %v1781, %v1829
        %v1831 = vpop.f32.mrf.mxu0
        %v1832 = vadd.f32 %v1783, %v1831
        %1833 = vmatmul.bf16.gmra.mxu0 %v1480
        %v1834 = vpop.f32.mrf.mxu0
        %v1835 = vadd.f32 %v1786, %v1834
        %v1836 = vpop.f32.mrf.mxu0
        %v1837 = vadd.f32 %v1788, %v1836
        %1838 = vmatmul.bf16.gmra.mxu0 %v1484
        %v1839 = vpop.f32.mrf.mxu0
        %v1840 = vadd.f32 %v1791, %v1839
        %v1841 = vpop.f32.mrf.mxu0
        %v1842 = vadd.f32 %v1793, %v1841
        %1843 = vmatmul.bf16.gmra.mxu0 %v1488
        %v1844 = vpop.f32.mrf.mxu0
        %v1845 = vadd.f32 %v1796, %v1844
        %v1846 = vpop.f32.mrf.mxu0
        %v1847 = vadd.f32 %v1798, %v1846
        %1848 = vdwg.mxu0
        %1849 = vmatpush.bf16.msra.mxu0 %v1710
        %1850 = vmatpush.bf16.msra.mxu0 %v1709
        %1851 = vmatpush.bf16.msra.mxu0 %v1708
        %1852 = vmatpush.bf16.msra.mxu0 %v1707
        %1853 = vmatpush.bf16.msra.mxu0 %v1706
        %1854 = vmatpush.bf16.msra.mxu0 %v1705
        %1855 = vmatpush.bf16.msra.mxu0 %v1704
        %1856 = vmatpush.bf16.msra.mxu0 %v1703
        %1857 = vmatmul.bf16.gmra.mxu0 %v1461
        %v1858 = vpop.f32.mrf.mxu0
        %v1859 = vadd.f32 %v1810, %v1858
        %v1860 = vpop.f32.mrf.mxu0
        %v1861 = vadd.f32 %v1812, %v1860
        %1862 = vmatmul.bf16.gmra.mxu0 %v1465
        %v1863 = vpop.f32.mrf.mxu0
        %v1864 = vadd.f32 %v1815, %v1863
        %v1865 = vpop.f32.mrf.mxu0
        %v1866 = vadd.f32 %v1817, %v1865
        %1867 = vmatmul.bf16.gmra.mxu0 %v1469
        %v1868 = vpop.f32.mrf.mxu0
        %v1869 = vadd.f32 %v1820, %v1868
        %v1870 = vpop.f32.mrf.mxu0
        %v1871 = vadd.f32 %v1822, %v1870
        %1872 = vmatmul.bf16.gmra.mxu0 %v1473
        %v1873 = vpop.f32.mrf.mxu0
        %v1874 = vadd.f32 %v1825, %v1873
        %v1875 = vpop.f32.mrf.mxu0
        %v1876 = vadd.f32 %v1827, %v1875
        %1877 = vmatmul.bf16.gmra.mxu0 %v1477
        %v1878 = vpop.f32.mrf.mxu0
        %v1879 = vadd.f32 %v1830, %v1878
        %v1880 = vpop.f32.mrf.mxu0
        %v1881 = vadd.f32 %v1832, %v1880
        %1882 = vmatmul.bf16.gmra.mxu0 %v1481
        %v1883 = vpop.f32.mrf.mxu0
        %v1884 = vadd.f32 %v1835, %v1883
        %v1885 = vpop.f32.mrf.mxu0
        %v1886 = vadd.f32 %v1837, %v1885
        %1887 = vmatmul.bf16.gmra.mxu0 %v1485
        %v1888 = vpop.f32.mrf.mxu0
        %v1889 = vadd.f32 %v1840, %v1888
        %v1890 = vpop.f32.mrf.mxu0
        %v1891 = vadd.f32 %v1842, %v1890
        %1892 = vmatmul.bf16.gmra.mxu0 %v1489
        %v1893 = vpop.f32.mrf.mxu0
        %v1894 = vadd.f32 %v1845, %v1893
        %v1895 = vpop.f32.mrf.mxu0
        %v1896 = vadd.f32 %v1847, %v1895
        %1897 = vdwg.mxu0
        %1898 = vmatpush.bf16.msra.mxu0 %v1718
        %1899 = vmatpush.bf16.msra.mxu0 %v1717
        %1900 = vmatpush.bf16.msra.mxu0 %v1716
        %1901 = vmatpush.bf16.msra.mxu0 %v1715
        %1902 = vmatpush.bf16.msra.mxu0 %v1714
        %1903 = vmatpush.bf16.msra.mxu0 %v1713
        %1904 = vmatpush.bf16.msra.mxu0 %v1712
        %1905 = vmatpush.bf16.msra.mxu0 %v1711
        %1906 = vmatmul.bf16.gmra.mxu0 %v1462
        %v1907 = vpop.f32.mrf.mxu0
        %v1908 = vadd.f32 %v1859, %v1907
        %v1909 = vpop.f32.mrf.mxu0
        %v1910 = vadd.f32 %v1861, %v1909
        %1911 = vmatmul.bf16.gmra.mxu0 %v1466
        %v1912 = vpop.f32.mrf.mxu0
        %v1913 = vadd.f32 %v1864, %v1912
        %v1914 = vpop.f32.mrf.mxu0
        %v1915 = vadd.f32 %v1866, %v1914
        %1916 = vmatmul.bf16.gmra.mxu0 %v1470
        %v1917 = vpop.f32.mrf.mxu0
        %v1918 = vadd.f32 %v1869, %v1917
        %v1919 = vpop.f32.mrf.mxu0
        %v1920 = vadd.f32 %v1871, %v1919
        %1921 = vmatmul.bf16.gmra.mxu0 %v1474
        %v1922 = vpop.f32.mrf.mxu0
        %v1923 = vadd.f32 %v1874, %v1922
        %v1924 = vpop.f32.mrf.mxu0
        %v1925 = vadd.f32 %v1876, %v1924
        %1926 = vmatmul.bf16.gmra.mxu0 %v1478
        %v1927 = vpop.f32.mrf.mxu0
        %v1928 = vadd.f32 %v1879, %v1927
        %v1929 = vpop.f32.mrf.mxu0
        %v1930 = vadd.f32 %v1881, %v1929
        %1931 = vmatmul.bf16.gmra.mxu0 %v1482
        %v1932 = vpop.f32.mrf.mxu0
        %v1933 = vadd.f32 %v1884, %v1932
        %v1934 = vpop.f32.mrf.mxu0
        %v1935 = vadd.f32 %v1886, %v1934
        %1936 = vmatmul.bf16.gmra.mxu0 %v1486
        %v1937 = vpop.f32.mrf.mxu0
        %v1938 = vadd.f32 %v1889, %v1937
        %v1939 = vpop.f32.mrf.mxu0
        %v1940 = vadd.f32 %v1891, %v1939
        %1941 = vmatmul.bf16.gmra.mxu0 %v1490
        %v1942 = vpop.f32.mrf.mxu0
        %v1943 = vadd.f32 %v1894, %v1942
        %v1944 = vpop.f32.mrf.mxu0
        %v1945 = vadd.f32 %v1896, %v1944
        %1946 = vdwg.mxu0
        %v1947 = vmul.f32 %v1908, 0.5
        %v1948 = vmul.f32 %v1910, 0.5
        %v1949 = vmul.f32 %v1913, 0.5
        %v1950 = vmul.f32 %v1915, 0.5
        %v1951 = vmul.f32 %v1918, 0.5
        %v1952 = vmul.f32 %v1920, 0.5
        %v1953 = vmul.f32 %v1923, 0.5
        %v1954 = vmul.f32 %v1925, 0.5
        %v1955 = vmul.f32 %v1928, 0.5
        %v1956 = vmul.f32 %v1930, 0.5
        %v1957 = vmul.f32 %v1933, 0.5
        %v1958 = vmul.f32 %v1935, 0.5
        %v1959 = vmul.f32 %v1938, 0.5
        %v1960 = vmul.f32 %v1940, 0.5
        %v1961 = vmul.f32 %v1943, 0.5
        %v1962 = vmul.f32 %v1945, 0.5
        %v1963 = vmul.f32 %v1947, 1.442695
        %v1964 = vpow.pop %v1963
        %v1965 = vmul.f32 %v1948, 1.442695
        %v1966 = vpow.pop %v1965
        %v1967 = vmul.f32 %v1949, 1.442695
        %v1968 = vpow.pop %v1967
        %v1969 = vmul.f32 %v1950, 1.442695
        %v1970 = vpow.pop %v1969
        %v1971 = vmul.f32 %v1951, 1.442695
        %v1972 = vpow.pop %v1971
        %v1973 = vmul.f32 %v1952, 1.442695
        %v1974 = vpow.pop %v1973
        %v1975 = vmul.f32 %v1953, 1.442695
        %v1976 = vpow.pop %v1975
        %v1977 = vmul.f32 %v1954, 1.442695
        %v1978 = vpow.pop %v1977
        %v1979 = vmul.f32 %v1955, 1.442695
        %v1980 = vpow.pop %v1979
        %v1981 = vmul.f32 %v1956, 1.442695
        %v1982 = vpow.pop %v1981
        %v1983 = vmul.f32 %v1957, 1.442695
        %v1984 = vpow.pop %v1983
        %v1985 = vmul.f32 %v1958, 1.442695
        %v1986 = vpow.pop %v1985
        %v1987 = vmul.f32 %v1959, 1.442695
        %v1988 = vpow.pop %v1987
        %v1989 = vmul.f32 %v1960, 1.442695
        %v1990 = vpow.pop %v1989
        %v1991 = vmul.f32 %v1961, 1.442695
        %v1992 = vpow.pop %v1991
        %v1993 = vmul.f32 %v1962, 1.442695
        %v1994 = vpow.pop %v1993
        %v1995 = vld [vmem:[%s476] sm:$0xff]
        %v1996 = vld [vmem:[%s476 + $0x8] sm:$0xff]
        %v1997 = vld [vmem:[%s476 + $0x10] sm:$0xff]
        %v1998 = vld [vmem:[%s476 + $0x18] sm:$0xff]
        %v1999 = vld [vmem:[%s476 + $0x20] sm:$0xff]
        %v2000 = vld [vmem:[%s476 + $0x28] sm:$0xff]
        %v2001 = vld [vmem:[%s476 + $0x30] sm:$0xff]
        %v2002 = vld [vmem:[%s476 + $0x38] sm:$0xff]
        %v2003 = vld [vmem:[%s476 + $0x40] sm:$0xff]
        %v2004 = vld [vmem:[%s476 + $0x48] sm:$0xff]
        %v2005 = vld [vmem:[%s476 + $0x50] sm:$0xff]
        %v2006 = vld [vmem:[%s476 + $0x58] sm:$0xff]
        %v2007 = vld [vmem:[%s476 + $0x60] sm:$0xff]
        %v2008 = vld [vmem:[%s476 + $0x68] sm:$0xff]
        %v2009 = vld [vmem:[%s476 + $0x70] sm:$0xff]
        %v2010 = vld [vmem:[%s476 + $0x78] sm:$0xff]
        %2027 = vrot.lane.b32.xlu0 %v1964, 96
        %v2028 = vpop.permute.xlu0 %2027
        %2029 = vrot.lane.b32.xlu0 %v1966, 96
        %v2030 = vpop.permute.xlu0 %2029
        %2031 = vrot.lane.b32.xlu0 %v1968, 96
        %v2032 = vpop.permute.xlu0 %2031
        %2033 = vrot.lane.b32.xlu0 %v1970, 96
        %v2034 = vpop.permute.xlu0 %2033
        %2035 = vrot.lane.b32.xlu0 %v1972, 96
        %v2036 = vpop.permute.xlu0 %2035
        %2037 = vrot.lane.b32.xlu0 %v1974, 96
        %v2038 = vpop.permute.xlu0 %2037
        %2039 = vrot.lane.b32.xlu0 %v1976, 96
        %v2040 = vpop.permute.xlu0 %2039
        %2041 = vrot.lane.b32.xlu0 %v1978, 96
        %v2042 = vpop.permute.xlu0 %2041
        %2043 = vrot.lane.b32.xlu0 %v1980, 96
        %v2044 = vpop.permute.xlu0 %2043
        %2045 = vrot.lane.b32.xlu0 %v1982, 96
        %v2046 = vpop.permute.xlu0 %2045
        %2047 = vrot.lane.b32.xlu0 %v1984, 96
        %v2048 = vpop.permute.xlu0 %2047
        %2049 = vrot.lane.b32.xlu0 %v1986, 96
        %v2050 = vpop.permute.xlu0 %2049
        %2051 = vrot.lane.b32.xlu0 %v1988, 96
        %v2052 = vpop.permute.xlu0 %2051
        %2053 = vrot.lane.b32.xlu0 %v1990, 96
        %v2054 = vpop.permute.xlu0 %2053
        %2055 = vrot.lane.b32.xlu0 %v1992, 96
        %v2056 = vpop.permute.xlu0 %2055
        %2057 = vrot.lane.b32.xlu0 %v1994, 96
        %v2058 = vpop.permute.xlu0 %2057
        %v2075 = vmul.f32 %v1995, %v2028
        %v2076 = vmul.f32 %v1996, %v2030
        %v2077 = vmul.f32 %v1997, %v2032
        %v2078 = vmul.f32 %v1998, %v2034
        %v2079 = vmul.f32 %v1999, %v2036
        %v2080 = vmul.f32 %v2000, %v2038
        %v2081 = vmul.f32 %v2001, %v2040
        %v2082 = vmul.f32 %v2002, %v2042
        %v2083 = vmul.f32 %v2003, %v2044
        %v2084 = vmul.f32 %v2004, %v2046
        %v2085 = vmul.f32 %v2005, %v2048
        %v2086 = vmul.f32 %v2006, %v2050
        %v2087 = vmul.f32 %v2007, %v2052
        %v2088 = vmul.f32 %v2008, %v2054
        %v2089 = vmul.f32 %v2009, %v2056
        %v2090 = vmul.f32 %v2010, %v2058
        %v2091 = vadd.f32 %v1908, %v2075
        %v2092 = vadd.f32 %v1910, %v2076
        %v2093 = vadd.f32 %v1913, %v2077
        %v2094 = vadd.f32 %v1915, %v2078
        %v2095 = vadd.f32 %v1918, %v2079
        %v2096 = vadd.f32 %v1920, %v2080
        %v2097 = vadd.f32 %v1923, %v2081
        %v2098 = vadd.f32 %v1925, %v2082
        %v2099 = vadd.f32 %v1928, %v2083
        %v2100 = vadd.f32 %v1930, %v2084
        %v2101 = vadd.f32 %v1933, %v2085
        %v2102 = vadd.f32 %v1935, %v2086
        %v2103 = vadd.f32 %v1938, %v2087
        %v2104 = vadd.f32 %v1940, %v2088
        %v2105 = vadd.f32 %v1943, %v2089
        %v2106 = vadd.f32 %v1945, %v2090
        %v2107 = vpack.c.bf16 %v2092, %v2091
        %v2108 = vpack.c.bf16 %v2094, %v2093
        %v2109 = vpack.c.bf16 %v2096, %v2095
        %v2110 = vpack.c.bf16 %v2098, %v2097
        %v2111 = vpack.c.bf16 %v2100, %v2099
        %v2112 = vpack.c.bf16 %v2102, %v2101
        %v2113 = vpack.c.bf16 %v2104, %v2103
        %v2114 = vpack.c.bf16 %v2106, %v2105
        %v2115 = vld [vmem:[#allocation13] sm:$0xff]
        %v2116 = vld [vmem:[#allocation13 + $0x8] sm:$0xff]
        %v2117 = vld [vmem:[#allocation13 + $0x10] sm:$0xff]
        %v2118 = vld [vmem:[#allocation13 + $0x18] sm:$0xff]
        %v2119 = vld [vmem:[#allocation13 + $0x20] sm:$0xff]
        %v2120 = vld [vmem:[#allocation13 + $0x28] sm:$0xff]
        %v2121 = vld [vmem:[#allocation13 + $0x30] sm:$0xff]
        %v2122 = vld [vmem:[#allocation13 + $0x38] sm:$0xff]
        %v2123 = vld [vmem:[%s7] sm:$0xf]
        %v2125 = vperm.slane %v2123, 0
        %v2126 = vperm.slane %v2123, 1
        %v2127 = vperm.slane %v2123, 2
        %v2128 = vperm.slane %v2123, 3
        %v2141 = vunpack.c.l.b16 %v2115
        %v2142 = vunpack.c.h.b16 %v2115
        %v2143 = vunpack.c.l.b16 %v2116
        %v2144 = vunpack.c.h.b16 %v2116
        %v2145 = vunpack.c.l.b16 %v2117
        %v2146 = vunpack.c.h.b16 %v2117
        %v2147 = vunpack.c.l.b16 %v2118
        %v2148 = vunpack.c.h.b16 %v2118
        %v2149 = vunpack.c.l.b16 %v2119
        %v2150 = vunpack.c.h.b16 %v2119
        %v2151 = vunpack.c.l.b16 %v2120
        %v2152 = vunpack.c.h.b16 %v2120
        %v2153 = vunpack.c.l.b16 %v2121
        %v2154 = vunpack.c.h.b16 %v2121
        %v2155 = vunpack.c.l.b16 %v2122
        %v2156 = vunpack.c.h.b16 %v2122
        %v2157 = vpack.c.b16 %v2145, %v2141
        %v2158 = vpack.c.b16 %v2146, %v2142
        %v2159 = vpack.c.b16 %v2147, %v2143
        %v2160 = vpack.c.b16 %v2148, %v2144
        %v2161 = vpack.c.b16 %v2153, %v2149
        %v2162 = vpack.c.b16 %v2154, %v2150
        %v2163 = vpack.c.b16 %v2155, %v2151
        %v2164 = vpack.c.b16 %v2156, %v2152
        %vm2173 = vcmask 261120
        %v2175 = vsel %vm2173, %v2107, 0
        %v2178 = vsel %vm2173, %v2108, 0
        %v2181 = vsel %vm2173, %v2109, 0
        %v2184 = vsel %vm2173, %v2110, 0
        %v2187 = vsel %vm2173, %v2111, 0
        %v2190 = vsel %vm2173, %v2112, 0
        %v2193 = vsel %vm2173, %v2113, 0
        %v2196 = vsel %vm2173, %v2114, 0
        %2198 = vmatpush.bf16.msra.mxu0 0
        %2199 = vmatpush.bf16.msra.mxu0 0
        %2200 = vmatpush.bf16.msra.mxu0 0
        %2201 = vmatpush.bf16.msra.mxu0 0
        %2202 = vmatpush.bf16.msra.mxu0 0
        %2203 = vmatpush.bf16.msra.mxu0 0
        %2204 = vmatpush.bf16.msra.mxu0 %v2161
        %2205 = vmatpush.bf16.msra.mxu0 %v2157
        %2206 = vmatmul.bf16.gmra.mxu0 %v2175
        %v2207 = vpop.f32.mrf.mxu0
        %v2208 = vadd.f32 %v2125, %v2207
        %v2209 = vpop.f32.mrf.mxu0
        %v2210 = vadd.f32 %v2125, %v2209
        %2211 = vmatmul.bf16.gmra.mxu0 %v2178
        %v2212 = vpop.f32.mrf.mxu0
        %v2213 = vadd.f32 %v2125, %v2212
        %v2214 = vpop.f32.mrf.mxu0
        %v2215 = vadd.f32 %v2125, %v2214
        %2216 = vmatmul.bf16.gmra.mxu0 %v2181
        %v2217 = vpop.f32.mrf.mxu0
        %v2218 = vadd.f32 %v2125, %v2217
        %v2219 = vpop.f32.mrf.mxu0
        %v2220 = vadd.f32 %v2125, %v2219
        %2221 = vmatmul.bf16.gmra.mxu0 %v2184
        %v2222 = vpop.f32.mrf.mxu0
        %v2223 = vadd.f32 %v2125, %v2222
        %v2224 = vpop.f32.mrf.mxu0
        %v2225 = vadd.f32 %v2125, %v2224
        %2226 = vmatmul.bf16.gmra.mxu0 %v2187
        %v2227 = vpop.f32.mrf.mxu0
        %v2228 = vadd.f32 %v2125, %v2227
        %v2229 = vpop.f32.mrf.mxu0
        %v2230 = vadd.f32 %v2125, %v2229
        %2231 = vmatmul.bf16.gmra.mxu0 %v2190
        %v2232 = vpop.f32.mrf.mxu0
        %v2233 = vadd.f32 %v2125, %v2232
        %v2234 = vpop.f32.mrf.mxu0
        %v2235 = vadd.f32 %v2125, %v2234
        %2236 = vmatmul.bf16.gmra.mxu0 %v2193
        %v2237 = vpop.f32.mrf.mxu0
        %v2238 = vadd.f32 %v2125, %v2237
        %v2239 = vpop.f32.mrf.mxu0
        %v2240 = vadd.f32 %v2125, %v2239
        %2241 = vmatmul.bf16.gmra.mxu0 %v2196
        %v2242 = vpop.f32.mrf.mxu0
        %v2243 = vadd.f32 %v2125, %v2242
        %v2244 = vpop.f32.mrf.mxu0
        %v2245 = vadd.f32 %v2125, %v2244
        %2246 = vdwg.mxu0
        %2247 = vmatpush.bf16.msra.mxu0 0
        %2248 = vmatpush.bf16.msra.mxu0 0
        %2249 = vmatpush.bf16.msra.mxu0 0
        %2250 = vmatpush.bf16.msra.mxu0 0
        %2251 = vmatpush.bf16.msra.mxu0 0
        %2252 = vmatpush.bf16.msra.mxu0 0
        %2253 = vmatpush.bf16.msra.mxu0 %v2162
        %2254 = vmatpush.bf16.msra.mxu0 %v2158
        %2255 = vmatmul.bf16.gmra.mxu0 %v2175
        %v2256 = vpop.f32.mrf.mxu0
        %v2257 = vadd.f32 %v2126, %v2256
        %v2258 = vpop.f32.mrf.mxu0
        %v2259 = vadd.f32 %v2126, %v2258
        %2260 = vmatmul.bf16.gmra.mxu0 %v2178
        %v2261 = vpop.f32.mrf.mxu0
        %v2262 = vadd.f32 %v2126, %v2261
        %v2263 = vpop.f32.mrf.mxu0
        %v2264 = vadd.f32 %v2126, %v2263
        %2265 = vmatmul.bf16.gmra.mxu0 %v2181
        %v2266 = vpop.f32.mrf.mxu0
        %v2267 = vadd.f32 %v2126, %v2266
        %v2268 = vpop.f32.mrf.mxu0
        %v2269 = vadd.f32 %v2126, %v2268
        %2270 = vmatmul.bf16.gmra.mxu0 %v2184
        %v2271 = vpop.f32.mrf.mxu0
        %v2272 = vadd.f32 %v2126, %v2271
        %v2273 = vpop.f32.mrf.mxu0
        %v2274 = vadd.f32 %v2126, %v2273
        %2275 = vmatmul.bf16.gmra.mxu0 %v2187
        %v2276 = vpop.f32.mrf.mxu0
        %v2277 = vadd.f32 %v2126, %v2276
        %v2278 = vpop.f32.mrf.mxu0
        %v2279 = vadd.f32 %v2126, %v2278
        %2280 = vmatmul.bf16.gmra.mxu0 %v2190
        %v2281 = vpop.f32.mrf.mxu0
        %v2282 = vadd.f32 %v2126, %v2281
        %v2283 = vpop.f32.mrf.mxu0
        %v2284 = vadd.f32 %v2126, %v2283
        %2285 = vmatmul.bf16.gmra.mxu0 %v2193
        %v2286 = vpop.f32.mrf.mxu0
        %v2287 = vadd.f32 %v2126, %v2286
        %v2288 = vpop.f32.mrf.mxu0
        %v2289 = vadd.f32 %v2126, %v2288
        %2290 = vmatmul.bf16.gmra.mxu0 %v2196
        %v2291 = vpop.f32.mrf.mxu0
        %v2292 = vadd.f32 %v2126, %v2291
        %v2293 = vpop.f32.mrf.mxu0
        %v2294 = vadd.f32 %v2126, %v2293
        %2295 = vdwg.mxu0
        %2296 = vmatpush.bf16.msra.mxu0 0
        %2297 = vmatpush.bf16.msra.mxu0 0
        %2298 = vmatpush.bf16.msra.mxu0 0
        %2299 = vmatpush.bf16.msra.mxu0 0
        %2300 = vmatpush.bf16.msra.mxu0 0
        %2301 = vmatpush.bf16.msra.mxu0 0
        %2302 = vmatpush.bf16.msra.mxu0 %v2163
        %2303 = vmatpush.bf16.msra.mxu0 %v2159
        %2304 = vmatmul.bf16.gmra.mxu0 %v2175
        %v2305 = vpop.f32.mrf.mxu0
        %v2306 = vadd.f32 %v2127, %v2305
        %v2307 = vpop.f32.mrf.mxu0
        %v2308 = vadd.f32 %v2127, %v2307
        %2309 = vmatmul.bf16.gmra.mxu0 %v2178
        %v2310 = vpop.f32.mrf.mxu0
        %v2311 = vadd.f32 %v2127, %v2310
        %v2312 = vpop.f32.mrf.mxu0
        %v2313 = vadd.f32 %v2127, %v2312
        %2314 = vmatmul.bf16.gmra.mxu0 %v2181
        %v2315 = vpop.f32.mrf.mxu0
        %v2316 = vadd.f32 %v2127, %v2315
        %v2317 = vpop.f32.mrf.mxu0
        %v2318 = vadd.f32 %v2127, %v2317
        %2319 = vmatmul.bf16.gmra.mxu0 %v2184
        %v2320 = vpop.f32.mrf.mxu0
        %v2321 = vadd.f32 %v2127, %v2320
        %v2322 = vpop.f32.mrf.mxu0
        %v2323 = vadd.f32 %v2127, %v2322
        %2324 = vmatmul.bf16.gmra.mxu0 %v2187
        %v2325 = vpop.f32.mrf.mxu0
        %v2326 = vadd.f32 %v2127, %v2325
        %v2327 = vpop.f32.mrf.mxu0
        %v2328 = vadd.f32 %v2127, %v2327
        %2329 = vmatmul.bf16.gmra.mxu0 %v2190
        %v2330 = vpop.f32.mrf.mxu0
        %v2331 = vadd.f32 %v2127, %v2330
        %v2332 = vpop.f32.mrf.mxu0
        %v2333 = vadd.f32 %v2127, %v2332
        %2334 = vmatmul.bf16.gmra.mxu0 %v2193
        %v2335 = vpop.f32.mrf.mxu0
        %v2336 = vadd.f32 %v2127, %v2335
        %v2337 = vpop.f32.mrf.mxu0
        %v2338 = vadd.f32 %v2127, %v2337
        %2339 = vmatmul.bf16.gmra.mxu0 %v2196
        %v2340 = vpop.f32.mrf.mxu0
        %v2341 = vadd.f32 %v2127, %v2340
        %v2342 = vpop.f32.mrf.mxu0
        %v2343 = vadd.f32 %v2127, %v2342
        %2344 = vdwg.mxu0
        %2345 = vmatpush.bf16.msra.mxu0 0
        %2346 = vmatpush.bf16.msra.mxu0 0
        %2347 = vmatpush.bf16.msra.mxu0 0
        %2348 = vmatpush.bf16.msra.mxu0 0
        %2349 = vmatpush.bf16.msra.mxu0 0
        %2350 = vmatpush.bf16.msra.mxu0 0
        %2351 = vmatpush.bf16.msra.mxu0 %v2164
        %2352 = vmatpush.bf16.msra.mxu0 %v2160
        %2353 = vmatmul.bf16.gmra.mxu0 %v2175
        %v2354 = vpop.f32.mrf.mxu0
        %v2355 = vadd.f32 %v2128, %v2354
        %v2356 = vpop.f32.mrf.mxu0
        %v2357 = vadd.f32 %v2128, %v2356
        %2358 = vmatmul.bf16.gmra.mxu0 %v2178
        %v2359 = vpop.f32.mrf.mxu0
        %v2360 = vadd.f32 %v2128, %v2359
        %v2361 = vpop.f32.mrf.mxu0
        %v2362 = vadd.f32 %v2128, %v2361
        %2363 = vmatmul.bf16.gmra.mxu0 %v2181
        %v2364 = vpop.f32.mrf.mxu0
        %v2365 = vadd.f32 %v2128, %v2364
        %v2366 = vpop.f32.mrf.mxu0
        %v2367 = vadd.f32 %v2128, %v2366
        %2368 = vmatmul.bf16.gmra.mxu0 %v2184
        %v2369 = vpop.f32.mrf.mxu0
        %v2370 = vadd.f32 %v2128, %v2369
        %v2371 = vpop.f32.mrf.mxu0
        %v2372 = vadd.f32 %v2128, %v2371
        %2373 = vmatmul.bf16.gmra.mxu0 %v2187
        %v2374 = vpop.f32.mrf.mxu0
        %v2375 = vadd.f32 %v2128, %v2374
        %v2376 = vpop.f32.mrf.mxu0
        %v2377 = vadd.f32 %v2128, %v2376
        %2378 = vmatmul.bf16.gmra.mxu0 %v2190
        %v2379 = vpop.f32.mrf.mxu0
        %v2380 = vadd.f32 %v2128, %v2379
        %v2381 = vpop.f32.mrf.mxu0
        %v2382 = vadd.f32 %v2128, %v2381
        %2383 = vmatmul.bf16.gmra.mxu0 %v2193
        %v2384 = vpop.f32.mrf.mxu0
        %v2385 = vadd.f32 %v2128, %v2384
        %v2386 = vpop.f32.mrf.mxu0
        %v2387 = vadd.f32 %v2128, %v2386
        %2388 = vmatmul.bf16.gmra.mxu0 %v2196
        %v2389 = vpop.f32.mrf.mxu0
        %v2390 = vadd.f32 %v2128, %v2389
        %v2391 = vpop.f32.mrf.mxu0
        %v2392 = vadd.f32 %v2128, %v2391
        %2393 = vdwg.mxu0
        %v2394 = vmax.f32 %v2208, 0.0
        %v2395 = vmax.f32 %v2257, 0.0
        %v2396 = vmax.f32 %v2306, 0.0
        %v2397 = vmax.f32 %v2355, 0.0
        %v2398 = vmax.f32 %v2210, 0.0
        %v2399 = vmax.f32 %v2259, 0.0
        %v2400 = vmax.f32 %v2308, 0.0
        %v2401 = vmax.f32 %v2357, 0.0
        %v2402 = vmax.f32 %v2213, 0.0
        %v2403 = vmax.f32 %v2262, 0.0
        %v2404 = vmax.f32 %v2311, 0.0
        %v2405 = vmax.f32 %v2360, 0.0
        %v2406 = vmax.f32 %v2215, 0.0
        %v2407 = vmax.f32 %v2264, 0.0
        %v2408 = vmax.f32 %v2313, 0.0
        %v2409 = vmax.f32 %v2362, 0.0
        %v2410 = vmax.f32 %v2218, 0.0
        %v2411 = vmax.f32 %v2267, 0.0
        %v2412 = vmax.f32 %v2316, 0.0
        %v2413 = vmax.f32 %v2365, 0.0
        %v2414 = vmax.f32 %v2220, 0.0
        %v2415 = vmax.f32 %v2269, 0.0
        %v2416 = vmax.f32 %v2318, 0.0
        %v2417 = vmax.f32 %v2367, 0.0
        %v2418 = vmax.f32 %v2223, 0.0
        %v2419 = vmax.f32 %v2272, 0.0
        %v2420 = vmax.f32 %v2321, 0.0
        %v2421 = vmax.f32 %v2370, 0.0
        %v2422 = vmax.f32 %v2225, 0.0
        %v2423 = vmax.f32 %v2274, 0.0
        %v2424 = vmax.f32 %v2323, 0.0
        %v2425 = vmax.f32 %v2372, 0.0
        %v2426 = vmax.f32 %v2228, 0.0
        %v2427 = vmax.f32 %v2277, 0.0
        %v2428 = vmax.f32 %v2326, 0.0
        %v2429 = vmax.f32 %v2375, 0.0
        %v2430 = vmax.f32 %v2230, 0.0
        %v2431 = vmax.f32 %v2279, 0.0
        %v2432 = vmax.f32 %v2328, 0.0
        %v2433 = vmax.f32 %v2377, 0.0
        %v2434 = vmax.f32 %v2233, 0.0
        %v2435 = vmax.f32 %v2282, 0.0
        %v2436 = vmax.f32 %v2331, 0.0
        %v2437 = vmax.f32 %v2380, 0.0
        %v2438 = vmax.f32 %v2235, 0.0
        %v2439 = vmax.f32 %v2284, 0.0
        %v2440 = vmax.f32 %v2333, 0.0
        %v2441 = vmax.f32 %v2382, 0.0
        %v2442 = vmax.f32 %v2238, 0.0
        %v2443 = vmax.f32 %v2287, 0.0
        %v2444 = vmax.f32 %v2336, 0.0
        %v2445 = vmax.f32 %v2385, 0.0
        %v2446 = vmax.f32 %v2240, 0.0
        %v2447 = vmax.f32 %v2289, 0.0
        %v2448 = vmax.f32 %v2338, 0.0
        %v2449 = vmax.f32 %v2387, 0.0
        %v2450 = vmax.f32 %v2243, 0.0
        %v2451 = vmax.f32 %v2292, 0.0
        %v2452 = vmax.f32 %v2341, 0.0
        %v2453 = vmax.f32 %v2390, 0.0
        %v2454 = vmax.f32 %v2245, 0.0
        %v2455 = vmax.f32 %v2294, 0.0
        %v2456 = vmax.f32 %v2343, 0.0
        %v2457 = vmax.f32 %v2392, 0.0
        %v2458 = vpack.c.bf16 %v2398, %v2394
        %v2459 = vpack.c.bf16 %v2399, %v2395
        %v2460 = vpack.c.bf16 %v2400, %v2396
        %v2461 = vpack.c.bf16 %v2401, %v2397
        %v2462 = vpack.c.bf16 %v2406, %v2402
        %v2463 = vpack.c.bf16 %v2407, %v2403
        %v2464 = vpack.c.bf16 %v2408, %v2404
        %v2465 = vpack.c.bf16 %v2409, %v2405
        %v2466 = vpack.c.bf16 %v2414, %v2410
        %v2467 = vpack.c.bf16 %v2415, %v2411
        %v2468 = vpack.c.bf16 %v2416, %v2412
        %v2469 = vpack.c.bf16 %v2417, %v2413
        %v2470 = vpack.c.bf16 %v2422, %v2418
        %v2471 = vpack.c.bf16 %v2423, %v2419
        %v2472 = vpack.c.bf16 %v2424, %v2420
        %v2473 = vpack.c.bf16 %v2425, %v2421
        %v2474 = vpack.c.bf16 %v2430, %v2426
        %v2475 = vpack.c.bf16 %v2431, %v2427
        %v2476 = vpack.c.bf16 %v2432, %v2428
        %v2477 = vpack.c.bf16 %v2433, %v2429
        %v2478 = vpack.c.bf16 %v2438, %v2434
        %v2479 = vpack.c.bf16 %v2439, %v2435
        %v2480 = vpack.c.bf16 %v2440, %v2436
        %v2481 = vpack.c.bf16 %v2441, %v2437
        %v2482 = vpack.c.bf16 %v2446, %v2442
        %v2483 = vpack.c.bf16 %v2447, %v2443
        %v2484 = vpack.c.bf16 %v2448, %v2444
        %v2485 = vpack.c.bf16 %v2449, %v2445
        %v2486 = vpack.c.bf16 %v2454, %v2450
        %v2487 = vpack.c.bf16 %v2455, %v2451
        %v2488 = vpack.c.bf16 %v2456, %v2452
        %v2489 = vpack.c.bf16 %v2457, %v2453
        %v2490 = vld [vmem:[#allocation14] sm:$0xff]
        %v2491 = vld [vmem:[#allocation14 + $0x8] sm:$0xff]
        %v2492 = vld [vmem:[#allocation14 + $0x10] sm:$0xff]
        %v2493 = vld [vmem:[#allocation14 + $0x18] sm:$0xff]
        %v2494 = vld [vmem:[#allocation14 + $0x20] sm:$0xff]
        %v2495 = vld [vmem:[#allocation14 + $0x28] sm:$0xff]
        %v2496 = vld [vmem:[#allocation14 + $0x30] sm:$0xff]
        %v2497 = vld [vmem:[#allocation14 + $0x38] sm:$0xff]
        %v2498 = vld [vmem:[#allocation14 + $0x40] sm:$0xff]
        %v2499 = vld [vmem:[#allocation14 + $0x48] sm:$0xff]
        %v2500 = vld [vmem:[#allocation14 + $0x50] sm:$0xff]
        %v2501 = vld [vmem:[#allocation14 + $0x58] sm:$0xff]
        %v2502 = vld [vmem:[#allocation14 + $0x60] sm:$0xff]
        %v2503 = vld [vmem:[#allocation14 + $0x68] sm:$0xff]
        %v2504 = vld [vmem:[#allocation14 + $0x70] sm:$0xff]
        %v2505 = vld [vmem:[#allocation14 + $0x78] sm:$0xff]
        %v2506 = vld [vmem:[#allocation14 + $0x80] sm:$0xff]
        %v2507 = vld [vmem:[#allocation14 + $0x88] sm:$0xff]
        %v2508 = vld [vmem:[#allocation14 + $0x90] sm:$0xff]
        %v2509 = vld [vmem:[#allocation14 + $0x98] sm:$0xff]
        %v2510 = vld [vmem:[#allocation14 + $0xa0] sm:$0xff]
        %v2511 = vld [vmem:[#allocation14 + $0xa8] sm:$0xff]
        %v2512 = vld [vmem:[#allocation14 + $0xb0] sm:$0xff]
        %v2513 = vld [vmem:[#allocation14 + $0xb8] sm:$0xff]
        %v2514 = vld [vmem:[#allocation14 + $0xc0] sm:$0xff]
        %v2515 = vld [vmem:[#allocation14 + $0xc8] sm:$0xff]
        %v2516 = vld [vmem:[#allocation14 + $0xd0] sm:$0xff]
        %v2517 = vld [vmem:[#allocation14 + $0xd8] sm:$0xff]
        %v2518 = vld [vmem:[#allocation14 + $0xe0] sm:$0xff]
        %v2519 = vld [vmem:[#allocation14 + $0xe8] sm:$0xff]
        %v2520 = vld [vmem:[#allocation14 + $0xf0] sm:$0xff]
        %v2521 = vld [vmem:[#allocation14 + $0xf8] sm:$0xff]
        %v2522 = vld [vmem:[#allocation14 + $0x100] sm:$0xff]
        %v2523 = vld [vmem:[#allocation14 + $0x108] sm:$0xff]
        %v2524 = vld [vmem:[#allocation14 + $0x110] sm:$0xff]
        %v2525 = vld [vmem:[#allocation14 + $0x118] sm:$0xff]
        %v2526 = vld [vmem:[#allocation14 + $0x120] sm:$0xff]
        %v2527 = vld [vmem:[#allocation14 + $0x128] sm:$0xff]
        %v2528 = vld [vmem:[#allocation14 + $0x130] sm:$0xff]
        %v2529 = vld [vmem:[#allocation14 + $0x138] sm:$0xff]
        %v2530 = vld [vmem:[#allocation14 + $0x140] sm:$0xff]
        %v2531 = vld [vmem:[#allocation14 + $0x148] sm:$0xff]
        %v2532 = vld [vmem:[#allocation14 + $0x150] sm:$0xff]
        %v2533 = vld [vmem:[#allocation14 + $0x158] sm:$0xff]
        %v2534 = vld [vmem:[#allocation14 + $0x160] sm:$0xff]
        %v2535 = vld [vmem:[#allocation14 + $0x168] sm:$0xff]
        %v2536 = vld [vmem:[#allocation14 + $0x170] sm:$0xff]
        %v2537 = vld [vmem:[#allocation14 + $0x178] sm:$0xff]
        %v2538 = vld [vmem:[#allocation14 + $0x180] sm:$0xff]
        %v2539 = vld [vmem:[#allocation14 + $0x188] sm:$0xff]
        %v2540 = vld [vmem:[#allocation14 + $0x190] sm:$0xff]
        %v2541 = vld [vmem:[#allocation14 + $0x198] sm:$0xff]
        %v2542 = vld [vmem:[#allocation14 + $0x1a0] sm:$0xff]
        %v2543 = vld [vmem:[#allocation14 + $0x1a8] sm:$0xff]
        %v2544 = vld [vmem:[#allocation14 + $0x1b0] sm:$0xff]
        %v2545 = vld [vmem:[#allocation14 + $0x1b8] sm:$0xff]
        %v2546 = vld [vmem:[#allocation14 + $0x1c0] sm:$0xff]
        %v2547 = vld [vmem:[#allocation14 + $0x1c8] sm:$0xff]
        %v2548 = vld [vmem:[#allocation14 + $0x1d0] sm:$0xff]
        %v2549 = vld [vmem:[#allocation14 + $0x1d8] sm:$0xff]
        %v2550 = vld [vmem:[#allocation14 + $0x1e0] sm:$0xff]
        %v2551 = vld [vmem:[#allocation14 + $0x1e8] sm:$0xff]
        %v2552 = vld [vmem:[#allocation14 + $0x1f0] sm:$0xff]
        %v2553 = vld [vmem:[#allocation14 + $0x1f8] sm:$0xff]
        %v2554 = vld [vmem:[%s9] sm:$0x3]
        %v2556 = vperm.slane %v2554, 0
        %v2557 = vperm.slane %v2554, 1
        %v2624 = vunpack.c.l.b16 %v2490
        %v2625 = vunpack.c.h.b16 %v2490
        %v2626 = vunpack.c.l.b16 %v2491
        %v2627 = vunpack.c.h.b16 %v2491
        %v2628 = vunpack.c.l.b16 %v2492
        %v2629 = vunpack.c.h.b16 %v2492
        %v2630 = vunpack.c.l.b16 %v2493
        %v2631 = vunpack.c.h.b16 %v2493
        %v2632 = vunpack.c.l.b16 %v2494
        %v2633 = vunpack.c.h.b16 %v2494
        %v2634 = vunpack.c.l.b16 %v2495
        %v2635 = vunpack.c.h.b16 %v2495
        %v2636 = vunpack.c.l.b16 %v2496
        %v2637 = vunpack.c.h.b16 %v2496
        %v2638 = vunpack.c.l.b16 %v2497
        %v2639 = vunpack.c.h.b16 %v2497
        %v2640 = vunpack.c.l.b16 %v2498
        %v2641 = vunpack.c.h.b16 %v2498
        %v2642 = vunpack.c.l.b16 %v2499
        %v2643 = vunpack.c.h.b16 %v2499
        %v2644 = vunpack.c.l.b16 %v2500
        %v2645 = vunpack.c.h.b16 %v2500
        %v2646 = vunpack.c.l.b16 %v2501
        %v2647 = vunpack.c.h.b16 %v2501
        %v2648 = vunpack.c.l.b16 %v2502
        %v2649 = vunpack.c.h.b16 %v2502
        %v2650 = vunpack.c.l.b16 %v2503
        %v2651 = vunpack.c.h.b16 %v2503
        %v2652 = vunpack.c.l.b16 %v2504
        %v2653 = vunpack.c.h.b16 %v2504
        %v2654 = vunpack.c.l.b16 %v2505
        %v2655 = vunpack.c.h.b16 %v2505
        %v2656 = vunpack.c.l.b16 %v2506
        %v2657 = vunpack.c.h.b16 %v2506
        %v2658 = vunpack.c.l.b16 %v2507
        %v2659 = vunpack.c.h.b16 %v2507
        %v2660 = vunpack.c.l.b16 %v2508
        %v2661 = vunpack.c.h.b16 %v2508
        %v2662 = vunpack.c.l.b16 %v2509
        %v2663 = vunpack.c.h.b16 %v2509
        %v2664 = vunpack.c.l.b16 %v2510
        %v2665 = vunpack.c.h.b16 %v2510
        %v2666 = vunpack.c.l.b16 %v2511
        %v2667 = vunpack.c.h.b16 %v2511
        %v2668 = vunpack.c.l.b16 %v2512
        %v2669 = vunpack.c.h.b16 %v2512
        %v2670 = vunpack.c.l.b16 %v2513
        %v2671 = vunpack.c.h.b16 %v2513
        %v2672 = vunpack.c.l.b16 %v2514
        %v2673 = vunpack.c.h.b16 %v2514
        %v2674 = vunpack.c.l.b16 %v2515
        %v2675 = vunpack.c.h.b16 %v2515
        %v2676 = vunpack.c.l.b16 %v2516
        %v2677 = vunpack.c.h.b16 %v2516
        %v2678 = vunpack.c.l.b16 %v2517
        %v2679 = vunpack.c.h.b16 %v2517
        %v2680 = vunpack.c.l.b16 %v2518
        %v2681 = vunpack.c.h.b16 %v2518
        %v2682 = vunpack.c.l.b16 %v2519
        %v2683 = vunpack.c.h.b16 %v2519
        %v2684 = vunpack.c.l.b16 %v2520
        %v2685 = vunpack.c.h.b16 %v2520
        %v2686 = vunpack.c.l.b16 %v2521
        %v2687 = vunpack.c.h.b16 %v2521
        %v2688 = vunpack.c.l.b16 %v2522
        %v2689 = vunpack.c.h.b16 %v2522
        %v2690 = vunpack.c.l.b16 %v2523
        %v2691 = vunpack.c.h.b16 %v2523
        %v2692 = vunpack.c.l.b16 %v2524
        %v2693 = vunpack.c.h.b16 %v2524
        %v2694 = vunpack.c.l.b16 %v2525
        %v2695 = vunpack.c.h.b16 %v2525
        %v2696 = vunpack.c.l.b16 %v2526
        %v2697 = vunpack.c.h.b16 %v2526
        %v2698 = vunpack.c.l.b16 %v2527
        %v2699 = vunpack.c.h.b16 %v2527
        %v2700 = vunpack.c.l.b16 %v2528
        %v2701 = vunpack.c.h.b16 %v2528
        %v2702 = vunpack.c.l.b16 %v2529
        %v2703 = vunpack.c.h.b16 %v2529
        %v2704 = vunpack.c.l.b16 %v2530
        %v2705 = vunpack.c.h.b16 %v2530
        %v2706 = vunpack.c.l.b16 %v2531
        %v2707 = vunpack.c.h.b16 %v2531
        %v2708 = vunpack.c.l.b16 %v2532
        %v2709 = vunpack.c.h.b16 %v2532
        %v2710 = vunpack.c.l.b16 %v2533
        %v2711 = vunpack.c.h.b16 %v2533
        %v2712 = vunpack.c.l.b16 %v2534
        %v2713 = vunpack.c.h.b16 %v2534
        %v2714 = vunpack.c.l.b16 %v2535
        %v2715 = vunpack.c.h.b16 %v2535
        %v2716 = vunpack.c.l.b16 %v2536
        %v2717 = vunpack.c.h.b16 %v2536
        %v2718 = vunpack.c.l.b16 %v2537
        %v2719 = vunpack.c.h.b16 %v2537
        %v2720 = vunpack.c.l.b16 %v2538
        %v2721 = vunpack.c.h.b16 %v2538
        %v2722 = vunpack.c.l.b16 %v2539
        %v2723 = vunpack.c.h.b16 %v2539
        %v2724 = vunpack.c.l.b16 %v2540
        %v2725 = vunpack.c.h.b16 %v2540
        %v2726 = vunpack.c.l.b16 %v2541
        %v2727 = vunpack.c.h.b16 %v2541
        %v2728 = vunpack.c.l.b16 %v2542
        %v2729 = vunpack.c.h.b16 %v2542
        %v2730 = vunpack.c.l.b16 %v2543
        %v2731 = vunpack.c.h.b16 %v2543
        %v2732 = vunpack.c.l.b16 %v2544
        %v2733 = vunpack.c.h.b16 %v2544
        %v2734 = vunpack.c.l.b16 %v2545
        %v2735 = vunpack.c.h.b16 %v2545
        %v2736 = vunpack.c.l.b16 %v2546
        %v2737 = vunpack.c.h.b16 %v2546
        %v2738 = vunpack.c.l.b16 %v2547
        %v2739 = vunpack.c.h.b16 %v2547
        %v2740 = vunpack.c.l.b16 %v2548
        %v2741 = vunpack.c.h.b16 %v2548
        %v2742 = vunpack.c.l.b16 %v2549
        %v2743 = vunpack.c.h.b16 %v2549
        %v2744 = vunpack.c.l.b16 %v2550
        %v2745 = vunpack.c.h.b16 %v2550
        %v2746 = vunpack.c.l.b16 %v2551
        %v2747 = vunpack.c.h.b16 %v2551
        %v2748 = vunpack.c.l.b16 %v2552
        %v2749 = vunpack.c.h.b16 %v2552
        %v2750 = vunpack.c.l.b16 %v2553
        %v2751 = vunpack.c.h.b16 %v2553
        %v2752 = vpack.c.b16 %v2626, %v2624
        %v2753 = vpack.c.b16 %v2627, %v2625
        %v2754 = vpack.c.b16 %v2630, %v2628
        %v2755 = vpack.c.b16 %v2631, %v2629
        %v2756 = vpack.c.b16 %v2634, %v2632
        %v2757 = vpack.c.b16 %v2635, %v2633
        %v2758 = vpack.c.b16 %v2638, %v2636
        %v2759 = vpack.c.b16 %v2639, %v2637
        %v2760 = vpack.c.b16 %v2642, %v2640
        %v2761 = vpack.c.b16 %v2643, %v2641
        %v2762 = vpack.c.b16 %v2646, %v2644
        %v2763 = vpack.c.b16 %v2647, %v2645
        %v2764 = vpack.c.b16 %v2650, %v2648
        %v2765 = vpack.c.b16 %v2651, %v2649
        %v2766 = vpack.c.b16 %v2654, %v2652
        %v2767 = vpack.c.b16 %v2655, %v2653
        %v2768 = vpack.c.b16 %v2658, %v2656
        %v2769 = vpack.c.b16 %v2659, %v2657
        %v2770 = vpack.c.b16 %v2662, %v2660
        %v2771 = vpack.c.b16 %v2663, %v2661
        %v2772 = vpack.c.b16 %v2666, %v2664
        %v2773 = vpack.c.b16 %v2667, %v2665
        %v2774 = vpack.c.b16 %v2670, %v2668
        %v2775 = vpack.c.b16 %v2671, %v2669
        %v2776 = vpack.c.b16 %v2674, %v2672
        %v2777 = vpack.c.b16 %v2675, %v2673
        %v2778 = vpack.c.b16 %v2678, %v2676
        %v2779 = vpack.c.b16 %v2679, %v2677
        %v2780 = vpack.c.b16 %v2682, %v2680
        %v2781 = vpack.c.b16 %v2683, %v2681
        %v2782 = vpack.c.b16 %v2686, %v2684
        %v2783 = vpack.c.b16 %v2687, %v2685
        %v2784 = vpack.c.b16 %v2690, %v2688
        %v2785 = vpack.c.b16 %v2691, %v2689
        %v2786 = vpack.c.b16 %v2694, %v2692
        %v2787 = vpack.c.b16 %v2695, %v2693
        %v2788 = vpack.c.b16 %v2698, %v2696
        %v2789 = vpack.c.b16 %v2699, %v2697
        %v2790 = vpack.c.b16 %v2702, %v2700
        %v2791 = vpack.c.b16 %v2703, %v2701
        %v2792 = vpack.c.b16 %v2706, %v2704
        %v2793 = vpack.c.b16 %v2707, %v2705
        %v2794 = vpack.c.b16 %v2710, %v2708
        %v2795 = vpack.c.b16 %v2711, %v2709
        %v2796 = vpack.c.b16 %v2714, %v2712
        %v2797 = vpack.c.b16 %v2715, %v2713
        %v2798 = vpack.c.b16 %v2718, %v2716
        %v2799 = vpack.c.b16 %v2719, %v2717
        %v2800 = vpack.c.b16 %v2722, %v2720
        %v2801 = vpack.c.b16 %v2723, %v2721
        %v2802 = vpack.c.b16 %v2726, %v2724
        %v2803 = vpack.c.b16 %v2727, %v2725
        %v2804 = vpack.c.b16 %v2730, %v2728
        %v2805 = vpack.c.b16 %v2731, %v2729
        %v2806 = vpack.c.b16 %v2734, %v2732
        %v2807 = vpack.c.b16 %v2735, %v2733
        %v2808 = vpack.c.b16 %v2738, %v2736
        %v2809 = vpack.c.b16 %v2739, %v2737
        %v2810 = vpack.c.b16 %v2742, %v2740
        %v2811 = vpack.c.b16 %v2743, %v2741
        %v2812 = vpack.c.b16 %v2746, %v2744
        %v2813 = vpack.c.b16 %v2747, %v2745
        %v2814 = vpack.c.b16 %v2750, %v2748
        %v2815 = vpack.c.b16 %v2751, %v2749
        %2880 = vmatpush.bf16.msra.mxu0 %v2766
        %2881 = vmatpush.bf16.msra.mxu0 %v2764
        %2882 = vmatpush.bf16.msra.mxu0 %v2762
        %2883 = vmatpush.bf16.msra.mxu0 %v2760
        %2884 = vmatpush.bf16.msra.mxu0 %v2758
        %2885 = vmatpush.bf16.msra.mxu0 %v2756
        %2886 = vmatpush.bf16.msra.mxu0 %v2754
        %2887 = vmatpush.bf16.msra.mxu0 %v2752
        %2888 = vmatmul.bf16.gmra.mxu0 %v2458
        %v2889 = vpop.f32.mrf.mxu0
        %v2890 = vadd.f32 %v2556, %v2889
        %v2891 = vpop.f32.mrf.mxu0
        %v2892 = vadd.f32 %v2556, %v2891
        %2893 = vmatmul.bf16.gmra.mxu0 %v2462
        %v2894 = vpop.f32.mrf.mxu0
        %v2895 = vadd.f32 %v2556, %v2894
        %v2896 = vpop.f32.mrf.mxu0
        %v2897 = vadd.f32 %v2556, %v2896
        %2898 = vmatmul.bf16.gmra.mxu0 %v2466
        %v2899 = vpop.f32.mrf.mxu0
        %v2900 = vadd.f32 %v2556, %v2899
        %v2901 = vpop.f32.mrf.mxu0
        %v2902 = vadd.f32 %v2556, %v2901
        %2903 = vmatmul.bf16.gmra.mxu0 %v2470
        %v2904 = vpop.f32.mrf.mxu0
        %v2905 = vadd.f32 %v2556, %v2904
        %v2906 = vpop.f32.mrf.mxu0
        %v2907 = vadd.f32 %v2556, %v2906
        %2908 = vmatmul.bf16.gmra.mxu0 %v2474
        %v2909 = vpop.f32.mrf.mxu0
        %v2910 = vadd.f32 %v2556, %v2909
        %v2911 = vpop.f32.mrf.mxu0
        %v2912 = vadd.f32 %v2556, %v2911
        %2913 = vmatmul.bf16.gmra.mxu0 %v2478
        %v2914 = vpop.f32.mrf.mxu0
        %v2915 = vadd.f32 %v2556, %v2914
        %v2916 = vpop.f32.mrf.mxu0
        %v2917 = vadd.f32 %v2556, %v2916
        %2918 = vmatmul.bf16.gmra.mxu0 %v2482
        %v2919 = vpop.f32.mrf.mxu0
        %v2920 = vadd.f32 %v2556, %v2919
        %v2921 = vpop.f32.mrf.mxu0
        %v2922 = vadd.f32 %v2556, %v2921
        %2923 = vmatmul.bf16.gmra.mxu0 %v2486
        %v2924 = vpop.f32.mrf.mxu0
        %v2925 = vadd.f32 %v2556, %v2924
        %v2926 = vpop.f32.mrf.mxu0
        %v2927 = vadd.f32 %v2556, %v2926
        %2928 = vdwg.mxu0
        %2929 = vmatpush.bf16.msra.mxu0 %v2782
        %2930 = vmatpush.bf16.msra.mxu0 %v2780
        %2931 = vmatpush.bf16.msra.mxu0 %v2778
        %2932 = vmatpush.bf16.msra.mxu0 %v2776
        %2933 = vmatpush.bf16.msra.mxu0 %v2774
        %2934 = vmatpush.bf16.msra.mxu0 %v2772
        %2935 = vmatpush.bf16.msra.mxu0 %v2770
        %2936 = vmatpush.bf16.msra.mxu0 %v2768
        %2937 = vmatmul.bf16.gmra.mxu0 %v2459
        %v2938 = vpop.f32.mrf.mxu0
        %v2939 = vadd.f32 %v2890, %v2938
        %v2940 = vpop.f32.mrf.mxu0
        %v2941 = vadd.f32 %v2892, %v2940
        %2942 = vmatmul.bf16.gmra.mxu0 %v2463
        %v2943 = vpop.f32.mrf.mxu0
        %v2944 = vadd.f32 %v2895, %v2943
        %v2945 = vpop.f32.mrf.mxu0
        %v2946 = vadd.f32 %v2897, %v2945
        %2947 = vmatmul.bf16.gmra.mxu0 %v2467
        %v2948 = vpop.f32.mrf.mxu0
        %v2949 = vadd.f32 %v2900, %v2948
        %v2950 = vpop.f32.mrf.mxu0
        %v2951 = vadd.f32 %v2902, %v2950
        %2952 = vmatmul.bf16.gmra.mxu0 %v2471
        %v2953 = vpop.f32.mrf.mxu0
        %v2954 = vadd.f32 %v2905, %v2953
        %v2955 = vpop.f32.mrf.mxu0
        %v2956 = vadd.f32 %v2907, %v2955
        %2957 = vmatmul.bf16.gmra.mxu0 %v2475
        %v2958 = vpop.f32.mrf.mxu0
        %v2959 = vadd.f32 %v2910, %v2958
        %v2960 = vpop.f32.mrf.mxu0
        %v2961 = vadd.f32 %v2912, %v2960
        %2962 = vmatmul.bf16.gmra.mxu0 %v2479
        %v2963 = vpop.f32.mrf.mxu0
        %v2964 = vadd.f32 %v2915, %v2963
        %v2965 = vpop.f32.mrf.mxu0
        %v2966 = vadd.f32 %v2917, %v2965
        %2967 = vmatmul.bf16.gmra.mxu0 %v2483
        %v2968 = vpop.f32.mrf.mxu0
        %v2969 = vadd.f32 %v2920, %v2968
        %v2970 = vpop.f32.mrf.mxu0
        %v2971 = vadd.f32 %v2922, %v2970
        %2972 = vmatmul.bf16.gmra.mxu0 %v2487
        %v2973 = vpop.f32.mrf.mxu0
        %v2974 = vadd.f32 %v2925, %v2973
        %v2975 = vpop.f32.mrf.mxu0
        %v2976 = vadd.f32 %v2927, %v2975
        %2977 = vdwg.mxu0
        %2978 = vmatpush.bf16.msra.mxu0 %v2798
        %2979 = vmatpush.bf16.msra.mxu0 %v2796
        %2980 = vmatpush.bf16.msra.mxu0 %v2794
        %2981 = vmatpush.bf16.msra.mxu0 %v2792
        %2982 = vmatpush.bf16.msra.mxu0 %v2790
        %2983 = vmatpush.bf16.msra.mxu0 %v2788
        %2984 = vmatpush.bf16.msra.mxu0 %v2786
        %2985 = vmatpush.bf16.msra.mxu0 %v2784
        %2986 = vmatmul.bf16.gmra.mxu0 %v2460
        %v2987 = vpop.f32.mrf.mxu0
        %v2988 = vadd.f32 %v2939, %v2987
        %v2989 = vpop.f32.mrf.mxu0
        %v2990 = vadd.f32 %v2941, %v2989
        %2991 = vmatmul.bf16.gmra.mxu0 %v2464
        %v2992 = vpop.f32.mrf.mxu0
        %v2993 = vadd.f32 %v2944, %v2992
        %v2994 = vpop.f32.mrf.mxu0
        %v2995 = vadd.f32 %v2946, %v2994
        %2996 = vmatmul.bf16.gmra.mxu0 %v2468
        %v2997 = vpop.f32.mrf.mxu0
        %v2998 = vadd.f32 %v2949, %v2997
        %v2999 = vpop.f32.mrf.mxu0
        %v3000 = vadd.f32 %v2951, %v2999
        %3001 = vmatmul.bf16.gmra.mxu0 %v2472
        %v3002 = vpop.f32.mrf.mxu0
        %v3003 = vadd.f32 %v2954, %v3002
        %v3004 = vpop.f32.mrf.mxu0
        %v3005 = vadd.f32 %v2956, %v3004
        %3006 = vmatmul.bf16.gmra.mxu0 %v2476
        %v3007 = vpop.f32.mrf.mxu0
        %v3008 = vadd.f32 %v2959, %v3007
        %v3009 = vpop.f32.mrf.mxu0
        %v3010 = vadd.f32 %v2961, %v3009
        %3011 = vmatmul.bf16.gmra.mxu0 %v2480
        %v3012 = vpop.f32.mrf.mxu0
        %v3013 = vadd.f32 %v2964, %v3012
        %v3014 = vpop.f32.mrf.mxu0
        %v3015 = vadd.f32 %v2966, %v3014
        %3016 = vmatmul.bf16.gmra.mxu0 %v2484
        %v3017 = vpop.f32.mrf.mxu0
        %v3018 = vadd.f32 %v2969, %v3017
        %v3019 = vpop.f32.mrf.mxu0
        %v3020 = vadd.f32 %v2971, %v3019
        %3021 = vmatmul.bf16.gmra.mxu0 %v2488
        %v3022 = vpop.f32.mrf.mxu0
        %v3023 = vadd.f32 %v2974, %v3022
        %v3024 = vpop.f32.mrf.mxu0
        %v3025 = vadd.f32 %v2976, %v3024
        %3026 = vdwg.mxu0
        %3027 = vmatpush.bf16.msra.mxu0 %v2814
        %3028 = vmatpush.bf16.msra.mxu0 %v2812
        %3029 = vmatpush.bf16.msra.mxu0 %v2810
        %3030 = vmatpush.bf16.msra.mxu0 %v2808
        %3031 = vmatpush.bf16.msra.mxu0 %v2806
        %3032 = vmatpush.bf16.msra.mxu0 %v2804
        %3033 = vmatpush.bf16.msra.mxu0 %v2802
        %3034 = vmatpush.bf16.msra.mxu0 %v2800
        %3035 = vmatmul.bf16.gmra.mxu0 %v2461
        %v3036 = vpop.f32.mrf.mxu0
        %v3037 = vadd.f32 %v2988, %v3036
        %v3038 = vpop.f32.mrf.mxu0
        %v3039 = vadd.f32 %v2990, %v3038
        %3040 = vmatmul.bf16.gmra.mxu0 %v2465
        %v3041 = vpop.f32.mrf.mxu0
        %v3042 = vadd.f32 %v2993, %v3041
        %v3043 = vpop.f32.mrf.mxu0
        %v3044 = vadd.f32 %v2995, %v3043
        %3045 = vmatmul.bf16.gmra.mxu0 %v2469
        %v3046 = vpop.f32.mrf.mxu0
        %v3047 = vadd.f32 %v2998, %v3046
        %v3048 = vpop.f32.mrf.mxu0
        %v3049 = vadd.f32 %v3000, %v3048
        %3050 = vmatmul.bf16.gmra.mxu0 %v2473
        %v3051 = vpop.f32.mrf.mxu0
        %v3052 = vadd.f32 %v3003, %v3051
        %v3053 = vpop.f32.mrf.mxu0
        %v3054 = vadd.f32 %v3005, %v3053
        %3055 = vmatmul.bf16.gmra.mxu0 %v2477
        %v3056 = vpop.f32.mrf.mxu0
        %v3057 = vadd.f32 %v3008, %v3056
        %v3058 = vpop.f32.mrf.mxu0
        %v3059 = vadd.f32 %v3010, %v3058
        %3060 = vmatmul.bf16.gmra.mxu0 %v2481
        %v3061 = vpop.f32.mrf.mxu0
        %v3062 = vadd.f32 %v3013, %v3061
        %v3063 = vpop.f32.mrf.mxu0
        %v3064 = vadd.f32 %v3015, %v3063
        %3065 = vmatmul.bf16.gmra.mxu0 %v2485
        %v3066 = vpop.f32.mrf.mxu0
        %v3067 = vadd.f32 %v3018, %v3066
        %v3068 = vpop.f32.mrf.mxu0
        %v3069 = vadd.f32 %v3020, %v3068
        %3070 = vmatmul.bf16.gmra.mxu0 %v2489
        %v3071 = vpop.f32.mrf.mxu0
        %v3072 = vadd.f32 %v3023, %v3071
        %v3073 = vpop.f32.mrf.mxu0
        %v3074 = vadd.f32 %v3025, %v3073
        %3075 = vdwg.mxu0
        %3076 = vmatpush.bf16.msra.mxu0 %v2767
        %3077 = vmatpush.bf16.msra.mxu0 %v2765
        %3078 = vmatpush.bf16.msra.mxu0 %v2763
        %3079 = vmatpush.bf16.msra.mxu0 %v2761
        %3080 = vmatpush.bf16.msra.mxu0 %v2759
        %3081 = vmatpush.bf16.msra.mxu0 %v2757
        %3082 = vmatpush.bf16.msra.mxu0 %v2755
        %3083 = vmatpush.bf16.msra.mxu0 %v2753
        %3084 = vmatmul.bf16.gmra.mxu0 %v2458
        %v3085 = vpop.f32.mrf.mxu0
        %v3086 = vadd.f32 %v2557, %v3085
        %v3087 = vpop.f32.mrf.mxu0
        %v3088 = vadd.f32 %v2557, %v3087
        %3089 = vmatmul.bf16.gmra.mxu0 %v2462
        %v3090 = vpop.f32.mrf.mxu0
        %v3091 = vadd.f32 %v2557, %v3090
        %v3092 = vpop.f32.mrf.mxu0
        %v3093 = vadd.f32 %v2557, %v3092
        %3094 = vmatmul.bf16.gmra.mxu0 %v2466
        %v3095 = vpop.f32.mrf.mxu0
        %v3096 = vadd.f32 %v2557, %v3095
        %v3097 = vpop.f32.mrf.mxu0
        %v3098 = vadd.f32 %v2557, %v3097
        %3099 = vmatmul.bf16.gmra.mxu0 %v2470
        %v3100 = vpop.f32.mrf.mxu0
        %v3101 = vadd.f32 %v2557, %v3100
        %v3102 = vpop.f32.mrf.mxu0
        %v3103 = vadd.f32 %v2557, %v3102
        %3104 = vmatmul.bf16.gmra.mxu0 %v2474
        %v3105 = vpop.f32.mrf.mxu0
        %v3106 = vadd.f32 %v2557, %v3105
        %v3107 = vpop.f32.mrf.mxu0
        %v3108 = vadd.f32 %v2557, %v3107
        %3109 = vmatmul.bf16.gmra.mxu0 %v2478
        %v3110 = vpop.f32.mrf.mxu0
        %v3111 = vadd.f32 %v2557, %v3110
        %v3112 = vpop.f32.mrf.mxu0
        %v3113 = vadd.f32 %v2557, %v3112
        %3114 = vmatmul.bf16.gmra.mxu0 %v2482
        %v3115 = vpop.f32.mrf.mxu0
        %v3116 = vadd.f32 %v2557, %v3115
        %v3117 = vpop.f32.mrf.mxu0
        %v3118 = vadd.f32 %v2557, %v3117
        %3119 = vmatmul.bf16.gmra.mxu0 %v2486
        %v3120 = vpop.f32.mrf.mxu0
        %v3121 = vadd.f32 %v2557, %v3120
        %v3122 = vpop.f32.mrf.mxu0
        %v3123 = vadd.f32 %v2557, %v3122
        %3124 = vdwg.mxu0
        %3125 = vmatpush.bf16.msra.mxu0 %v2783
        %3126 = vmatpush.bf16.msra.mxu0 %v2781
        %3127 = vmatpush.bf16.msra.mxu0 %v2779
        %3128 = vmatpush.bf16.msra.mxu0 %v2777
        %3129 = vmatpush.bf16.msra.mxu0 %v2775
        %3130 = vmatpush.bf16.msra.mxu0 %v2773
        %3131 = vmatpush.bf16.msra.mxu0 %v2771
        %3132 = vmatpush.bf16.msra.mxu0 %v2769
        %3133 = vmatmul.bf16.gmra.mxu0 %v2459
        %v3134 = vpop.f32.mrf.mxu0
        %v3135 = vadd.f32 %v3086, %v3134
        %v3136 = vpop.f32.mrf.mxu0
        %v3137 = vadd.f32 %v3088, %v3136
        %3138 = vmatmul.bf16.gmra.mxu0 %v2463
        %v3139 = vpop.f32.mrf.mxu0
        %v3140 = vadd.f32 %v3091, %v3139
        %v3141 = vpop.f32.mrf.mxu0
        %v3142 = vadd.f32 %v3093, %v3141
        %3143 = vmatmul.bf16.gmra.mxu0 %v2467
        %v3144 = vpop.f32.mrf.mxu0
        %v3145 = vadd.f32 %v3096, %v3144
        %v3146 = vpop.f32.mrf.mxu0
        %v3147 = vadd.f32 %v3098, %v3146
        %3148 = vmatmul.bf16.gmra.mxu0 %v2471
        %v3149 = vpop.f32.mrf.mxu0
        %v3150 = vadd.f32 %v3101, %v3149
        %v3151 = vpop.f32.mrf.mxu0
        %v3152 = vadd.f32 %v3103, %v3151
        %3153 = vmatmul.bf16.gmra.mxu0 %v2475
        %v3154 = vpop.f32.mrf.mxu0
        %v3155 = vadd.f32 %v3106, %v3154
        %v3156 = vpop.f32.mrf.mxu0
        %v3157 = vadd.f32 %v3108, %v3156
        %3158 = vmatmul.bf16.gmra.mxu0 %v2479
        %v3159 = vpop.f32.mrf.mxu0
        %v3160 = vadd.f32 %v3111, %v3159
        %v3161 = vpop.f32.mrf.mxu0
        %v3162 = vadd.f32 %v3113, %v3161
        %3163 = vmatmul.bf16.gmra.mxu0 %v2483
        %v3164 = vpop.f32.mrf.mxu0
        %v3165 = vadd.f32 %v3116, %v3164
        %v3166 = vpop.f32.mrf.mxu0
        %v3167 = vadd.f32 %v3118, %v3166
        %3168 = vmatmul.bf16.gmra.mxu0 %v2487
        %v3169 = vpop.f32.mrf.mxu0
        %v3170 = vadd.f32 %v3121, %v3169
        %v3171 = vpop.f32.mrf.mxu0
        %v3172 = vadd.f32 %v3123, %v3171
        %3173 = vdwg.mxu0
        %3174 = vmatpush.bf16.msra.mxu0 %v2799
        %3175 = vmatpush.bf16.msra.mxu0 %v2797
        %3176 = vmatpush.bf16.msra.mxu0 %v2795
        %3177 = vmatpush.bf16.msra.mxu0 %v2793
        %3178 = vmatpush.bf16.msra.mxu0 %v2791
        %3179 = vmatpush.bf16.msra.mxu0 %v2789
        %3180 = vmatpush.bf16.msra.mxu0 %v2787
        %3181 = vmatpush.bf16.msra.mxu0 %v2785
        %3182 = vmatmul.bf16.gmra.mxu0 %v2460
        %v3183 = vpop.f32.mrf.mxu0
        %v3184 = vadd.f32 %v3135, %v3183
        %v3185 = vpop.f32.mrf.mxu0
        %v3186 = vadd.f32 %v3137, %v3185
        %3187 = vmatmul.bf16.gmra.mxu0 %v2464
        %v3188 = vpop.f32.mrf.mxu0
        %v3189 = vadd.f32 %v3140, %v3188
        %v3190 = vpop.f32.mrf.mxu0
        %v3191 = vadd.f32 %v3142, %v3190
        %3192 = vmatmul.bf16.gmra.mxu0 %v2468
        %v3193 = vpop.f32.mrf.mxu0
        %v3194 = vadd.f32 %v3145, %v3193
        %v3195 = vpop.f32.mrf.mxu0
        %v3196 = vadd.f32 %v3147, %v3195
        %3197 = vmatmul.bf16.gmra.mxu0 %v2472
        %v3198 = vpop.f32.mrf.mxu0
        %v3199 = vadd.f32 %v3150, %v3198
        %v3200 = vpop.f32.mrf.mxu0
        %v3201 = vadd.f32 %v3152, %v3200
        %3202 = vmatmul.bf16.gmra.mxu0 %v2476
        %v3203 = vpop.f32.mrf.mxu0
        %v3204 = vadd.f32 %v3155, %v3203
        %v3205 = vpop.f32.mrf.mxu0
        %v3206 = vadd.f32 %v3157, %v3205
        %3207 = vmatmul.bf16.gmra.mxu0 %v2480
        %v3208 = vpop.f32.mrf.mxu0
        %v3209 = vadd.f32 %v3160, %v3208
        %v3210 = vpop.f32.mrf.mxu0
        %v3211 = vadd.f32 %v3162, %v3210
        %3212 = vmatmul.bf16.gmra.mxu0 %v2484
        %v3213 = vpop.f32.mrf.mxu0
        %v3214 = vadd.f32 %v3165, %v3213
        %v3215 = vpop.f32.mrf.mxu0
        %v3216 = vadd.f32 %v3167, %v3215
        %3217 = vmatmul.bf16.gmra.mxu0 %v2488
        %v3218 = vpop.f32.mrf.mxu0
        %v3219 = vadd.f32 %v3170, %v3218
        %v3220 = vpop.f32.mrf.mxu0
        %v3221 = vadd.f32 %v3172, %v3220
        %3222 = vdwg.mxu0
        %3223 = vmatpush.bf16.msra.mxu0 %v2815
        %3224 = vmatpush.bf16.msra.mxu0 %v2813
        %3225 = vmatpush.bf16.msra.mxu0 %v2811
        %3226 = vmatpush.bf16.msra.mxu0 %v2809
        %3227 = vmatpush.bf16.msra.mxu0 %v2807
        %3228 = vmatpush.bf16.msra.mxu0 %v2805
        %3229 = vmatpush.bf16.msra.mxu0 %v2803
        %3230 = vmatpush.bf16.msra.mxu0 %v2801
        %3231 = vmatmul.bf16.gmra.mxu0 %v2461
        %v3232 = vpop.f32.mrf.mxu0
        %v3233 = vadd.f32 %v3184, %v3232
        %v3234 = vpop.f32.mrf.mxu0
        %v3235 = vadd.f32 %v3186, %v3234
        %3236 = vmatmul.bf16.gmra.mxu0 %v2465
        %v3237 = vpop.f32.mrf.mxu0
        %v3238 = vadd.f32 %v3189, %v3237
        %v3239 = vpop.f32.mrf.mxu0
        %v3240 = vadd.f32 %v3191, %v3239
        %3241 = vmatmul.bf16.gmra.mxu0 %v2469
        %v3242 = vpop.f32.mrf.mxu0
        %v3243 = vadd.f32 %v3194, %v3242
        %v3244 = vpop.f32.mrf.mxu0
        %v3245 = vadd.f32 %v3196, %v3244
        %3246 = vmatmul.bf16.gmra.mxu0 %v2473
        %v3247 = vpop.f32.mrf.mxu0
        %v3248 = vadd.f32 %v3199, %v3247
        %v3249 = vpop.f32.mrf.mxu0
        %v3250 = vadd.f32 %v3201, %v3249
        %3251 = vmatmul.bf16.gmra.mxu0 %v2477
        %v3252 = vpop.f32.mrf.mxu0
        %v3253 = vadd.f32 %v3204, %v3252
        %v3254 = vpop.f32.mrf.mxu0
        %v3255 = vadd.f32 %v3206, %v3254
        %3256 = vmatmul.bf16.gmra.mxu0 %v2481
        %v3257 = vpop.f32.mrf.mxu0
        %v3258 = vadd.f32 %v3209, %v3257
        %v3259 = vpop.f32.mrf.mxu0
        %v3260 = vadd.f32 %v3211, %v3259
        %3261 = vmatmul.bf16.gmra.mxu0 %v2485
        %v3262 = vpop.f32.mrf.mxu0
        %v3263 = vadd.f32 %v3214, %v3262
        %v3264 = vpop.f32.mrf.mxu0
        %v3265 = vadd.f32 %v3216, %v3264
        %3266 = vmatmul.bf16.gmra.mxu0 %v2489
        %v3267 = vpop.f32.mrf.mxu0
        %v3268 = vadd.f32 %v3219, %v3267
        %v3269 = vpop.f32.mrf.mxu0
        %v3270 = vadd.f32 %v3221, %v3269
        %3271 = vdwg.mxu0
        %v3272 = vxor.u32 %v3037, 2147483648
        %v3273 = vxor.u32 %v3233, 2147483648
        %v3274 = vxor.u32 %v3039, 2147483648
        %v3275 = vxor.u32 %v3235, 2147483648
        %v3276 = vxor.u32 %v3042, 2147483648
        %v3277 = vxor.u32 %v3238, 2147483648
        %v3278 = vxor.u32 %v3044, 2147483648
        %v3279 = vxor.u32 %v3240, 2147483648
        %v3280 = vxor.u32 %v3047, 2147483648
        %v3281 = vxor.u32 %v3243, 2147483648
        %v3282 = vxor.u32 %v3049, 2147483648
        %v3283 = vxor.u32 %v3245, 2147483648
        %v3284 = vxor.u32 %v3052, 2147483648
        %v3285 = vxor.u32 %v3248, 2147483648
        %v3286 = vxor.u32 %v3054, 2147483648
        %v3287 = vxor.u32 %v3250, 2147483648
        %v3288 = vxor.u32 %v3057, 2147483648
        %v3289 = vxor.u32 %v3253, 2147483648
        %v3290 = vxor.u32 %v3059, 2147483648
        %v3291 = vxor.u32 %v3255, 2147483648
        %v3292 = vxor.u32 %v3062, 2147483648
        %v3293 = vxor.u32 %v3258, 2147483648
        %v3294 = vxor.u32 %v3064, 2147483648
        %v3295 = vxor.u32 %v3260, 2147483648
        %v3296 = vxor.u32 %v3067, 2147483648
        %v3297 = vxor.u32 %v3263, 2147483648
        %v3298 = vxor.u32 %v3069, 2147483648
        %v3299 = vxor.u32 %v3265, 2147483648
        %v3300 = vxor.u32 %v3072, 2147483648
        %v3301 = vxor.u32 %v3268, 2147483648
        %v3302 = vxor.u32 %v3074, 2147483648
        %v3303 = vxor.u32 %v3270, 2147483648
        %v3304 = vmul.f32 %v3272, 1.442695
        %v3305 = vpow.pop %v3304
        %v3306 = vmul.f32 %v3273, 1.442695
        %v3307 = vpow.pop %v3306
        %v3308 = vmul.f32 %v3274, 1.442695
        %v3309 = vpow.pop %v3308
        %v3310 = vmul.f32 %v3275, 1.442695
        %v3311 = vpow.pop %v3310
        %v3312 = vmul.f32 %v3276, 1.442695
        %v3313 = vpow.pop %v3312
        %v3314 = vmul.f32 %v3277, 1.442695
        %v3315 = vpow.pop %v3314
        %v3316 = vmul.f32 %v3278, 1.442695
        %v3317 = vpow.pop %v3316
        %v3318 = vmul.f32 %v3279, 1.442695
        %v3319 = vpow.pop %v3318
        %v3320 = vmul.f32 %v3280, 1.442695
        %v3321 = vpow.pop %v3320
        %v3322 = vmul.f32 %v3281, 1.442695
        %v3323 = vpow.pop %v3322
        %v3324 = vmul.f32 %v3282, 1.442695
        %v3325 = vpow.pop %v3324
        %v3326 = vmul.f32 %v3283, 1.442695
        %v3327 = vpow.pop %v3326
        %v3328 = vmul.f32 %v3284, 1.442695
        %v3329 = vpow.pop %v3328
        %v3330 = vmul.f32 %v3285, 1.442695
        %v3331 = vpow.pop %v3330
        %v3332 = vmul.f32 %v3286, 1.442695
        %v3333 = vpow.pop %v3332
        %v3334 = vmul.f32 %v3287, 1.442695
        %v3335 = vpow.pop %v3334
        %v3336 = vmul.f32 %v3288, 1.442695
        %v3337 = vpow.pop %v3336
        %v3338 = vmul.f32 %v3289, 1.442695
        %v3339 = vpow.pop %v3338
        %v3340 = vmul.f32 %v3290, 1.442695
        %v3341 = vpow.pop %v3340
        %v3342 = vmul.f32 %v3291, 1.442695
        %v3343 = vpow.pop %v3342
        %v3344 = vmul.f32 %v3292, 1.442695
        %v3345 = vpow.pop %v3344
        %v3346 = vmul.f32 %v3293, 1.442695
        %v3347 = vpow.pop %v3346
        %v3348 = vmul.f32 %v3294, 1.442695
        %v3349 = vpow.pop %v3348
        %v3350 = vmul.f32 %v3295, 1.442695
        %v3351 = vpow.pop %v3350
        %v3352 = vmul.f32 %v3296, 1.442695
        %v3353 = vpow.pop %v3352
        %v3354 = vmul.f32 %v3297, 1.442695
        %v3355 = vpow.pop %v3354
        %v3356 = vmul.f32 %v3298, 1.442695
        %v3357 = vpow.pop %v3356
        %v3358 = vmul.f32 %v3299, 1.442695
        %v3359 = vpow.pop %v3358
        %v3360 = vmul.f32 %v3300, 1.442695
        %v3361 = vpow.pop %v3360
        %v3362 = vmul.f32 %v3301, 1.442695
        %v3363 = vpow.pop %v3362
        %v3364 = vmul.f32 %v3302, 1.442695
        %v3365 = vpow.pop %v3364
        %v3366 = vmul.f32 %v3303, 1.442695
        %v3367 = vpow.pop %v3366
        %v3368 = vadd.f32 %v3305, 1.0
        %v3369 = vadd.f32 %v3307, 1.0
        %v3370 = vadd.f32 %v3309, 1.0
        %v3371 = vadd.f32 %v3311, 1.0
        %v3372 = vadd.f32 %v3313, 1.0
        %v3373 = vadd.f32 %v3315, 1.0
        %v3374 = vadd.f32 %v3317, 1.0
        %v3375 = vadd.f32 %v3319, 1.0
        %v3376 = vadd.f32 %v3321, 1.0
        %v3377 = vadd.f32 %v3323, 1.0
        %v3378 = vadd.f32 %v3325, 1.0
        %v3379 = vadd.f32 %v3327, 1.0
        %v3380 = vadd.f32 %v3329, 1.0
        %v3381 = vadd.f32 %v3331, 1.0
        %v3382 = vadd.f32 %v3333, 1.0
        %v3383 = vadd.f32 %v3335, 1.0
        %v3384 = vadd.f32 %v3337, 1.0
        %v3385 = vadd.f32 %v3339, 1.0
        %v3386 = vadd.f32 %v3341, 1.0
        %v3387 = vadd.f32 %v3343, 1.0
        %v3388 = vadd.f32 %v3345, 1.0
        %v3389 = vadd.f32 %v3347, 1.0
        %v3390 = vadd.f32 %v3349, 1.0
        %v3391 = vadd.f32 %v3351, 1.0
        %v3392 = vadd.f32 %v3353, 1.0
        %v3393 = vadd.f32 %v3355, 1.0
        %v3394 = vadd.f32 %v3357, 1.0
        %v3395 = vadd.f32 %v3359, 1.0
        %v3396 = vadd.f32 %v3361, 1.0
        %v3397 = vadd.f32 %v3363, 1.0
        %v3398 = vadd.f32 %v3365, 1.0
        %v3399 = vadd.f32 %v3367, 1.0
        %v3400 = vrcp.pop %v3368
        %v3401 = vmul.f32 %v3368, %v3400
        %v3402 = vsub.f32 1.0, %v3401
        %v3403 = vmul.f32 %v3400, %v3402
        %v3404 = vadd.f32 %v3400, %v3403
        %vm3405 = vweird.f32 %v3368
        %vm3406 = vweird.f32 %v3400
        %vm3407 = vmor %vm3405, %vm3406
        %v3408 = vsel %vm3407, %v3400, %v3404
        %v3409 = vand.u32 2147483647, %v3368
        %vm3410 = vcmp.eq.f32.partialorder %v3409, 8.507059e+37
        %v3411 = vand.u32 %v3368, 2147483648
        %v3412 = vor.u32 1.1754944e-38, %v3411
        %v3413 = vsel %vm3410, %v3412, %v3408
        %v3414 = vmul.f32 1.0, %v3413
        %v3415 = vrcp.pop %v3369
        %v3416 = vmul.f32 %v3369, %v3415
        %v3417 = vsub.f32 1.0, %v3416
        %v3418 = vmul.f32 %v3415, %v3417
        %v3419 = vadd.f32 %v3415, %v3418
        %vm3420 = vweird.f32 %v3369
        %vm3421 = vweird.f32 %v3415
        %vm3422 = vmor %vm3420, %vm3421
        %v3423 = vsel %vm3422, %v3415, %v3419
        %v3424 = vand.u32 2147483647, %v3369
        %vm3425 = vcmp.eq.f32.partialorder %v3424, 8.507059e+37
        %v3426 = vand.u32 %v3369, 2147483648
        %v3427 = vor.u32 1.1754944e-38, %v3426
        %v3428 = vsel %vm3425, %v3427, %v3423
        %v3429 = vmul.f32 1.0, %v3428
        %v3430 = vrcp.pop %v3370
        %v3431 = vmul.f32 %v3370, %v3430
        %v3432 = vsub.f32 1.0, %v3431
        %v3433 = vmul.f32 %v3430, %v3432
        %v3434 = vadd.f32 %v3430, %v3433
        %vm3435 = vweird.f32 %v3370
        %vm3436 = vweird.f32 %v3430
        %vm3437 = vmor %vm3435, %vm3436
        %v3438 = vsel %vm3437, %v3430, %v3434
        %v3439 = vand.u32 2147483647, %v3370
        %vm3440 = vcmp.eq.f32.partialorder %v3439, 8.507059e+37
        %v3441 = vand.u32 %v3370, 2147483648
        %v3442 = vor.u32 1.1754944e-38, %v3441
        %v3443 = vsel %vm3440, %v3442, %v3438
        %v3444 = vmul.f32 1.0, %v3443
        %v3445 = vrcp.pop %v3371
        %v3446 = vmul.f32 %v3371, %v3445
        %v3447 = vsub.f32 1.0, %v3446
        %v3448 = vmul.f32 %v3445, %v3447
        %v3449 = vadd.f32 %v3445, %v3448
        %vm3450 = vweird.f32 %v3371
        %vm3451 = vweird.f32 %v3445
        %vm3452 = vmor %vm3450, %vm3451
        %v3453 = vsel %vm3452, %v3445, %v3449
        %v3454 = vand.u32 2147483647, %v3371
        %vm3455 = vcmp.eq.f32.partialorder %v3454, 8.507059e+37
        %v3456 = vand.u32 %v3371, 2147483648
        %v3457 = vor.u32 1.1754944e-38, %v3456
        %v3458 = vsel %vm3455, %v3457, %v3453
        %v3459 = vmul.f32 1.0, %v3458
        %v3460 = vrcp.pop %v3372
        %v3461 = vmul.f32 %v3372, %v3460
        %v3462 = vsub.f32 1.0, %v3461
        %v3463 = vmul.f32 %v3460, %v3462
        %v3464 = vadd.f32 %v3460, %v3463
        %vm3465 = vweird.f32 %v3372
        %vm3466 = vweird.f32 %v3460
        %vm3467 = vmor %vm3465, %vm3466
        %v3468 = vsel %vm3467, %v3460, %v3464
        %v3469 = vand.u32 2147483647, %v3372
        %vm3470 = vcmp.eq.f32.partialorder %v3469, 8.507059e+37
        %v3471 = vand.u32 %v3372, 2147483648
        %v3472 = vor.u32 1.1754944e-38, %v3471
        %v3473 = vsel %vm3470, %v3472, %v3468
        %v3474 = vmul.f32 1.0, %v3473
        %v3475 = vrcp.pop %v3373
        %v3476 = vmul.f32 %v3373, %v3475
        %v3477 = vsub.f32 1.0, %v3476
        %v3478 = vmul.f32 %v3475, %v3477
        %v3479 = vadd.f32 %v3475, %v3478
        %vm3480 = vweird.f32 %v3373
        %vm3481 = vweird.f32 %v3475
        %vm3482 = vmor %vm3480, %vm3481
        %v3483 = vsel %vm3482, %v3475, %v3479
        %v3484 = vand.u32 2147483647, %v3373
        %vm3485 = vcmp.eq.f32.partialorder %v3484, 8.507059e+37
        %v3486 = vand.u32 %v3373, 2147483648
        %v3487 = vor.u32 1.1754944e-38, %v3486
        %v3488 = vsel %vm3485, %v3487, %v3483
        %v3489 = vmul.f32 1.0, %v3488
        %v3490 = vrcp.pop %v3374
        %v3491 = vmul.f32 %v3374, %v3490
        %v3492 = vsub.f32 1.0, %v3491
        %v3493 = vmul.f32 %v3490, %v3492
        %v3494 = vadd.f32 %v3490, %v3493
        %vm3495 = vweird.f32 %v3374
        %vm3496 = vweird.f32 %v3490
        %vm3497 = vmor %vm3495, %vm3496
        %v3498 = vsel %vm3497, %v3490, %v3494
        %v3499 = vand.u32 2147483647, %v3374
        %vm3500 = vcmp.eq.f32.partialorder %v3499, 8.507059e+37
        %v3501 = vand.u32 %v3374, 2147483648
        %v3502 = vor.u32 1.1754944e-38, %v3501
        %v3503 = vsel %vm3500, %v3502, %v3498
        %v3504 = vmul.f32 1.0, %v3503
        %v3505 = vrcp.pop %v3375
        %v3506 = vmul.f32 %v3375, %v3505
        %v3507 = vsub.f32 1.0, %v3506
        %v3508 = vmul.f32 %v3505, %v3507
        %v3509 = vadd.f32 %v3505, %v3508
        %vm3510 = vweird.f32 %v3375
        %vm3511 = vweird.f32 %v3505
        %vm3512 = vmor %vm3510, %vm3511
        %v3513 = vsel %vm3512, %v3505, %v3509
        %v3514 = vand.u32 2147483647, %v3375
        %vm3515 = vcmp.eq.f32.partialorder %v3514, 8.507059e+37
        %v3516 = vand.u32 %v3375, 2147483648
        %v3517 = vor.u32 1.1754944e-38, %v3516
        %v3518 = vsel %vm3515, %v3517, %v3513
        %v3519 = vmul.f32 1.0, %v3518
        %v3520 = vrcp.pop %v3376
        %v3521 = vmul.f32 %v3376, %v3520
        %v3522 = vsub.f32 1.0, %v3521
        %v3523 = vmul.f32 %v3520, %v3522
        %v3524 = vadd.f32 %v3520, %v3523
        %vm3525 = vweird.f32 %v3376
        %vm3526 = vweird.f32 %v3520
        %vm3527 = vmor %vm3525, %vm3526
        %v3528 = vsel %vm3527, %v3520, %v3524
        %v3529 = vand.u32 2147483647, %v3376
        %vm3530 = vcmp.eq.f32.partialorder %v3529, 8.507059e+37
        %v3531 = vand.u32 %v3376, 2147483648
        %v3532 = vor.u32 1.1754944e-38, %v3531
        %v3533 = vsel %vm3530, %v3532, %v3528
        %v3534 = vmul.f32 1.0, %v3533
        %v3535 = vrcp.pop %v3377
        %v3536 = vmul.f32 %v3377, %v3535
        %v3537 = vsub.f32 1.0, %v3536
        %v3538 = vmul.f32 %v3535, %v3537
        %v3539 = vadd.f32 %v3535, %v3538
        %vm3540 = vweird.f32 %v3377
        %vm3541 = vweird.f32 %v3535
        %vm3542 = vmor %vm3540, %vm3541
        %v3543 = vsel %vm3542, %v3535, %v3539
        %v3544 = vand.u32 2147483647, %v3377
        %vm3545 = vcmp.eq.f32.partialorder %v3544, 8.507059e+37
        %v3546 = vand.u32 %v3377, 2147483648
        %v3547 = vor.u32 1.1754944e-38, %v3546
        %v3548 = vsel %vm3545, %v3547, %v3543
        %v3549 = vmul.f32 1.0, %v3548
        %v3550 = vrcp.pop %v3378
        %v3551 = vmul.f32 %v3378, %v3550
        %v3552 = vsub.f32 1.0, %v3551
        %v3553 = vmul.f32 %v3550, %v3552
        %v3554 = vadd.f32 %v3550, %v3553
        %vm3555 = vweird.f32 %v3378
        %vm3556 = vweird.f32 %v3550
        %vm3557 = vmor %vm3555, %vm3556
        %v3558 = vsel %vm3557, %v3550, %v3554
        %v3559 = vand.u32 2147483647, %v3378
        %vm3560 = vcmp.eq.f32.partialorder %v3559, 8.507059e+37
        %v3561 = vand.u32 %v3378, 2147483648
        %v3562 = vor.u32 1.1754944e-38, %v3561
        %v3563 = vsel %vm3560, %v3562, %v3558
        %v3564 = vmul.f32 1.0, %v3563
        %v3565 = vrcp.pop %v3379
        %v3566 = vmul.f32 %v3379, %v3565
        %v3567 = vsub.f32 1.0, %v3566
        %v3568 = vmul.f32 %v3565, %v3567
        %v3569 = vadd.f32 %v3565, %v3568
        %vm3570 = vweird.f32 %v3379
        %vm3571 = vweird.f32 %v3565
        %vm3572 = vmor %vm3570, %vm3571
        %v3573 = vsel %vm3572, %v3565, %v3569
        %v3574 = vand.u32 2147483647, %v3379
        %vm3575 = vcmp.eq.f32.partialorder %v3574, 8.507059e+37
        %v3576 = vand.u32 %v3379, 2147483648
        %v3577 = vor.u32 1.1754944e-38, %v3576
        %v3578 = vsel %vm3575, %v3577, %v3573
        %v3579 = vmul.f32 1.0, %v3578
        %v3580 = vrcp.pop %v3380
        %v3581 = vmul.f32 %v3380, %v3580
        %v3582 = vsub.f32 1.0, %v3581
        %v3583 = vmul.f32 %v3580, %v3582
        %v3584 = vadd.f32 %v3580, %v3583
        %vm3585 = vweird.f32 %v3380
        %vm3586 = vweird.f32 %v3580
        %vm3587 = vmor %vm3585, %vm3586
        %v3588 = vsel %vm3587, %v3580, %v3584
        %v3589 = vand.u32 2147483647, %v3380
        %vm3590 = vcmp.eq.f32.partialorder %v3589, 8.507059e+37
        %v3591 = vand.u32 %v3380, 2147483648
        %v3592 = vor.u32 1.1754944e-38, %v3591
        %v3593 = vsel %vm3590, %v3592, %v3588
        %v3594 = vmul.f32 1.0, %v3593
        %v3595 = vrcp.pop %v3381
        %v3596 = vmul.f32 %v3381, %v3595
        %v3597 = vsub.f32 1.0, %v3596
        %v3598 = vmul.f32 %v3595, %v3597
        %v3599 = vadd.f32 %v3595, %v3598
        %vm3600 = vweird.f32 %v3381
        %vm3601 = vweird.f32 %v3595
        %vm3602 = vmor %vm3600, %vm3601
        %v3603 = vsel %vm3602, %v3595, %v3599
        %v3604 = vand.u32 2147483647, %v3381
        %vm3605 = vcmp.eq.f32.partialorder %v3604, 8.507059e+37
        %v3606 = vand.u32 %v3381, 2147483648
        %v3607 = vor.u32 1.1754944e-38, %v3606
        %v3608 = vsel %vm3605, %v3607, %v3603
        %v3609 = vmul.f32 1.0, %v3608
        %v3610 = vrcp.pop %v3382
        %v3611 = vmul.f32 %v3382, %v3610
        %v3612 = vsub.f32 1.0, %v3611
        %v3613 = vmul.f32 %v3610, %v3612
        %v3614 = vadd.f32 %v3610, %v3613
        %vm3615 = vweird.f32 %v3382
        %vm3616 = vweird.f32 %v3610
        %vm3617 = vmor %vm3615, %vm3616
        %v3618 = vsel %vm3617, %v3610, %v3614
        %v3619 = vand.u32 2147483647, %v3382
        %vm3620 = vcmp.eq.f32.partialorder %v3619, 8.507059e+37
        %v3621 = vand.u32 %v3382, 2147483648
        %v3622 = vor.u32 1.1754944e-38, %v3621
        %v3623 = vsel %vm3620, %v3622, %v3618
        %v3624 = vmul.f32 1.0, %v3623
        %v3625 = vrcp.pop %v3383
        %v3626 = vmul.f32 %v3383, %v3625
        %v3627 = vsub.f32 1.0, %v3626
        %v3628 = vmul.f32 %v3625, %v3627
        %v3629 = vadd.f32 %v3625, %v3628
        %vm3630 = vweird.f32 %v3383
        %vm3631 = vweird.f32 %v3625
        %vm3632 = vmor %vm3630, %vm3631
        %v3633 = vsel %vm3632, %v3625, %v3629
        %v3634 = vand.u32 2147483647, %v3383
        %vm3635 = vcmp.eq.f32.partialorder %v3634, 8.507059e+37
        %v3636 = vand.u32 %v3383, 2147483648
        %v3637 = vor.u32 1.1754944e-38, %v3636
        %v3638 = vsel %vm3635, %v3637, %v3633
        %v3639 = vmul.f32 1.0, %v3638
        %v3640 = vrcp.pop %v3384
        %v3641 = vmul.f32 %v3384, %v3640
        %v3642 = vsub.f32 1.0, %v3641
        %v3643 = vmul.f32 %v3640, %v3642
        %v3644 = vadd.f32 %v3640, %v3643
        %vm3645 = vweird.f32 %v3384
        %vm3646 = vweird.f32 %v3640
        %vm3647 = vmor %vm3645, %vm3646
        %v3648 = vsel %vm3647, %v3640, %v3644
        %v3649 = vand.u32 2147483647, %v3384
        %vm3650 = vcmp.eq.f32.partialorder %v3649, 8.507059e+37
        %v3651 = vand.u32 %v3384, 2147483648
        %v3652 = vor.u32 1.1754944e-38, %v3651
        %v3653 = vsel %vm3650, %v3652, %v3648
        %v3654 = vmul.f32 1.0, %v3653
        %v3655 = vrcp.pop %v3385
        %v3656 = vmul.f32 %v3385, %v3655
        %v3657 = vsub.f32 1.0, %v3656
        %v3658 = vmul.f32 %v3655, %v3657
        %v3659 = vadd.f32 %v3655, %v3658
        %vm3660 = vweird.f32 %v3385
        %vm3661 = vweird.f32 %v3655
        %vm3662 = vmor %vm3660, %vm3661
        %v3663 = vsel %vm3662, %v3655, %v3659
        %v3664 = vand.u32 2147483647, %v3385
        %vm3665 = vcmp.eq.f32.partialorder %v3664, 8.507059e+37
        %v3666 = vand.u32 %v3385, 2147483648
        %v3667 = vor.u32 1.1754944e-38, %v3666
        %v3668 = vsel %vm3665, %v3667, %v3663
        %v3669 = vmul.f32 1.0, %v3668
        %v3670 = vrcp.pop %v3386
        %v3671 = vmul.f32 %v3386, %v3670
        %v3672 = vsub.f32 1.0, %v3671
        %v3673 = vmul.f32 %v3670, %v3672
        %v3674 = vadd.f32 %v3670, %v3673
        %vm3675 = vweird.f32 %v3386
        %vm3676 = vweird.f32 %v3670
        %vm3677 = vmor %vm3675, %vm3676
        %v3678 = vsel %vm3677, %v3670, %v3674
        %v3679 = vand.u32 2147483647, %v3386
        %vm3680 = vcmp.eq.f32.partialorder %v3679, 8.507059e+37
        %v3681 = vand.u32 %v3386, 2147483648
        %v3682 = vor.u32 1.1754944e-38, %v3681
        %v3683 = vsel %vm3680, %v3682, %v3678
        %v3684 = vmul.f32 1.0, %v3683
        %v3685 = vrcp.pop %v3387
        %v3686 = vmul.f32 %v3387, %v3685
        %v3687 = vsub.f32 1.0, %v3686
        %v3688 = vmul.f32 %v3685, %v3687
        %v3689 = vadd.f32 %v3685, %v3688
        %vm3690 = vweird.f32 %v3387
        %vm3691 = vweird.f32 %v3685
        %vm3692 = vmor %vm3690, %vm3691
        %v3693 = vsel %vm3692, %v3685, %v3689
        %v3694 = vand.u32 2147483647, %v3387
        %vm3695 = vcmp.eq.f32.partialorder %v3694, 8.507059e+37
        %v3696 = vand.u32 %v3387, 2147483648
        %v3697 = vor.u32 1.1754944e-38, %v3696
        %v3698 = vsel %vm3695, %v3697, %v3693
        %v3699 = vmul.f32 1.0, %v3698
        %v3700 = vrcp.pop %v3388
        %v3701 = vmul.f32 %v3388, %v3700
        %v3702 = vsub.f32 1.0, %v3701
        %v3703 = vmul.f32 %v3700, %v3702
        %v3704 = vadd.f32 %v3700, %v3703
        %vm3705 = vweird.f32 %v3388
        %vm3706 = vweird.f32 %v3700
        %vm3707 = vmor %vm3705, %vm3706
        %v3708 = vsel %vm3707, %v3700, %v3704
        %v3709 = vand.u32 2147483647, %v3388
        %vm3710 = vcmp.eq.f32.partialorder %v3709, 8.507059e+37
        %v3711 = vand.u32 %v3388, 2147483648
        %v3712 = vor.u32 1.1754944e-38, %v3711
        %v3713 = vsel %vm3710, %v3712, %v3708
        %v3714 = vmul.f32 1.0, %v3713
        %v3715 = vrcp.pop %v3389
        %v3716 = vmul.f32 %v3389, %v3715
        %v3717 = vsub.f32 1.0, %v3716
        %v3718 = vmul.f32 %v3715, %v3717
        %v3719 = vadd.f32 %v3715, %v3718
        %vm3720 = vweird.f32 %v3389
        %vm3721 = vweird.f32 %v3715
        %vm3722 = vmor %vm3720, %vm3721
        %v3723 = vsel %vm3722, %v3715, %v3719
        %v3724 = vand.u32 2147483647, %v3389
        %vm3725 = vcmp.eq.f32.partialorder %v3724, 8.507059e+37
        %v3726 = vand.u32 %v3389, 2147483648
        %v3727 = vor.u32 1.1754944e-38, %v3726
        %v3728 = vsel %vm3725, %v3727, %v3723
        %v3729 = vmul.f32 1.0, %v3728
        %v3730 = vrcp.pop %v3390
        %v3731 = vmul.f32 %v3390, %v3730
        %v3732 = vsub.f32 1.0, %v3731
        %v3733 = vmul.f32 %v3730, %v3732
        %v3734 = vadd.f32 %v3730, %v3733
        %vm3735 = vweird.f32 %v3390
        %vm3736 = vweird.f32 %v3730
        %vm3737 = vmor %vm3735, %vm3736
        %v3738 = vsel %vm3737, %v3730, %v3734
        %v3739 = vand.u32 2147483647, %v3390
        %vm3740 = vcmp.eq.f32.partialorder %v3739, 8.507059e+37
        %v3741 = vand.u32 %v3390, 2147483648
        %v3742 = vor.u32 1.1754944e-38, %v3741
        %v3743 = vsel %vm3740, %v3742, %v3738
        %v3744 = vmul.f32 1.0, %v3743
        %v3745 = vrcp.pop %v3391
        %v3746 = vmul.f32 %v3391, %v3745
        %v3747 = vsub.f32 1.0, %v3746
        %v3748 = vmul.f32 %v3745, %v3747
        %v3749 = vadd.f32 %v3745, %v3748
        %vm3750 = vweird.f32 %v3391
        %vm3751 = vweird.f32 %v3745
        %vm3752 = vmor %vm3750, %vm3751
        %v3753 = vsel %vm3752, %v3745, %v3749
        %v3754 = vand.u32 2147483647, %v3391
        %vm3755 = vcmp.eq.f32.partialorder %v3754, 8.507059e+37
        %v3756 = vand.u32 %v3391, 2147483648
        %v3757 = vor.u32 1.1754944e-38, %v3756
        %v3758 = vsel %vm3755, %v3757, %v3753
        %v3759 = vmul.f32 1.0, %v3758
        %v3760 = vrcp.pop %v3392
        %v3761 = vmul.f32 %v3392, %v3760
        %v3762 = vsub.f32 1.0, %v3761
        %v3763 = vmul.f32 %v3760, %v3762
        %v3764 = vadd.f32 %v3760, %v3763
        %vm3765 = vweird.f32 %v3392
        %vm3766 = vweird.f32 %v3760
        %vm3767 = vmor %vm3765, %vm3766
        %v3768 = vsel %vm3767, %v3760, %v3764
        %v3769 = vand.u32 2147483647, %v3392
        %vm3770 = vcmp.eq.f32.partialorder %v3769, 8.507059e+37
        %v3771 = vand.u32 %v3392, 2147483648
        %v3772 = vor.u32 1.1754944e-38, %v3771
        %v3773 = vsel %vm3770, %v3772, %v3768
        %v3774 = vmul.f32 1.0, %v3773
        %v3775 = vrcp.pop %v3393
        %v3776 = vmul.f32 %v3393, %v3775
        %v3777 = vsub.f32 1.0, %v3776
        %v3778 = vmul.f32 %v3775, %v3777
        %v3779 = vadd.f32 %v3775, %v3778
        %vm3780 = vweird.f32 %v3393
        %vm3781 = vweird.f32 %v3775
        %vm3782 = vmor %vm3780, %vm3781
        %v3783 = vsel %vm3782, %v3775, %v3779
        %v3784 = vand.u32 2147483647, %v3393
        %vm3785 = vcmp.eq.f32.partialorder %v3784, 8.507059e+37
        %v3786 = vand.u32 %v3393, 2147483648
        %v3787 = vor.u32 1.1754944e-38, %v3786
        %v3788 = vsel %vm3785, %v3787, %v3783
        %v3789 = vmul.f32 1.0, %v3788
        %v3790 = vrcp.pop %v3394
        %v3791 = vmul.f32 %v3394, %v3790
        %v3792 = vsub.f32 1.0, %v3791
        %v3793 = vmul.f32 %v3790, %v3792
        %v3794 = vadd.f32 %v3790, %v3793
        %vm3795 = vweird.f32 %v3394
        %vm3796 = vweird.f32 %v3790
        %vm3797 = vmor %vm3795, %vm3796
        %v3798 = vsel %vm3797, %v3790, %v3794
        %v3799 = vand.u32 2147483647, %v3394
        %vm3800 = vcmp.eq.f32.partialorder %v3799, 8.507059e+37
        %v3801 = vand.u32 %v3394, 2147483648
        %v3802 = vor.u32 1.1754944e-38, %v3801
        %v3803 = vsel %vm3800, %v3802, %v3798
        %v3804 = vmul.f32 1.0, %v3803
        %v3805 = vrcp.pop %v3395
        %v3806 = vmul.f32 %v3395, %v3805
        %v3807 = vsub.f32 1.0, %v3806
        %v3808 = vmul.f32 %v3805, %v3807
        %v3809 = vadd.f32 %v3805, %v3808
        %vm3810 = vweird.f32 %v3395
        %vm3811 = vweird.f32 %v3805
        %vm3812 = vmor %vm3810, %vm3811
        %v3813 = vsel %vm3812, %v3805, %v3809
        %v3814 = vand.u32 2147483647, %v3395
        %vm3815 = vcmp.eq.f32.partialorder %v3814, 8.507059e+37
        %v3816 = vand.u32 %v3395, 2147483648
        %v3817 = vor.u32 1.1754944e-38, %v3816
        %v3818 = vsel %vm3815, %v3817, %v3813
        %v3819 = vmul.f32 1.0, %v3818
        %v3820 = vrcp.pop %v3396
        %v3821 = vmul.f32 %v3396, %v3820
        %v3822 = vsub.f32 1.0, %v3821
        %v3823 = vmul.f32 %v3820, %v3822
        %v3824 = vadd.f32 %v3820, %v3823
        %vm3825 = vweird.f32 %v3396
        %vm3826 = vweird.f32 %v3820
        %vm3827 = vmor %vm3825, %vm3826
        %v3828 = vsel %vm3827, %v3820, %v3824
        %v3829 = vand.u32 2147483647, %v3396
        %vm3830 = vcmp.eq.f32.partialorder %v3829, 8.507059e+37
        %v3831 = vand.u32 %v3396, 2147483648
        %v3832 = vor.u32 1.1754944e-38, %v3831
        %v3833 = vsel %vm3830, %v3832, %v3828
        %v3834 = vmul.f32 1.0, %v3833
        %v3835 = vrcp.pop %v3397
        %v3836 = vmul.f32 %v3397, %v3835
        %v3837 = vsub.f32 1.0, %v3836
        %v3838 = vmul.f32 %v3835, %v3837
        %v3839 = vadd.f32 %v3835, %v3838
        %vm3840 = vweird.f32 %v3397
        %vm3841 = vweird.f32 %v3835
        %vm3842 = vmor %vm3840, %vm3841
        %v3843 = vsel %vm3842, %v3835, %v3839
        %v3844 = vand.u32 2147483647, %v3397
        %vm3845 = vcmp.eq.f32.partialorder %v3844, 8.507059e+37
        %v3846 = vand.u32 %v3397, 2147483648
        %v3847 = vor.u32 1.1754944e-38, %v3846
        %v3848 = vsel %vm3845, %v3847, %v3843
        %v3849 = vmul.f32 1.0, %v3848
        %v3850 = vrcp.pop %v3398
        %v3851 = vmul.f32 %v3398, %v3850
        %v3852 = vsub.f32 1.0, %v3851
        %v3853 = vmul.f32 %v3850, %v3852
        %v3854 = vadd.f32 %v3850, %v3853
        %vm3855 = vweird.f32 %v3398
        %vm3856 = vweird.f32 %v3850
        %vm3857 = vmor %vm3855, %vm3856
        %v3858 = vsel %vm3857, %v3850, %v3854
        %v3859 = vand.u32 2147483647, %v3398
        %vm3860 = vcmp.eq.f32.partialorder %v3859, 8.507059e+37
        %v3861 = vand.u32 %v3398, 2147483648
        %v3862 = vor.u32 1.1754944e-38, %v3861
        %v3863 = vsel %vm3860, %v3862, %v3858
        %v3864 = vmul.f32 1.0, %v3863
        %v3865 = vrcp.pop %v3399
        %v3866 = vmul.f32 %v3399, %v3865
        %v3867 = vsub.f32 1.0, %v3866
        %v3868 = vmul.f32 %v3865, %v3867
        %v3869 = vadd.f32 %v3865, %v3868
        %vm3870 = vweird.f32 %v3399
        %vm3871 = vweird.f32 %v3865
        %vm3872 = vmor %vm3870, %vm3871
        %v3873 = vsel %vm3872, %v3865, %v3869
        %v3874 = vand.u32 2147483647, %v3399
        %vm3875 = vcmp.eq.f32.partialorder %v3874, 8.507059e+37
        %v3876 = vand.u32 %v3399, 2147483648
        %v3877 = vor.u32 1.1754944e-38, %v3876
        %v3878 = vsel %vm3875, %v3877, %v3873
        %v3879 = vmul.f32 1.0, %v3878
        %3880 = vst [vmem:[%s548] sm:$0xff] %v3414
        %3881 = vst [vmem:[%s548 + $0x8] sm:$0xff] %v3429
        %3882 = vst [vmem:[%s548 + $0x10] sm:$0xff] %v3444
        %3883 = vst [vmem:[%s548 + $0x18] sm:$0xff] %v3459
        %3884 = vst [vmem:[%s548 + $0x20] sm:$0xff] %v3474
        %3885 = vst [vmem:[%s548 + $0x28] sm:$0xff] %v3489
        %3886 = vst [vmem:[%s548 + $0x30] sm:$0xff] %v3504
        %3887 = vst [vmem:[%s548 + $0x38] sm:$0xff] %v3519
        %3888 = vst [vmem:[%s548 + $0x40] sm:$0xff] %v3534
        %3889 = vst [vmem:[%s548 + $0x48] sm:$0xff] %v3549
        %3890 = vst [vmem:[%s548 + $0x50] sm:$0xff] %v3564
        %3891 = vst [vmem:[%s548 + $0x58] sm:$0xff] %v3579
        %3892 = vst [vmem:[%s548 + $0x60] sm:$0xff] %v3594
        %3893 = vst [vmem:[%s548 + $0x68] sm:$0xff] %v3609
        %3894 = vst [vmem:[%s548 + $0x70] sm:$0xff] %v3624
        %3895 = vst [vmem:[%s548 + $0x78] sm:$0xff] %v3639
        %3896 = vst [vmem:[%s548 + $0x80] sm:$0xff] %v3654
        %3897 = vst [vmem:[%s548 + $0x88] sm:$0xff] %v3669
        %3898 = vst [vmem:[%s548 + $0x90] sm:$0xff] %v3684
        %3899 = vst [vmem:[%s548 + $0x98] sm:$0xff] %v3699
        %3900 = vst [vmem:[%s548 + $0xa0] sm:$0xff] %v3714
        %3901 = vst [vmem:[%s548 + $0xa8] sm:$0xff] %v3729
        %3902 = vst [vmem:[%s548 + $0xb0] sm:$0xff] %v3744
        %3903 = vst [vmem:[%s548 + $0xb8] sm:$0xff] %v3759
        %3904 = vst [vmem:[%s548 + $0xc0] sm:$0xff] %v3774
        %3905 = vst [vmem:[%s548 + $0xc8] sm:$0xff] %v3789
        %3906 = vst [vmem:[%s548 + $0xd0] sm:$0xff] %v3804
        %3907 = vst [vmem:[%s548 + $0xd8] sm:$0xff] %v3819
        %3908 = vst [vmem:[%s548 + $0xe0] sm:$0xff] %v3834
        %3909 = vst [vmem:[%s548 + $0xe8] sm:$0xff] %v3849
        %3910 = vst [vmem:[%s548 + $0xf0] sm:$0xff] %v3864
        %3911 = vst [vmem:[%s548 + $0xf8] sm:$0xff] %v3879
        %3912 = vst [vmem:[%s555] sm:$0xff] %v1908
        %3913 = vst [vmem:[%s555 + $0x8] sm:$0xff] %v1910
        %3914 = vst [vmem:[%s555 + $0x10] sm:$0xff] %v1913
        %3915 = vst [vmem:[%s555 + $0x18] sm:$0xff] %v1915
        %3916 = vst [vmem:[%s555 + $0x20] sm:$0xff] %v1918
        %3917 = vst [vmem:[%s555 + $0x28] sm:$0xff] %v1920
        %3918 = vst [vmem:[%s555 + $0x30] sm:$0xff] %v1923
        %3919 = vst [vmem:[%s555 + $0x38] sm:$0xff] %v1925
        %3920 = vst [vmem:[%s555 + $0x40] sm:$0xff] %v1928
        %3921 = vst [vmem:[%s555 + $0x48] sm:$0xff] %v1930
        %3922 = vst [vmem:[%s555 + $0x50] sm:$0xff] %v1933
        %3923 = vst [vmem:[%s555 + $0x58] sm:$0xff] %v1935
        %3924 = vst [vmem:[%s555 + $0x60] sm:$0xff] %v1938
        %3925 = vst [vmem:[%s555 + $0x68] sm:$0xff] %v1940
        %3926 = vst [vmem:[%s555 + $0x70] sm:$0xff] %v1943
        %3927 = vst [vmem:[%s555 + $0x78] sm:$0xff] %v1945
        %s3928 = sand.u32 %s266, 1
        %s3929 = scalar_lea.sflag [#allocation4], %s3928
        %s3930 = sand.u32 %s266, 1
        %s3931 = smul.addr %s3930, 256
        %s3932 = scalar_lea.vmem [#allocation16], %s3931
        %s3933 = sand.u32 %s292, 1
        %s3934 = scalar_lea.sflag [#allocation18], %s3933
        %s3935 = sand.u32 %s292, 1
        %s3936 = smul.addr %s3935, 128
        %s3937 = scalar_lea.vmem [#allocation17], %s3936
        // Predicated region
        $region93: #{tpu_custom_call.1} parent=59 // pred_check
          %p3938 = pneg %p276
        $region94: #{tpu_custom_call.1} parent=59 // pred_check_branch
          %3940 = sbr.rel (%p3938) target = $region96
        $region95: #{tpu_custom_call.1} parent=59 // pred_region
          %s3941 = smul.u32 16, %s38
          %3943 = vsyncadd %s3929, 0
          %s3944 = smul.addr %s3941, 2
          %s3945 = smul.addr %s3944, 8
          %s3946 = scalar_lea.hbm %s10, %s3945
          %s3947 = sshll.u32 %s3932, 4
          %s3948 = int_to_ptr.vmem [resolvable:$true] %s3947
          %s3949 = sshll.u32 %s3946, 4
          %s3950 = int_to_ptr.hbm [resolvable:$true] %s3949
          %3955 = dma.vmem_to_hbm [thread:$0]  %s3948, 4096, %s3950, %s3929, 256, 256, 16
        $region96: #{tpu_custom_call.1} parent=59 // pred_fallthru
          _
        // Predicated region
        $region97: #{tpu_custom_call.1} parent=59 // pred_check
          %p3956 = pneg %p302
        $region98: #{tpu_custom_call.1} parent=59 // pred_check_branch
          %3958 = sbr.rel (%p3956) target = $region100
        $region99: #{tpu_custom_call.1} parent=59 // pred_region
          %s3959 = smul.u32 16, %s38
          %3961 = vsyncadd %s3934, 0
          %s3962 = smul.addr %s3959, 8
          %s3963 = scalar_lea.hbm %s11, %s3962
          %s3964 = sshll.u32 %s3937, 4
          %s3965 = int_to_ptr.vmem [resolvable:$true] %s3964
          %s3966 = sshll.u32 %s3963, 4
          %s3967 = int_to_ptr.hbm [resolvable:$true] %s3966
          %3972 = dma.vmem_to_hbm [thread:$0]  %s3965, 2048, %s3967, %s3934, 128, 128, 8
        $region100: #{tpu_custom_call.1} parent=59 // pred_fallthru
          _
      $region60: #{tpu_custom_call.1} parent=5 // pred_fallthru
        _
      %p3973 = scmp.le.s32.totalorder 2, %s33
      // Predicated region
      $region101: #{tpu_custom_call.1} parent=5 // pred_check
        %p3974 = pneg %p3973
      $region102: #{tpu_custom_call.1} parent=5 // pred_check_branch
        %3976 = sbr.rel (%p3974) target = $region104
      $region103: #{tpu_custom_call.1} parent=5 // pred_region
        %s3977 = ssub.s32 %s33, 2
        // Predicated region
        $region105: #{tpu_custom_call.1} parent=103 // pred_check
          %p3978 = pneg %p282
        $region106: #{tpu_custom_call.1} parent=103 // pred_check_branch
          %3980 = sbr.rel (%p3978) target = $region108
        $region107: #{tpu_custom_call.1} parent=103 // pred_region
          %s3981 = sand.u32 %s267, 1
          %s3982 = scalar_lea.sflag [#allocation4], %s3981
          %s3983 = sand.u32 %s267, 1
          %s3984 = smul.addr %s3983, 256
          %s3985 = scalar_lea.vmem [#allocation16], %s3984
          %3987 = dma.done %s3982, 4096
        $region108: #{tpu_custom_call.1} parent=103 // pred_fallthru
          _
        // Predicated region
        $region109: #{tpu_custom_call.1} parent=103 // pred_check
          %p3988 = pneg %p308
        $region110: #{tpu_custom_call.1} parent=103 // pred_check_branch
          %3990 = sbr.rel (%p3988) target = $region112
        $region111: #{tpu_custom_call.1} parent=103 // pred_region
          %s3991 = sand.u32 %s293, 1
          %s3992 = scalar_lea.sflag [#allocation18], %s3991
          %s3993 = sand.u32 %s293, 1
          %s3994 = smul.addr %s3993, 128
          %s3995 = scalar_lea.vmem [#allocation17], %s3994
          %3997 = dma.done %s3992, 2048
        $region112: #{tpu_custom_call.1} parent=103 // pred_fallthru
          _
      $region104: #{tpu_custom_call.1} parent=5 // pred_fallthru
        _
    $region6: #{tpu_custom_call.1} parent=1 // loop_footer
      %s37 = sadd.s32 1, %s33
    $region7: #{tpu_custom_call.1} parent=1 // loop_footer_branch
      %32 = sbr.rel target = $region3
    $region8: #{tpu_custom_call.1} parent=1 // loop_exit
      _
    %3998 = vsyncpa [#allocation3], 1
    %s3999 = scalar_lea.sflag [#allocation3], 1
    %4000 = vsyncpa %s3999, 1
    %4001 = vsyncpa [#allocation6], 1
    %s4002 = scalar_lea.sflag [#allocation6], 1
    %4003 = vsyncpa %s4002, 1
    %4004 = vsyncpa [#allocation9], 1
    %4005 = vsyncpa [#allocation12], 1
    %4006 = vsyncpa [#allocation15], 1
    %4007 = vsyncpa [#allocation4], 1
    %s4008 = scalar_lea.sflag [#allocation4], 1
    %4009 = vsyncpa %s4008, 1
    %4010 = vsyncpa [#allocation18], 1
    %s4011 = scalar_lea.sflag [#allocation18], 1
    %4012 = vsyncpa %s4011, 1

</llo_original>
